<compile_context>
chip_gen: v5e
topology: v5e:2x2
jax: 0.10.0
libtpu: 0.0.40
codegen_flags: <defaults>
</compile_context>

<pallas_src>
import jax
import jax.numpy as jnp
from jax.experimental import pallas as pl
from jax.experimental.pallas import tpu as pltpu


# ---------------------------------------------------------------------------
# Kernel
# ---------------------------------------------------------------------------
def _mlp_head_kernel(x_ref, w0_ref, b0_ref, w1_ref, b1_ref, w2_ref, b2_ref,
                     o_ref, h_ref):
    """Fused 3-layer MLP.

    Grid = (batch tiles i, output-column tiles j).  Layers 0 and 1 run once
    per batch tile (at j == 0) and the bf16 activation is cached in the VMEM
    scratch h_ref; the final Linear is tiled over output columns j.
    """
    j = pl.program_id(1)

    @pl.when(j == 0)
    def _():
        # layer 0: Linear(input -> hidden) + ReLU  (bf16 in, f32 accumulate)
        h = jnp.dot(x_ref[...], w0_ref[...], preferred_element_type=jnp.float32)
        h = jnp.maximum(h + b0_ref[...], 0.0)
        # layer 1: Linear(hidden -> hidden) + ReLU
        h = jnp.dot(h.astype(w1_ref.dtype), w1_ref[...],
                    preferred_element_type=jnp.float32)
        h = jnp.maximum(h + b1_ref[...], 0.0)
        h_ref[...] = h.astype(h_ref.dtype)

    # layer 2: Linear(hidden -> output), no activation (column tile j)
    out = jnp.dot(h_ref[...], w2_ref[...], preferred_element_type=jnp.float32)
    o_ref[...] = (out + b2_ref[...]).astype(o_ref.dtype)


# ---------------------------------------------------------------------------
# Helpers
# ---------------------------------------------------------------------------
def _round_up(v, m):
    return (v + m - 1) // m * m


def _pad2d(a, rows, cols):
    r, c = a.shape
    if r == rows and c == cols:
        return a
    return jnp.pad(a, ((0, rows - r), (0, cols - c)))


def _pick_tile_b(b_pad, cap=256):
    """Batch tile: multiple of 16, <= cap, prefer >= 2 grid steps (megacore)."""
    for t in (256, 128, 64, 32, 16):
        if t <= cap and b_pad % t == 0 and b_pad // t >= 2:
            return t
    return b_pad  # tiny batch: single grid step over the whole (padded) batch


def _pick_tile_n(d_out_p, cap=1024):
    """Output-column tile: lane-dense multiple of 128, ~512-1024 wide."""
    if d_out_p <= cap:
        return d_out_p
    for t in (1024, 512, 256, 128):
        if d_out_p % t == 0 and d_out_p // t >= 2:
            return t
    return d_out_p


# ---------------------------------------------------------------------------
# Wrapper
# ---------------------------------------------------------------------------
def vlm_head_forward(x, params):
    """Fused forward of VLMHeadModel (n_hidden_layers=2, dropout=0.0).

    x: (B, input_size) float32 (or bf16)
    params: w0 (in,hid) bf16, b0 (1,hid) f32, w1 (hid,hid) bf16, b1 (1,hid) f32,
            w2 (hid,out) bf16, b2 (1,out) f32  -- weights stored as (in, out),
            i.e. already transposed relative to nn.Linear's (out, in).
    """
    B, d_in = x.shape
    d_hid = params["w0"].shape[1]
    d_out = params["w2"].shape[1]

    # Pad features to multiples of 128 (lane-dense), batch to multiple of 16
    # (bf16 sublane tile).  Zero padding is exact: padded input cols multiply
    # zero weight rows; padded hidden cols get zero weight/bias -> relu(0)=0.
    d_in_p = _round_up(d_in, 128)
    d_hid_p = _round_up(d_hid, 128)
    d_out_p = _round_up(d_out, 128)
    b_pad = _round_up(B, 16)

    tile_b = _pick_tile_b(b_pad)
    tile_n = _pick_tile_n(d_out_p)
    n_i = b_pad // tile_b
    n_j = d_out_p // tile_n

    wdt = jnp.bfloat16
    x_p = _pad2d(x, b_pad, d_in_p).astype(wdt)
    w0 = _pad2d(params["w0"].astype(wdt), d_in_p, d_hid_p)
    w1 = _pad2d(params["w1"].astype(wdt), d_hid_p, d_hid_p)
    w2 = _pad2d(params["w2"].astype(wdt), d_hid_p, d_out_p)
    b0 = _pad2d(params["b0"].astype(jnp.float32), 1, d_hid_p)
    b1 = _pad2d(params["b1"].astype(jnp.float32), 1, d_hid_p)
    b2 = _pad2d(params["b2"].astype(jnp.float32), 1, d_out_p)

    flops = 2 * b_pad * (d_in_p * d_hid_p + d_hid_p * d_hid_p
                         + d_hid_p * d_out_p)
    bytes_accessed = ((x_p.size + w0.size + w1.size + w2.size) * 2
                      + (b0.size + b1.size + b2.size) * 4
                      + b_pad * d_out_p * 4)
    cost = pl.CostEstimate(flops=flops, transcendentals=0,
                           bytes_accessed=bytes_accessed)

    # Rough VMEM need (worst case: everything double-buffered) + headroom,
    # kept under v7x's 64 MiB physical VMEM.
    need = (2 * ((w0.size + w1.size) * 2 + (b0.size + b1.size) * 4)
            + 2 * (d_hid_p * tile_n * 2 + tile_n * 4)
            + 2 * (tile_b * d_in_p * 2 + tile_b * tile_n * 4)
            + tile_b * d_hid_p * 2)
    vmem_limit = int(min(max(need + (16 << 20), 32 << 20), 56 << 20))

    def run(single_buffer_weights):
        # Single-buffer the operands whose block index never changes.
        const = ({"pipeline_mode": pl.Buffered(1)}
                 if single_buffer_weights else {})
        grid_spec = pltpu.PrefetchScalarGridSpec(
            num_scalar_prefetch=0,
            grid=(n_i, n_j),
            in_specs=[
                pl.BlockSpec((tile_b, d_in_p), lambda i, j: (i, 0)),          # x
                pl.BlockSpec((d_in_p, d_hid_p), lambda i, j: (0, 0), **const),  # w0
                pl.BlockSpec((1, d_hid_p), lambda i, j: (0, 0), **const),       # b0
                pl.BlockSpec((d_hid_p, d_hid_p), lambda i, j: (0, 0), **const), # w1
                pl.BlockSpec((1, d_hid_p), lambda i, j: (0, 0), **const),       # b1
                pl.BlockSpec((d_hid_p, tile_n), lambda i, j: (0, j)),         # w2
                pl.BlockSpec((1, tile_n), lambda i, j: (0, j)),               # b2
            ],
            out_specs=pl.BlockSpec((tile_b, tile_n), lambda i, j: (i, j)),
            scratch_shapes=[pltpu.VMEM((tile_b, d_hid_p), wdt)],
        )
        fn = pl.pallas_call(
            _mlp_head_kernel,
            out_shape=jax.ShapeDtypeStruct((b_pad, d_out_p), jnp.float32),
            grid_spec=grid_spec,
            compiler_params=pltpu.CompilerParams(
                dimension_semantics=("parallel", "arbitrary"),
                vmem_limit_bytes=vmem_limit),
            cost_estimate=cost,
        )
        out = fn(x_p, w0, b0, w1, b1, w2, b2)
        return jax.block_until_ready(out)

    try:
        out_p = run(single_buffer_weights=True)
    except Exception:
        # Fallback if this Pallas version rejects Buffered(1) single-buffering.
        out_p = run(single_buffer_weights=False)

    return out_p[:B, :d_out]


# ---------------------------------------------------------------------------
# Init + reference
# ---------------------------------------------------------------------------
def init_params(key, input_size, hidden_size, output_size):
    """Mirror nn.Linear init U(-1/sqrt(fan_in), 1/sqrt(fan_in)); bf16 weights,
    f32 biases; weights stored pre-transposed as (fan_in, fan_out)."""
    ks = jax.random.split(key, 6)

    def linear(kw, kb, fan_in, fan_out):
        bound = 1.0 / jnp.sqrt(jnp.float32(fan_in))
        w = jax.random.uniform(kw, (fan_in, fan_out), jnp.float32,
                               -bound, bound).astype(jnp.bfloat16)
        b = jax.random.uniform(kb, (1, fan_out), jnp.float32, -bound, bound)
        return w, b

    w0, b0 = linear(ks[0], ks[1], input_size, hidden_size)
    w1, b1 = linear(ks[2], ks[3], hidden_size, hidden_size)
    w2, b2 = linear(ks[4], ks[5], hidden_size, output_size)
    return dict(w0=w0, b0=b0, w1=w1, b1=b1, w2=w2, b2=b2)


def reference_forward(x, p):
    """Pure-JAX reference with the same bf16-operand / f32-accumulate numerics."""
    wdt = p["w0"].dtype
    h = jnp.dot(x.astype(wdt), p["w0"], preferred_element_type=jnp.float32)
    h = jnp.maximum(h + p["b0"], 0.0)
    h = jnp.dot(h.astype(wdt), p["w1"], preferred_element_type=jnp.float32)
    h = jnp.maximum(h + p["b1"], 0.0)
    out = jnp.dot(h.astype(wdt), p["w2"], preferred_element_type=jnp.float32)
    return out + p["b2"]


# ---------------------------------------------------------------------------
# Test
# ---------------------------------------------------------------------------
if __name__ == "__main__":
    key = jax.random.PRNGKey(0)

    configs = [
        # (batch, input, hidden, output) -- small shapes consistent with the
        # module (defaults scaled down / varied to exercise all code paths).
        (64, 512, 512, 512),    # default-like dims, 2 batch tiles (megacore)
        (32, 256, 256, 2048),   # wide head -> output-column tiling (n_j > 1)
        (10, 96, 192, 200),     # ragged batch + non-128-multiple features
    ]

    ok = True
    for (batch, d_in, d_hid, d_out) in configs:
        key, kx, kp = jax.random.split(key, 3)
        x = jax.random.normal(kx, (batch, d_in), jnp.float32)
        params = init_params(kp, d_in, d_hid, d_out)

        out = vlm_head_forward(x, params)
        out = jax.block_until_ready(out)
        ref = reference_forward(x, params)

        if out.shape != (batch, d_out):
            ok = False
            print("shape mismatch", out.shape, (batch, d_out))
        if not jnp.allclose(out, ref, atol=2e-2, rtol=2e-2):
            ok = False
            print("value mismatch, max abs err:",
                  float(jnp.max(jnp.abs(out - ref))))

    assert ok, "kernel output mismatch vs reference"
    print("KERNEL_OK")
</pallas_src>

<mosaic_0001>
module attributes {stable_mosaic.version = 11 : i64} {
  func.func @_mlp_head_kernel(%arg0: i32, %arg1: i32, %arg2: memref<32x512xbf16, #tpu.memory_space<vmem>>, %arg3: memref<512x512xbf16, #tpu.memory_space<vmem>>, %arg4: memref<1x512xf32, #tpu.memory_space<vmem>>, %arg5: memref<512x512xbf16, #tpu.memory_space<vmem>>, %arg6: memref<1x512xf32, #tpu.memory_space<vmem>>, %arg7: memref<512x512xbf16, #tpu.memory_space<vmem>>, %arg8: memref<1x512xf32, #tpu.memory_space<vmem>>, %arg9: memref<32x512xf32, #tpu.memory_space<vmem>>, %arg10: memref<32x512xbf16, #tpu.memory_space<vmem>>) attributes {dimension_semantics = [#tpu.dimension_semantics<parallel>, #tpu.dimension_semantics<arbitrary>], iteration_bounds = array<i64: 2, 1>, scalar_prefetch = 0 : i64, scratch_operands = 1 : i64, tpu.core_type = #tpu.core_type<tc>, window_params = [{transform_indices = @transform_0, window_bounds = array<i64: 32, 512>}, {pipeline_mode = #tpu.pipeline_mode<synchronous>, transform_indices = @transform_1, window_bounds = array<i64: 512, 512>}, {pipeline_mode = #tpu.pipeline_mode<synchronous>, transform_indices = @transform_2, window_bounds = array<i64: 1, 512>}, {pipeline_mode = #tpu.pipeline_mode<synchronous>, transform_indices = @transform_3, window_bounds = array<i64: 512, 512>}, {pipeline_mode = #tpu.pipeline_mode<synchronous>, transform_indices = @transform_4, window_bounds = array<i64: 1, 512>}, {transform_indices = @transform_5, window_bounds = array<i64: 512, 512>}, {transform_indices = @transform_6, window_bounds = array<i64: 1, 512>}, {transform_indices = @transform_7, window_bounds = array<i64: 32, 512>}]} {
    %c0_i32 = arith.constant 0 : i32
    %0 = arith.cmpi eq, %arg1, %c0_i32 : i32
    %1 = arith.extui %0 : i1 to i32
    %c0_i32_0 = arith.constant 0 : i32
    %2 = arith.cmpi ne, %1, %c0_i32_0 : i32
    scf.if %2 {
      %c0_8 = arith.constant 0 : index
      %c0_9 = arith.constant 0 : index
      %10 = vector.load %arg2[%c0_8, %c0_9] : memref<32x512xbf16, #tpu.memory_space<vmem>>, vector<32x512xbf16>
      %c0_10 = arith.constant 0 : index
      %c0_11 = arith.constant 0 : index
      %11 = vector.load %arg3[%c0_10, %c0_11] : memref<512x512xbf16, #tpu.memory_space<vmem>>, vector<512x512xbf16>
      %cst_12 = arith.constant dense<0.000000e+00> : vector<32x512xf32>
      %12 = tpu.matmul %10, %11, %cst_12 {dimension_numbers = #tpu.dot_dimension_numbers<[1], [0], [0], [1], [0, 0, 1, 1], [], []>} : vector<32x512xbf16>, vector<512x512xbf16>, vector<32x512xf32> -> vector<32x512xf32>
      %c0_13 = arith.constant 0 : index
      %c0_14 = arith.constant 0 : index
      %13 = vector.load %arg4[%c0_13, %c0_14] : memref<1x512xf32, #tpu.memory_space<vmem>>, vector<1x512xf32>
      %14 = vector.broadcast %13 : vector<1x512xf32> to vector<32x512xf32>
      %15 = arith.addf %12, %14 : vector<32x512xf32>
      %cst_15 = arith.constant 0.000000e+00 : f32
      %16 = vector.broadcast %cst_15 : f32 to vector<32x512xf32>
      %17 = arith.maximumf %15, %16 : vector<32x512xf32>
      %18 = arith.truncf %17 : vector<32x512xf32> to vector<32x512xbf16>
      %c0_16 = arith.constant 0 : index
      %c0_17 = arith.constant 0 : index
      %19 = vector.load %arg5[%c0_16, %c0_17] : memref<512x512xbf16, #tpu.memory_space<vmem>>, vector<512x512xbf16>
      %cst_18 = arith.constant dense<0.000000e+00> : vector<32x512xf32>
      %20 = tpu.matmul %18, %19, %cst_18 {dimension_numbers = #tpu.dot_dimension_numbers<[1], [0], [0], [1], [0, 0, 1, 1], [], []>} : vector<32x512xbf16>, vector<512x512xbf16>, vector<32x512xf32> -> vector<32x512xf32>
      %c0_19 = arith.constant 0 : index
      %c0_20 = arith.constant 0 : index
      %21 = vector.load %arg6[%c0_19, %c0_20] : memref<1x512xf32, #tpu.memory_space<vmem>>, vector<1x512xf32>
      %22 = vector.broadcast %21 : vector<1x512xf32> to vector<32x512xf32>
      %23 = arith.addf %20, %22 : vector<32x512xf32>
      %cst_21 = arith.constant 0.000000e+00 : f32
      %24 = vector.broadcast %cst_21 : f32 to vector<32x512xf32>
      %25 = arith.maximumf %23, %24 : vector<32x512xf32>
      %26 = arith.truncf %25 : vector<32x512xf32> to vector<32x512xbf16>
      %c0_22 = arith.constant 0 : index
      %c0_23 = arith.constant 0 : index
      %27 = vector.load %arg10[%c0_22, %c0_23] : memref<32x512xbf16, #tpu.memory_space<vmem>>, vector<32x512xbf16>
      tpu.vector_store %arg10[%c0_22, %c0_23], %26 {strides = array<i32>} : memref<32x512xbf16, #tpu.memory_space<vmem>>, vector<32x512xbf16>,
    } else {
    }
    %c0 = arith.constant 0 : index
    %c0_1 = arith.constant 0 : index
    %3 = vector.load %arg10[%c0, %c0_1] : memref<32x512xbf16, #tpu.memory_space<vmem>>, vector<32x512xbf16>
    %c0_2 = arith.constant 0 : index
    %c0_3 = arith.constant 0 : index
    %4 = vector.load %arg7[%c0_2, %c0_3] : memref<512x512xbf16, #tpu.memory_space<vmem>>, vector<512x512xbf16>
    %cst = arith.constant dense<0.000000e+00> : vector<32x512xf32>
    %5 = tpu.matmul %3, %4, %cst {dimension_numbers = #tpu.dot_dimension_numbers<[1], [0], [0], [1], [0, 0, 1, 1], [], []>} : vector<32x512xbf16>, vector<512x512xbf16>, vector<32x512xf32> -> vector<32x512xf32>
    %c0_4 = arith.constant 0 : index
    %c0_5 = arith.constant 0 : index
    %6 = vector.load %arg8[%c0_4, %c0_5] : memref<1x512xf32, #tpu.memory_space<vmem>>, vector<1x512xf32>
    %7 = vector.broadcast %6 : vector<1x512xf32> to vector<32x512xf32>
    %8 = arith.addf %5, %7 : vector<32x512xf32>
    %c0_6 = arith.constant 0 : index
    %c0_7 = arith.constant 0 : index
    %9 = vector.load %arg9[%c0_6, %c0_7] : memref<32x512xf32, #tpu.memory_space<vmem>>, vector<32x512xf32>
    tpu.vector_store %arg9[%c0_6, %c0_7], %8 {strides = array<i32>} : memref<32x512xf32, #tpu.memory_space<vmem>>, vector<32x512xf32>,
    return
  }
  func.func @transform_0(%arg0: i32, %arg1: i32) -> (i32, i32) {
    %c0_i32 = arith.constant 0 : i32
    %c0_i32_0 = arith.constant 0 : i32
    return %arg0, %c0_i32 : i32, i32
  }
  func.func @transform_1(%arg0: i32, %arg1: i32) -> (i32, i32) {
    %c0_i32 = arith.constant 0 : i32
    %c0_i32_0 = arith.constant 0 : i32
    %c0_i32_1 = arith.constant 0 : i32
    return %c0_i32, %c0_i32_0 : i32, i32
  }
  func.func @transform_2(%arg0: i32, %arg1: i32) -> (i32, i32) {
    %c0_i32 = arith.constant 0 : i32
    %c0_i32_0 = arith.constant 0 : i32
    %c0_i32_1 = arith.constant 0 : i32
    return %c0_i32, %c0_i32_0 : i32, i32
  }
  func.func @transform_3(%arg0: i32, %arg1: i32) -> (i32, i32) {
    %c0_i32 = arith.constant 0 : i32
    %c0_i32_0 = arith.constant 0 : i32
    %c0_i32_1 = arith.constant 0 : i32
    return %c0_i32, %c0_i32_0 : i32, i32
  }
  func.func @transform_4(%arg0: i32, %arg1: i32) -> (i32, i32) {
    %c0_i32 = arith.constant 0 : i32
    %c0_i32_0 = arith.constant 0 : i32
    %c0_i32_1 = arith.constant 0 : i32
    return %c0_i32, %c0_i32_0 : i32, i32
  }
  func.func @transform_5(%arg0: i32, %arg1: i32) -> (i32, i32) {
    %c0_i32 = arith.constant 0 : i32
    %c0_i32_0 = arith.constant 0 : i32
    return %c0_i32, %arg1 : i32, i32
  }
  func.func @transform_6(%arg0: i32, %arg1: i32) -> (i32, i32) {
    %c0_i32 = arith.constant 0 : i32
    %c0_i32_0 = arith.constant 0 : i32
    return %c0_i32, %arg1 : i32, i32
  }
  func.func @transform_7(%arg0: i32, %arg1: i32) -> (i32, i32) {
    %c0_i32 = arith.constant 0 : i32
    return %arg0, %arg1 : i32, i32
  }
}

module attributes {stable_mosaic.version = 11 : i64} {
  func.func @_mlp_head_kernel(%arg0: i32, %arg1: i32, %arg2: memref<32x512xbf16, #tpu.memory_space<vmem>>, %arg3: memref<512x512xbf16, #tpu.memory_space<vmem>>, %arg4: memref<1x512xf32, #tpu.memory_space<vmem>>, %arg5: memref<512x512xbf16, #tpu.memory_space<vmem>>, %arg6: memref<1x512xf32, #tpu.memory_space<vmem>>, %arg7: memref<512x512xbf16, #tpu.memory_space<vmem>>, %arg8: memref<1x512xf32, #tpu.memory_space<vmem>>, %arg9: memref<32x512xf32, #tpu.memory_space<vmem>>, %arg10: memref<32x512xbf16, #tpu.memory_space<vmem>>) attributes {dimension_semantics = [#tpu.dimension_semantics<parallel>, #tpu.dimension_semantics<arbitrary>], iteration_bounds = array<i64: 2, 1>, scalar_prefetch = 0 : i64, scratch_operands = 1 : i64, tpu.core_type = #tpu.core_type<tc>, window_params = [{transform_indices = @transform_0, window_bounds = array<i64: 32, 512>}, {pipeline_mode = #tpu.pipeline_mode<synchronous>, transform_indices = @transform_1, window_bounds = array<i64: 512, 512>}, {pipeline_mode = #tpu.pipeline_mode<synchronous>, transform_indices = @transform_2, window_bounds = array<i64: 1, 512>}, {pipeline_mode = #tpu.pipeline_mode<synchronous>, transform_indices = @transform_3, window_bounds = array<i64: 512, 512>}, {pipeline_mode = #tpu.pipeline_mode<synchronous>, transform_indices = @transform_4, window_bounds = array<i64: 1, 512>}, {transform_indices = @transform_5, window_bounds = array<i64: 512, 512>}, {transform_indices = @transform_6, window_bounds = array<i64: 1, 512>}, {transform_indices = @transform_7, window_bounds = array<i64: 32, 512>}]} {
    %c0_i32 = arith.constant 0 : i32
    %0 = arith.cmpi eq, %arg1, %c0_i32 : i32
    %1 = arith.extui %0 : i1 to i32
    %c0_i32_0 = arith.constant 0 : i32
    %2 = arith.cmpi ne, %1, %c0_i32_0 : i32
    scf.if %2 {
      %c0_8 = arith.constant 0 : index
      %c0_9 = arith.constant 0 : index
      %10 = vector.load %arg2[%c0_8, %c0_9] : memref<32x512xbf16, #tpu.memory_space<vmem>>, vector<32x512xbf16>
      %c0_10 = arith.constant 0 : index
      %c0_11 = arith.constant 0 : index
      %11 = vector.load %arg3[%c0_10, %c0_11] : memref<512x512xbf16, #tpu.memory_space<vmem>>, vector<512x512xbf16>
      %cst_12 = arith.constant dense<0.000000e+00> : vector<32x512xf32>
      %12 = tpu.matmul %10, %11, %cst_12 {dimension_numbers = #tpu.dot_dimension_numbers<[1], [0], [0], [1], [0, 0, 1, 1], [], []>} : vector<32x512xbf16>, vector<512x512xbf16>, vector<32x512xf32> -> vector<32x512xf32>
      %c0_13 = arith.constant 0 : index
      %c0_14 = arith.constant 0 : index
      %13 = vector.load %arg4[%c0_13, %c0_14] : memref<1x512xf32, #tpu.memory_space<vmem>>, vector<1x512xf32>
      %14 = vector.broadcast %13 : vector<1x512xf32> to vector<32x512xf32>
      %15 = arith.addf %12, %14 : vector<32x512xf32>
      %cst_15 = arith.constant 0.000000e+00 : f32
      %16 = vector.broadcast %cst_15 : f32 to vector<32x512xf32>
      %17 = arith.maximumf %15, %16 : vector<32x512xf32>
      %18 = arith.truncf %17 : vector<32x512xf32> to vector<32x512xbf16>
      %c0_16 = arith.constant 0 : index
      %c0_17 = arith.constant 0 : index
      %19 = vector.load %arg5[%c0_16, %c0_17] : memref<512x512xbf16, #tpu.memory_space<vmem>>, vector<512x512xbf16>
      %cst_18 = arith.constant dense<0.000000e+00> : vector<32x512xf32>
      %20 = tpu.matmul %18, %19, %cst_18 {dimension_numbers = #tpu.dot_dimension_numbers<[1], [0], [0], [1], [0, 0, 1, 1], [], []>} : vector<32x512xbf16>, vector<512x512xbf16>, vector<32x512xf32> -> vector<32x512xf32>
      %c0_19 = arith.constant 0 : index
      %c0_20 = arith.constant 0 : index
      %21 = vector.load %arg6[%c0_19, %c0_20] : memref<1x512xf32, #tpu.memory_space<vmem>>, vector<1x512xf32>
      %22 = vector.broadcast %21 : vector<1x512xf32> to vector<32x512xf32>
      %23 = arith.addf %20, %22 : vector<32x512xf32>
      %cst_21 = arith.constant 0.000000e+00 : f32
      %24 = vector.broadcast %cst_21 : f32 to vector<32x512xf32>
      %25 = arith.maximumf %23, %24 : vector<32x512xf32>
      %26 = arith.truncf %25 : vector<32x512xf32> to vector<32x512xbf16>
      %c0_22 = arith.constant 0 : index
      %c0_23 = arith.constant 0 : index
      %27 = vector.load %arg10[%c0_22, %c0_23] : memref<32x512xbf16, #tpu.memory_space<vmem>>, vector<32x512xbf16>
      tpu.vector_store %arg10[%c0_22, %c0_23], %26 {strides = array<i32>} : memref<32x512xbf16, #tpu.memory_space<vmem>>, vector<32x512xbf16>,
    } else {
    }
    %c0 = arith.constant 0 : index
    %c0_1 = arith.constant 0 : index
    %3 = vector.load %arg10[%c0, %c0_1] : memref<32x512xbf16, #tpu.memory_space<vmem>>, vector<32x512xbf16>
    %c0_2 = arith.constant 0 : index
    %c0_3 = arith.constant 0 : index
    %4 = vector.load %arg7[%c0_2, %c0_3] : memref<512x512xbf16, #tpu.memory_space<vmem>>, vector<512x512xbf16>
    %cst = arith.constant dense<0.000000e+00> : vector<32x512xf32>
    %5 = tpu.matmul %3, %4, %cst {dimension_numbers = #tpu.dot_dimension_numbers<[1], [0], [0], [1], [0, 0, 1, 1], [], []>} : vector<32x512xbf16>, vector<512x512xbf16>, vector<32x512xf32> -> vector<32x512xf32>
    %c0_4 = arith.constant 0 : index
    %c0_5 = arith.constant 0 : index
    %6 = vector.load %arg8[%c0_4, %c0_5] : memref<1x512xf32, #tpu.memory_space<vmem>>, vector<1x512xf32>
    %7 = vector.broadcast %6 : vector<1x512xf32> to vector<32x512xf32>
    %8 = arith.addf %5, %7 : vector<32x512xf32>
    %c0_6 = arith.constant 0 : index
    %c0_7 = arith.constant 0 : index
    %9 = vector.load %arg9[%c0_6, %c0_7] : memref<32x512xf32, #tpu.memory_space<vmem>>, vector<32x512xf32>
    tpu.vector_store %arg9[%c0_6, %c0_7], %8 {strides = array<i32>} : memref<32x512xf32, #tpu.memory_space<vmem>>, vector<32x512xf32>,
    return
  }
  func.func @transform_0(%arg0: i32, %arg1: i32) -> (i32, i32) {
    %c0_i32 = arith.constant 0 : i32
    %c0_i32_0 = arith.constant 0 : i32
    return %arg0, %c0_i32 : i32, i32
  }
  func.func @transform_1(%arg0: i32, %arg1: i32) -> (i32, i32) {
    %c0_i32 = arith.constant 0 : i32
    %c0_i32_0 = arith.constant 0 : i32
    %c0_i32_1 = arith.constant 0 : i32
    return %c0_i32, %c0_i32_0 : i32, i32
  }
  func.func @transform_2(%arg0: i32, %arg1: i32) -> (i32, i32) {
    %c0_i32 = arith.constant 0 : i32
    %c0_i32_0 = arith.constant 0 : i32
    %c0_i32_1 = arith.constant 0 : i32
    return %c0_i32, %c0_i32_0 : i32, i32
  }
  func.func @transform_3(%arg0: i32, %arg1: i32) -> (i32, i32) {
    %c0_i32 = arith.constant 0 : i32
    %c0_i32_0 = arith.constant 0 : i32
    %c0_i32_1 = arith.constant 0 : i32
    return %c0_i32, %c0_i32_0 : i32, i32
  }
  func.func @transform_4(%arg0: i32, %arg1: i32) -> (i32, i32) {
    %c0_i32 = arith.constant 0 : i32
    %c0_i32_0 = arith.constant 0 : i32
    %c0_i32_1 = arith.constant 0 : i32
    return %c0_i32, %c0_i32_0 : i32, i32
  }
  func.func @transform_5(%arg0: i32, %arg1: i32) -> (i32, i32) {
    %c0_i32 = arith.constant 0 : i32
    %c0_i32_0 = arith.constant 0 : i32
    return %c0_i32, %arg1 : i32, i32
  }
  func.func @transform_6(%arg0: i32, %arg1: i32) -> (i32, i32) {
    %c0_i32 = arith.constant 0 : i32
    %c0_i32_0 = arith.constant 0 : i32
    return %c0_i32, %arg1 : i32, i32
  }
  func.func @transform_7(%arg0: i32, %arg1: i32) -> (i32, i32) {
    %c0_i32 = arith.constant 0 : i32
    return %arg0, %arg1 : i32, i32
  }
}

</mosaic_0001>

<llo_original>
// kernel: tpu_custom_call.1
$region0: #{tpu_custom_call.1}
  #allocation0 [shape = 'u32[]', space=smem, size = 0x4, offset = 0x4, fixed_abs, tag = 'smem constant byte address 0x4 - core index']
  #allocation1 [shape = 'u32[72,128]{1,0:T(1,128)}', space=vmem, size = 0x9000, scoped, tag = 'internal scratch']
  #allocation2 [shape = 'bf16[32,512]{1,0:T(8,128)(2,1)}', space=vmem, size = 0x8000, scoped, tag = 'scratch operand']
  %s0 = inlined_call_operand.hbm [shape: bf16[64,512], index: 0, kind: input, shape index: {}]
  %s1 = inlined_call_operand.hbm [shape: bf16[512,512], index: 1, kind: input, shape index: {}]
  %s2 = inlined_call_operand.hbm [shape: f32[1,512], index: 2, kind: input, shape index: {}]
  %s3 = inlined_call_operand.hbm [shape: bf16[512,512], index: 3, kind: input, shape index: {}]
  %s4 = inlined_call_operand.hbm [shape: f32[1,512], index: 4, kind: input, shape index: {}]
  %s5 = inlined_call_operand.hbm [shape: bf16[512,512], index: 5, kind: input, shape index: {}]
  %s6 = inlined_call_operand.vmem [shape: f32[1,512], index: 6, kind: input, shape index: {}]
  %s7 = inlined_call_operand.hbm [shape: f32[64,512], index: 7, kind: output, shape index: {}]
  %s8 = sld [smem:[#allocation0]]
  $region89: #{tpu_custom_call.1} parent=0
    _
  %s10 = ssub.s32 1, %s8
  %s11 = scalar_select 0, %s10, %s8
  $region1: #{tpu_custom_call.1} parent=0
    #allocation3 [shape = 'u8[65536]{0}', space=vmem, size = 0x10000, scoped, tag = 'input window, operand 0']
    #allocation4 [shape = 's32[2]{0}', space=sflag, size = 0x8, scoped, tag = 'scoped memory for tpu_custom_call.1']
    #allocation5 [shape = 's32[2]{0}', space=sflag, size = 0x8, scoped, tag = 'scoped memory for tpu_custom_call.1']
    #allocation6 [shape = 'u8[524288]{0}', space=vmem, size = 0x80000, scoped, tag = 'input window, operand 1, single buffered']
    #allocation7 [shape = 's32[1]{0}', space=sflag, size = 0x4, scoped, tag = 'scoped memory for tpu_custom_call.1']
    #allocation8 [shape = 'u8[2048]{0}', space=vmem, size = 0x800, scoped, tag = 'input window, operand 2, single buffered']
    #allocation9 [shape = 'u8[524288]{0}', space=vmem, size = 0x80000, scoped, tag = 'input window, operand 3, single buffered']
    #allocation10 [shape = 's32[1]{0}', space=sflag, size = 0x4, scoped, tag = 'scoped memory for tpu_custom_call.1']
    #allocation11 [shape = 'u8[2048]{0}', space=vmem, size = 0x800, scoped, tag = 'input window, operand 4, single buffered']
    #allocation12 [shape = 'u8[524288]{0}', space=vmem, size = 0x80000, scoped, tag = 'input window, operand 5, single buffered']
    #allocation13 [shape = 's32[1]{0}', space=sflag, size = 0x4, scoped, tag = 'scoped memory for tpu_custom_call.1']
    #allocation14 [shape = 'u8[131072]{0}', space=vmem, size = 0x20000, scoped, tag = 'output window, operand 0']
    %12 = vsyncpa [#allocation4], 0
    %s13 = scalar_lea.sflag [#allocation4], 1
    %14 = vsyncpa %s13, 0
    %15 = vsyncpa [#allocation7], 0
    %16 = vsyncpa [#allocation10], 0
    %17 = vsyncpa [#allocation13], 0
    %18 = vsyncpa [#allocation5], 0
    %s19 = scalar_lea.sflag [#allocation5], 1
    %20 = vsyncpa %s19, 0
    loop: start=0, step=1, limit=4
    $region2: #{tpu_custom_call.1} parent=1 // loop_pre_header
      _
    $region3: #{tpu_custom_call.1} parent=1 // loop_header
      %s22 = sphi 0, %s26
      %p23 = scmp.ge.s32.totalorder %s22, 4
      %s29 = sphi 0, %s41
      %s30 = sphi 0, %s37
      %s31 = sphi 0, %s29
      %s32 = sphi 0, %s30
      %s33 = sphi 0, %s31
      %s34 = sphi 0, %s32
      %s44 = sphi 0, %s46
      %s47 = sphi 0, %s44
      %s48 = sphi 0, %s47
      %s64 = sphi 0, %s48
      %s68 = sphi 0, %s68
      %s70 = sphi 0, %s68
      %s71 = sphi 0, %s70
      %s85 = sphi 0, %s71
      %s89 = sphi 0, %s89
      %s91 = sphi 0, %s89
      %s92 = sphi 0, %s91
      %s106 = sphi 0, %s92
      %s110 = sphi 0, %s110
      %s112 = sphi 0, %s110
      %s113 = sphi 0, %s112
      %s127 = sphi 0, %s113
      %s131 = sphi 0, %s131
      %s133 = sphi 0, %s131
      %s134 = sphi 0, %s133
      %s148 = sphi 0, %s134
      %s154 = sphi 0, %s156
      %s157 = sphi 0, %s154
      %s158 = sphi 0, %s157
      %s174 = sphi 0, %s158
      %s180 = sphi 0, %s182
      %s183 = sphi 0, %s180
      %s184 = sphi 0, %s183
      %s200 = sphi 0, %s184
      %s208 = sphi 0, %s210
      %s211 = sphi 0, %s208
      %s212 = sphi 0, %s211
      %s228 = sphi 0, %s212
    $region4: #{tpu_custom_call.1} parent=1 // loop_header_branch
      %25 = sbr.rel (%p23) target = $region8
    $region5: #{tpu_custom_call.1} parent=1 // loop_body
      %s27 = ssub.s32 %s22, 1
      %s28 = ssub.s32 %s22, 2
      %s35 = sadd.s32 1, %s30
      %p36 = scmp.ge.s32.totalorder %s35, 1
      %s37 = scalar_select %p36, 0, %s35
      %s38 = sadd.s32 1, %s29
      %s39 = scalar_select %p36, %s38, %s29
      %p40 = scmp.ge.s32.totalorder %s39, 2
      %s41 = scalar_select %p40, 0, %s39
      %s42 = ssub.s32 %s29, %s41
      %p43 = scmp.eq.s32.totalorder %s42, 0
      %s45 = sadd.s32 %s44, 1
      %s46 = scalar_select %p43, %s44, %s45
      %p49 = pneg %p43
      %p50 = scmp.eq.s32.totalorder %s22, 1
      %p51 = por %p49, %p50
      %p52 = scmp.ne.s32.totalorder %s44, %s47
      %p53 = scmp.eq.s32.totalorder %s22, 0
      %p54 = por %p52, %p53
      %p55 = scmp.ne.s32.totalorder %s44, %s47
      %p56 = scmp.eq.s32.totalorder %s27, 1
      %p57 = por %p55, %p56
      %p58 = scmp.ne.s32.totalorder %s47, %s48
      %p59 = scmp.eq.s32.totalorder %s27, 0
      %p60 = por %p58, %p59
      %p61 = scmp.ne.s32.totalorder %s47, %s48
      %p62 = scmp.eq.s32.totalorder %s28, 1
      %p63 = por %p61, %p62
      %p65 = scmp.ne.s32.totalorder %s48, %s64
      %p66 = scmp.eq.s32.totalorder %s28, 0
      %p67 = por %p65, %p66
      %s69 = sadd.s32 %s68, 1
      %p72 = scmp.eq.s32.totalorder %s22, 1
      %p73 = scmp.ne.s32.totalorder %s68, %s70
      %p74 = scmp.eq.s32.totalorder %s22, 0
      %p75 = por %p73, %p74
      %p76 = scmp.ne.s32.totalorder %s68, %s70
      %p77 = scmp.eq.s32.totalorder %s27, 1
      %p78 = por %p76, %p77
      %p79 = scmp.ne.s32.totalorder %s70, %s71
      %p80 = scmp.eq.s32.totalorder %s27, 0
      %p81 = por %p79, %p80
      %p82 = scmp.ne.s32.totalorder %s70, %s71
      %p83 = scmp.eq.s32.totalorder %s28, 1
      %p84 = por %p82, %p83
      %p86 = scmp.ne.s32.totalorder %s71, %s85
      %p87 = scmp.eq.s32.totalorder %s28, 0
      %p88 = por %p86, %p87
      %s90 = sadd.s32 %s89, 1
      %p93 = scmp.eq.s32.totalorder %s22, 1
      %p94 = scmp.ne.s32.totalorder %s89, %s91
      %p95 = scmp.eq.s32.totalorder %s22, 0
      %p96 = por %p94, %p95
      %p97 = scmp.ne.s32.totalorder %s89, %s91
      %p98 = scmp.eq.s32.totalorder %s27, 1
      %p99 = por %p97, %p98
      %p100 = scmp.ne.s32.totalorder %s91, %s92
      %p101 = scmp.eq.s32.totalorder %s27, 0
      %p102 = por %p100, %p101
      %p103 = scmp.ne.s32.totalorder %s91, %s92
      %p104 = scmp.eq.s32.totalorder %s28, 1
      %p105 = por %p103, %p104
      %p107 = scmp.ne.s32.totalorder %s92, %s106
      %p108 = scmp.eq.s32.totalorder %s28, 0
      %p109 = por %p107, %p108
      %s111 = sadd.s32 %s110, 1
      %p114 = scmp.eq.s32.totalorder %s22, 1
      %p115 = scmp.ne.s32.totalorder %s110, %s112
      %p116 = scmp.eq.s32.totalorder %s22, 0
      %p117 = por %p115, %p116
      %p118 = scmp.ne.s32.totalorder %s110, %s112
      %p119 = scmp.eq.s32.totalorder %s27, 1
      %p120 = por %p118, %p119
      %p121 = scmp.ne.s32.totalorder %s112, %s113
      %p122 = scmp.eq.s32.totalorder %s27, 0
      %p123 = por %p121, %p122
      %p124 = scmp.ne.s32.totalorder %s112, %s113
      %p125 = scmp.eq.s32.totalorder %s28, 1
      %p126 = por %p124, %p125
      %p128 = scmp.ne.s32.totalorder %s113, %s127
      %p129 = scmp.eq.s32.totalorder %s28, 0
      %p130 = por %p128, %p129
      %s132 = sadd.s32 %s131, 1
      %p135 = scmp.eq.s32.totalorder %s22, 1
      %p136 = scmp.ne.s32.totalorder %s131, %s133
      %p137 = scmp.eq.s32.totalorder %s22, 0
      %p138 = por %p136, %p137
      %p139 = scmp.ne.s32.totalorder %s131, %s133
      %p140 = scmp.eq.s32.totalorder %s27, 1
      %p141 = por %p139, %p140
      %p142 = scmp.ne.s32.totalorder %s133, %s134
      %p143 = scmp.eq.s32.totalorder %s27, 0
      %p144 = por %p142, %p143
      %p145 = scmp.ne.s32.totalorder %s133, %s134
      %p146 = scmp.eq.s32.totalorder %s28, 1
      %p147 = por %p145, %p146
      %p149 = scmp.ne.s32.totalorder %s134, %s148
      %p150 = scmp.eq.s32.totalorder %s28, 0
      %p151 = por %p149, %p150
      %s152 = ssub.s32 %s30, %s37
      %p153 = scmp.eq.s32.totalorder %s152, 0
      %s155 = sadd.s32 %s154, 1
      %s156 = scalar_select %p153, %s154, %s155
      %p159 = pneg %p153
      %p160 = scmp.eq.s32.totalorder %s22, 1
      %p161 = por %p159, %p160
      %p162 = scmp.ne.s32.totalorder %s154, %s157
      %p163 = scmp.eq.s32.totalorder %s22, 0
      %p164 = por %p162, %p163
      %p165 = scmp.ne.s32.totalorder %s154, %s157
      %p166 = scmp.eq.s32.totalorder %s27, 1
      %p167 = por %p165, %p166
      %p168 = scmp.ne.s32.totalorder %s157, %s158
      %p169 = scmp.eq.s32.totalorder %s27, 0
      %p170 = por %p168, %p169
      %p171 = scmp.ne.s32.totalorder %s157, %s158
      %p172 = scmp.eq.s32.totalorder %s28, 1
      %p173 = por %p171, %p172
      %p175 = scmp.ne.s32.totalorder %s158, %s174
      %p176 = scmp.eq.s32.totalorder %s28, 0
      %p177 = por %p175, %p176
      %s178 = ssub.s32 %s30, %s37
      %p179 = scmp.eq.s32.totalorder %s178, 0
      %s181 = sadd.s32 %s180, 1
      %s182 = scalar_select %p179, %s180, %s181
      %p185 = pneg %p179
      %p186 = scmp.eq.s32.totalorder %s22, 1
      %p187 = por %p185, %p186
      %p188 = scmp.ne.s32.totalorder %s180, %s183
      %p189 = scmp.eq.s32.totalorder %s22, 0
      %p190 = por %p188, %p189
      %p191 = scmp.ne.s32.totalorder %s180, %s183
      %p192 = scmp.eq.s32.totalorder %s27, 1
      %p193 = por %p191, %p192
      %p194 = scmp.ne.s32.totalorder %s183, %s184
      %p195 = scmp.eq.s32.totalorder %s27, 0
      %p196 = por %p194, %p195
      %p197 = scmp.ne.s32.totalorder %s183, %s184
      %p198 = scmp.eq.s32.totalorder %s28, 1
      %p199 = por %p197, %p198
      %p201 = scmp.ne.s32.totalorder %s184, %s200
      %p202 = scmp.eq.s32.totalorder %s28, 0
      %p203 = por %p201, %p202
      %s204 = ssub.s32 %s29, %s41
      %s205 = ssub.s32 %s30, %s37
      %s206 = sor.u32 %s204, %s205
      %p207 = scmp.eq.s32.totalorder %s206, 0
      %s209 = sadd.s32 %s208, 1
      %s210 = scalar_select %p207, %s208, %s209
      %p213 = pneg %p207
      %p214 = scmp.eq.s32.totalorder %s22, 1
      %p215 = por %p213, %p214
      %p216 = scmp.ne.s32.totalorder %s208, %s211
      %p217 = scmp.eq.s32.totalorder %s22, 0
      %p218 = por %p216, %p217
      %p219 = scmp.ne.s32.totalorder %s208, %s211
      %p220 = scmp.eq.s32.totalorder %s27, 1
      %p221 = por %p219, %p220
      %p222 = scmp.ne.s32.totalorder %s211, %s212
      %p223 = scmp.eq.s32.totalorder %s27, 0
      %p224 = por %p222, %p223
      %p225 = scmp.ne.s32.totalorder %s211, %s212
      %p226 = scmp.eq.s32.totalorder %s28, 1
      %p227 = por %p225, %p226
      %p229 = scmp.ne.s32.totalorder %s212, %s228
      %p230 = scmp.eq.s32.totalorder %s28, 0
      %p231 = por %p229, %p230
      %p232 = scmp.le.s32.totalorder 1, %s22
      %p233 = scmp.lt.s32.totalorder %s22, 3
      %p234 = pnand %p232, %p233
      %p235 = pneg %p234
      // Predicated region
      $region9: #{tpu_custom_call.1} parent=5 // pred_check
        _
      $region10: #{tpu_custom_call.1} parent=5 // pred_check_branch
        %237 = sbr.rel (%p234) target = $region12
      $region11: #{tpu_custom_call.1} parent=5 // pred_region
        %s238 = ssub.s32 %s22, 1
        // Predicated region
        $region13: #{tpu_custom_call.1} parent=11 // pred_check
          %p239 = pneg %p81
        $region14: #{tpu_custom_call.1} parent=11 // pred_check_branch
          %241 = sbr.rel (%p239) target = $region16
        $region15: #{tpu_custom_call.1} parent=11 // pred_region
          %243 = vsyncadd [#allocation7], 0
          %s244 = sshll.u32 %s1, 4
          %s245 = int_to_ptr.hbm [resolvable:$true] %s244
          %s246 = sshll.u32 [#allocation6], 4
          %s247 = int_to_ptr.vmem [resolvable:$true] %s246
          %252 = dma.hbm_to_vmem [thread:$0]  %s245, 16384, %s247, [#allocation7], 256, 256, 16
        $region16: #{tpu_custom_call.1} parent=11 // pred_fallthru
          _
        // Predicated region
        $region17: #{tpu_custom_call.1} parent=11 // pred_check
          %p253 = pneg %p102
        $region18: #{tpu_custom_call.1} parent=11 // pred_check_branch
          %255 = sbr.rel (%p253) target = $region20
        $region19: #{tpu_custom_call.1} parent=11 // pred_region
          %257 = vsyncadd [#allocation7], 0
          %s259 = sshll.u32 %s2, 4
          %s260 = int_to_ptr.hbm [resolvable:$true] %s259
          %s261 = sshll.u32 [#allocation8], 4
          %s262 = int_to_ptr.vmem [resolvable:$true] %s261
          %264 = dma.hbm_to_vmem [thread:$0]  %s260, 64, %s262, [#allocation7]
        $region20: #{tpu_custom_call.1} parent=11 // pred_fallthru
          _
        // Predicated region
        $region21: #{tpu_custom_call.1} parent=11 // pred_check
          %p265 = pneg %p123
        $region22: #{tpu_custom_call.1} parent=11 // pred_check_branch
          %267 = sbr.rel (%p265) target = $region24
        $region23: #{tpu_custom_call.1} parent=11 // pred_region
          %269 = vsyncadd [#allocation10], 0
          %s270 = sshll.u32 %s3, 4
          %s271 = int_to_ptr.hbm [resolvable:$true] %s270
          %s272 = sshll.u32 [#allocation9], 4
          %s273 = int_to_ptr.vmem [resolvable:$true] %s272
          %278 = dma.hbm_to_vmem [thread:$0]  %s271, 16384, %s273, [#allocation10], 256, 256, 16
        $region24: #{tpu_custom_call.1} parent=11 // pred_fallthru
          _
        // Predicated region
        $region25: #{tpu_custom_call.1} parent=11 // pred_check
          %p279 = pneg %p144
        $region26: #{tpu_custom_call.1} parent=11 // pred_check_branch
          %281 = sbr.rel (%p279) target = $region28
        $region27: #{tpu_custom_call.1} parent=11 // pred_region
          %283 = vsyncadd [#allocation10], 0
          %s285 = sshll.u32 %s4, 4
          %s286 = int_to_ptr.hbm [resolvable:$true] %s285
          %s287 = sshll.u32 [#allocation11], 4
          %s288 = int_to_ptr.vmem [resolvable:$true] %s287
          %290 = dma.hbm_to_vmem [thread:$0]  %s286, 64, %s288, [#allocation10]
        $region28: #{tpu_custom_call.1} parent=11 // pred_fallthru
          _
        // Predicated region
        $region29: #{tpu_custom_call.1} parent=11 // pred_check
          %p291 = pneg %p170
        $region30: #{tpu_custom_call.1} parent=11 // pred_check_branch
          %293 = sbr.rel (%p291) target = $region32
        $region31: #{tpu_custom_call.1} parent=11 // pred_region
          %s294 = smul.u32 4, %s32
          %296 = vsyncadd [#allocation13], 0
          %s297 = smul.addr %s294, 4
          %s298 = scalar_lea.hbm %s5, %s297
          %s299 = sshll.u32 %s298, 4
          %s300 = int_to_ptr.hbm [resolvable:$true] %s299
          %s301 = sshll.u32 [#allocation12], 4
          %s302 = int_to_ptr.vmem [resolvable:$true] %s301
          %307 = dma.hbm_to_vmem [thread:$0]  %s300, 16384, %s302, [#allocation13], 256, 256, 16
        $region32: #{tpu_custom_call.1} parent=11 // pred_fallthru
          _
        // Predicated region
        $region33: #{tpu_custom_call.1} parent=11 // pred_check
          %p308 = pneg %p196
        $region34: #{tpu_custom_call.1} parent=11 // pred_check_branch
          %310 = sbr.rel (%p308) target = $region36
        $region35: #{tpu_custom_call.1} parent=11 // pred_region
          %s311 = smul.u32 4, %s32
          %p312 = scmp.lt.s32.totalorder %s311, 3
          %s313 = scalar_select %p312, %s311, 3
          %s314 = scalar_lea.vmem %s6, %s313
          %s315 = smul.u32 4, %s32
        $region36: #{tpu_custom_call.1} parent=11 // pred_fallthru
          _
      $region12: #{tpu_custom_call.1} parent=5 // pred_fallthru
        _
      %p316 = scmp.lt.s32.totalorder %s22, 2
      // Predicated region
      $region37: #{tpu_custom_call.1} parent=5 // pred_check
        %p317 = pneg %p316
      $region38: #{tpu_custom_call.1} parent=5 // pred_check_branch
        %319 = sbr.rel (%p317) target = $region40
      $region39: #{tpu_custom_call.1} parent=5 // pred_region
        // Predicated region
        $region41: #{tpu_custom_call.1} parent=39 // pred_check
          %p320 = pneg %p54
        $region42: #{tpu_custom_call.1} parent=39 // pred_check_branch
          %322 = sbr.rel (%p320) target = $region44
        $region43: #{tpu_custom_call.1} parent=39 // pred_region
          %s323 = sand.u32 %s44, 1
          %s324 = scalar_lea.sflag [#allocation4], %s323
          %s325 = sand.u32 %s44, 1
          %s326 = smul.addr %s325, 64
          %s327 = scalar_lea.vmem [#allocation3], %s326
          %s328 = smul.u32 4, %s29
          %330 = vsyncadd %s324, 0
          %s331 = smul.addr %s328, 4
          %s332 = smul.addr %s331, 4
          %s333 = scalar_lea.hbm %s0, %s332
          %s334 = sshll.u32 %s333, 4
          %s335 = int_to_ptr.hbm [resolvable:$true] %s334
          %s336 = sshll.u32 %s327, 4
          %s337 = int_to_ptr.vmem [resolvable:$true] %s336
          %342 = dma.hbm_to_vmem [thread:$0]  %s335, 1024, %s337, %s324, 256, 256, 16
        $region44: #{tpu_custom_call.1} parent=39 // pred_fallthru
          _
      $region40: #{tpu_custom_call.1} parent=5 // pred_fallthru
        _
      %p343 = scmp.le.s32.totalorder 1, %s22
      %p344 = scmp.lt.s32.totalorder %s22, 3
      %p345 = pnand %p343, %p344
      %p346 = pneg %p345
      // Predicated region
      $region45: #{tpu_custom_call.1} parent=5 // pred_check
        _
      $region46: #{tpu_custom_call.1} parent=5 // pred_check_branch
        %348 = sbr.rel (%p345) target = $region48
      $region47: #{tpu_custom_call.1} parent=5 // pred_region
        %s349 = ssub.s32 %s22, 1
        %s350 = sand.u32 %s47, 1
        %s351 = scalar_lea.sflag [#allocation4], %s350
        %s352 = sand.u32 %s47, 1
        %s353 = smul.addr %s352, 64
        %s354 = scalar_lea.vmem [#allocation3], %s353
        // Predicated region
        $region49: #{tpu_custom_call.1} parent=47 // pred_check
          %p355 = pneg %p60
        $region50: #{tpu_custom_call.1} parent=47 // pred_check_branch
          %357 = sbr.rel (%p355) target = $region52
        $region51: #{tpu_custom_call.1} parent=47 // pred_region
          %359 = dma.done %s351, 1024
        $region52: #{tpu_custom_call.1} parent=47 // pred_fallthru
          _
        // Predicated region
        $region53: #{tpu_custom_call.1} parent=47 // pred_check
          %p360 = pneg %p81
        $region54: #{tpu_custom_call.1} parent=47 // pred_check_branch
          %362 = sbr.rel (%p360) target = $region56
        $region55: #{tpu_custom_call.1} parent=47 // pred_region
          %364 = dma.done [#allocation7], 16384
        $region56: #{tpu_custom_call.1} parent=47 // pred_fallthru
          _
        // Predicated region
        $region57: #{tpu_custom_call.1} parent=47 // pred_check
          %p365 = pneg %p102
        $region58: #{tpu_custom_call.1} parent=47 // pred_check_branch
          %367 = sbr.rel (%p365) target = $region60
        $region59: #{tpu_custom_call.1} parent=47 // pred_region
          %369 = dma.done [#allocation7], 64
        $region60: #{tpu_custom_call.1} parent=47 // pred_fallthru
          _
        // Predicated region
        $region61: #{tpu_custom_call.1} parent=47 // pred_check
          %p370 = pneg %p123
        $region62: #{tpu_custom_call.1} parent=47 // pred_check_branch
          %372 = sbr.rel (%p370) target = $region64
        $region63: #{tpu_custom_call.1} parent=47 // pred_region
          %374 = dma.done [#allocation10], 16384
        $region64: #{tpu_custom_call.1} parent=47 // pred_fallthru
          _
        // Predicated region
        $region65: #{tpu_custom_call.1} parent=47 // pred_check
          %p375 = pneg %p144
        $region66: #{tpu_custom_call.1} parent=47 // pred_check_branch
          %377 = sbr.rel (%p375) target = $region68
        $region67: #{tpu_custom_call.1} parent=47 // pred_region
          %379 = dma.done [#allocation10], 64
        $region68: #{tpu_custom_call.1} parent=47 // pred_fallthru
          _
        // Predicated region
        $region69: #{tpu_custom_call.1} parent=47 // pred_check
          %p380 = pneg %p170
        $region70: #{tpu_custom_call.1} parent=47 // pred_check_branch
          %382 = sbr.rel (%p380) target = $region72
        $region71: #{tpu_custom_call.1} parent=47 // pred_region
          %384 = dma.done [#allocation13], 16384
        $region72: #{tpu_custom_call.1} parent=47 // pred_fallthru
          _
        %s385 = sand.u32 %s47, 1
        %s386 = scalar_lea.sflag [#allocation4], %s385
        %s387 = sand.u32 %s47, 1
        %s388 = smul.addr %s387, 64
        %s389 = scalar_lea.vmem [#allocation3], %s388
        %p390 = pneg %p60
        %p391 = pneg %p57
        %p392 = pneg %p81
        %p393 = pneg %p78
        %p394 = pneg %p102
        %p395 = pneg %p99
        %p396 = pneg %p123
        %p397 = pneg %p120
        %p398 = pneg %p144
        %p399 = pneg %p141
        %p400 = pneg %p170
        %p401 = pneg %p167
        %s402 = smul.u32 4, %s32
        %p403 = scmp.lt.s32.totalorder %s402, 3
        %s404 = scalar_select %p403, %s402, 3
        %s405 = scalar_lea.vmem %s6, %s404
        %p406 = pneg %p196
        %p407 = pneg %p193
        %p408 = pneg %p224
        %p409 = pneg %p221
        %s410 = sand.u32 %s211, 1
        %s411 = scalar_lea.sflag [#allocation5], %s410
        %s412 = sand.u32 %s211, 1
        %s413 = smul.addr %s412, 128
        %s414 = scalar_lea.vmem [#allocation14], %s413
        %s415 = smul.u32 4, %s31
        %s416 = smul.u32 4, %s32
        %s417 = smul.u32 4, %s32
        %p418 = scmp.lt.s32.totalorder %s417, 3
        %s419 = scalar_select %p418, %s417, 3
        %s420 = scalar_lea.vmem %s6, %s419
        %s421 = smul.u32 4, %s32
        %s422 = smul.u32 4, %s31
        %s423 = smul.u32 4, %s32
        %p424 = scmp.eq.s32.totalorder %s32, 0
        // Predicated region
        $region73: #{tpu_custom_call.1} parent=47 // pred_check
          %p425 = pneg %p424
        $region74: #{tpu_custom_call.1} parent=47 // pred_check_branch
          %427 = sbr.rel (%p425) target = $region76
        $region75: #{tpu_custom_call.1} parent=47 // pred_region
          %v428 = vld [vmem:[%s354] sm:$0xff]
          %v429 = vld [vmem:[%s354 + $0x8] sm:$0xff]
          %v430 = vld [vmem:[%s354 + $0x10] sm:$0xff]
          %v431 = vld [vmem:[%s354 + $0x18] sm:$0xff]
          %v432 = vld [vmem:[%s354 + $0x20] sm:$0xff]
          %v433 = vld [vmem:[%s354 + $0x28] sm:$0xff]
          %v434 = vld [vmem:[%s354 + $0x30] sm:$0xff]
          %v435 = vld [vmem:[%s354 + $0x38] sm:$0xff]
          %v436 = vld [vmem:[#allocation6] sm:$0xff]
          %v437 = vld [vmem:[#allocation6 + $0x8] sm:$0xff]
          %v438 = vld [vmem:[#allocation6 + $0x10] sm:$0xff]
          %v439 = vld [vmem:[#allocation6 + $0x18] sm:$0xff]
          %v440 = vld [vmem:[#allocation6 + $0x20] sm:$0xff]
          %v441 = vld [vmem:[#allocation6 + $0x28] sm:$0xff]
          %v442 = vld [vmem:[#allocation6 + $0x30] sm:$0xff]
          %v443 = vld [vmem:[#allocation6 + $0x38] sm:$0xff]
          %v444 = vld [vmem:[#allocation6 + $0x40] sm:$0xff]
          %v445 = vld [vmem:[#allocation6 + $0x48] sm:$0xff]
          %v446 = vld [vmem:[#allocation6 + $0x50] sm:$0xff]
          %v447 = vld [vmem:[#allocation6 + $0x58] sm:$0xff]
          %v448 = vld [vmem:[#allocation6 + $0x60] sm:$0xff]
          %v449 = vld [vmem:[#allocation6 + $0x68] sm:$0xff]
          %v450 = vld [vmem:[#allocation6 + $0x70] sm:$0xff]
          %v451 = vld [vmem:[#allocation6 + $0x78] sm:$0xff]
          %v452 = vld [vmem:[#allocation6 + $0x80] sm:$0xff]
          %v453 = vld [vmem:[#allocation6 + $0x88] sm:$0xff]
          %v454 = vld [vmem:[#allocation6 + $0x90] sm:$0xff]
          %v455 = vld [vmem:[#allocation6 + $0x98] sm:$0xff]
          %v456 = vld [vmem:[#allocation6 + $0xa0] sm:$0xff]
          %v457 = vld [vmem:[#allocation6 + $0xa8] sm:$0xff]
          %v458 = vld [vmem:[#allocation6 + $0xb0] sm:$0xff]
          %v459 = vld [vmem:[#allocation6 + $0xb8] sm:$0xff]
          %v460 = vld [vmem:[#allocation6 + $0xc0] sm:$0xff]
          %v461 = vld [vmem:[#allocation6 + $0xc8] sm:$0xff]
          %v462 = vld [vmem:[#allocation6 + $0xd0] sm:$0xff]
          %v463 = vld [vmem:[#allocation6 + $0xd8] sm:$0xff]
          %v464 = vld [vmem:[#allocation6 + $0xe0] sm:$0xff]
          %v465 = vld [vmem:[#allocation6 + $0xe8] sm:$0xff]
          %v466 = vld [vmem:[#allocation6 + $0xf0] sm:$0xff]
          %v467 = vld [vmem:[#allocation6 + $0xf8] sm:$0xff]
          %v468 = vld [vmem:[#allocation6 + $0x100] sm:$0xff]
          %v469 = vld [vmem:[#allocation6 + $0x108] sm:$0xff]
          %v470 = vld [vmem:[#allocation6 + $0x110] sm:$0xff]
          %v471 = vld [vmem:[#allocation6 + $0x118] sm:$0xff]
          %v472 = vld [vmem:[#allocation6 + $0x120] sm:$0xff]
          %v473 = vld [vmem:[#allocation6 + $0x128] sm:$0xff]
          %v474 = vld [vmem:[#allocation6 + $0x130] sm:$0xff]
          %v475 = vld [vmem:[#allocation6 + $0x138] sm:$0xff]
          %v476 = vld [vmem:[#allocation6 + $0x140] sm:$0xff]
          %v477 = vld [vmem:[#allocation6 + $0x148] sm:$0xff]
          %v478 = vld [vmem:[#allocation6 + $0x150] sm:$0xff]
          %v479 = vld [vmem:[#allocation6 + $0x158] sm:$0xff]
          %v480 = vld [vmem:[#allocation6 + $0x160] sm:$0xff]
          %v481 = vld [vmem:[#allocation6 + $0x168] sm:$0xff]
          %v482 = vld [vmem:[#allocation6 + $0x170] sm:$0xff]
          %v483 = vld [vmem:[#allocation6 + $0x178] sm:$0xff]
          %v484 = vld [vmem:[#allocation6 + $0x180] sm:$0xff]
          %v485 = vld [vmem:[#allocation6 + $0x188] sm:$0xff]
          %v486 = vld [vmem:[#allocation6 + $0x190] sm:$0xff]
          %v487 = vld [vmem:[#allocation6 + $0x198] sm:$0xff]
          %v488 = vld [vmem:[#allocation6 + $0x1a0] sm:$0xff]
          %v489 = vld [vmem:[#allocation6 + $0x1a8] sm:$0xff]
          %v490 = vld [vmem:[#allocation6 + $0x1b0] sm:$0xff]
          %v491 = vld [vmem:[#allocation6 + $0x1b8] sm:$0xff]
          %v492 = vld [vmem:[#allocation6 + $0x1c0] sm:$0xff]
          %v493 = vld [vmem:[#allocation6 + $0x1c8] sm:$0xff]
          %v494 = vld [vmem:[#allocation6 + $0x1d0] sm:$0xff]
          %v495 = vld [vmem:[#allocation6 + $0x1d8] sm:$0xff]
          %v496 = vld [vmem:[#allocation6 + $0x1e0] sm:$0xff]
          %v497 = vld [vmem:[#allocation6 + $0x1e8] sm:$0xff]
          %v498 = vld [vmem:[#allocation6 + $0x1f0] sm:$0xff]
          %v499 = vld [vmem:[#allocation6 + $0x1f8] sm:$0xff]
          %v500 = vld [vmem:[#allocation6 + $0x200] sm:$0xff]
          %v501 = vld [vmem:[#allocation6 + $0x208] sm:$0xff]
          %v502 = vld [vmem:[#allocation6 + $0x210] sm:$0xff]
          %v503 = vld [vmem:[#allocation6 + $0x218] sm:$0xff]
          %v504 = vld [vmem:[#allocation6 + $0x220] sm:$0xff]
          %v505 = vld [vmem:[#allocation6 + $0x228] sm:$0xff]
          %v506 = vld [vmem:[#allocation6 + $0x230] sm:$0xff]
          %v507 = vld [vmem:[#allocation6 + $0x238] sm:$0xff]
          %v508 = vld [vmem:[#allocation6 + $0x240] sm:$0xff]
          %v509 = vld [vmem:[#allocation6 + $0x248] sm:$0xff]
          %v510 = vld [vmem:[#allocation6 + $0x250] sm:$0xff]
          %v511 = vld [vmem:[#allocation6 + $0x258] sm:$0xff]
          %v512 = vld [vmem:[#allocation6 + $0x260] sm:$0xff]
          %v513 = vld [vmem:[#allocation6 + $0x268] sm:$0xff]
          %v514 = vld [vmem:[#allocation6 + $0x270] sm:$0xff]
          %v515 = vld [vmem:[#allocation6 + $0x278] sm:$0xff]
          %v516 = vld [vmem:[#allocation6 + $0x280] sm:$0xff]
          %v517 = vld [vmem:[#allocation6 + $0x288] sm:$0xff]
          %v518 = vld [vmem:[#allocation6 + $0x290] sm:$0xff]
          %v519 = vld [vmem:[#allocation6 + $0x298] sm:$0xff]
          %v520 = vld [vmem:[#allocation6 + $0x2a0] sm:$0xff]
          %v521 = vld [vmem:[#allocation6 + $0x2a8] sm:$0xff]
          %v522 = vld [vmem:[#allocation6 + $0x2b0] sm:$0xff]
          %v523 = vld [vmem:[#allocation6 + $0x2b8] sm:$0xff]
          %v524 = vld [vmem:[#allocation6 + $0x2c0] sm:$0xff]
          %v525 = vld [vmem:[#allocation6 + $0x2c8] sm:$0xff]
          %v526 = vld [vmem:[#allocation6 + $0x2d0] sm:$0xff]
          %v527 = vld [vmem:[#allocation6 + $0x2d8] sm:$0xff]
          %v528 = vld [vmem:[#allocation6 + $0x2e0] sm:$0xff]
          %v529 = vld [vmem:[#allocation6 + $0x2e8] sm:$0xff]
          %v530 = vld [vmem:[#allocation6 + $0x2f0] sm:$0xff]
          %v531 = vld [vmem:[#allocation6 + $0x2f8] sm:$0xff]
          %v532 = vld [vmem:[#allocation6 + $0x300] sm:$0xff]
          %v533 = vld [vmem:[#allocation6 + $0x308] sm:$0xff]
          %v534 = vld [vmem:[#allocation6 + $0x310] sm:$0xff]
          %v535 = vld [vmem:[#allocation6 + $0x318] sm:$0xff]
          %v536 = vld [vmem:[#allocation6 + $0x320] sm:$0xff]
          %v537 = vld [vmem:[#allocation6 + $0x328] sm:$0xff]
          %v538 = vld [vmem:[#allocation6 + $0x330] sm:$0xff]
          %v539 = vld [vmem:[#allocation6 + $0x338] sm:$0xff]
          %v540 = vld [vmem:[#allocation6 + $0x340] sm:$0xff]
          %v541 = vld [vmem:[#allocation6 + $0x348] sm:$0xff]
          %v542 = vld [vmem:[#allocation6 + $0x350] sm:$0xff]
          %v543 = vld [vmem:[#allocation6 + $0x358] sm:$0xff]
          %v544 = vld [vmem:[#allocation6 + $0x360] sm:$0xff]
          %v545 = vld [vmem:[#allocation6 + $0x368] sm:$0xff]
          %v546 = vld [vmem:[#allocation6 + $0x370] sm:$0xff]
          %v547 = vld [vmem:[#allocation6 + $0x378] sm:$0xff]
          %v548 = vld [vmem:[#allocation6 + $0x380] sm:$0xff]
          %v549 = vld [vmem:[#allocation6 + $0x388] sm:$0xff]
          %v550 = vld [vmem:[#allocation6 + $0x390] sm:$0xff]
          %v551 = vld [vmem:[#allocation6 + $0x398] sm:$0xff]
          %v552 = vld [vmem:[#allocation6 + $0x3a0] sm:$0xff]
          %v553 = vld [vmem:[#allocation6 + $0x3a8] sm:$0xff]
          %v554 = vld [vmem:[#allocation6 + $0x3b0] sm:$0xff]
          %v555 = vld [vmem:[#allocation6 + $0x3b8] sm:$0xff]
          %v556 = vld [vmem:[#allocation6 + $0x3c0] sm:$0xff]
          %v557 = vld [vmem:[#allocation6 + $0x3c8] sm:$0xff]
          %v558 = vld [vmem:[#allocation6 + $0x3d0] sm:$0xff]
          %v559 = vld [vmem:[#allocation6 + $0x3d8] sm:$0xff]
          %v560 = vld [vmem:[#allocation6 + $0x3e0] sm:$0xff]
          %v561 = vld [vmem:[#allocation6 + $0x3e8] sm:$0xff]
          %v562 = vld [vmem:[#allocation6 + $0x3f0] sm:$0xff]
          %v563 = vld [vmem:[#allocation6 + $0x3f8] sm:$0xff]
          %v564 = vld [vmem:[#allocation8] sm:$0xf]
          %v566 = vperm.slane %v564, 0
          %v567 = vperm.slane %v564, 1
          %v568 = vperm.slane %v564, 2
          %v569 = vperm.slane %v564, 3
          %v582 = vunpack.c.l.b16 %v428
          %v583 = vunpack.c.h.b16 %v428
          %v584 = vunpack.c.l.b16 %v429
          %v585 = vunpack.c.h.b16 %v429
          %v586 = vunpack.c.l.b16 %v430
          %v587 = vunpack.c.h.b16 %v430
          %v588 = vunpack.c.l.b16 %v431
          %v589 = vunpack.c.h.b16 %v431
          %v590 = vunpack.c.l.b16 %v432
          %v591 = vunpack.c.h.b16 %v432
          %v592 = vunpack.c.l.b16 %v433
          %v593 = vunpack.c.h.b16 %v433
          %v594 = vunpack.c.l.b16 %v434
          %v595 = vunpack.c.h.b16 %v434
          %v596 = vunpack.c.l.b16 %v435
          %v597 = vunpack.c.h.b16 %v435
          %v598 = vpack.c.b16 %v586, %v582
          %v599 = vpack.c.b16 %v587, %v583
          %v600 = vpack.c.b16 %v588, %v584
          %v601 = vpack.c.b16 %v589, %v585
          %v602 = vpack.c.b16 %v594, %v590
          %v603 = vpack.c.b16 %v595, %v591
          %v604 = vpack.c.b16 %v596, %v592
          %v605 = vpack.c.b16 %v597, %v593
          %v742 = vunpack.c.l.b16 %v436
          %v743 = vunpack.c.h.b16 %v436
          %v744 = vunpack.c.l.b16 %v437
          %v745 = vunpack.c.h.b16 %v437
          %v746 = vunpack.c.l.b16 %v438
          %v747 = vunpack.c.h.b16 %v438
          %v748 = vunpack.c.l.b16 %v439
          %v749 = vunpack.c.h.b16 %v439
          %v750 = vunpack.c.l.b16 %v440
          %v751 = vunpack.c.h.b16 %v440
          %v752 = vunpack.c.l.b16 %v441
          %v753 = vunpack.c.h.b16 %v441
          %v754 = vunpack.c.l.b16 %v442
          %v755 = vunpack.c.h.b16 %v442
          %v756 = vunpack.c.l.b16 %v443
          %v757 = vunpack.c.h.b16 %v443
          %v758 = vunpack.c.l.b16 %v444
          %v759 = vunpack.c.h.b16 %v444
          %v760 = vunpack.c.l.b16 %v445
          %v761 = vunpack.c.h.b16 %v445
          %v762 = vunpack.c.l.b16 %v446
          %v763 = vunpack.c.h.b16 %v446
          %v764 = vunpack.c.l.b16 %v447
          %v765 = vunpack.c.h.b16 %v447
          %v766 = vunpack.c.l.b16 %v448
          %v767 = vunpack.c.h.b16 %v448
          %v768 = vunpack.c.l.b16 %v449
          %v769 = vunpack.c.h.b16 %v449
          %v770 = vunpack.c.l.b16 %v450
          %v771 = vunpack.c.h.b16 %v450
          %v772 = vunpack.c.l.b16 %v451
          %v773 = vunpack.c.h.b16 %v451
          %v774 = vunpack.c.l.b16 %v452
          %v775 = vunpack.c.h.b16 %v452
          %v776 = vunpack.c.l.b16 %v453
          %v777 = vunpack.c.h.b16 %v453
          %v778 = vunpack.c.l.b16 %v454
          %v779 = vunpack.c.h.b16 %v454
          %v780 = vunpack.c.l.b16 %v455
          %v781 = vunpack.c.h.b16 %v455
          %v782 = vunpack.c.l.b16 %v456
          %v783 = vunpack.c.h.b16 %v456
          %v784 = vunpack.c.l.b16 %v457
          %v785 = vunpack.c.h.b16 %v457
          %v786 = vunpack.c.l.b16 %v458
          %v787 = vunpack.c.h.b16 %v458
          %v788 = vunpack.c.l.b16 %v459
          %v789 = vunpack.c.h.b16 %v459
          %v790 = vunpack.c.l.b16 %v460
          %v791 = vunpack.c.h.b16 %v460
          %v792 = vunpack.c.l.b16 %v461
          %v793 = vunpack.c.h.b16 %v461
          %v794 = vunpack.c.l.b16 %v462
          %v795 = vunpack.c.h.b16 %v462
          %v796 = vunpack.c.l.b16 %v463
          %v797 = vunpack.c.h.b16 %v463
          %v798 = vunpack.c.l.b16 %v464
          %v799 = vunpack.c.h.b16 %v464
          %v800 = vunpack.c.l.b16 %v465
          %v801 = vunpack.c.h.b16 %v465
          %v802 = vunpack.c.l.b16 %v466
          %v803 = vunpack.c.h.b16 %v466
          %v804 = vunpack.c.l.b16 %v467
          %v805 = vunpack.c.h.b16 %v467
          %v806 = vunpack.c.l.b16 %v468
          %v807 = vunpack.c.h.b16 %v468
          %v808 = vunpack.c.l.b16 %v469
          %v809 = vunpack.c.h.b16 %v469
          %v810 = vunpack.c.l.b16 %v470
          %v811 = vunpack.c.h.b16 %v470
          %v812 = vunpack.c.l.b16 %v471
          %v813 = vunpack.c.h.b16 %v471
          %v814 = vunpack.c.l.b16 %v472
          %v815 = vunpack.c.h.b16 %v472
          %v816 = vunpack.c.l.b16 %v473
          %v817 = vunpack.c.h.b16 %v473
          %v818 = vunpack.c.l.b16 %v474
          %v819 = vunpack.c.h.b16 %v474
          %v820 = vunpack.c.l.b16 %v475
          %v821 = vunpack.c.h.b16 %v475
          %v822 = vunpack.c.l.b16 %v476
          %v823 = vunpack.c.h.b16 %v476
          %v824 = vunpack.c.l.b16 %v477
          %v825 = vunpack.c.h.b16 %v477
          %v826 = vunpack.c.l.b16 %v478
          %v827 = vunpack.c.h.b16 %v478
          %v828 = vunpack.c.l.b16 %v479
          %v829 = vunpack.c.h.b16 %v479
          %v830 = vunpack.c.l.b16 %v480
          %v831 = vunpack.c.h.b16 %v480
          %v832 = vunpack.c.l.b16 %v481
          %v833 = vunpack.c.h.b16 %v481
          %v834 = vunpack.c.l.b16 %v482
          %v835 = vunpack.c.h.b16 %v482
          %v836 = vunpack.c.l.b16 %v483
          %v837 = vunpack.c.h.b16 %v483
          %v838 = vunpack.c.l.b16 %v484
          %v839 = vunpack.c.h.b16 %v484
          %v840 = vunpack.c.l.b16 %v485
          %v841 = vunpack.c.h.b16 %v485
          %v842 = vunpack.c.l.b16 %v486
          %v843 = vunpack.c.h.b16 %v486
          %v844 = vunpack.c.l.b16 %v487
          %v845 = vunpack.c.h.b16 %v487
          %v846 = vunpack.c.l.b16 %v488
          %v847 = vunpack.c.h.b16 %v488
          %v848 = vunpack.c.l.b16 %v489
          %v849 = vunpack.c.h.b16 %v489
          %v850 = vunpack.c.l.b16 %v490
          %v851 = vunpack.c.h.b16 %v490
          %v852 = vunpack.c.l.b16 %v491
          %v853 = vunpack.c.h.b16 %v491
          %v854 = vunpack.c.l.b16 %v492
          %v855 = vunpack.c.h.b16 %v492
          %v856 = vunpack.c.l.b16 %v493
          %v857 = vunpack.c.h.b16 %v493
          %v858 = vunpack.c.l.b16 %v494
          %v859 = vunpack.c.h.b16 %v494
          %v860 = vunpack.c.l.b16 %v495
          %v861 = vunpack.c.h.b16 %v495
          %v862 = vunpack.c.l.b16 %v496
          %v863 = vunpack.c.h.b16 %v496
          %v864 = vunpack.c.l.b16 %v497
          %v865 = vunpack.c.h.b16 %v497
          %v866 = vunpack.c.l.b16 %v498
          %v867 = vunpack.c.h.b16 %v498
          %v868 = vunpack.c.l.b16 %v499
          %v869 = vunpack.c.h.b16 %v499
          %v870 = vunpack.c.l.b16 %v500
          %v871 = vunpack.c.h.b16 %v500
          %v872 = vunpack.c.l.b16 %v501
          %v873 = vunpack.c.h.b16 %v501
          %v874 = vunpack.c.l.b16 %v502
          %v875 = vunpack.c.h.b16 %v502
          %v876 = vunpack.c.l.b16 %v503
          %v877 = vunpack.c.h.b16 %v503
          %v878 = vunpack.c.l.b16 %v504
          %v879 = vunpack.c.h.b16 %v504
          %v880 = vunpack.c.l.b16 %v505
          %v881 = vunpack.c.h.b16 %v505
          %v882 = vunpack.c.l.b16 %v506
          %v883 = vunpack.c.h.b16 %v506
          %v884 = vunpack.c.l.b16 %v507
          %v885 = vunpack.c.h.b16 %v507
          %v886 = vunpack.c.l.b16 %v508
          %v887 = vunpack.c.h.b16 %v508
          %v888 = vunpack.c.l.b16 %v509
          %v889 = vunpack.c.h.b16 %v509
          %v890 = vunpack.c.l.b16 %v510
          %v891 = vunpack.c.h.b16 %v510
          %v892 = vunpack.c.l.b16 %v511
          %v893 = vunpack.c.h.b16 %v511
          %v894 = vunpack.c.l.b16 %v512
          %v895 = vunpack.c.h.b16 %v512
          %v896 = vunpack.c.l.b16 %v513
          %v897 = vunpack.c.h.b16 %v513
          %v898 = vunpack.c.l.b16 %v514
          %v899 = vunpack.c.h.b16 %v514
          %v900 = vunpack.c.l.b16 %v515
          %v901 = vunpack.c.h.b16 %v515
          %v902 = vunpack.c.l.b16 %v516
          %v903 = vunpack.c.h.b16 %v516
          %v904 = vunpack.c.l.b16 %v517
          %v905 = vunpack.c.h.b16 %v517
          %v906 = vunpack.c.l.b16 %v518
          %v907 = vunpack.c.h.b16 %v518
          %v908 = vunpack.c.l.b16 %v519
          %v909 = vunpack.c.h.b16 %v519
          %v910 = vunpack.c.l.b16 %v520
          %v911 = vunpack.c.h.b16 %v520
          %v912 = vunpack.c.l.b16 %v521
          %v913 = vunpack.c.h.b16 %v521
          %v914 = vunpack.c.l.b16 %v522
          %v915 = vunpack.c.h.b16 %v522
          %v916 = vunpack.c.l.b16 %v523
          %v917 = vunpack.c.h.b16 %v523
          %v918 = vunpack.c.l.b16 %v524
          %v919 = vunpack.c.h.b16 %v524
          %v920 = vunpack.c.l.b16 %v525
          %v921 = vunpack.c.h.b16 %v525
          %v922 = vunpack.c.l.b16 %v526
          %v923 = vunpack.c.h.b16 %v526
          %v924 = vunpack.c.l.b16 %v527
          %v925 = vunpack.c.h.b16 %v527
          %v926 = vunpack.c.l.b16 %v528
          %v927 = vunpack.c.h.b16 %v528
          %v928 = vunpack.c.l.b16 %v529
          %v929 = vunpack.c.h.b16 %v529
          %v930 = vunpack.c.l.b16 %v530
          %v931 = vunpack.c.h.b16 %v530
          %v932 = vunpack.c.l.b16 %v531
          %v933 = vunpack.c.h.b16 %v531
          %v934 = vunpack.c.l.b16 %v532
          %v935 = vunpack.c.h.b16 %v532
          %v936 = vunpack.c.l.b16 %v533
          %v937 = vunpack.c.h.b16 %v533
          %v938 = vunpack.c.l.b16 %v534
          %v939 = vunpack.c.h.b16 %v534
          %v940 = vunpack.c.l.b16 %v535
          %v941 = vunpack.c.h.b16 %v535
          %v942 = vunpack.c.l.b16 %v536
          %v943 = vunpack.c.h.b16 %v536
          %v944 = vunpack.c.l.b16 %v537
          %v945 = vunpack.c.h.b16 %v537
          %v946 = vunpack.c.l.b16 %v538
          %v947 = vunpack.c.h.b16 %v538
          %v948 = vunpack.c.l.b16 %v539
          %v949 = vunpack.c.h.b16 %v539
          %v950 = vunpack.c.l.b16 %v540
          %v951 = vunpack.c.h.b16 %v540
          %v952 = vunpack.c.l.b16 %v541
          %v953 = vunpack.c.h.b16 %v541
          %v954 = vunpack.c.l.b16 %v542
          %v955 = vunpack.c.h.b16 %v542
          %v956 = vunpack.c.l.b16 %v543
          %v957 = vunpack.c.h.b16 %v543
          %v958 = vunpack.c.l.b16 %v544
          %v959 = vunpack.c.h.b16 %v544
          %v960 = vunpack.c.l.b16 %v545
          %v961 = vunpack.c.h.b16 %v545
          %v962 = vunpack.c.l.b16 %v546
          %v963 = vunpack.c.h.b16 %v546
          %v964 = vunpack.c.l.b16 %v547
          %v965 = vunpack.c.h.b16 %v547
          %v966 = vunpack.c.l.b16 %v548
          %v967 = vunpack.c.h.b16 %v548
          %v968 = vunpack.c.l.b16 %v549
          %v969 = vunpack.c.h.b16 %v549
          %v970 = vunpack.c.l.b16 %v550
          %v971 = vunpack.c.h.b16 %v550
          %v972 = vunpack.c.l.b16 %v551
          %v973 = vunpack.c.h.b16 %v551
          %v974 = vunpack.c.l.b16 %v552
          %v975 = vunpack.c.h.b16 %v552
          %v976 = vunpack.c.l.b16 %v553
          %v977 = vunpack.c.h.b16 %v553
          %v978 = vunpack.c.l.b16 %v554
          %v979 = vunpack.c.h.b16 %v554
          %v980 = vunpack.c.l.b16 %v555
          %v981 = vunpack.c.h.b16 %v555
          %v982 = vunpack.c.l.b16 %v556
          %v983 = vunpack.c.h.b16 %v556
          %v984 = vunpack.c.l.b16 %v557
          %v985 = vunpack.c.h.b16 %v557
          %v986 = vunpack.c.l.b16 %v558
          %v987 = vunpack.c.h.b16 %v558
          %v988 = vunpack.c.l.b16 %v559
          %v989 = vunpack.c.h.b16 %v559
          %v990 = vunpack.c.l.b16 %v560
          %v991 = vunpack.c.h.b16 %v560
          %v992 = vunpack.c.l.b16 %v561
          %v993 = vunpack.c.h.b16 %v561
          %v994 = vunpack.c.l.b16 %v562
          %v995 = vunpack.c.h.b16 %v562
          %v996 = vunpack.c.l.b16 %v563
          %v997 = vunpack.c.h.b16 %v563
          %v998 = vpack.c.b16 %v746, %v742
          %v999 = vpack.c.b16 %v747, %v743
          %v1000 = vpack.c.b16 %v748, %v744
          %v1001 = vpack.c.b16 %v749, %v745
          %v1002 = vpack.c.b16 %v754, %v750
          %v1003 = vpack.c.b16 %v755, %v751
          %v1004 = vpack.c.b16 %v756, %v752
          %v1005 = vpack.c.b16 %v757, %v753
          %v1006 = vpack.c.b16 %v762, %v758
          %v1007 = vpack.c.b16 %v763, %v759
          %v1008 = vpack.c.b16 %v764, %v760
          %v1009 = vpack.c.b16 %v765, %v761
          %v1010 = vpack.c.b16 %v770, %v766
          %v1011 = vpack.c.b16 %v771, %v767
          %v1012 = vpack.c.b16 %v772, %v768
          %v1013 = vpack.c.b16 %v773, %v769
          %v1014 = vpack.c.b16 %v778, %v774
          %v1015 = vpack.c.b16 %v779, %v775
          %v1016 = vpack.c.b16 %v780, %v776
          %v1017 = vpack.c.b16 %v781, %v777
          %v1018 = vpack.c.b16 %v786, %v782
          %v1019 = vpack.c.b16 %v787, %v783
          %v1020 = vpack.c.b16 %v788, %v784
          %v1021 = vpack.c.b16 %v789, %v785
          %v1022 = vpack.c.b16 %v794, %v790
          %v1023 = vpack.c.b16 %v795, %v791
          %v1024 = vpack.c.b16 %v796, %v792
          %v1025 = vpack.c.b16 %v797, %v793
          %v1026 = vpack.c.b16 %v802, %v798
          %v1027 = vpack.c.b16 %v803, %v799
          %v1028 = vpack.c.b16 %v804, %v800
          %v1029 = vpack.c.b16 %v805, %v801
          %v1030 = vpack.c.b16 %v810, %v806
          %v1031 = vpack.c.b16 %v811, %v807
          %v1032 = vpack.c.b16 %v812, %v808
          %v1033 = vpack.c.b16 %v813, %v809
          %v1034 = vpack.c.b16 %v818, %v814
          %v1035 = vpack.c.b16 %v819, %v815
          %v1036 = vpack.c.b16 %v820, %v816
          %v1037 = vpack.c.b16 %v821, %v817
          %v1038 = vpack.c.b16 %v826, %v822
          %v1039 = vpack.c.b16 %v827, %v823
          %v1040 = vpack.c.b16 %v828, %v824
          %v1041 = vpack.c.b16 %v829, %v825
          %v1042 = vpack.c.b16 %v834, %v830
          %v1043 = vpack.c.b16 %v835, %v831
          %v1044 = vpack.c.b16 %v836, %v832
          %v1045 = vpack.c.b16 %v837, %v833
          %v1046 = vpack.c.b16 %v842, %v838
          %v1047 = vpack.c.b16 %v843, %v839
          %v1048 = vpack.c.b16 %v844, %v840
          %v1049 = vpack.c.b16 %v845, %v841
          %v1050 = vpack.c.b16 %v850, %v846
          %v1051 = vpack.c.b16 %v851, %v847
          %v1052 = vpack.c.b16 %v852, %v848
          %v1053 = vpack.c.b16 %v853, %v849
          %v1054 = vpack.c.b16 %v858, %v854
          %v1055 = vpack.c.b16 %v859, %v855
          %v1056 = vpack.c.b16 %v860, %v856
          %v1057 = vpack.c.b16 %v861, %v857
          %v1058 = vpack.c.b16 %v866, %v862
          %v1059 = vpack.c.b16 %v867, %v863
          %v1060 = vpack.c.b16 %v868, %v864
          %v1061 = vpack.c.b16 %v869, %v865
          %v1062 = vpack.c.b16 %v874, %v870
          %v1063 = vpack.c.b16 %v875, %v871
          %v1064 = vpack.c.b16 %v876, %v872
          %v1065 = vpack.c.b16 %v877, %v873
          %v1066 = vpack.c.b16 %v882, %v878
          %v1067 = vpack.c.b16 %v883, %v879
          %v1068 = vpack.c.b16 %v884, %v880
          %v1069 = vpack.c.b16 %v885, %v881
          %v1070 = vpack.c.b16 %v890, %v886
          %v1071 = vpack.c.b16 %v891, %v887
          %v1072 = vpack.c.b16 %v892, %v888
          %v1073 = vpack.c.b16 %v893, %v889
          %v1074 = vpack.c.b16 %v898, %v894
          %v1075 = vpack.c.b16 %v899, %v895
          %v1076 = vpack.c.b16 %v900, %v896
          %v1077 = vpack.c.b16 %v901, %v897
          %v1078 = vpack.c.b16 %v906, %v902
          %v1079 = vpack.c.b16 %v907, %v903
          %v1080 = vpack.c.b16 %v908, %v904
          %v1081 = vpack.c.b16 %v909, %v905
          %v1082 = vpack.c.b16 %v914, %v910
          %v1083 = vpack.c.b16 %v915, %v911
          %v1084 = vpack.c.b16 %v916, %v912
          %v1085 = vpack.c.b16 %v917, %v913
          %v1086 = vpack.c.b16 %v922, %v918
          %v1087 = vpack.c.b16 %v923, %v919
          %v1088 = vpack.c.b16 %v924, %v920
          %v1089 = vpack.c.b16 %v925, %v921
          %v1090 = vpack.c.b16 %v930, %v926
          %v1091 = vpack.c.b16 %v931, %v927
          %v1092 = vpack.c.b16 %v932, %v928
          %v1093 = vpack.c.b16 %v933, %v929
          %v1094 = vpack.c.b16 %v938, %v934
          %v1095 = vpack.c.b16 %v939, %v935
          %v1096 = vpack.c.b16 %v940, %v936
          %v1097 = vpack.c.b16 %v941, %v937
          %v1098 = vpack.c.b16 %v946, %v942
          %v1099 = vpack.c.b16 %v947, %v943
          %v1100 = vpack.c.b16 %v948, %v944
          %v1101 = vpack.c.b16 %v949, %v945
          %v1102 = vpack.c.b16 %v954, %v950
          %v1103 = vpack.c.b16 %v955, %v951
          %v1104 = vpack.c.b16 %v956, %v952
          %v1105 = vpack.c.b16 %v957, %v953
          %v1106 = vpack.c.b16 %v962, %v958
          %v1107 = vpack.c.b16 %v963, %v959
          %v1108 = vpack.c.b16 %v964, %v960
          %v1109 = vpack.c.b16 %v965, %v961
          %v1110 = vpack.c.b16 %v970, %v966
          %v1111 = vpack.c.b16 %v971, %v967
          %v1112 = vpack.c.b16 %v972, %v968
          %v1113 = vpack.c.b16 %v973, %v969
          %v1114 = vpack.c.b16 %v978, %v974
          %v1115 = vpack.c.b16 %v979, %v975
          %v1116 = vpack.c.b16 %v980, %v976
          %v1117 = vpack.c.b16 %v981, %v977
          %v1118 = vpack.c.b16 %v986, %v982
          %v1119 = vpack.c.b16 %v987, %v983
          %v1120 = vpack.c.b16 %v988, %v984
          %v1121 = vpack.c.b16 %v989, %v985
          %v1122 = vpack.c.b16 %v994, %v990
          %v1123 = vpack.c.b16 %v995, %v991
          %v1124 = vpack.c.b16 %v996, %v992
          %v1125 = vpack.c.b16 %v997, %v993
          %1254 = vmatpush.bf16.msra.mxu0 %v1026
          %1255 = vmatpush.bf16.msra.mxu0 %v1022
          %1256 = vmatpush.bf16.msra.mxu0 %v1018
          %1257 = vmatpush.bf16.msra.mxu0 %v1014
          %1258 = vmatpush.bf16.msra.mxu0 %v1010
          %1259 = vmatpush.bf16.msra.mxu0 %v1006
          %1260 = vmatpush.bf16.msra.mxu0 %v1002
          %1261 = vmatpush.bf16.msra.mxu0 %v998
          %1262 = vmatmul.bf16.gmra.mxu0 %v598
          %v1263 = vpop.f32.mrf.mxu0
          %v1264 = vadd.f32 %v566, %v1263
          %v1265 = vpop.f32.mrf.mxu0
          %v1266 = vadd.f32 %v566, %v1265
          %1267 = vmatmul.bf16.gmra.mxu0 %v602
          %v1268 = vpop.f32.mrf.mxu0
          %v1269 = vadd.f32 %v566, %v1268
          %v1270 = vpop.f32.mrf.mxu0
          %v1271 = vadd.f32 %v566, %v1270
          %1272 = vdwg.mxu0
          %1273 = vmatpush.bf16.msra.mxu0 %v1058
          %1274 = vmatpush.bf16.msra.mxu0 %v1054
          %1275 = vmatpush.bf16.msra.mxu0 %v1050
          %1276 = vmatpush.bf16.msra.mxu0 %v1046
          %1277 = vmatpush.bf16.msra.mxu0 %v1042
          %1278 = vmatpush.bf16.msra.mxu0 %v1038
          %1279 = vmatpush.bf16.msra.mxu0 %v1034
          %1280 = vmatpush.bf16.msra.mxu0 %v1030
          %1281 = vmatmul.bf16.gmra.mxu0 %v599
          %v1282 = vpop.f32.mrf.mxu0
          %v1283 = vadd.f32 %v1264, %v1282
          %v1284 = vpop.f32.mrf.mxu0
          %v1285 = vadd.f32 %v1266, %v1284
          %1286 = vmatmul.bf16.gmra.mxu0 %v603
          %v1287 = vpop.f32.mrf.mxu0
          %v1288 = vadd.f32 %v1269, %v1287
          %v1289 = vpop.f32.mrf.mxu0
          %v1290 = vadd.f32 %v1271, %v1289
          %1291 = vdwg.mxu0
          %1292 = vmatpush.bf16.msra.mxu0 %v1090
          %1293 = vmatpush.bf16.msra.mxu0 %v1086
          %1294 = vmatpush.bf16.msra.mxu0 %v1082
          %1295 = vmatpush.bf16.msra.mxu0 %v1078
          %1296 = vmatpush.bf16.msra.mxu0 %v1074
          %1297 = vmatpush.bf16.msra.mxu0 %v1070
          %1298 = vmatpush.bf16.msra.mxu0 %v1066
          %1299 = vmatpush.bf16.msra.mxu0 %v1062
          %1300 = vmatmul.bf16.gmra.mxu0 %v600
          %v1301 = vpop.f32.mrf.mxu0
          %v1302 = vadd.f32 %v1283, %v1301
          %v1303 = vpop.f32.mrf.mxu0
          %v1304 = vadd.f32 %v1285, %v1303
          %1305 = vmatmul.bf16.gmra.mxu0 %v604
          %v1306 = vpop.f32.mrf.mxu0
          %v1307 = vadd.f32 %v1288, %v1306
          %v1308 = vpop.f32.mrf.mxu0
          %v1309 = vadd.f32 %v1290, %v1308
          %1310 = vdwg.mxu0
          %1311 = vmatpush.bf16.msra.mxu0 %v1122
          %1312 = vmatpush.bf16.msra.mxu0 %v1118
          %1313 = vmatpush.bf16.msra.mxu0 %v1114
          %1314 = vmatpush.bf16.msra.mxu0 %v1110
          %1315 = vmatpush.bf16.msra.mxu0 %v1106
          %1316 = vmatpush.bf16.msra.mxu0 %v1102
          %1317 = vmatpush.bf16.msra.mxu0 %v1098
          %1318 = vmatpush.bf16.msra.mxu0 %v1094
          %1319 = vmatmul.bf16.gmra.mxu0 %v601
          %v1320 = vpop.f32.mrf.mxu0
          %v1321 = vadd.f32 %v1302, %v1320
          %v1322 = vpop.f32.mrf.mxu0
          %v1323 = vadd.f32 %v1304, %v1322
          %1324 = vmatmul.bf16.gmra.mxu0 %v605
          %v1325 = vpop.f32.mrf.mxu0
          %v1326 = vadd.f32 %v1307, %v1325
          %v1327 = vpop.f32.mrf.mxu0
          %v1328 = vadd.f32 %v1309, %v1327
          %1329 = vdwg.mxu0
          %1330 = vmatpush.bf16.msra.mxu0 %v1027
          %1331 = vmatpush.bf16.msra.mxu0 %v1023
          %1332 = vmatpush.bf16.msra.mxu0 %v1019
          %1333 = vmatpush.bf16.msra.mxu0 %v1015
          %1334 = vmatpush.bf16.msra.mxu0 %v1011
          %1335 = vmatpush.bf16.msra.mxu0 %v1007
          %1336 = vmatpush.bf16.msra.mxu0 %v1003
          %1337 = vmatpush.bf16.msra.mxu0 %v999
          %1338 = vmatmul.bf16.gmra.mxu0 %v598
          %v1339 = vpop.f32.mrf.mxu0
          %v1340 = vadd.f32 %v567, %v1339
          %v1341 = vpop.f32.mrf.mxu0
          %v1342 = vadd.f32 %v567, %v1341
          %1343 = vmatmul.bf16.gmra.mxu0 %v602
          %v1344 = vpop.f32.mrf.mxu0
          %v1345 = vadd.f32 %v567, %v1344
          %v1346 = vpop.f32.mrf.mxu0
          %v1347 = vadd.f32 %v567, %v1346
          %1348 = vdwg.mxu0
          %1349 = vmatpush.bf16.msra.mxu0 %v1059
          %1350 = vmatpush.bf16.msra.mxu0 %v1055
          %1351 = vmatpush.bf16.msra.mxu0 %v1051
          %1352 = vmatpush.bf16.msra.mxu0 %v1047
          %1353 = vmatpush.bf16.msra.mxu0 %v1043
          %1354 = vmatpush.bf16.msra.mxu0 %v1039
          %1355 = vmatpush.bf16.msra.mxu0 %v1035
          %1356 = vmatpush.bf16.msra.mxu0 %v1031
          %1357 = vmatmul.bf16.gmra.mxu0 %v599
          %v1358 = vpop.f32.mrf.mxu0
          %v1359 = vadd.f32 %v1340, %v1358
          %v1360 = vpop.f32.mrf.mxu0
          %v1361 = vadd.f32 %v1342, %v1360
          %1362 = vmatmul.bf16.gmra.mxu0 %v603
          %v1363 = vpop.f32.mrf.mxu0
          %v1364 = vadd.f32 %v1345, %v1363
          %v1365 = vpop.f32.mrf.mxu0
          %v1366 = vadd.f32 %v1347, %v1365
          %1367 = vdwg.mxu0
          %1368 = vmatpush.bf16.msra.mxu0 %v1091
          %1369 = vmatpush.bf16.msra.mxu0 %v1087
          %1370 = vmatpush.bf16.msra.mxu0 %v1083
          %1371 = vmatpush.bf16.msra.mxu0 %v1079
          %1372 = vmatpush.bf16.msra.mxu0 %v1075
          %1373 = vmatpush.bf16.msra.mxu0 %v1071
          %1374 = vmatpush.bf16.msra.mxu0 %v1067
          %1375 = vmatpush.bf16.msra.mxu0 %v1063
          %1376 = vmatmul.bf16.gmra.mxu0 %v600
          %v1377 = vpop.f32.mrf.mxu0
          %v1378 = vadd.f32 %v1359, %v1377
          %v1379 = vpop.f32.mrf.mxu0
          %v1380 = vadd.f32 %v1361, %v1379
          %1381 = vmatmul.bf16.gmra.mxu0 %v604
          %v1382 = vpop.f32.mrf.mxu0
          %v1383 = vadd.f32 %v1364, %v1382
          %v1384 = vpop.f32.mrf.mxu0
          %v1385 = vadd.f32 %v1366, %v1384
          %1386 = vdwg.mxu0
          %1387 = vmatpush.bf16.msra.mxu0 %v1123
          %1388 = vmatpush.bf16.msra.mxu0 %v1119
          %1389 = vmatpush.bf16.msra.mxu0 %v1115
          %1390 = vmatpush.bf16.msra.mxu0 %v1111
          %1391 = vmatpush.bf16.msra.mxu0 %v1107
          %1392 = vmatpush.bf16.msra.mxu0 %v1103
          %1393 = vmatpush.bf16.msra.mxu0 %v1099
          %1394 = vmatpush.bf16.msra.mxu0 %v1095
          %1395 = vmatmul.bf16.gmra.mxu0 %v601
          %v1396 = vpop.f32.mrf.mxu0
          %v1397 = vadd.f32 %v1378, %v1396
          %v1398 = vpop.f32.mrf.mxu0
          %v1399 = vadd.f32 %v1380, %v1398
          %1400 = vmatmul.bf16.gmra.mxu0 %v605
          %v1401 = vpop.f32.mrf.mxu0
          %v1402 = vadd.f32 %v1383, %v1401
          %v1403 = vpop.f32.mrf.mxu0
          %v1404 = vadd.f32 %v1385, %v1403
          %1405 = vdwg.mxu0
          %1406 = vmatpush.bf16.msra.mxu0 %v1028
          %1407 = vmatpush.bf16.msra.mxu0 %v1024
          %1408 = vmatpush.bf16.msra.mxu0 %v1020
          %1409 = vmatpush.bf16.msra.mxu0 %v1016
          %1410 = vmatpush.bf16.msra.mxu0 %v1012
          %1411 = vmatpush.bf16.msra.mxu0 %v1008
          %1412 = vmatpush.bf16.msra.mxu0 %v1004
          %1413 = vmatpush.bf16.msra.mxu0 %v1000
          %1414 = vmatmul.bf16.gmra.mxu0 %v598
          %v1415 = vpop.f32.mrf.mxu0
          %v1416 = vadd.f32 %v568, %v1415
          %v1417 = vpop.f32.mrf.mxu0
          %v1418 = vadd.f32 %v568, %v1417
          %1419 = vmatmul.bf16.gmra.mxu0 %v602
          %v1420 = vpop.f32.mrf.mxu0
          %v1421 = vadd.f32 %v568, %v1420
          %v1422 = vpop.f32.mrf.mxu0
          %v1423 = vadd.f32 %v568, %v1422
          %1424 = vdwg.mxu0
          %1425 = vmatpush.bf16.msra.mxu0 %v1060
          %1426 = vmatpush.bf16.msra.mxu0 %v1056
          %1427 = vmatpush.bf16.msra.mxu0 %v1052
          %1428 = vmatpush.bf16.msra.mxu0 %v1048
          %1429 = vmatpush.bf16.msra.mxu0 %v1044
          %1430 = vmatpush.bf16.msra.mxu0 %v1040
          %1431 = vmatpush.bf16.msra.mxu0 %v1036
          %1432 = vmatpush.bf16.msra.mxu0 %v1032
          %1433 = vmatmul.bf16.gmra.mxu0 %v599
          %v1434 = vpop.f32.mrf.mxu0
          %v1435 = vadd.f32 %v1416, %v1434
          %v1436 = vpop.f32.mrf.mxu0
          %v1437 = vadd.f32 %v1418, %v1436
          %1438 = vmatmul.bf16.gmra.mxu0 %v603
          %v1439 = vpop.f32.mrf.mxu0
          %v1440 = vadd.f32 %v1421, %v1439
          %v1441 = vpop.f32.mrf.mxu0
          %v1442 = vadd.f32 %v1423, %v1441
          %1443 = vdwg.mxu0
          %1444 = vmatpush.bf16.msra.mxu0 %v1092
          %1445 = vmatpush.bf16.msra.mxu0 %v1088
          %1446 = vmatpush.bf16.msra.mxu0 %v1084
          %1447 = vmatpush.bf16.msra.mxu0 %v1080
          %1448 = vmatpush.bf16.msra.mxu0 %v1076
          %1449 = vmatpush.bf16.msra.mxu0 %v1072
          %1450 = vmatpush.bf16.msra.mxu0 %v1068
          %1451 = vmatpush.bf16.msra.mxu0 %v1064
          %1452 = vmatmul.bf16.gmra.mxu0 %v600
          %v1453 = vpop.f32.mrf.mxu0
          %v1454 = vadd.f32 %v1435, %v1453
          %v1455 = vpop.f32.mrf.mxu0
          %v1456 = vadd.f32 %v1437, %v1455
          %1457 = vmatmul.bf16.gmra.mxu0 %v604
          %v1458 = vpop.f32.mrf.mxu0
          %v1459 = vadd.f32 %v1440, %v1458
          %v1460 = vpop.f32.mrf.mxu0
          %v1461 = vadd.f32 %v1442, %v1460
          %1462 = vdwg.mxu0
          %1463 = vmatpush.bf16.msra.mxu0 %v1124
          %1464 = vmatpush.bf16.msra.mxu0 %v1120
          %1465 = vmatpush.bf16.msra.mxu0 %v1116
          %1466 = vmatpush.bf16.msra.mxu0 %v1112
          %1467 = vmatpush.bf16.msra.mxu0 %v1108
          %1468 = vmatpush.bf16.msra.mxu0 %v1104
          %1469 = vmatpush.bf16.msra.mxu0 %v1100
          %1470 = vmatpush.bf16.msra.mxu0 %v1096
          %1471 = vmatmul.bf16.gmra.mxu0 %v601
          %v1472 = vpop.f32.mrf.mxu0
          %v1473 = vadd.f32 %v1454, %v1472
          %v1474 = vpop.f32.mrf.mxu0
          %v1475 = vadd.f32 %v1456, %v1474
          %1476 = vmatmul.bf16.gmra.mxu0 %v605
          %v1477 = vpop.f32.mrf.mxu0
          %v1478 = vadd.f32 %v1459, %v1477
          %v1479 = vpop.f32.mrf.mxu0
          %v1480 = vadd.f32 %v1461, %v1479
          %1481 = vdwg.mxu0
          %1482 = vmatpush.bf16.msra.mxu0 %v1029
          %1483 = vmatpush.bf16.msra.mxu0 %v1025
          %1484 = vmatpush.bf16.msra.mxu0 %v1021
          %1485 = vmatpush.bf16.msra.mxu0 %v1017
          %1486 = vmatpush.bf16.msra.mxu0 %v1013
          %1487 = vmatpush.bf16.msra.mxu0 %v1009
          %1488 = vmatpush.bf16.msra.mxu0 %v1005
          %1489 = vmatpush.bf16.msra.mxu0 %v1001
          %1490 = vmatmul.bf16.gmra.mxu0 %v598
          %v1491 = vpop.f32.mrf.mxu0
          %v1492 = vadd.f32 %v569, %v1491
          %v1493 = vpop.f32.mrf.mxu0
          %v1494 = vadd.f32 %v569, %v1493
          %1495 = vmatmul.bf16.gmra.mxu0 %v602
          %v1496 = vpop.f32.mrf.mxu0
          %v1497 = vadd.f32 %v569, %v1496
          %v1498 = vpop.f32.mrf.mxu0
          %v1499 = vadd.f32 %v569, %v1498
          %1500 = vdwg.mxu0
          %1501 = vmatpush.bf16.msra.mxu0 %v1061
          %1502 = vmatpush.bf16.msra.mxu0 %v1057
          %1503 = vmatpush.bf16.msra.mxu0 %v1053
          %1504 = vmatpush.bf16.msra.mxu0 %v1049
          %1505 = vmatpush.bf16.msra.mxu0 %v1045
          %1506 = vmatpush.bf16.msra.mxu0 %v1041
          %1507 = vmatpush.bf16.msra.mxu0 %v1037
          %1508 = vmatpush.bf16.msra.mxu0 %v1033
          %1509 = vmatmul.bf16.gmra.mxu0 %v599
          %v1510 = vpop.f32.mrf.mxu0
          %v1511 = vadd.f32 %v1492, %v1510
          %v1512 = vpop.f32.mrf.mxu0
          %v1513 = vadd.f32 %v1494, %v1512
          %1514 = vmatmul.bf16.gmra.mxu0 %v603
          %v1515 = vpop.f32.mrf.mxu0
          %v1516 = vadd.f32 %v1497, %v1515
          %v1517 = vpop.f32.mrf.mxu0
          %v1518 = vadd.f32 %v1499, %v1517
          %1519 = vdwg.mxu0
          %1520 = vmatpush.bf16.msra.mxu0 %v1093
          %1521 = vmatpush.bf16.msra.mxu0 %v1089
          %1522 = vmatpush.bf16.msra.mxu0 %v1085
          %1523 = vmatpush.bf16.msra.mxu0 %v1081
          %1524 = vmatpush.bf16.msra.mxu0 %v1077
          %1525 = vmatpush.bf16.msra.mxu0 %v1073
          %1526 = vmatpush.bf16.msra.mxu0 %v1069
          %1527 = vmatpush.bf16.msra.mxu0 %v1065
          %1528 = vmatmul.bf16.gmra.mxu0 %v600
          %v1529 = vpop.f32.mrf.mxu0
          %v1530 = vadd.f32 %v1511, %v1529
          %v1531 = vpop.f32.mrf.mxu0
          %v1532 = vadd.f32 %v1513, %v1531
          %1533 = vmatmul.bf16.gmra.mxu0 %v604
          %v1534 = vpop.f32.mrf.mxu0
          %v1535 = vadd.f32 %v1516, %v1534
          %v1536 = vpop.f32.mrf.mxu0
          %v1537 = vadd.f32 %v1518, %v1536
          %1538 = vdwg.mxu0
          %1539 = vmatpush.bf16.msra.mxu0 %v1125
          %1540 = vmatpush.bf16.msra.mxu0 %v1121
          %1541 = vmatpush.bf16.msra.mxu0 %v1117
          %1542 = vmatpush.bf16.msra.mxu0 %v1113
          %1543 = vmatpush.bf16.msra.mxu0 %v1109
          %1544 = vmatpush.bf16.msra.mxu0 %v1105
          %1545 = vmatpush.bf16.msra.mxu0 %v1101
          %1546 = vmatpush.bf16.msra.mxu0 %v1097
          %1547 = vmatmul.bf16.gmra.mxu0 %v601
          %v1548 = vpop.f32.mrf.mxu0
          %v1549 = vadd.f32 %v1530, %v1548
          %v1550 = vpop.f32.mrf.mxu0
          %v1551 = vadd.f32 %v1532, %v1550
          %1552 = vmatmul.bf16.gmra.mxu0 %v605
          %v1553 = vpop.f32.mrf.mxu0
          %v1554 = vadd.f32 %v1535, %v1553
          %v1555 = vpop.f32.mrf.mxu0
          %v1556 = vadd.f32 %v1537, %v1555
          %1557 = vdwg.mxu0
          %v1558 = vmax.f32 %v1321, 0.0
          %v1559 = vmax.f32 %v1397, 0.0
          %v1560 = vmax.f32 %v1473, 0.0
          %v1561 = vmax.f32 %v1549, 0.0
          %v1562 = vmax.f32 %v1323, 0.0
          %v1563 = vmax.f32 %v1399, 0.0
          %v1564 = vmax.f32 %v1475, 0.0
          %v1565 = vmax.f32 %v1551, 0.0
          %v1566 = vmax.f32 %v1326, 0.0
          %v1567 = vmax.f32 %v1402, 0.0
          %v1568 = vmax.f32 %v1478, 0.0
          %v1569 = vmax.f32 %v1554, 0.0
          %v1570 = vmax.f32 %v1328, 0.0
          %v1571 = vmax.f32 %v1404, 0.0
          %v1572 = vmax.f32 %v1480, 0.0
          %v1573 = vmax.f32 %v1556, 0.0
          %v1574 = vpack.c.bf16 %v1562, %v1558
          %v1575 = vpack.c.bf16 %v1563, %v1559
          %v1576 = vpack.c.bf16 %v1564, %v1560
          %v1577 = vpack.c.bf16 %v1565, %v1561
          %v1578 = vpack.c.bf16 %v1570, %v1566
          %v1579 = vpack.c.bf16 %v1571, %v1567
          %v1580 = vpack.c.bf16 %v1572, %v1568
          %v1581 = vpack.c.bf16 %v1573, %v1569
          %v1582 = vld [vmem:[#allocation9] sm:$0xff]
          %v1583 = vld [vmem:[#allocation9 + $0x8] sm:$0xff]
          %v1584 = vld [vmem:[#allocation9 + $0x10] sm:$0xff]
          %v1585 = vld [vmem:[#allocation9 + $0x18] sm:$0xff]
          %v1586 = vld [vmem:[#allocation9 + $0x20] sm:$0xff]
          %v1587 = vld [vmem:[#allocation9 + $0x28] sm:$0xff]
          %v1588 = vld [vmem:[#allocation9 + $0x30] sm:$0xff]
          %v1589 = vld [vmem:[#allocation9 + $0x38] sm:$0xff]
          %v1590 = vld [vmem:[#allocation9 + $0x40] sm:$0xff]
          %v1591 = vld [vmem:[#allocation9 + $0x48] sm:$0xff]
          %v1592 = vld [vmem:[#allocation9 + $0x50] sm:$0xff]
          %v1593 = vld [vmem:[#allocation9 + $0x58] sm:$0xff]
          %v1594 = vld [vmem:[#allocation9 + $0x60] sm:$0xff]
          %v1595 = vld [vmem:[#allocation9 + $0x68] sm:$0xff]
          %v1596 = vld [vmem:[#allocation9 + $0x70] sm:$0xff]
          %v1597 = vld [vmem:[#allocation9 + $0x78] sm:$0xff]
          %v1598 = vld [vmem:[#allocation9 + $0x80] sm:$0xff]
          %v1599 = vld [vmem:[#allocation9 + $0x88] sm:$0xff]
          %v1600 = vld [vmem:[#allocation9 + $0x90] sm:$0xff]
          %v1601 = vld [vmem:[#allocation9 + $0x98] sm:$0xff]
          %v1602 = vld [vmem:[#allocation9 + $0xa0] sm:$0xff]
          %v1603 = vld [vmem:[#allocation9 + $0xa8] sm:$0xff]
          %v1604 = vld [vmem:[#allocation9 + $0xb0] sm:$0xff]
          %v1605 = vld [vmem:[#allocation9 + $0xb8] sm:$0xff]
          %v1606 = vld [vmem:[#allocation9 + $0xc0] sm:$0xff]
          %v1607 = vld [vmem:[#allocation9 + $0xc8] sm:$0xff]
          %v1608 = vld [vmem:[#allocation9 + $0xd0] sm:$0xff]
          %v1609 = vld [vmem:[#allocation9 + $0xd8] sm:$0xff]
          %v1610 = vld [vmem:[#allocation9 + $0xe0] sm:$0xff]
          %v1611 = vld [vmem:[#allocation9 + $0xe8] sm:$0xff]
          %v1612 = vld [vmem:[#allocation9 + $0xf0] sm:$0xff]
          %v1613 = vld [vmem:[#allocation9 + $0xf8] sm:$0xff]
          %v1614 = vld [vmem:[#allocation9 + $0x100] sm:$0xff]
          %v1615 = vld [vmem:[#allocation9 + $0x108] sm:$0xff]
          %v1616 = vld [vmem:[#allocation9 + $0x110] sm:$0xff]
          %v1617 = vld [vmem:[#allocation9 + $0x118] sm:$0xff]
          %v1618 = vld [vmem:[#allocation9 + $0x120] sm:$0xff]
          %v1619 = vld [vmem:[#allocation9 + $0x128] sm:$0xff]
          %v1620 = vld [vmem:[#allocation9 + $0x130] sm:$0xff]
          %v1621 = vld [vmem:[#allocation9 + $0x138] sm:$0xff]
          %v1622 = vld [vmem:[#allocation9 + $0x140] sm:$0xff]
          %v1623 = vld [vmem:[#allocation9 + $0x148] sm:$0xff]
          %v1624 = vld [vmem:[#allocation9 + $0x150] sm:$0xff]
          %v1625 = vld [vmem:[#allocation9 + $0x158] sm:$0xff]
          %v1626 = vld [vmem:[#allocation9 + $0x160] sm:$0xff]
          %v1627 = vld [vmem:[#allocation9 + $0x168] sm:$0xff]
          %v1628 = vld [vmem:[#allocation9 + $0x170] sm:$0xff]
          %v1629 = vld [vmem:[#allocation9 + $0x178] sm:$0xff]
          %v1630 = vld [vmem:[#allocation9 + $0x180] sm:$0xff]
          %v1631 = vld [vmem:[#allocation9 + $0x188] sm:$0xff]
          %v1632 = vld [vmem:[#allocation9 + $0x190] sm:$0xff]
          %v1633 = vld [vmem:[#allocation9 + $0x198] sm:$0xff]
          %v1634 = vld [vmem:[#allocation9 + $0x1a0] sm:$0xff]
          %v1635 = vld [vmem:[#allocation9 + $0x1a8] sm:$0xff]
          %v1636 = vld [vmem:[#allocation9 + $0x1b0] sm:$0xff]
          %v1637 = vld [vmem:[#allocation9 + $0x1b8] sm:$0xff]
          %v1638 = vld [vmem:[#allocation9 + $0x1c0] sm:$0xff]
          %v1639 = vld [vmem:[#allocation9 + $0x1c8] sm:$0xff]
          %v1640 = vld [vmem:[#allocation9 + $0x1d0] sm:$0xff]
          %v1641 = vld [vmem:[#allocation9 + $0x1d8] sm:$0xff]
          %v1642 = vld [vmem:[#allocation9 + $0x1e0] sm:$0xff]
          %v1643 = vld [vmem:[#allocation9 + $0x1e8] sm:$0xff]
          %v1644 = vld [vmem:[#allocation9 + $0x1f0] sm:$0xff]
          %v1645 = vld [vmem:[#allocation9 + $0x1f8] sm:$0xff]
          %v1646 = vld [vmem:[#allocation9 + $0x200] sm:$0xff]
          %v1647 = vld [vmem:[#allocation9 + $0x208] sm:$0xff]
          %v1648 = vld [vmem:[#allocation9 + $0x210] sm:$0xff]
          %v1649 = vld [vmem:[#allocation9 + $0x218] sm:$0xff]
          %v1650 = vld [vmem:[#allocation9 + $0x220] sm:$0xff]
          %v1651 = vld [vmem:[#allocation9 + $0x228] sm:$0xff]
          %v1652 = vld [vmem:[#allocation9 + $0x230] sm:$0xff]
          %v1653 = vld [vmem:[#allocation9 + $0x238] sm:$0xff]
          %v1654 = vld [vmem:[#allocation9 + $0x240] sm:$0xff]
          %v1655 = vld [vmem:[#allocation9 + $0x248] sm:$0xff]
          %v1656 = vld [vmem:[#allocation9 + $0x250] sm:$0xff]
          %v1657 = vld [vmem:[#allocation9 + $0x258] sm:$0xff]
          %v1658 = vld [vmem:[#allocation9 + $0x260] sm:$0xff]
          %v1659 = vld [vmem:[#allocation9 + $0x268] sm:$0xff]
          %v1660 = vld [vmem:[#allocation9 + $0x270] sm:$0xff]
          %v1661 = vld [vmem:[#allocation9 + $0x278] sm:$0xff]
          %v1662 = vld [vmem:[#allocation9 + $0x280] sm:$0xff]
          %v1663 = vld [vmem:[#allocation9 + $0x288] sm:$0xff]
          %v1664 = vld [vmem:[#allocation9 + $0x290] sm:$0xff]
          %v1665 = vld [vmem:[#allocation9 + $0x298] sm:$0xff]
          %v1666 = vld [vmem:[#allocation9 + $0x2a0] sm:$0xff]
          %v1667 = vld [vmem:[#allocation9 + $0x2a8] sm:$0xff]
          %v1668 = vld [vmem:[#allocation9 + $0x2b0] sm:$0xff]
          %v1669 = vld [vmem:[#allocation9 + $0x2b8] sm:$0xff]
          %v1670 = vld [vmem:[#allocation9 + $0x2c0] sm:$0xff]
          %v1671 = vld [vmem:[#allocation9 + $0x2c8] sm:$0xff]
          %v1672 = vld [vmem:[#allocation9 + $0x2d0] sm:$0xff]
          %v1673 = vld [vmem:[#allocation9 + $0x2d8] sm:$0xff]
          %v1674 = vld [vmem:[#allocation9 + $0x2e0] sm:$0xff]
          %v1675 = vld [vmem:[#allocation9 + $0x2e8] sm:$0xff]
          %v1676 = vld [vmem:[#allocation9 + $0x2f0] sm:$0xff]
          %v1677 = vld [vmem:[#allocation9 + $0x2f8] sm:$0xff]
          %v1678 = vld [vmem:[#allocation9 + $0x300] sm:$0xff]
          %v1679 = vld [vmem:[#allocation9 + $0x308] sm:$0xff]
          %v1680 = vld [vmem:[#allocation9 + $0x310] sm:$0xff]
          %v1681 = vld [vmem:[#allocation9 + $0x318] sm:$0xff]
          %v1682 = vld [vmem:[#allocation9 + $0x320] sm:$0xff]
          %v1683 = vld [vmem:[#allocation9 + $0x328] sm:$0xff]
          %v1684 = vld [vmem:[#allocation9 + $0x330] sm:$0xff]
          %v1685 = vld [vmem:[#allocation9 + $0x338] sm:$0xff]
          %v1686 = vld [vmem:[#allocation9 + $0x340] sm:$0xff]
          %v1687 = vld [vmem:[#allocation9 + $0x348] sm:$0xff]
          %v1688 = vld [vmem:[#allocation9 + $0x350] sm:$0xff]
          %v1689 = vld [vmem:[#allocation9 + $0x358] sm:$0xff]
          %v1690 = vld [vmem:[#allocation9 + $0x360] sm:$0xff]
          %v1691 = vld [vmem:[#allocation9 + $0x368] sm:$0xff]
          %v1692 = vld [vmem:[#allocation9 + $0x370] sm:$0xff]
          %v1693 = vld [vmem:[#allocation9 + $0x378] sm:$0xff]
          %v1694 = vld [vmem:[#allocation9 + $0x380] sm:$0xff]
          %v1695 = vld [vmem:[#allocation9 + $0x388] sm:$0xff]
          %v1696 = vld [vmem:[#allocation9 + $0x390] sm:$0xff]
          %v1697 = vld [vmem:[#allocation9 + $0x398] sm:$0xff]
          %v1698 = vld [vmem:[#allocation9 + $0x3a0] sm:$0xff]
          %v1699 = vld [vmem:[#allocation9 + $0x3a8] sm:$0xff]
          %v1700 = vld [vmem:[#allocation9 + $0x3b0] sm:$0xff]
          %v1701 = vld [vmem:[#allocation9 + $0x3b8] sm:$0xff]
          %v1702 = vld [vmem:[#allocation9 + $0x3c0] sm:$0xff]
          %v1703 = vld [vmem:[#allocation9 + $0x3c8] sm:$0xff]
          %v1704 = vld [vmem:[#allocation9 + $0x3d0] sm:$0xff]
          %v1705 = vld [vmem:[#allocation9 + $0x3d8] sm:$0xff]
          %v1706 = vld [vmem:[#allocation9 + $0x3e0] sm:$0xff]
          %v1707 = vld [vmem:[#allocation9 + $0x3e8] sm:$0xff]
          %v1708 = vld [vmem:[#allocation9 + $0x3f0] sm:$0xff]
          %v1709 = vld [vmem:[#allocation9 + $0x3f8] sm:$0xff]
          %v1710 = vld [vmem:[#allocation11] sm:$0xf]
          %v1712 = vperm.slane %v1710, 0
          %v1713 = vperm.slane %v1710, 1
          %v1714 = vperm.slane %v1710, 2
          %v1715 = vperm.slane %v1710, 3
          %v1848 = vunpack.c.l.b16 %v1582
          %v1849 = vunpack.c.h.b16 %v1582
          %v1850 = vunpack.c.l.b16 %v1583
          %v1851 = vunpack.c.h.b16 %v1583
          %v1852 = vunpack.c.l.b16 %v1584
          %v1853 = vunpack.c.h.b16 %v1584
          %v1854 = vunpack.c.l.b16 %v1585
          %v1855 = vunpack.c.h.b16 %v1585
          %v1856 = vunpack.c.l.b16 %v1586
          %v1857 = vunpack.c.h.b16 %v1586
          %v1858 = vunpack.c.l.b16 %v1587
          %v1859 = vunpack.c.h.b16 %v1587
          %v1860 = vunpack.c.l.b16 %v1588
          %v1861 = vunpack.c.h.b16 %v1588
          %v1862 = vunpack.c.l.b16 %v1589
          %v1863 = vunpack.c.h.b16 %v1589
          %v1864 = vunpack.c.l.b16 %v1590
          %v1865 = vunpack.c.h.b16 %v1590
          %v1866 = vunpack.c.l.b16 %v1591
          %v1867 = vunpack.c.h.b16 %v1591
          %v1868 = vunpack.c.l.b16 %v1592
          %v1869 = vunpack.c.h.b16 %v1592
          %v1870 = vunpack.c.l.b16 %v1593
          %v1871 = vunpack.c.h.b16 %v1593
          %v1872 = vunpack.c.l.b16 %v1594
          %v1873 = vunpack.c.h.b16 %v1594
          %v1874 = vunpack.c.l.b16 %v1595
          %v1875 = vunpack.c.h.b16 %v1595
          %v1876 = vunpack.c.l.b16 %v1596
          %v1877 = vunpack.c.h.b16 %v1596
          %v1878 = vunpack.c.l.b16 %v1597
          %v1879 = vunpack.c.h.b16 %v1597
          %v1880 = vunpack.c.l.b16 %v1598
          %v1881 = vunpack.c.h.b16 %v1598
          %v1882 = vunpack.c.l.b16 %v1599
          %v1883 = vunpack.c.h.b16 %v1599
          %v1884 = vunpack.c.l.b16 %v1600
          %v1885 = vunpack.c.h.b16 %v1600
          %v1886 = vunpack.c.l.b16 %v1601
          %v1887 = vunpack.c.h.b16 %v1601
          %v1888 = vunpack.c.l.b16 %v1602
          %v1889 = vunpack.c.h.b16 %v1602
          %v1890 = vunpack.c.l.b16 %v1603
          %v1891 = vunpack.c.h.b16 %v1603
          %v1892 = vunpack.c.l.b16 %v1604
          %v1893 = vunpack.c.h.b16 %v1604
          %v1894 = vunpack.c.l.b16 %v1605
          %v1895 = vunpack.c.h.b16 %v1605
          %v1896 = vunpack.c.l.b16 %v1606
          %v1897 = vunpack.c.h.b16 %v1606
          %v1898 = vunpack.c.l.b16 %v1607
          %v1899 = vunpack.c.h.b16 %v1607
          %v1900 = vunpack.c.l.b16 %v1608
          %v1901 = vunpack.c.h.b16 %v1608
          %v1902 = vunpack.c.l.b16 %v1609
          %v1903 = vunpack.c.h.b16 %v1609
          %v1904 = vunpack.c.l.b16 %v1610
          %v1905 = vunpack.c.h.b16 %v1610
          %v1906 = vunpack.c.l.b16 %v1611
          %v1907 = vunpack.c.h.b16 %v1611
          %v1908 = vunpack.c.l.b16 %v1612
          %v1909 = vunpack.c.h.b16 %v1612
          %v1910 = vunpack.c.l.b16 %v1613
          %v1911 = vunpack.c.h.b16 %v1613
          %v1912 = vunpack.c.l.b16 %v1614
          %v1913 = vunpack.c.h.b16 %v1614
          %v1914 = vunpack.c.l.b16 %v1615
          %v1915 = vunpack.c.h.b16 %v1615
          %v1916 = vunpack.c.l.b16 %v1616
          %v1917 = vunpack.c.h.b16 %v1616
          %v1918 = vunpack.c.l.b16 %v1617
          %v1919 = vunpack.c.h.b16 %v1617
          %v1920 = vunpack.c.l.b16 %v1618
          %v1921 = vunpack.c.h.b16 %v1618
          %v1922 = vunpack.c.l.b16 %v1619
          %v1923 = vunpack.c.h.b16 %v1619
          %v1924 = vunpack.c.l.b16 %v1620
          %v1925 = vunpack.c.h.b16 %v1620
          %v1926 = vunpack.c.l.b16 %v1621
          %v1927 = vunpack.c.h.b16 %v1621
          %v1928 = vunpack.c.l.b16 %v1622
          %v1929 = vunpack.c.h.b16 %v1622
          %v1930 = vunpack.c.l.b16 %v1623
          %v1931 = vunpack.c.h.b16 %v1623
          %v1932 = vunpack.c.l.b16 %v1624
          %v1933 = vunpack.c.h.b16 %v1624
          %v1934 = vunpack.c.l.b16 %v1625
          %v1935 = vunpack.c.h.b16 %v1625
          %v1936 = vunpack.c.l.b16 %v1626
          %v1937 = vunpack.c.h.b16 %v1626
          %v1938 = vunpack.c.l.b16 %v1627
          %v1939 = vunpack.c.h.b16 %v1627
          %v1940 = vunpack.c.l.b16 %v1628
          %v1941 = vunpack.c.h.b16 %v1628
          %v1942 = vunpack.c.l.b16 %v1629
          %v1943 = vunpack.c.h.b16 %v1629
          %v1944 = vunpack.c.l.b16 %v1630
          %v1945 = vunpack.c.h.b16 %v1630
          %v1946 = vunpack.c.l.b16 %v1631
          %v1947 = vunpack.c.h.b16 %v1631
          %v1948 = vunpack.c.l.b16 %v1632
          %v1949 = vunpack.c.h.b16 %v1632
          %v1950 = vunpack.c.l.b16 %v1633
          %v1951 = vunpack.c.h.b16 %v1633
          %v1952 = vunpack.c.l.b16 %v1634
          %v1953 = vunpack.c.h.b16 %v1634
          %v1954 = vunpack.c.l.b16 %v1635
          %v1955 = vunpack.c.h.b16 %v1635
          %v1956 = vunpack.c.l.b16 %v1636
          %v1957 = vunpack.c.h.b16 %v1636
          %v1958 = vunpack.c.l.b16 %v1637
          %v1959 = vunpack.c.h.b16 %v1637
          %v1960 = vunpack.c.l.b16 %v1638
          %v1961 = vunpack.c.h.b16 %v1638
          %v1962 = vunpack.c.l.b16 %v1639
          %v1963 = vunpack.c.h.b16 %v1639
          %v1964 = vunpack.c.l.b16 %v1640
          %v1965 = vunpack.c.h.b16 %v1640
          %v1966 = vunpack.c.l.b16 %v1641
          %v1967 = vunpack.c.h.b16 %v1641
          %v1968 = vunpack.c.l.b16 %v1642
          %v1969 = vunpack.c.h.b16 %v1642
          %v1970 = vunpack.c.l.b16 %v1643
          %v1971 = vunpack.c.h.b16 %v1643
          %v1972 = vunpack.c.l.b16 %v1644
          %v1973 = vunpack.c.h.b16 %v1644
          %v1974 = vunpack.c.l.b16 %v1645
          %v1975 = vunpack.c.h.b16 %v1645
          %v1976 = vunpack.c.l.b16 %v1646
          %v1977 = vunpack.c.h.b16 %v1646
          %v1978 = vunpack.c.l.b16 %v1647
          %v1979 = vunpack.c.h.b16 %v1647
          %v1980 = vunpack.c.l.b16 %v1648
          %v1981 = vunpack.c.h.b16 %v1648
          %v1982 = vunpack.c.l.b16 %v1649
          %v1983 = vunpack.c.h.b16 %v1649
          %v1984 = vunpack.c.l.b16 %v1650
          %v1985 = vunpack.c.h.b16 %v1650
          %v1986 = vunpack.c.l.b16 %v1651
          %v1987 = vunpack.c.h.b16 %v1651
          %v1988 = vunpack.c.l.b16 %v1652
          %v1989 = vunpack.c.h.b16 %v1652
          %v1990 = vunpack.c.l.b16 %v1653
          %v1991 = vunpack.c.h.b16 %v1653
          %v1992 = vunpack.c.l.b16 %v1654
          %v1993 = vunpack.c.h.b16 %v1654
          %v1994 = vunpack.c.l.b16 %v1655
          %v1995 = vunpack.c.h.b16 %v1655
          %v1996 = vunpack.c.l.b16 %v1656
          %v1997 = vunpack.c.h.b16 %v1656
          %v1998 = vunpack.c.l.b16 %v1657
          %v1999 = vunpack.c.h.b16 %v1657
          %v2000 = vunpack.c.l.b16 %v1658
          %v2001 = vunpack.c.h.b16 %v1658
          %v2002 = vunpack.c.l.b16 %v1659
          %v2003 = vunpack.c.h.b16 %v1659
          %v2004 = vunpack.c.l.b16 %v1660
          %v2005 = vunpack.c.h.b16 %v1660
          %v2006 = vunpack.c.l.b16 %v1661
          %v2007 = vunpack.c.h.b16 %v1661
          %v2008 = vunpack.c.l.b16 %v1662
          %v2009 = vunpack.c.h.b16 %v1662
          %v2010 = vunpack.c.l.b16 %v1663
          %v2011 = vunpack.c.h.b16 %v1663
          %v2012 = vunpack.c.l.b16 %v1664
          %v2013 = vunpack.c.h.b16 %v1664
          %v2014 = vunpack.c.l.b16 %v1665
          %v2015 = vunpack.c.h.b16 %v1665
          %v2016 = vunpack.c.l.b16 %v1666
          %v2017 = vunpack.c.h.b16 %v1666
          %v2018 = vunpack.c.l.b16 %v1667
          %v2019 = vunpack.c.h.b16 %v1667
          %v2020 = vunpack.c.l.b16 %v1668
          %v2021 = vunpack.c.h.b16 %v1668
          %v2022 = vunpack.c.l.b16 %v1669
          %v2023 = vunpack.c.h.b16 %v1669
          %v2024 = vunpack.c.l.b16 %v1670
          %v2025 = vunpack.c.h.b16 %v1670
          %v2026 = vunpack.c.l.b16 %v1671
          %v2027 = vunpack.c.h.b16 %v1671
          %v2028 = vunpack.c.l.b16 %v1672
          %v2029 = vunpack.c.h.b16 %v1672
          %v2030 = vunpack.c.l.b16 %v1673
          %v2031 = vunpack.c.h.b16 %v1673
          %v2032 = vunpack.c.l.b16 %v1674
          %v2033 = vunpack.c.h.b16 %v1674
          %v2034 = vunpack.c.l.b16 %v1675
          %v2035 = vunpack.c.h.b16 %v1675
          %v2036 = vunpack.c.l.b16 %v1676
          %v2037 = vunpack.c.h.b16 %v1676
          %v2038 = vunpack.c.l.b16 %v1677
          %v2039 = vunpack.c.h.b16 %v1677
          %v2040 = vunpack.c.l.b16 %v1678
          %v2041 = vunpack.c.h.b16 %v1678
          %v2042 = vunpack.c.l.b16 %v1679
          %v2043 = vunpack.c.h.b16 %v1679
          %v2044 = vunpack.c.l.b16 %v1680
          %v2045 = vunpack.c.h.b16 %v1680
          %v2046 = vunpack.c.l.b16 %v1681
          %v2047 = vunpack.c.h.b16 %v1681
          %v2048 = vunpack.c.l.b16 %v1682
          %v2049 = vunpack.c.h.b16 %v1682
          %v2050 = vunpack.c.l.b16 %v1683
          %v2051 = vunpack.c.h.b16 %v1683
          %v2052 = vunpack.c.l.b16 %v1684
          %v2053 = vunpack.c.h.b16 %v1684
          %v2054 = vunpack.c.l.b16 %v1685
          %v2055 = vunpack.c.h.b16 %v1685
          %v2056 = vunpack.c.l.b16 %v1686
          %v2057 = vunpack.c.h.b16 %v1686
          %v2058 = vunpack.c.l.b16 %v1687
          %v2059 = vunpack.c.h.b16 %v1687
          %v2060 = vunpack.c.l.b16 %v1688
          %v2061 = vunpack.c.h.b16 %v1688
          %v2062 = vunpack.c.l.b16 %v1689
          %v2063 = vunpack.c.h.b16 %v1689
          %v2064 = vunpack.c.l.b16 %v1690
          %v2065 = vunpack.c.h.b16 %v1690
          %v2066 = vunpack.c.l.b16 %v1691
          %v2067 = vunpack.c.h.b16 %v1691
          %v2068 = vunpack.c.l.b16 %v1692
          %v2069 = vunpack.c.h.b16 %v1692
          %v2070 = vunpack.c.l.b16 %v1693
          %v2071 = vunpack.c.h.b16 %v1693
          %v2072 = vunpack.c.l.b16 %v1694
          %v2073 = vunpack.c.h.b16 %v1694
          %v2074 = vunpack.c.l.b16 %v1695
          %v2075 = vunpack.c.h.b16 %v1695
          %v2076 = vunpack.c.l.b16 %v1696
          %v2077 = vunpack.c.h.b16 %v1696
          %v2078 = vunpack.c.l.b16 %v1697
          %v2079 = vunpack.c.h.b16 %v1697
          %v2080 = vunpack.c.l.b16 %v1698
          %v2081 = vunpack.c.h.b16 %v1698
          %v2082 = vunpack.c.l.b16 %v1699
          %v2083 = vunpack.c.h.b16 %v1699
          %v2084 = vunpack.c.l.b16 %v1700
          %v2085 = vunpack.c.h.b16 %v1700
          %v2086 = vunpack.c.l.b16 %v1701
          %v2087 = vunpack.c.h.b16 %v1701
          %v2088 = vunpack.c.l.b16 %v1702
          %v2089 = vunpack.c.h.b16 %v1702
          %v2090 = vunpack.c.l.b16 %v1703
          %v2091 = vunpack.c.h.b16 %v1703
          %v2092 = vunpack.c.l.b16 %v1704
          %v2093 = vunpack.c.h.b16 %v1704
          %v2094 = vunpack.c.l.b16 %v1705
          %v2095 = vunpack.c.h.b16 %v1705
          %v2096 = vunpack.c.l.b16 %v1706
          %v2097 = vunpack.c.h.b16 %v1706
          %v2098 = vunpack.c.l.b16 %v1707
          %v2099 = vunpack.c.h.b16 %v1707
          %v2100 = vunpack.c.l.b16 %v1708
          %v2101 = vunpack.c.h.b16 %v1708
          %v2102 = vunpack.c.l.b16 %v1709
          %v2103 = vunpack.c.h.b16 %v1709
          %v2104 = vpack.c.b16 %v1852, %v1848
          %v2105 = vpack.c.b16 %v1853, %v1849
          %v2106 = vpack.c.b16 %v1854, %v1850
          %v2107 = vpack.c.b16 %v1855, %v1851
          %v2108 = vpack.c.b16 %v1860, %v1856
          %v2109 = vpack.c.b16 %v1861, %v1857
          %v2110 = vpack.c.b16 %v1862, %v1858
          %v2111 = vpack.c.b16 %v1863, %v1859
          %v2112 = vpack.c.b16 %v1868, %v1864
          %v2113 = vpack.c.b16 %v1869, %v1865
          %v2114 = vpack.c.b16 %v1870, %v1866
          %v2115 = vpack.c.b16 %v1871, %v1867
          %v2116 = vpack.c.b16 %v1876, %v1872
          %v2117 = vpack.c.b16 %v1877, %v1873
          %v2118 = vpack.c.b16 %v1878, %v1874
          %v2119 = vpack.c.b16 %v1879, %v1875
          %v2120 = vpack.c.b16 %v1884, %v1880
          %v2121 = vpack.c.b16 %v1885, %v1881
          %v2122 = vpack.c.b16 %v1886, %v1882
          %v2123 = vpack.c.b16 %v1887, %v1883
          %v2124 = vpack.c.b16 %v1892, %v1888
          %v2125 = vpack.c.b16 %v1893, %v1889
          %v2126 = vpack.c.b16 %v1894, %v1890
          %v2127 = vpack.c.b16 %v1895, %v1891
          %v2128 = vpack.c.b16 %v1900, %v1896
          %v2129 = vpack.c.b16 %v1901, %v1897
          %v2130 = vpack.c.b16 %v1902, %v1898
          %v2131 = vpack.c.b16 %v1903, %v1899
          %v2132 = vpack.c.b16 %v1908, %v1904
          %v2133 = vpack.c.b16 %v1909, %v1905
          %v2134 = vpack.c.b16 %v1910, %v1906
          %v2135 = vpack.c.b16 %v1911, %v1907
          %v2136 = vpack.c.b16 %v1916, %v1912
          %v2137 = vpack.c.b16 %v1917, %v1913
          %v2138 = vpack.c.b16 %v1918, %v1914
          %v2139 = vpack.c.b16 %v1919, %v1915
          %v2140 = vpack.c.b16 %v1924, %v1920
          %v2141 = vpack.c.b16 %v1925, %v1921
          %v2142 = vpack.c.b16 %v1926, %v1922
          %v2143 = vpack.c.b16 %v1927, %v1923
          %v2144 = vpack.c.b16 %v1932, %v1928
          %v2145 = vpack.c.b16 %v1933, %v1929
          %v2146 = vpack.c.b16 %v1934, %v1930
          %v2147 = vpack.c.b16 %v1935, %v1931
          %v2148 = vpack.c.b16 %v1940, %v1936
          %v2149 = vpack.c.b16 %v1941, %v1937
          %v2150 = vpack.c.b16 %v1942, %v1938
          %v2151 = vpack.c.b16 %v1943, %v1939
          %v2152 = vpack.c.b16 %v1948, %v1944
          %v2153 = vpack.c.b16 %v1949, %v1945
          %v2154 = vpack.c.b16 %v1950, %v1946
          %v2155 = vpack.c.b16 %v1951, %v1947
          %v2156 = vpack.c.b16 %v1956, %v1952
          %v2157 = vpack.c.b16 %v1957, %v1953
          %v2158 = vpack.c.b16 %v1958, %v1954
          %v2159 = vpack.c.b16 %v1959, %v1955
          %v2160 = vpack.c.b16 %v1964, %v1960
          %v2161 = vpack.c.b16 %v1965, %v1961
          %v2162 = vpack.c.b16 %v1966, %v1962
          %v2163 = vpack.c.b16 %v1967, %v1963
          %v2164 = vpack.c.b16 %v1972, %v1968
          %v2165 = vpack.c.b16 %v1973, %v1969
          %v2166 = vpack.c.b16 %v1974, %v1970
          %v2167 = vpack.c.b16 %v1975, %v1971
          %v2168 = vpack.c.b16 %v1980, %v1976
          %v2169 = vpack.c.b16 %v1981, %v1977
          %v2170 = vpack.c.b16 %v1982, %v1978
          %v2171 = vpack.c.b16 %v1983, %v1979
          %v2172 = vpack.c.b16 %v1988, %v1984
          %v2173 = vpack.c.b16 %v1989, %v1985
          %v2174 = vpack.c.b16 %v1990, %v1986
          %v2175 = vpack.c.b16 %v1991, %v1987
          %v2176 = vpack.c.b16 %v1996, %v1992
          %v2177 = vpack.c.b16 %v1997, %v1993
          %v2178 = vpack.c.b16 %v1998, %v1994
          %v2179 = vpack.c.b16 %v1999, %v1995
          %v2180 = vpack.c.b16 %v2004, %v2000
          %v2181 = vpack.c.b16 %v2005, %v2001
          %v2182 = vpack.c.b16 %v2006, %v2002
          %v2183 = vpack.c.b16 %v2007, %v2003
          %v2184 = vpack.c.b16 %v2012, %v2008
          %v2185 = vpack.c.b16 %v2013, %v2009
          %v2186 = vpack.c.b16 %v2014, %v2010
          %v2187 = vpack.c.b16 %v2015, %v2011
          %v2188 = vpack.c.b16 %v2020, %v2016
          %v2189 = vpack.c.b16 %v2021, %v2017
          %v2190 = vpack.c.b16 %v2022, %v2018
          %v2191 = vpack.c.b16 %v2023, %v2019
          %v2192 = vpack.c.b16 %v2028, %v2024
          %v2193 = vpack.c.b16 %v2029, %v2025
          %v2194 = vpack.c.b16 %v2030, %v2026
          %v2195 = vpack.c.b16 %v2031, %v2027
          %v2196 = vpack.c.b16 %v2036, %v2032
          %v2197 = vpack.c.b16 %v2037, %v2033
          %v2198 = vpack.c.b16 %v2038, %v2034
          %v2199 = vpack.c.b16 %v2039, %v2035
          %v2200 = vpack.c.b16 %v2044, %v2040
          %v2201 = vpack.c.b16 %v2045, %v2041
          %v2202 = vpack.c.b16 %v2046, %v2042
          %v2203 = vpack.c.b16 %v2047, %v2043
          %v2204 = vpack.c.b16 %v2052, %v2048
          %v2205 = vpack.c.b16 %v2053, %v2049
          %v2206 = vpack.c.b16 %v2054, %v2050
          %v2207 = vpack.c.b16 %v2055, %v2051
          %v2208 = vpack.c.b16 %v2060, %v2056
          %v2209 = vpack.c.b16 %v2061, %v2057
          %v2210 = vpack.c.b16 %v2062, %v2058
          %v2211 = vpack.c.b16 %v2063, %v2059
          %v2212 = vpack.c.b16 %v2068, %v2064
          %v2213 = vpack.c.b16 %v2069, %v2065
          %v2214 = vpack.c.b16 %v2070, %v2066
          %v2215 = vpack.c.b16 %v2071, %v2067
          %v2216 = vpack.c.b16 %v2076, %v2072
          %v2217 = vpack.c.b16 %v2077, %v2073
          %v2218 = vpack.c.b16 %v2078, %v2074
          %v2219 = vpack.c.b16 %v2079, %v2075
          %v2220 = vpack.c.b16 %v2084, %v2080
          %v2221 = vpack.c.b16 %v2085, %v2081
          %v2222 = vpack.c.b16 %v2086, %v2082
          %v2223 = vpack.c.b16 %v2087, %v2083
          %v2224 = vpack.c.b16 %v2092, %v2088
          %v2225 = vpack.c.b16 %v2093, %v2089
          %v2226 = vpack.c.b16 %v2094, %v2090
          %v2227 = vpack.c.b16 %v2095, %v2091
          %v2228 = vpack.c.b16 %v2100, %v2096
          %v2229 = vpack.c.b16 %v2101, %v2097
          %v2230 = vpack.c.b16 %v2102, %v2098
          %v2231 = vpack.c.b16 %v2103, %v2099
          %2360 = vmatpush.bf16.msra.mxu0 %v2132
          %2361 = vmatpush.bf16.msra.mxu0 %v2128
          %2362 = vmatpush.bf16.msra.mxu0 %v2124
          %2363 = vmatpush.bf16.msra.mxu0 %v2120
          %2364 = vmatpush.bf16.msra.mxu0 %v2116
          %2365 = vmatpush.bf16.msra.mxu0 %v2112
          %2366 = vmatpush.bf16.msra.mxu0 %v2108
          %2367 = vmatpush.bf16.msra.mxu0 %v2104
          %2368 = vmatmul.bf16.gmra.mxu0 %v1574
          %v2369 = vpop.f32.mrf.mxu0
          %v2370 = vadd.f32 %v1712, %v2369
          %v2371 = vpop.f32.mrf.mxu0
          %v2372 = vadd.f32 %v1712, %v2371
          %2373 = vmatmul.bf16.gmra.mxu0 %v1578
          %v2374 = vpop.f32.mrf.mxu0
          %v2375 = vadd.f32 %v1712, %v2374
          %v2376 = vpop.f32.mrf.mxu0
          %v2377 = vadd.f32 %v1712, %v2376
          %2378 = vdwg.mxu0
          %2379 = vmatpush.bf16.msra.mxu0 %v2164
          %2380 = vmatpush.bf16.msra.mxu0 %v2160
          %2381 = vmatpush.bf16.msra.mxu0 %v2156
          %2382 = vmatpush.bf16.msra.mxu0 %v2152
          %2383 = vmatpush.bf16.msra.mxu0 %v2148
          %2384 = vmatpush.bf16.msra.mxu0 %v2144
          %2385 = vmatpush.bf16.msra.mxu0 %v2140
          %2386 = vmatpush.bf16.msra.mxu0 %v2136
          %2387 = vmatmul.bf16.gmra.mxu0 %v1575
          %v2388 = vpop.f32.mrf.mxu0
          %v2389 = vadd.f32 %v2370, %v2388
          %v2390 = vpop.f32.mrf.mxu0
          %v2391 = vadd.f32 %v2372, %v2390
          %2392 = vmatmul.bf16.gmra.mxu0 %v1579
          %v2393 = vpop.f32.mrf.mxu0
          %v2394 = vadd.f32 %v2375, %v2393
          %v2395 = vpop.f32.mrf.mxu0
          %v2396 = vadd.f32 %v2377, %v2395
          %2397 = vdwg.mxu0
          %2398 = vmatpush.bf16.msra.mxu0 %v2196
          %2399 = vmatpush.bf16.msra.mxu0 %v2192
          %2400 = vmatpush.bf16.msra.mxu0 %v2188
          %2401 = vmatpush.bf16.msra.mxu0 %v2184
          %2402 = vmatpush.bf16.msra.mxu0 %v2180
          %2403 = vmatpush.bf16.msra.mxu0 %v2176
          %2404 = vmatpush.bf16.msra.mxu0 %v2172
          %2405 = vmatpush.bf16.msra.mxu0 %v2168
          %2406 = vmatmul.bf16.gmra.mxu0 %v1576
          %v2407 = vpop.f32.mrf.mxu0
          %v2408 = vadd.f32 %v2389, %v2407
          %v2409 = vpop.f32.mrf.mxu0
          %v2410 = vadd.f32 %v2391, %v2409
          %2411 = vmatmul.bf16.gmra.mxu0 %v1580
          %v2412 = vpop.f32.mrf.mxu0
          %v2413 = vadd.f32 %v2394, %v2412
          %v2414 = vpop.f32.mrf.mxu0
          %v2415 = vadd.f32 %v2396, %v2414
          %2416 = vdwg.mxu0
          %2417 = vmatpush.bf16.msra.mxu0 %v2228
          %2418 = vmatpush.bf16.msra.mxu0 %v2224
          %2419 = vmatpush.bf16.msra.mxu0 %v2220
          %2420 = vmatpush.bf16.msra.mxu0 %v2216
          %2421 = vmatpush.bf16.msra.mxu0 %v2212
          %2422 = vmatpush.bf16.msra.mxu0 %v2208
          %2423 = vmatpush.bf16.msra.mxu0 %v2204
          %2424 = vmatpush.bf16.msra.mxu0 %v2200
          %2425 = vmatmul.bf16.gmra.mxu0 %v1577
          %v2426 = vpop.f32.mrf.mxu0
          %v2427 = vadd.f32 %v2408, %v2426
          %v2428 = vpop.f32.mrf.mxu0
          %v2429 = vadd.f32 %v2410, %v2428
          %2430 = vmatmul.bf16.gmra.mxu0 %v1581
          %v2431 = vpop.f32.mrf.mxu0
          %v2432 = vadd.f32 %v2413, %v2431
          %v2433 = vpop.f32.mrf.mxu0
          %v2434 = vadd.f32 %v2415, %v2433
          %2435 = vdwg.mxu0
          %2436 = vmatpush.bf16.msra.mxu0 %v2133
          %2437 = vmatpush.bf16.msra.mxu0 %v2129
          %2438 = vmatpush.bf16.msra.mxu0 %v2125
          %2439 = vmatpush.bf16.msra.mxu0 %v2121
          %2440 = vmatpush.bf16.msra.mxu0 %v2117
          %2441 = vmatpush.bf16.msra.mxu0 %v2113
          %2442 = vmatpush.bf16.msra.mxu0 %v2109
          %2443 = vmatpush.bf16.msra.mxu0 %v2105
          %2444 = vmatmul.bf16.gmra.mxu0 %v1574
          %v2445 = vpop.f32.mrf.mxu0
          %v2446 = vadd.f32 %v1713, %v2445
          %v2447 = vpop.f32.mrf.mxu0
          %v2448 = vadd.f32 %v1713, %v2447
          %2449 = vmatmul.bf16.gmra.mxu0 %v1578
          %v2450 = vpop.f32.mrf.mxu0
          %v2451 = vadd.f32 %v1713, %v2450
          %v2452 = vpop.f32.mrf.mxu0
          %v2453 = vadd.f32 %v1713, %v2452
          %2454 = vdwg.mxu0
          %2455 = vmatpush.bf16.msra.mxu0 %v2165
          %2456 = vmatpush.bf16.msra.mxu0 %v2161
          %2457 = vmatpush.bf16.msra.mxu0 %v2157
          %2458 = vmatpush.bf16.msra.mxu0 %v2153
          %2459 = vmatpush.bf16.msra.mxu0 %v2149
          %2460 = vmatpush.bf16.msra.mxu0 %v2145
          %2461 = vmatpush.bf16.msra.mxu0 %v2141
          %2462 = vmatpush.bf16.msra.mxu0 %v2137
          %2463 = vmatmul.bf16.gmra.mxu0 %v1575
          %v2464 = vpop.f32.mrf.mxu0
          %v2465 = vadd.f32 %v2446, %v2464
          %v2466 = vpop.f32.mrf.mxu0
          %v2467 = vadd.f32 %v2448, %v2466
          %2468 = vmatmul.bf16.gmra.mxu0 %v1579
          %v2469 = vpop.f32.mrf.mxu0
          %v2470 = vadd.f32 %v2451, %v2469
          %v2471 = vpop.f32.mrf.mxu0
          %v2472 = vadd.f32 %v2453, %v2471
          %2473 = vdwg.mxu0
          %2474 = vmatpush.bf16.msra.mxu0 %v2197
          %2475 = vmatpush.bf16.msra.mxu0 %v2193
          %2476 = vmatpush.bf16.msra.mxu0 %v2189
          %2477 = vmatpush.bf16.msra.mxu0 %v2185
          %2478 = vmatpush.bf16.msra.mxu0 %v2181
          %2479 = vmatpush.bf16.msra.mxu0 %v2177
          %2480 = vmatpush.bf16.msra.mxu0 %v2173
          %2481 = vmatpush.bf16.msra.mxu0 %v2169
          %2482 = vmatmul.bf16.gmra.mxu0 %v1576
          %v2483 = vpop.f32.mrf.mxu0
          %v2484 = vadd.f32 %v2465, %v2483
          %v2485 = vpop.f32.mrf.mxu0
          %v2486 = vadd.f32 %v2467, %v2485
          %2487 = vmatmul.bf16.gmra.mxu0 %v1580
          %v2488 = vpop.f32.mrf.mxu0
          %v2489 = vadd.f32 %v2470, %v2488
          %v2490 = vpop.f32.mrf.mxu0
          %v2491 = vadd.f32 %v2472, %v2490
          %2492 = vdwg.mxu0
          %2493 = vmatpush.bf16.msra.mxu0 %v2229
          %2494 = vmatpush.bf16.msra.mxu0 %v2225
          %2495 = vmatpush.bf16.msra.mxu0 %v2221
          %2496 = vmatpush.bf16.msra.mxu0 %v2217
          %2497 = vmatpush.bf16.msra.mxu0 %v2213
          %2498 = vmatpush.bf16.msra.mxu0 %v2209
          %2499 = vmatpush.bf16.msra.mxu0 %v2205
          %2500 = vmatpush.bf16.msra.mxu0 %v2201
          %2501 = vmatmul.bf16.gmra.mxu0 %v1577
          %v2502 = vpop.f32.mrf.mxu0
          %v2503 = vadd.f32 %v2484, %v2502
          %v2504 = vpop.f32.mrf.mxu0
          %v2505 = vadd.f32 %v2486, %v2504
          %2506 = vmatmul.bf16.gmra.mxu0 %v1581
          %v2507 = vpop.f32.mrf.mxu0
          %v2508 = vadd.f32 %v2489, %v2507
          %v2509 = vpop.f32.mrf.mxu0
          %v2510 = vadd.f32 %v2491, %v2509
          %2511 = vdwg.mxu0
          %2512 = vmatpush.bf16.msra.mxu0 %v2134
          %2513 = vmatpush.bf16.msra.mxu0 %v2130
          %2514 = vmatpush.bf16.msra.mxu0 %v2126
          %2515 = vmatpush.bf16.msra.mxu0 %v2122
          %2516 = vmatpush.bf16.msra.mxu0 %v2118
          %2517 = vmatpush.bf16.msra.mxu0 %v2114
          %2518 = vmatpush.bf16.msra.mxu0 %v2110
          %2519 = vmatpush.bf16.msra.mxu0 %v2106
          %2520 = vmatmul.bf16.gmra.mxu0 %v1574
          %v2521 = vpop.f32.mrf.mxu0
          %v2522 = vadd.f32 %v1714, %v2521
          %v2523 = vpop.f32.mrf.mxu0
          %v2524 = vadd.f32 %v1714, %v2523
          %2525 = vmatmul.bf16.gmra.mxu0 %v1578
          %v2526 = vpop.f32.mrf.mxu0
          %v2527 = vadd.f32 %v1714, %v2526
          %v2528 = vpop.f32.mrf.mxu0
          %v2529 = vadd.f32 %v1714, %v2528
          %2530 = vdwg.mxu0
          %2531 = vmatpush.bf16.msra.mxu0 %v2166
          %2532 = vmatpush.bf16.msra.mxu0 %v2162
          %2533 = vmatpush.bf16.msra.mxu0 %v2158
          %2534 = vmatpush.bf16.msra.mxu0 %v2154
          %2535 = vmatpush.bf16.msra.mxu0 %v2150
          %2536 = vmatpush.bf16.msra.mxu0 %v2146
          %2537 = vmatpush.bf16.msra.mxu0 %v2142
          %2538 = vmatpush.bf16.msra.mxu0 %v2138
          %2539 = vmatmul.bf16.gmra.mxu0 %v1575
          %v2540 = vpop.f32.mrf.mxu0
          %v2541 = vadd.f32 %v2522, %v2540
          %v2542 = vpop.f32.mrf.mxu0
          %v2543 = vadd.f32 %v2524, %v2542
          %2544 = vmatmul.bf16.gmra.mxu0 %v1579
          %v2545 = vpop.f32.mrf.mxu0
          %v2546 = vadd.f32 %v2527, %v2545
          %v2547 = vpop.f32.mrf.mxu0
          %v2548 = vadd.f32 %v2529, %v2547
          %2549 = vdwg.mxu0
          %2550 = vmatpush.bf16.msra.mxu0 %v2198
          %2551 = vmatpush.bf16.msra.mxu0 %v2194
          %2552 = vmatpush.bf16.msra.mxu0 %v2190
          %2553 = vmatpush.bf16.msra.mxu0 %v2186
          %2554 = vmatpush.bf16.msra.mxu0 %v2182
          %2555 = vmatpush.bf16.msra.mxu0 %v2178
          %2556 = vmatpush.bf16.msra.mxu0 %v2174
          %2557 = vmatpush.bf16.msra.mxu0 %v2170
          %2558 = vmatmul.bf16.gmra.mxu0 %v1576
          %v2559 = vpop.f32.mrf.mxu0
          %v2560 = vadd.f32 %v2541, %v2559
          %v2561 = vpop.f32.mrf.mxu0
          %v2562 = vadd.f32 %v2543, %v2561
          %2563 = vmatmul.bf16.gmra.mxu0 %v1580
          %v2564 = vpop.f32.mrf.mxu0
          %v2565 = vadd.f32 %v2546, %v2564
          %v2566 = vpop.f32.mrf.mxu0
          %v2567 = vadd.f32 %v2548, %v2566
          %2568 = vdwg.mxu0
          %2569 = vmatpush.bf16.msra.mxu0 %v2230
          %2570 = vmatpush.bf16.msra.mxu0 %v2226
          %2571 = vmatpush.bf16.msra.mxu0 %v2222
          %2572 = vmatpush.bf16.msra.mxu0 %v2218
          %2573 = vmatpush.bf16.msra.mxu0 %v2214
          %2574 = vmatpush.bf16.msra.mxu0 %v2210
          %2575 = vmatpush.bf16.msra.mxu0 %v2206
          %2576 = vmatpush.bf16.msra.mxu0 %v2202
          %2577 = vmatmul.bf16.gmra.mxu0 %v1577
          %v2578 = vpop.f32.mrf.mxu0
          %v2579 = vadd.f32 %v2560, %v2578
          %v2580 = vpop.f32.mrf.mxu0
          %v2581 = vadd.f32 %v2562, %v2580
          %2582 = vmatmul.bf16.gmra.mxu0 %v1581
          %v2583 = vpop.f32.mrf.mxu0
          %v2584 = vadd.f32 %v2565, %v2583
          %v2585 = vpop.f32.mrf.mxu0
          %v2586 = vadd.f32 %v2567, %v2585
          %2587 = vdwg.mxu0
          %2588 = vmatpush.bf16.msra.mxu0 %v2135
          %2589 = vmatpush.bf16.msra.mxu0 %v2131
          %2590 = vmatpush.bf16.msra.mxu0 %v2127
          %2591 = vmatpush.bf16.msra.mxu0 %v2123
          %2592 = vmatpush.bf16.msra.mxu0 %v2119
          %2593 = vmatpush.bf16.msra.mxu0 %v2115
          %2594 = vmatpush.bf16.msra.mxu0 %v2111
          %2595 = vmatpush.bf16.msra.mxu0 %v2107
          %2596 = vmatmul.bf16.gmra.mxu0 %v1574
          %v2597 = vpop.f32.mrf.mxu0
          %v2598 = vadd.f32 %v1715, %v2597
          %v2599 = vpop.f32.mrf.mxu0
          %v2600 = vadd.f32 %v1715, %v2599
          %2601 = vmatmul.bf16.gmra.mxu0 %v1578
          %v2602 = vpop.f32.mrf.mxu0
          %v2603 = vadd.f32 %v1715, %v2602
          %v2604 = vpop.f32.mrf.mxu0
          %v2605 = vadd.f32 %v1715, %v2604
          %2606 = vdwg.mxu0
          %2607 = vmatpush.bf16.msra.mxu0 %v2167
          %2608 = vmatpush.bf16.msra.mxu0 %v2163
          %2609 = vmatpush.bf16.msra.mxu0 %v2159
          %2610 = vmatpush.bf16.msra.mxu0 %v2155
          %2611 = vmatpush.bf16.msra.mxu0 %v2151
          %2612 = vmatpush.bf16.msra.mxu0 %v2147
          %2613 = vmatpush.bf16.msra.mxu0 %v2143
          %2614 = vmatpush.bf16.msra.mxu0 %v2139
          %2615 = vmatmul.bf16.gmra.mxu0 %v1575
          %v2616 = vpop.f32.mrf.mxu0
          %v2617 = vadd.f32 %v2598, %v2616
          %v2618 = vpop.f32.mrf.mxu0
          %v2619 = vadd.f32 %v2600, %v2618
          %2620 = vmatmul.bf16.gmra.mxu0 %v1579
          %v2621 = vpop.f32.mrf.mxu0
          %v2622 = vadd.f32 %v2603, %v2621
          %v2623 = vpop.f32.mrf.mxu0
          %v2624 = vadd.f32 %v2605, %v2623
          %2625 = vdwg.mxu0
          %2626 = vmatpush.bf16.msra.mxu0 %v2199
          %2627 = vmatpush.bf16.msra.mxu0 %v2195
          %2628 = vmatpush.bf16.msra.mxu0 %v2191
          %2629 = vmatpush.bf16.msra.mxu0 %v2187
          %2630 = vmatpush.bf16.msra.mxu0 %v2183
          %2631 = vmatpush.bf16.msra.mxu0 %v2179
          %2632 = vmatpush.bf16.msra.mxu0 %v2175
          %2633 = vmatpush.bf16.msra.mxu0 %v2171
          %2634 = vmatmul.bf16.gmra.mxu0 %v1576
          %v2635 = vpop.f32.mrf.mxu0
          %v2636 = vadd.f32 %v2617, %v2635
          %v2637 = vpop.f32.mrf.mxu0
          %v2638 = vadd.f32 %v2619, %v2637
          %2639 = vmatmul.bf16.gmra.mxu0 %v1580
          %v2640 = vpop.f32.mrf.mxu0
          %v2641 = vadd.f32 %v2622, %v2640
          %v2642 = vpop.f32.mrf.mxu0
          %v2643 = vadd.f32 %v2624, %v2642
          %2644 = vdwg.mxu0
          %2645 = vmatpush.bf16.msra.mxu0 %v2231
          %2646 = vmatpush.bf16.msra.mxu0 %v2227
          %2647 = vmatpush.bf16.msra.mxu0 %v2223
          %2648 = vmatpush.bf16.msra.mxu0 %v2219
          %2649 = vmatpush.bf16.msra.mxu0 %v2215
          %2650 = vmatpush.bf16.msra.mxu0 %v2211
          %2651 = vmatpush.bf16.msra.mxu0 %v2207
          %2652 = vmatpush.bf16.msra.mxu0 %v2203
          %2653 = vmatmul.bf16.gmra.mxu0 %v1577
          %v2654 = vpop.f32.mrf.mxu0
          %v2655 = vadd.f32 %v2636, %v2654
          %v2656 = vpop.f32.mrf.mxu0
          %v2657 = vadd.f32 %v2638, %v2656
          %2658 = vmatmul.bf16.gmra.mxu0 %v1581
          %v2659 = vpop.f32.mrf.mxu0
          %v2660 = vadd.f32 %v2641, %v2659
          %v2661 = vpop.f32.mrf.mxu0
          %v2662 = vadd.f32 %v2643, %v2661
          %2663 = vdwg.mxu0
          %v2664 = vmax.f32 %v2427, 0.0
          %v2665 = vmax.f32 %v2503, 0.0
          %v2666 = vmax.f32 %v2579, 0.0
          %v2667 = vmax.f32 %v2655, 0.0
          %v2668 = vmax.f32 %v2429, 0.0
          %v2669 = vmax.f32 %v2505, 0.0
          %v2670 = vmax.f32 %v2581, 0.0
          %v2671 = vmax.f32 %v2657, 0.0
          %v2672 = vmax.f32 %v2432, 0.0
          %v2673 = vmax.f32 %v2508, 0.0
          %v2674 = vmax.f32 %v2584, 0.0
          %v2675 = vmax.f32 %v2660, 0.0
          %v2676 = vmax.f32 %v2434, 0.0
          %v2677 = vmax.f32 %v2510, 0.0
          %v2678 = vmax.f32 %v2586, 0.0
          %v2679 = vmax.f32 %v2662, 0.0
          %v2680 = vpack.c.bf16 %v2665, %v2664
          %v2681 = vpack.c.bf16 %v2667, %v2666
          %v2682 = vpack.c.bf16 %v2669, %v2668
          %v2683 = vpack.c.bf16 %v2671, %v2670
          %v2684 = vpack.c.bf16 %v2673, %v2672
          %v2685 = vpack.c.bf16 %v2675, %v2674
          %v2686 = vpack.c.bf16 %v2677, %v2676
          %v2687 = vpack.c.bf16 %v2679, %v2678
          %2688 = vst [vmem:[#allocation2] sm:$0xff] %v2680
          %2689 = vst [vmem:[#allocation2 + $0x8] sm:$0xff] %v2681
          %2690 = vst [vmem:[#allocation2 + $0x10] sm:$0xff] %v2682
          %2691 = vst [vmem:[#allocation2 + $0x18] sm:$0xff] %v2683
          %2692 = vst [vmem:[#allocation2 + $0x20] sm:$0xff] %v2684
          %2693 = vst [vmem:[#allocation2 + $0x28] sm:$0xff] %v2685
          %2694 = vst [vmem:[#allocation2 + $0x30] sm:$0xff] %v2686
          %2695 = vst [vmem:[#allocation2 + $0x38] sm:$0xff] %v2687
        $region76: #{tpu_custom_call.1} parent=47 // pred_fallthru
          _
        %v2696 = vld [vmem:[#allocation2] sm:$0xff]
        %v2697 = vld [vmem:[#allocation2 + $0x8] sm:$0xff]
        %v2698 = vld [vmem:[#allocation2 + $0x10] sm:$0xff]
        %v2699 = vld [vmem:[#allocation2 + $0x18] sm:$0xff]
        %v2700 = vld [vmem:[#allocation2 + $0x20] sm:$0xff]
        %v2701 = vld [vmem:[#allocation2 + $0x28] sm:$0xff]
        %v2702 = vld [vmem:[#allocation2 + $0x30] sm:$0xff]
        %v2703 = vld [vmem:[#allocation2 + $0x38] sm:$0xff]
        %v2704 = vld [vmem:[#allocation12] sm:$0xff]
        %v2705 = vld [vmem:[#allocation12 + $0x8] sm:$0xff]
        %v2706 = vld [vmem:[#allocation12 + $0x10] sm:$0xff]
        %v2707 = vld [vmem:[#allocation12 + $0x18] sm:$0xff]
        %v2708 = vld [vmem:[#allocation12 + $0x20] sm:$0xff]
        %v2709 = vld [vmem:[#allocation12 + $0x28] sm:$0xff]
        %v2710 = vld [vmem:[#allocation12 + $0x30] sm:$0xff]
        %v2711 = vld [vmem:[#allocation12 + $0x38] sm:$0xff]
        %v2712 = vld [vmem:[#allocation12 + $0x40] sm:$0xff]
        %v2713 = vld [vmem:[#allocation12 + $0x48] sm:$0xff]
        %v2714 = vld [vmem:[#allocation12 + $0x50] sm:$0xff]
        %v2715 = vld [vmem:[#allocation12 + $0x58] sm:$0xff]
        %v2716 = vld [vmem:[#allocation12 + $0x60] sm:$0xff]
        %v2717 = vld [vmem:[#allocation12 + $0x68] sm:$0xff]
        %v2718 = vld [vmem:[#allocation12 + $0x70] sm:$0xff]
        %v2719 = vld [vmem:[#allocation12 + $0x78] sm:$0xff]
        %v2720 = vld [vmem:[#allocation12 + $0x80] sm:$0xff]
        %v2721 = vld [vmem:[#allocation12 + $0x88] sm:$0xff]
        %v2722 = vld [vmem:[#allocation12 + $0x90] sm:$0xff]
        %v2723 = vld [vmem:[#allocation12 + $0x98] sm:$0xff]
        %v2724 = vld [vmem:[#allocation12 + $0xa0] sm:$0xff]
        %v2725 = vld [vmem:[#allocation12 + $0xa8] sm:$0xff]
        %v2726 = vld [vmem:[#allocation12 + $0xb0] sm:$0xff]
        %v2727 = vld [vmem:[#allocation12 + $0xb8] sm:$0xff]
        %v2728 = vld [vmem:[#allocation12 + $0xc0] sm:$0xff]
        %v2729 = vld [vmem:[#allocation12 + $0xc8] sm:$0xff]
        %v2730 = vld [vmem:[#allocation12 + $0xd0] sm:$0xff]
        %v2731 = vld [vmem:[#allocation12 + $0xd8] sm:$0xff]
        %v2732 = vld [vmem:[#allocation12 + $0xe0] sm:$0xff]
        %v2733 = vld [vmem:[#allocation12 + $0xe8] sm:$0xff]
        %v2734 = vld [vmem:[#allocation12 + $0xf0] sm:$0xff]
        %v2735 = vld [vmem:[#allocation12 + $0xf8] sm:$0xff]
        %v2736 = vld [vmem:[#allocation12 + $0x100] sm:$0xff]
        %v2737 = vld [vmem:[#allocation12 + $0x108] sm:$0xff]
        %v2738 = vld [vmem:[#allocation12 + $0x110] sm:$0xff]
        %v2739 = vld [vmem:[#allocation12 + $0x118] sm:$0xff]
        %v2740 = vld [vmem:[#allocation12 + $0x120] sm:$0xff]
        %v2741 = vld [vmem:[#allocation12 + $0x128] sm:$0xff]
        %v2742 = vld [vmem:[#allocation12 + $0x130] sm:$0xff]
        %v2743 = vld [vmem:[#allocation12 + $0x138] sm:$0xff]
        %v2744 = vld [vmem:[#allocation12 + $0x140] sm:$0xff]
        %v2745 = vld [vmem:[#allocation12 + $0x148] sm:$0xff]
        %v2746 = vld [vmem:[#allocation12 + $0x150] sm:$0xff]
        %v2747 = vld [vmem:[#allocation12 + $0x158] sm:$0xff]
        %v2748 = vld [vmem:[#allocation12 + $0x160] sm:$0xff]
        %v2749 = vld [vmem:[#allocation12 + $0x168] sm:$0xff]
        %v2750 = vld [vmem:[#allocation12 + $0x170] sm:$0xff]
        %v2751 = vld [vmem:[#allocation12 + $0x178] sm:$0xff]
        %v2752 = vld [vmem:[#allocation12 + $0x180] sm:$0xff]
        %v2753 = vld [vmem:[#allocation12 + $0x188] sm:$0xff]
        %v2754 = vld [vmem:[#allocation12 + $0x190] sm:$0xff]
        %v2755 = vld [vmem:[#allocation12 + $0x198] sm:$0xff]
        %v2756 = vld [vmem:[#allocation12 + $0x1a0] sm:$0xff]
        %v2757 = vld [vmem:[#allocation12 + $0x1a8] sm:$0xff]
        %v2758 = vld [vmem:[#allocation12 + $0x1b0] sm:$0xff]
        %v2759 = vld [vmem:[#allocation12 + $0x1b8] sm:$0xff]
        %v2760 = vld [vmem:[#allocation12 + $0x1c0] sm:$0xff]
        %v2761 = vld [vmem:[#allocation12 + $0x1c8] sm:$0xff]
        %v2762 = vld [vmem:[#allocation12 + $0x1d0] sm:$0xff]
        %v2763 = vld [vmem:[#allocation12 + $0x1d8] sm:$0xff]
        %v2764 = vld [vmem:[#allocation12 + $0x1e0] sm:$0xff]
        %v2765 = vld [vmem:[#allocation12 + $0x1e8] sm:$0xff]
        %v2766 = vld [vmem:[#allocation12 + $0x1f0] sm:$0xff]
        %v2767 = vld [vmem:[#allocation12 + $0x1f8] sm:$0xff]
        %v2768 = vld [vmem:[#allocation12 + $0x200] sm:$0xff]
        %v2769 = vld [vmem:[#allocation12 + $0x208] sm:$0xff]
        %v2770 = vld [vmem:[#allocation12 + $0x210] sm:$0xff]
        %v2771 = vld [vmem:[#allocation12 + $0x218] sm:$0xff]
        %v2772 = vld [vmem:[#allocation12 + $0x220] sm:$0xff]
        %v2773 = vld [vmem:[#allocation12 + $0x228] sm:$0xff]
        %v2774 = vld [vmem:[#allocation12 + $0x230] sm:$0xff]
        %v2775 = vld [vmem:[#allocation12 + $0x238] sm:$0xff]
        %v2776 = vld [vmem:[#allocation12 + $0x240] sm:$0xff]
        %v2777 = vld [vmem:[#allocation12 + $0x248] sm:$0xff]
        %v2778 = vld [vmem:[#allocation12 + $0x250] sm:$0xff]
        %v2779 = vld [vmem:[#allocation12 + $0x258] sm:$0xff]
        %v2780 = vld [vmem:[#allocation12 + $0x260] sm:$0xff]
        %v2781 = vld [vmem:[#allocation12 + $0x268] sm:$0xff]
        %v2782 = vld [vmem:[#allocation12 + $0x270] sm:$0xff]
        %v2783 = vld [vmem:[#allocation12 + $0x278] sm:$0xff]
        %v2784 = vld [vmem:[#allocation12 + $0x280] sm:$0xff]
        %v2785 = vld [vmem:[#allocation12 + $0x288] sm:$0xff]
        %v2786 = vld [vmem:[#allocation12 + $0x290] sm:$0xff]
        %v2787 = vld [vmem:[#allocation12 + $0x298] sm:$0xff]
        %v2788 = vld [vmem:[#allocation12 + $0x2a0] sm:$0xff]
        %v2789 = vld [vmem:[#allocation12 + $0x2a8] sm:$0xff]
        %v2790 = vld [vmem:[#allocation12 + $0x2b0] sm:$0xff]
        %v2791 = vld [vmem:[#allocation12 + $0x2b8] sm:$0xff]
        %v2792 = vld [vmem:[#allocation12 + $0x2c0] sm:$0xff]
        %v2793 = vld [vmem:[#allocation12 + $0x2c8] sm:$0xff]
        %v2794 = vld [vmem:[#allocation12 + $0x2d0] sm:$0xff]
        %v2795 = vld [vmem:[#allocation12 + $0x2d8] sm:$0xff]
        %v2796 = vld [vmem:[#allocation12 + $0x2e0] sm:$0xff]
        %v2797 = vld [vmem:[#allocation12 + $0x2e8] sm:$0xff]
        %v2798 = vld [vmem:[#allocation12 + $0x2f0] sm:$0xff]
        %v2799 = vld [vmem:[#allocation12 + $0x2f8] sm:$0xff]
        %v2800 = vld [vmem:[#allocation12 + $0x300] sm:$0xff]
        %v2801 = vld [vmem:[#allocation12 + $0x308] sm:$0xff]
        %v2802 = vld [vmem:[#allocation12 + $0x310] sm:$0xff]
        %v2803 = vld [vmem:[#allocation12 + $0x318] sm:$0xff]
        %v2804 = vld [vmem:[#allocation12 + $0x320] sm:$0xff]
        %v2805 = vld [vmem:[#allocation12 + $0x328] sm:$0xff]
        %v2806 = vld [vmem:[#allocation12 + $0x330] sm:$0xff]
        %v2807 = vld [vmem:[#allocation12 + $0x338] sm:$0xff]
        %v2808 = vld [vmem:[#allocation12 + $0x340] sm:$0xff]
        %v2809 = vld [vmem:[#allocation12 + $0x348] sm:$0xff]
        %v2810 = vld [vmem:[#allocation12 + $0x350] sm:$0xff]
        %v2811 = vld [vmem:[#allocation12 + $0x358] sm:$0xff]
        %v2812 = vld [vmem:[#allocation12 + $0x360] sm:$0xff]
        %v2813 = vld [vmem:[#allocation12 + $0x368] sm:$0xff]
        %v2814 = vld [vmem:[#allocation12 + $0x370] sm:$0xff]
        %v2815 = vld [vmem:[#allocation12 + $0x378] sm:$0xff]
        %v2816 = vld [vmem:[#allocation12 + $0x380] sm:$0xff]
        %v2817 = vld [vmem:[#allocation12 + $0x388] sm:$0xff]
        %v2818 = vld [vmem:[#allocation12 + $0x390] sm:$0xff]
        %v2819 = vld [vmem:[#allocation12 + $0x398] sm:$0xff]
        %v2820 = vld [vmem:[#allocation12 + $0x3a0] sm:$0xff]
        %v2821 = vld [vmem:[#allocation12 + $0x3a8] sm:$0xff]
        %v2822 = vld [vmem:[#allocation12 + $0x3b0] sm:$0xff]
        %v2823 = vld [vmem:[#allocation12 + $0x3b8] sm:$0xff]
        %v2824 = vld [vmem:[#allocation12 + $0x3c0] sm:$0xff]
        %v2825 = vld [vmem:[#allocation12 + $0x3c8] sm:$0xff]
        %v2826 = vld [vmem:[#allocation12 + $0x3d0] sm:$0xff]
        %v2827 = vld [vmem:[#allocation12 + $0x3d8] sm:$0xff]
        %v2828 = vld [vmem:[#allocation12 + $0x3e0] sm:$0xff]
        %v2829 = vld [vmem:[#allocation12 + $0x3e8] sm:$0xff]
        %v2830 = vld [vmem:[#allocation12 + $0x3f0] sm:$0xff]
        %v2831 = vld [vmem:[#allocation12 + $0x3f8] sm:$0xff]
        %v2832 = vld [vmem:[%s420] sm:$0xf]
        %v2834 = vperm.slane %v2832, 0
        %v2835 = vperm.slane %v2832, 1
        %v2836 = vperm.slane %v2832, 2
        %v2837 = vperm.slane %v2832, 3
        %v2850 = vunpack.c.l.b16 %v2696
        %v2851 = vunpack.c.h.b16 %v2696
        %v2852 = vunpack.c.l.b16 %v2697
        %v2853 = vunpack.c.h.b16 %v2697
        %v2854 = vunpack.c.l.b16 %v2698
        %v2855 = vunpack.c.h.b16 %v2698
        %v2856 = vunpack.c.l.b16 %v2699
        %v2857 = vunpack.c.h.b16 %v2699
        %v2858 = vunpack.c.l.b16 %v2700
        %v2859 = vunpack.c.h.b16 %v2700
        %v2860 = vunpack.c.l.b16 %v2701
        %v2861 = vunpack.c.h.b16 %v2701
        %v2862 = vunpack.c.l.b16 %v2702
        %v2863 = vunpack.c.h.b16 %v2702
        %v2864 = vunpack.c.l.b16 %v2703
        %v2865 = vunpack.c.h.b16 %v2703
        %v2866 = vpack.c.b16 %v2854, %v2850
        %v2867 = vpack.c.b16 %v2855, %v2851
        %v2868 = vpack.c.b16 %v2856, %v2852
        %v2869 = vpack.c.b16 %v2857, %v2853
        %v2870 = vpack.c.b16 %v2862, %v2858
        %v2871 = vpack.c.b16 %v2863, %v2859
        %v2872 = vpack.c.b16 %v2864, %v2860
        %v2873 = vpack.c.b16 %v2865, %v2861
        %v3010 = vunpack.c.l.b16 %v2704
        %v3011 = vunpack.c.h.b16 %v2704
        %v3012 = vunpack.c.l.b16 %v2705
        %v3013 = vunpack.c.h.b16 %v2705
        %v3014 = vunpack.c.l.b16 %v2706
        %v3015 = vunpack.c.h.b16 %v2706
        %v3016 = vunpack.c.l.b16 %v2707
        %v3017 = vunpack.c.h.b16 %v2707
        %v3018 = vunpack.c.l.b16 %v2708
        %v3019 = vunpack.c.h.b16 %v2708
        %v3020 = vunpack.c.l.b16 %v2709
        %v3021 = vunpack.c.h.b16 %v2709
        %v3022 = vunpack.c.l.b16 %v2710
        %v3023 = vunpack.c.h.b16 %v2710
        %v3024 = vunpack.c.l.b16 %v2711
        %v3025 = vunpack.c.h.b16 %v2711
        %v3026 = vunpack.c.l.b16 %v2712
        %v3027 = vunpack.c.h.b16 %v2712
        %v3028 = vunpack.c.l.b16 %v2713
        %v3029 = vunpack.c.h.b16 %v2713
        %v3030 = vunpack.c.l.b16 %v2714
        %v3031 = vunpack.c.h.b16 %v2714
        %v3032 = vunpack.c.l.b16 %v2715
        %v3033 = vunpack.c.h.b16 %v2715
        %v3034 = vunpack.c.l.b16 %v2716
        %v3035 = vunpack.c.h.b16 %v2716
        %v3036 = vunpack.c.l.b16 %v2717
        %v3037 = vunpack.c.h.b16 %v2717
        %v3038 = vunpack.c.l.b16 %v2718
        %v3039 = vunpack.c.h.b16 %v2718
        %v3040 = vunpack.c.l.b16 %v2719
        %v3041 = vunpack.c.h.b16 %v2719
        %v3042 = vunpack.c.l.b16 %v2720
        %v3043 = vunpack.c.h.b16 %v2720
        %v3044 = vunpack.c.l.b16 %v2721
        %v3045 = vunpack.c.h.b16 %v2721
        %v3046 = vunpack.c.l.b16 %v2722
        %v3047 = vunpack.c.h.b16 %v2722
        %v3048 = vunpack.c.l.b16 %v2723
        %v3049 = vunpack.c.h.b16 %v2723
        %v3050 = vunpack.c.l.b16 %v2724
        %v3051 = vunpack.c.h.b16 %v2724
        %v3052 = vunpack.c.l.b16 %v2725
        %v3053 = vunpack.c.h.b16 %v2725
        %v3054 = vunpack.c.l.b16 %v2726
        %v3055 = vunpack.c.h.b16 %v2726
        %v3056 = vunpack.c.l.b16 %v2727
        %v3057 = vunpack.c.h.b16 %v2727
        %v3058 = vunpack.c.l.b16 %v2728
        %v3059 = vunpack.c.h.b16 %v2728
        %v3060 = vunpack.c.l.b16 %v2729
        %v3061 = vunpack.c.h.b16 %v2729
        %v3062 = vunpack.c.l.b16 %v2730
        %v3063 = vunpack.c.h.b16 %v2730
        %v3064 = vunpack.c.l.b16 %v2731
        %v3065 = vunpack.c.h.b16 %v2731
        %v3066 = vunpack.c.l.b16 %v2732
        %v3067 = vunpack.c.h.b16 %v2732
        %v3068 = vunpack.c.l.b16 %v2733
        %v3069 = vunpack.c.h.b16 %v2733
        %v3070 = vunpack.c.l.b16 %v2734
        %v3071 = vunpack.c.h.b16 %v2734
        %v3072 = vunpack.c.l.b16 %v2735
        %v3073 = vunpack.c.h.b16 %v2735
        %v3074 = vunpack.c.l.b16 %v2736
        %v3075 = vunpack.c.h.b16 %v2736
        %v3076 = vunpack.c.l.b16 %v2737
        %v3077 = vunpack.c.h.b16 %v2737
        %v3078 = vunpack.c.l.b16 %v2738
        %v3079 = vunpack.c.h.b16 %v2738
        %v3080 = vunpack.c.l.b16 %v2739
        %v3081 = vunpack.c.h.b16 %v2739
        %v3082 = vunpack.c.l.b16 %v2740
        %v3083 = vunpack.c.h.b16 %v2740
        %v3084 = vunpack.c.l.b16 %v2741
        %v3085 = vunpack.c.h.b16 %v2741
        %v3086 = vunpack.c.l.b16 %v2742
        %v3087 = vunpack.c.h.b16 %v2742
        %v3088 = vunpack.c.l.b16 %v2743
        %v3089 = vunpack.c.h.b16 %v2743
        %v3090 = vunpack.c.l.b16 %v2744
        %v3091 = vunpack.c.h.b16 %v2744
        %v3092 = vunpack.c.l.b16 %v2745
        %v3093 = vunpack.c.h.b16 %v2745
        %v3094 = vunpack.c.l.b16 %v2746
        %v3095 = vunpack.c.h.b16 %v2746
        %v3096 = vunpack.c.l.b16 %v2747
        %v3097 = vunpack.c.h.b16 %v2747
        %v3098 = vunpack.c.l.b16 %v2748
        %v3099 = vunpack.c.h.b16 %v2748
        %v3100 = vunpack.c.l.b16 %v2749
        %v3101 = vunpack.c.h.b16 %v2749
        %v3102 = vunpack.c.l.b16 %v2750
        %v3103 = vunpack.c.h.b16 %v2750
        %v3104 = vunpack.c.l.b16 %v2751
        %v3105 = vunpack.c.h.b16 %v2751
        %v3106 = vunpack.c.l.b16 %v2752
        %v3107 = vunpack.c.h.b16 %v2752
        %v3108 = vunpack.c.l.b16 %v2753
        %v3109 = vunpack.c.h.b16 %v2753
        %v3110 = vunpack.c.l.b16 %v2754
        %v3111 = vunpack.c.h.b16 %v2754
        %v3112 = vunpack.c.l.b16 %v2755
        %v3113 = vunpack.c.h.b16 %v2755
        %v3114 = vunpack.c.l.b16 %v2756
        %v3115 = vunpack.c.h.b16 %v2756
        %v3116 = vunpack.c.l.b16 %v2757
        %v3117 = vunpack.c.h.b16 %v2757
        %v3118 = vunpack.c.l.b16 %v2758
        %v3119 = vunpack.c.h.b16 %v2758
        %v3120 = vunpack.c.l.b16 %v2759
        %v3121 = vunpack.c.h.b16 %v2759
        %v3122 = vunpack.c.l.b16 %v2760
        %v3123 = vunpack.c.h.b16 %v2760
        %v3124 = vunpack.c.l.b16 %v2761
        %v3125 = vunpack.c.h.b16 %v2761
        %v3126 = vunpack.c.l.b16 %v2762
        %v3127 = vunpack.c.h.b16 %v2762
        %v3128 = vunpack.c.l.b16 %v2763
        %v3129 = vunpack.c.h.b16 %v2763
        %v3130 = vunpack.c.l.b16 %v2764
        %v3131 = vunpack.c.h.b16 %v2764
        %v3132 = vunpack.c.l.b16 %v2765
        %v3133 = vunpack.c.h.b16 %v2765
        %v3134 = vunpack.c.l.b16 %v2766
        %v3135 = vunpack.c.h.b16 %v2766
        %v3136 = vunpack.c.l.b16 %v2767
        %v3137 = vunpack.c.h.b16 %v2767
        %v3138 = vunpack.c.l.b16 %v2768
        %v3139 = vunpack.c.h.b16 %v2768
        %v3140 = vunpack.c.l.b16 %v2769
        %v3141 = vunpack.c.h.b16 %v2769
        %v3142 = vunpack.c.l.b16 %v2770
        %v3143 = vunpack.c.h.b16 %v2770
        %v3144 = vunpack.c.l.b16 %v2771
        %v3145 = vunpack.c.h.b16 %v2771
        %v3146 = vunpack.c.l.b16 %v2772
        %v3147 = vunpack.c.h.b16 %v2772
        %v3148 = vunpack.c.l.b16 %v2773
        %v3149 = vunpack.c.h.b16 %v2773
        %v3150 = vunpack.c.l.b16 %v2774
        %v3151 = vunpack.c.h.b16 %v2774
        %v3152 = vunpack.c.l.b16 %v2775
        %v3153 = vunpack.c.h.b16 %v2775
        %v3154 = vunpack.c.l.b16 %v2776
        %v3155 = vunpack.c.h.b16 %v2776
        %v3156 = vunpack.c.l.b16 %v2777
        %v3157 = vunpack.c.h.b16 %v2777
        %v3158 = vunpack.c.l.b16 %v2778
        %v3159 = vunpack.c.h.b16 %v2778
        %v3160 = vunpack.c.l.b16 %v2779
        %v3161 = vunpack.c.h.b16 %v2779
        %v3162 = vunpack.c.l.b16 %v2780
        %v3163 = vunpack.c.h.b16 %v2780
        %v3164 = vunpack.c.l.b16 %v2781
        %v3165 = vunpack.c.h.b16 %v2781
        %v3166 = vunpack.c.l.b16 %v2782
        %v3167 = vunpack.c.h.b16 %v2782
        %v3168 = vunpack.c.l.b16 %v2783
        %v3169 = vunpack.c.h.b16 %v2783
        %v3170 = vunpack.c.l.b16 %v2784
        %v3171 = vunpack.c.h.b16 %v2784
        %v3172 = vunpack.c.l.b16 %v2785
        %v3173 = vunpack.c.h.b16 %v2785
        %v3174 = vunpack.c.l.b16 %v2786
        %v3175 = vunpack.c.h.b16 %v2786
        %v3176 = vunpack.c.l.b16 %v2787
        %v3177 = vunpack.c.h.b16 %v2787
        %v3178 = vunpack.c.l.b16 %v2788
        %v3179 = vunpack.c.h.b16 %v2788
        %v3180 = vunpack.c.l.b16 %v2789
        %v3181 = vunpack.c.h.b16 %v2789
        %v3182 = vunpack.c.l.b16 %v2790
        %v3183 = vunpack.c.h.b16 %v2790
        %v3184 = vunpack.c.l.b16 %v2791
        %v3185 = vunpack.c.h.b16 %v2791
        %v3186 = vunpack.c.l.b16 %v2792
        %v3187 = vunpack.c.h.b16 %v2792
        %v3188 = vunpack.c.l.b16 %v2793
        %v3189 = vunpack.c.h.b16 %v2793
        %v3190 = vunpack.c.l.b16 %v2794
        %v3191 = vunpack.c.h.b16 %v2794
        %v3192 = vunpack.c.l.b16 %v2795
        %v3193 = vunpack.c.h.b16 %v2795
        %v3194 = vunpack.c.l.b16 %v2796
        %v3195 = vunpack.c.h.b16 %v2796
        %v3196 = vunpack.c.l.b16 %v2797
        %v3197 = vunpack.c.h.b16 %v2797
        %v3198 = vunpack.c.l.b16 %v2798
        %v3199 = vunpack.c.h.b16 %v2798
        %v3200 = vunpack.c.l.b16 %v2799
        %v3201 = vunpack.c.h.b16 %v2799
        %v3202 = vunpack.c.l.b16 %v2800
        %v3203 = vunpack.c.h.b16 %v2800
        %v3204 = vunpack.c.l.b16 %v2801
        %v3205 = vunpack.c.h.b16 %v2801
        %v3206 = vunpack.c.l.b16 %v2802
        %v3207 = vunpack.c.h.b16 %v2802
        %v3208 = vunpack.c.l.b16 %v2803
        %v3209 = vunpack.c.h.b16 %v2803
        %v3210 = vunpack.c.l.b16 %v2804
        %v3211 = vunpack.c.h.b16 %v2804
        %v3212 = vunpack.c.l.b16 %v2805
        %v3213 = vunpack.c.h.b16 %v2805
        %v3214 = vunpack.c.l.b16 %v2806
        %v3215 = vunpack.c.h.b16 %v2806
        %v3216 = vunpack.c.l.b16 %v2807
        %v3217 = vunpack.c.h.b16 %v2807
        %v3218 = vunpack.c.l.b16 %v2808
        %v3219 = vunpack.c.h.b16 %v2808
        %v3220 = vunpack.c.l.b16 %v2809
        %v3221 = vunpack.c.h.b16 %v2809
        %v3222 = vunpack.c.l.b16 %v2810
        %v3223 = vunpack.c.h.b16 %v2810
        %v3224 = vunpack.c.l.b16 %v2811
        %v3225 = vunpack.c.h.b16 %v2811
        %v3226 = vunpack.c.l.b16 %v2812
        %v3227 = vunpack.c.h.b16 %v2812
        %v3228 = vunpack.c.l.b16 %v2813
        %v3229 = vunpack.c.h.b16 %v2813
        %v3230 = vunpack.c.l.b16 %v2814
        %v3231 = vunpack.c.h.b16 %v2814
        %v3232 = vunpack.c.l.b16 %v2815
        %v3233 = vunpack.c.h.b16 %v2815
        %v3234 = vunpack.c.l.b16 %v2816
        %v3235 = vunpack.c.h.b16 %v2816
        %v3236 = vunpack.c.l.b16 %v2817
        %v3237 = vunpack.c.h.b16 %v2817
        %v3238 = vunpack.c.l.b16 %v2818
        %v3239 = vunpack.c.h.b16 %v2818
        %v3240 = vunpack.c.l.b16 %v2819
        %v3241 = vunpack.c.h.b16 %v2819
        %v3242 = vunpack.c.l.b16 %v2820
        %v3243 = vunpack.c.h.b16 %v2820
        %v3244 = vunpack.c.l.b16 %v2821
        %v3245 = vunpack.c.h.b16 %v2821
        %v3246 = vunpack.c.l.b16 %v2822
        %v3247 = vunpack.c.h.b16 %v2822
        %v3248 = vunpack.c.l.b16 %v2823
        %v3249 = vunpack.c.h.b16 %v2823
        %v3250 = vunpack.c.l.b16 %v2824
        %v3251 = vunpack.c.h.b16 %v2824
        %v3252 = vunpack.c.l.b16 %v2825
        %v3253 = vunpack.c.h.b16 %v2825
        %v3254 = vunpack.c.l.b16 %v2826
        %v3255 = vunpack.c.h.b16 %v2826
        %v3256 = vunpack.c.l.b16 %v2827
        %v3257 = vunpack.c.h.b16 %v2827
        %v3258 = vunpack.c.l.b16 %v2828
        %v3259 = vunpack.c.h.b16 %v2828
        %v3260 = vunpack.c.l.b16 %v2829
        %v3261 = vunpack.c.h.b16 %v2829
        %v3262 = vunpack.c.l.b16 %v2830
        %v3263 = vunpack.c.h.b16 %v2830
        %v3264 = vunpack.c.l.b16 %v2831
        %v3265 = vunpack.c.h.b16 %v2831
        %v3266 = vpack.c.b16 %v3014, %v3010
        %v3267 = vpack.c.b16 %v3015, %v3011
        %v3268 = vpack.c.b16 %v3016, %v3012
        %v3269 = vpack.c.b16 %v3017, %v3013
        %v3270 = vpack.c.b16 %v3022, %v3018
        %v3271 = vpack.c.b16 %v3023, %v3019
        %v3272 = vpack.c.b16 %v3024, %v3020
        %v3273 = vpack.c.b16 %v3025, %v3021
        %v3274 = vpack.c.b16 %v3030, %v3026
        %v3275 = vpack.c.b16 %v3031, %v3027
        %v3276 = vpack.c.b16 %v3032, %v3028
        %v3277 = vpack.c.b16 %v3033, %v3029
        %v3278 = vpack.c.b16 %v3038, %v3034
        %v3279 = vpack.c.b16 %v3039, %v3035
        %v3280 = vpack.c.b16 %v3040, %v3036
        %v3281 = vpack.c.b16 %v3041, %v3037
        %v3282 = vpack.c.b16 %v3046, %v3042
        %v3283 = vpack.c.b16 %v3047, %v3043
        %v3284 = vpack.c.b16 %v3048, %v3044
        %v3285 = vpack.c.b16 %v3049, %v3045
        %v3286 = vpack.c.b16 %v3054, %v3050
        %v3287 = vpack.c.b16 %v3055, %v3051
        %v3288 = vpack.c.b16 %v3056, %v3052
        %v3289 = vpack.c.b16 %v3057, %v3053
        %v3290 = vpack.c.b16 %v3062, %v3058
        %v3291 = vpack.c.b16 %v3063, %v3059
        %v3292 = vpack.c.b16 %v3064, %v3060
        %v3293 = vpack.c.b16 %v3065, %v3061
        %v3294 = vpack.c.b16 %v3070, %v3066
        %v3295 = vpack.c.b16 %v3071, %v3067
        %v3296 = vpack.c.b16 %v3072, %v3068
        %v3297 = vpack.c.b16 %v3073, %v3069
        %v3298 = vpack.c.b16 %v3078, %v3074
        %v3299 = vpack.c.b16 %v3079, %v3075
        %v3300 = vpack.c.b16 %v3080, %v3076
        %v3301 = vpack.c.b16 %v3081, %v3077
        %v3302 = vpack.c.b16 %v3086, %v3082
        %v3303 = vpack.c.b16 %v3087, %v3083
        %v3304 = vpack.c.b16 %v3088, %v3084
        %v3305 = vpack.c.b16 %v3089, %v3085
        %v3306 = vpack.c.b16 %v3094, %v3090
        %v3307 = vpack.c.b16 %v3095, %v3091
        %v3308 = vpack.c.b16 %v3096, %v3092
        %v3309 = vpack.c.b16 %v3097, %v3093
        %v3310 = vpack.c.b16 %v3102, %v3098
        %v3311 = vpack.c.b16 %v3103, %v3099
        %v3312 = vpack.c.b16 %v3104, %v3100
        %v3313 = vpack.c.b16 %v3105, %v3101
        %v3314 = vpack.c.b16 %v3110, %v3106
        %v3315 = vpack.c.b16 %v3111, %v3107
        %v3316 = vpack.c.b16 %v3112, %v3108
        %v3317 = vpack.c.b16 %v3113, %v3109
        %v3318 = vpack.c.b16 %v3118, %v3114
        %v3319 = vpack.c.b16 %v3119, %v3115
        %v3320 = vpack.c.b16 %v3120, %v3116
        %v3321 = vpack.c.b16 %v3121, %v3117
        %v3322 = vpack.c.b16 %v3126, %v3122
        %v3323 = vpack.c.b16 %v3127, %v3123
        %v3324 = vpack.c.b16 %v3128, %v3124
        %v3325 = vpack.c.b16 %v3129, %v3125
        %v3326 = vpack.c.b16 %v3134, %v3130
        %v3327 = vpack.c.b16 %v3135, %v3131
        %v3328 = vpack.c.b16 %v3136, %v3132
        %v3329 = vpack.c.b16 %v3137, %v3133
        %v3330 = vpack.c.b16 %v3142, %v3138
        %v3331 = vpack.c.b16 %v3143, %v3139
        %v3332 = vpack.c.b16 %v3144, %v3140
        %v3333 = vpack.c.b16 %v3145, %v3141
        %v3334 = vpack.c.b16 %v3150, %v3146
        %v3335 = vpack.c.b16 %v3151, %v3147
        %v3336 = vpack.c.b16 %v3152, %v3148
        %v3337 = vpack.c.b16 %v3153, %v3149
        %v3338 = vpack.c.b16 %v3158, %v3154
        %v3339 = vpack.c.b16 %v3159, %v3155
        %v3340 = vpack.c.b16 %v3160, %v3156
        %v3341 = vpack.c.b16 %v3161, %v3157
        %v3342 = vpack.c.b16 %v3166, %v3162
        %v3343 = vpack.c.b16 %v3167, %v3163
        %v3344 = vpack.c.b16 %v3168, %v3164
        %v3345 = vpack.c.b16 %v3169, %v3165
        %v3346 = vpack.c.b16 %v3174, %v3170
        %v3347 = vpack.c.b16 %v3175, %v3171
        %v3348 = vpack.c.b16 %v3176, %v3172
        %v3349 = vpack.c.b16 %v3177, %v3173
        %v3350 = vpack.c.b16 %v3182, %v3178
        %v3351 = vpack.c.b16 %v3183, %v3179
        %v3352 = vpack.c.b16 %v3184, %v3180
        %v3353 = vpack.c.b16 %v3185, %v3181
        %v3354 = vpack.c.b16 %v3190, %v3186
        %v3355 = vpack.c.b16 %v3191, %v3187
        %v3356 = vpack.c.b16 %v3192, %v3188
        %v3357 = vpack.c.b16 %v3193, %v3189
        %v3358 = vpack.c.b16 %v3198, %v3194
        %v3359 = vpack.c.b16 %v3199, %v3195
        %v3360 = vpack.c.b16 %v3200, %v3196
        %v3361 = vpack.c.b16 %v3201, %v3197
        %v3362 = vpack.c.b16 %v3206, %v3202
        %v3363 = vpack.c.b16 %v3207, %v3203
        %v3364 = vpack.c.b16 %v3208, %v3204
        %v3365 = vpack.c.b16 %v3209, %v3205
        %v3366 = vpack.c.b16 %v3214, %v3210
        %v3367 = vpack.c.b16 %v3215, %v3211
        %v3368 = vpack.c.b16 %v3216, %v3212
        %v3369 = vpack.c.b16 %v3217, %v3213
        %v3370 = vpack.c.b16 %v3222, %v3218
        %v3371 = vpack.c.b16 %v3223, %v3219
        %v3372 = vpack.c.b16 %v3224, %v3220
        %v3373 = vpack.c.b16 %v3225, %v3221
        %v3374 = vpack.c.b16 %v3230, %v3226
        %v3375 = vpack.c.b16 %v3231, %v3227
        %v3376 = vpack.c.b16 %v3232, %v3228
        %v3377 = vpack.c.b16 %v3233, %v3229
        %v3378 = vpack.c.b16 %v3238, %v3234
        %v3379 = vpack.c.b16 %v3239, %v3235
        %v3380 = vpack.c.b16 %v3240, %v3236
        %v3381 = vpack.c.b16 %v3241, %v3237
        %v3382 = vpack.c.b16 %v3246, %v3242
        %v3383 = vpack.c.b16 %v3247, %v3243
        %v3384 = vpack.c.b16 %v3248, %v3244
        %v3385 = vpack.c.b16 %v3249, %v3245
        %v3386 = vpack.c.b16 %v3254, %v3250
        %v3387 = vpack.c.b16 %v3255, %v3251
        %v3388 = vpack.c.b16 %v3256, %v3252
        %v3389 = vpack.c.b16 %v3257, %v3253
        %v3390 = vpack.c.b16 %v3262, %v3258
        %v3391 = vpack.c.b16 %v3263, %v3259
        %v3392 = vpack.c.b16 %v3264, %v3260
        %v3393 = vpack.c.b16 %v3265, %v3261
        %3522 = vmatpush.bf16.msra.mxu0 %v3294
        %3523 = vmatpush.bf16.msra.mxu0 %v3290
        %3524 = vmatpush.bf16.msra.mxu0 %v3286
        %3525 = vmatpush.bf16.msra.mxu0 %v3282
        %3526 = vmatpush.bf16.msra.mxu0 %v3278
        %3527 = vmatpush.bf16.msra.mxu0 %v3274
        %3528 = vmatpush.bf16.msra.mxu0 %v3270
        %3529 = vmatpush.bf16.msra.mxu0 %v3266
        %3530 = vmatmul.bf16.gmra.mxu0 %v2866
        %v3531 = vpop.f32.mrf.mxu0
        %v3532 = vadd.f32 %v2834, %v3531
        %v3533 = vpop.f32.mrf.mxu0
        %v3534 = vadd.f32 %v2834, %v3533
        %3535 = vmatmul.bf16.gmra.mxu0 %v2870
        %v3536 = vpop.f32.mrf.mxu0
        %v3537 = vadd.f32 %v2834, %v3536
        %v3538 = vpop.f32.mrf.mxu0
        %v3539 = vadd.f32 %v2834, %v3538
        %3540 = vdwg.mxu0
        %3541 = vmatpush.bf16.msra.mxu0 %v3326
        %3542 = vmatpush.bf16.msra.mxu0 %v3322
        %3543 = vmatpush.bf16.msra.mxu0 %v3318
        %3544 = vmatpush.bf16.msra.mxu0 %v3314
        %3545 = vmatpush.bf16.msra.mxu0 %v3310
        %3546 = vmatpush.bf16.msra.mxu0 %v3306
        %3547 = vmatpush.bf16.msra.mxu0 %v3302
        %3548 = vmatpush.bf16.msra.mxu0 %v3298
        %3549 = vmatmul.bf16.gmra.mxu0 %v2867
        %v3550 = vpop.f32.mrf.mxu0
        %v3551 = vadd.f32 %v3532, %v3550
        %v3552 = vpop.f32.mrf.mxu0
        %v3553 = vadd.f32 %v3534, %v3552
        %3554 = vmatmul.bf16.gmra.mxu0 %v2871
        %v3555 = vpop.f32.mrf.mxu0
        %v3556 = vadd.f32 %v3537, %v3555
        %v3557 = vpop.f32.mrf.mxu0
        %v3558 = vadd.f32 %v3539, %v3557
        %3559 = vdwg.mxu0
        %3560 = vmatpush.bf16.msra.mxu0 %v3358
        %3561 = vmatpush.bf16.msra.mxu0 %v3354
        %3562 = vmatpush.bf16.msra.mxu0 %v3350
        %3563 = vmatpush.bf16.msra.mxu0 %v3346
        %3564 = vmatpush.bf16.msra.mxu0 %v3342
        %3565 = vmatpush.bf16.msra.mxu0 %v3338
        %3566 = vmatpush.bf16.msra.mxu0 %v3334
        %3567 = vmatpush.bf16.msra.mxu0 %v3330
        %3568 = vmatmul.bf16.gmra.mxu0 %v2868
        %v3569 = vpop.f32.mrf.mxu0
        %v3570 = vadd.f32 %v3551, %v3569
        %v3571 = vpop.f32.mrf.mxu0
        %v3572 = vadd.f32 %v3553, %v3571
        %3573 = vmatmul.bf16.gmra.mxu0 %v2872
        %v3574 = vpop.f32.mrf.mxu0
        %v3575 = vadd.f32 %v3556, %v3574
        %v3576 = vpop.f32.mrf.mxu0
        %v3577 = vadd.f32 %v3558, %v3576
        %3578 = vdwg.mxu0
        %3579 = vmatpush.bf16.msra.mxu0 %v3390
        %3580 = vmatpush.bf16.msra.mxu0 %v3386
        %3581 = vmatpush.bf16.msra.mxu0 %v3382
        %3582 = vmatpush.bf16.msra.mxu0 %v3378
        %3583 = vmatpush.bf16.msra.mxu0 %v3374
        %3584 = vmatpush.bf16.msra.mxu0 %v3370
        %3585 = vmatpush.bf16.msra.mxu0 %v3366
        %3586 = vmatpush.bf16.msra.mxu0 %v3362
        %3587 = vmatmul.bf16.gmra.mxu0 %v2869
        %v3588 = vpop.f32.mrf.mxu0
        %v3589 = vadd.f32 %v3570, %v3588
        %v3590 = vpop.f32.mrf.mxu0
        %v3591 = vadd.f32 %v3572, %v3590
        %3592 = vmatmul.bf16.gmra.mxu0 %v2873
        %v3593 = vpop.f32.mrf.mxu0
        %v3594 = vadd.f32 %v3575, %v3593
        %v3595 = vpop.f32.mrf.mxu0
        %v3596 = vadd.f32 %v3577, %v3595
        %3597 = vdwg.mxu0
        %3598 = vmatpush.bf16.msra.mxu0 %v3295
        %3599 = vmatpush.bf16.msra.mxu0 %v3291
        %3600 = vmatpush.bf16.msra.mxu0 %v3287
        %3601 = vmatpush.bf16.msra.mxu0 %v3283
        %3602 = vmatpush.bf16.msra.mxu0 %v3279
        %3603 = vmatpush.bf16.msra.mxu0 %v3275
        %3604 = vmatpush.bf16.msra.mxu0 %v3271
        %3605 = vmatpush.bf16.msra.mxu0 %v3267
        %3606 = vmatmul.bf16.gmra.mxu0 %v2866
        %v3607 = vpop.f32.mrf.mxu0
        %v3608 = vadd.f32 %v2835, %v3607
        %v3609 = vpop.f32.mrf.mxu0
        %v3610 = vadd.f32 %v2835, %v3609
        %3611 = vmatmul.bf16.gmra.mxu0 %v2870
        %v3612 = vpop.f32.mrf.mxu0
        %v3613 = vadd.f32 %v2835, %v3612
        %v3614 = vpop.f32.mrf.mxu0
        %v3615 = vadd.f32 %v2835, %v3614
        %3616 = vdwg.mxu0
        %3617 = vmatpush.bf16.msra.mxu0 %v3327
        %3618 = vmatpush.bf16.msra.mxu0 %v3323
        %3619 = vmatpush.bf16.msra.mxu0 %v3319
        %3620 = vmatpush.bf16.msra.mxu0 %v3315
        %3621 = vmatpush.bf16.msra.mxu0 %v3311
        %3622 = vmatpush.bf16.msra.mxu0 %v3307
        %3623 = vmatpush.bf16.msra.mxu0 %v3303
        %3624 = vmatpush.bf16.msra.mxu0 %v3299
        %3625 = vmatmul.bf16.gmra.mxu0 %v2867
        %v3626 = vpop.f32.mrf.mxu0
        %v3627 = vadd.f32 %v3608, %v3626
        %v3628 = vpop.f32.mrf.mxu0
        %v3629 = vadd.f32 %v3610, %v3628
        %3630 = vmatmul.bf16.gmra.mxu0 %v2871
        %v3631 = vpop.f32.mrf.mxu0
        %v3632 = vadd.f32 %v3613, %v3631
        %v3633 = vpop.f32.mrf.mxu0
        %v3634 = vadd.f32 %v3615, %v3633
        %3635 = vdwg.mxu0
        %3636 = vmatpush.bf16.msra.mxu0 %v3359
        %3637 = vmatpush.bf16.msra.mxu0 %v3355
        %3638 = vmatpush.bf16.msra.mxu0 %v3351
        %3639 = vmatpush.bf16.msra.mxu0 %v3347
        %3640 = vmatpush.bf16.msra.mxu0 %v3343
        %3641 = vmatpush.bf16.msra.mxu0 %v3339
        %3642 = vmatpush.bf16.msra.mxu0 %v3335
        %3643 = vmatpush.bf16.msra.mxu0 %v3331
        %3644 = vmatmul.bf16.gmra.mxu0 %v2868
        %v3645 = vpop.f32.mrf.mxu0
        %v3646 = vadd.f32 %v3627, %v3645
        %v3647 = vpop.f32.mrf.mxu0
        %v3648 = vadd.f32 %v3629, %v3647
        %3649 = vmatmul.bf16.gmra.mxu0 %v2872
        %v3650 = vpop.f32.mrf.mxu0
        %v3651 = vadd.f32 %v3632, %v3650
        %v3652 = vpop.f32.mrf.mxu0
        %v3653 = vadd.f32 %v3634, %v3652
        %3654 = vdwg.mxu0
        %3655 = vmatpush.bf16.msra.mxu0 %v3391
        %3656 = vmatpush.bf16.msra.mxu0 %v3387
        %3657 = vmatpush.bf16.msra.mxu0 %v3383
        %3658 = vmatpush.bf16.msra.mxu0 %v3379
        %3659 = vmatpush.bf16.msra.mxu0 %v3375
        %3660 = vmatpush.bf16.msra.mxu0 %v3371
        %3661 = vmatpush.bf16.msra.mxu0 %v3367
        %3662 = vmatpush.bf16.msra.mxu0 %v3363
        %3663 = vmatmul.bf16.gmra.mxu0 %v2869
        %v3664 = vpop.f32.mrf.mxu0
        %v3665 = vadd.f32 %v3646, %v3664
        %v3666 = vpop.f32.mrf.mxu0
        %v3667 = vadd.f32 %v3648, %v3666
        %3668 = vmatmul.bf16.gmra.mxu0 %v2873
        %v3669 = vpop.f32.mrf.mxu0
        %v3670 = vadd.f32 %v3651, %v3669
        %v3671 = vpop.f32.mrf.mxu0
        %v3672 = vadd.f32 %v3653, %v3671
        %3673 = vdwg.mxu0
        %3674 = vmatpush.bf16.msra.mxu0 %v3296
        %3675 = vmatpush.bf16.msra.mxu0 %v3292
        %3676 = vmatpush.bf16.msra.mxu0 %v3288
        %3677 = vmatpush.bf16.msra.mxu0 %v3284
        %3678 = vmatpush.bf16.msra.mxu0 %v3280
        %3679 = vmatpush.bf16.msra.mxu0 %v3276
        %3680 = vmatpush.bf16.msra.mxu0 %v3272
        %3681 = vmatpush.bf16.msra.mxu0 %v3268
        %3682 = vmatmul.bf16.gmra.mxu0 %v2866
        %v3683 = vpop.f32.mrf.mxu0
        %v3684 = vadd.f32 %v2836, %v3683
        %v3685 = vpop.f32.mrf.mxu0
        %v3686 = vadd.f32 %v2836, %v3685
        %3687 = vmatmul.bf16.gmra.mxu0 %v2870
        %v3688 = vpop.f32.mrf.mxu0
        %v3689 = vadd.f32 %v2836, %v3688
        %v3690 = vpop.f32.mrf.mxu0
        %v3691 = vadd.f32 %v2836, %v3690
        %3692 = vdwg.mxu0
        %3693 = vmatpush.bf16.msra.mxu0 %v3328
        %3694 = vmatpush.bf16.msra.mxu0 %v3324
        %3695 = vmatpush.bf16.msra.mxu0 %v3320
        %3696 = vmatpush.bf16.msra.mxu0 %v3316
        %3697 = vmatpush.bf16.msra.mxu0 %v3312
        %3698 = vmatpush.bf16.msra.mxu0 %v3308
        %3699 = vmatpush.bf16.msra.mxu0 %v3304
        %3700 = vmatpush.bf16.msra.mxu0 %v3300
        %3701 = vmatmul.bf16.gmra.mxu0 %v2867
        %v3702 = vpop.f32.mrf.mxu0
        %v3703 = vadd.f32 %v3684, %v3702
        %v3704 = vpop.f32.mrf.mxu0
        %v3705 = vadd.f32 %v3686, %v3704
        %3706 = vmatmul.bf16.gmra.mxu0 %v2871
        %v3707 = vpop.f32.mrf.mxu0
        %v3708 = vadd.f32 %v3689, %v3707
        %v3709 = vpop.f32.mrf.mxu0
        %v3710 = vadd.f32 %v3691, %v3709
        %3711 = vdwg.mxu0
        %3712 = vmatpush.bf16.msra.mxu0 %v3360
        %3713 = vmatpush.bf16.msra.mxu0 %v3356
        %3714 = vmatpush.bf16.msra.mxu0 %v3352
        %3715 = vmatpush.bf16.msra.mxu0 %v3348
        %3716 = vmatpush.bf16.msra.mxu0 %v3344
        %3717 = vmatpush.bf16.msra.mxu0 %v3340
        %3718 = vmatpush.bf16.msra.mxu0 %v3336
        %3719 = vmatpush.bf16.msra.mxu0 %v3332
        %3720 = vmatmul.bf16.gmra.mxu0 %v2868
        %v3721 = vpop.f32.mrf.mxu0
        %v3722 = vadd.f32 %v3703, %v3721
        %v3723 = vpop.f32.mrf.mxu0
        %v3724 = vadd.f32 %v3705, %v3723
        %3725 = vmatmul.bf16.gmra.mxu0 %v2872
        %v3726 = vpop.f32.mrf.mxu0
        %v3727 = vadd.f32 %v3708, %v3726
        %v3728 = vpop.f32.mrf.mxu0
        %v3729 = vadd.f32 %v3710, %v3728
        %3730 = vdwg.mxu0
        %3731 = vmatpush.bf16.msra.mxu0 %v3392
        %3732 = vmatpush.bf16.msra.mxu0 %v3388
        %3733 = vmatpush.bf16.msra.mxu0 %v3384
        %3734 = vmatpush.bf16.msra.mxu0 %v3380
        %3735 = vmatpush.bf16.msra.mxu0 %v3376
        %3736 = vmatpush.bf16.msra.mxu0 %v3372
        %3737 = vmatpush.bf16.msra.mxu0 %v3368
        %3738 = vmatpush.bf16.msra.mxu0 %v3364
        %3739 = vmatmul.bf16.gmra.mxu0 %v2869
        %v3740 = vpop.f32.mrf.mxu0
        %v3741 = vadd.f32 %v3722, %v3740
        %v3742 = vpop.f32.mrf.mxu0
        %v3743 = vadd.f32 %v3724, %v3742
        %3744 = vmatmul.bf16.gmra.mxu0 %v2873
        %v3745 = vpop.f32.mrf.mxu0
        %v3746 = vadd.f32 %v3727, %v3745
        %v3747 = vpop.f32.mrf.mxu0
        %v3748 = vadd.f32 %v3729, %v3747
        %3749 = vdwg.mxu0
        %3750 = vmatpush.bf16.msra.mxu0 %v3297
        %3751 = vmatpush.bf16.msra.mxu0 %v3293
        %3752 = vmatpush.bf16.msra.mxu0 %v3289
        %3753 = vmatpush.bf16.msra.mxu0 %v3285
        %3754 = vmatpush.bf16.msra.mxu0 %v3281
        %3755 = vmatpush.bf16.msra.mxu0 %v3277
        %3756 = vmatpush.bf16.msra.mxu0 %v3273
        %3757 = vmatpush.bf16.msra.mxu0 %v3269
        %3758 = vmatmul.bf16.gmra.mxu0 %v2866
        %v3759 = vpop.f32.mrf.mxu0
        %v3760 = vadd.f32 %v2837, %v3759
        %v3761 = vpop.f32.mrf.mxu0
        %v3762 = vadd.f32 %v2837, %v3761
        %3763 = vmatmul.bf16.gmra.mxu0 %v2870
        %v3764 = vpop.f32.mrf.mxu0
        %v3765 = vadd.f32 %v2837, %v3764
        %v3766 = vpop.f32.mrf.mxu0
        %v3767 = vadd.f32 %v2837, %v3766
        %3768 = vdwg.mxu0
        %3769 = vmatpush.bf16.msra.mxu0 %v3329
        %3770 = vmatpush.bf16.msra.mxu0 %v3325
        %3771 = vmatpush.bf16.msra.mxu0 %v3321
        %3772 = vmatpush.bf16.msra.mxu0 %v3317
        %3773 = vmatpush.bf16.msra.mxu0 %v3313
        %3774 = vmatpush.bf16.msra.mxu0 %v3309
        %3775 = vmatpush.bf16.msra.mxu0 %v3305
        %3776 = vmatpush.bf16.msra.mxu0 %v3301
        %3777 = vmatmul.bf16.gmra.mxu0 %v2867
        %v3778 = vpop.f32.mrf.mxu0
        %v3779 = vadd.f32 %v3760, %v3778
        %v3780 = vpop.f32.mrf.mxu0
        %v3781 = vadd.f32 %v3762, %v3780
        %3782 = vmatmul.bf16.gmra.mxu0 %v2871
        %v3783 = vpop.f32.mrf.mxu0
        %v3784 = vadd.f32 %v3765, %v3783
        %v3785 = vpop.f32.mrf.mxu0
        %v3786 = vadd.f32 %v3767, %v3785
        %3787 = vdwg.mxu0
        %3788 = vmatpush.bf16.msra.mxu0 %v3361
        %3789 = vmatpush.bf16.msra.mxu0 %v3357
        %3790 = vmatpush.bf16.msra.mxu0 %v3353
        %3791 = vmatpush.bf16.msra.mxu0 %v3349
        %3792 = vmatpush.bf16.msra.mxu0 %v3345
        %3793 = vmatpush.bf16.msra.mxu0 %v3341
        %3794 = vmatpush.bf16.msra.mxu0 %v3337
        %3795 = vmatpush.bf16.msra.mxu0 %v3333
        %3796 = vmatmul.bf16.gmra.mxu0 %v2868
        %v3797 = vpop.f32.mrf.mxu0
        %v3798 = vadd.f32 %v3779, %v3797
        %v3799 = vpop.f32.mrf.mxu0
        %v3800 = vadd.f32 %v3781, %v3799
        %3801 = vmatmul.bf16.gmra.mxu0 %v2872
        %v3802 = vpop.f32.mrf.mxu0
        %v3803 = vadd.f32 %v3784, %v3802
        %v3804 = vpop.f32.mrf.mxu0
        %v3805 = vadd.f32 %v3786, %v3804
        %3806 = vdwg.mxu0
        %3807 = vmatpush.bf16.msra.mxu0 %v3393
        %3808 = vmatpush.bf16.msra.mxu0 %v3389
        %3809 = vmatpush.bf16.msra.mxu0 %v3385
        %3810 = vmatpush.bf16.msra.mxu0 %v3381
        %3811 = vmatpush.bf16.msra.mxu0 %v3377
        %3812 = vmatpush.bf16.msra.mxu0 %v3373
        %3813 = vmatpush.bf16.msra.mxu0 %v3369
        %3814 = vmatpush.bf16.msra.mxu0 %v3365
        %3815 = vmatmul.bf16.gmra.mxu0 %v2869
        %v3816 = vpop.f32.mrf.mxu0
        %v3817 = vadd.f32 %v3798, %v3816
        %v3818 = vpop.f32.mrf.mxu0
        %v3819 = vadd.f32 %v3800, %v3818
        %3820 = vmatmul.bf16.gmra.mxu0 %v2873
        %v3821 = vpop.f32.mrf.mxu0
        %v3822 = vadd.f32 %v3803, %v3821
        %v3823 = vpop.f32.mrf.mxu0
        %v3824 = vadd.f32 %v3805, %v3823
        %3825 = vdwg.mxu0
        %3826 = vst [vmem:[%s414] sm:$0xff] %v3589
        %3827 = vst [vmem:[%s414 + $0x8] sm:$0xff] %v3665
        %3828 = vst [vmem:[%s414 + $0x10] sm:$0xff] %v3741
        %3829 = vst [vmem:[%s414 + $0x18] sm:$0xff] %v3817
        %3830 = vst [vmem:[%s414 + $0x20] sm:$0xff] %v3591
        %3831 = vst [vmem:[%s414 + $0x28] sm:$0xff] %v3667
        %3832 = vst [vmem:[%s414 + $0x30] sm:$0xff] %v3743
        %3833 = vst [vmem:[%s414 + $0x38] sm:$0xff] %v3819
        %3834 = vst [vmem:[%s414 + $0x40] sm:$0xff] %v3594
        %3835 = vst [vmem:[%s414 + $0x48] sm:$0xff] %v3670
        %3836 = vst [vmem:[%s414 + $0x50] sm:$0xff] %v3746
        %3837 = vst [vmem:[%s414 + $0x58] sm:$0xff] %v3822
        %3838 = vst [vmem:[%s414 + $0x60] sm:$0xff] %v3596
        %3839 = vst [vmem:[%s414 + $0x68] sm:$0xff] %v3672
        %3840 = vst [vmem:[%s414 + $0x70] sm:$0xff] %v3748
        %3841 = vst [vmem:[%s414 + $0x78] sm:$0xff] %v3824
        %s3842 = sand.u32 %s211, 1
        %s3843 = scalar_lea.sflag [#allocation5], %s3842
        %s3844 = sand.u32 %s211, 1
        %s3845 = smul.addr %s3844, 128
        %s3846 = scalar_lea.vmem [#allocation14], %s3845
        // Predicated region
        $region77: #{tpu_custom_call.1} parent=47 // pred_check
          %p3847 = pneg %p221
        $region78: #{tpu_custom_call.1} parent=47 // pred_check_branch
          %3849 = sbr.rel (%p3847) target = $region80
        $region79: #{tpu_custom_call.1} parent=47 // pred_region
          %s3850 = smul.u32 4, %s31
          %s3851 = smul.u32 4, %s32
          %3853 = vsyncadd %s3843, 0
          %s3854 = smul.addr %s3850, 4
          %s3855 = sadd.s32 %s3851, %s3854
          %s3856 = smul.addr %s3855, 8
          %s3857 = scalar_lea.hbm %s7, %s3856
          %s3858 = sshll.u32 %s3846, 4
          %s3859 = int_to_ptr.vmem [resolvable:$true] %s3858
          %s3860 = sshll.u32 %s3857, 4
          %s3861 = int_to_ptr.hbm [resolvable:$true] %s3860
          %3866 = dma.vmem_to_hbm [thread:$0]  %s3859, 2048, %s3861, %s3843, 512, 512, 32
        $region80: #{tpu_custom_call.1} parent=47 // pred_fallthru
          _
      $region48: #{tpu_custom_call.1} parent=5 // pred_fallthru
        _
      %p3867 = scmp.le.s32.totalorder 2, %s22
      // Predicated region
      $region81: #{tpu_custom_call.1} parent=5 // pred_check
        %p3868 = pneg %p3867
      $region82: #{tpu_custom_call.1} parent=5 // pred_check_branch
        %3870 = sbr.rel (%p3868) target = $region84
      $region83: #{tpu_custom_call.1} parent=5 // pred_region
        %s3871 = ssub.s32 %s22, 2
        // Predicated region
        $region85: #{tpu_custom_call.1} parent=83 // pred_check
          %p3872 = pneg %p227
        $region86: #{tpu_custom_call.1} parent=83 // pred_check_branch
          %3874 = sbr.rel (%p3872) target = $region88
        $region87: #{tpu_custom_call.1} parent=83 // pred_region
          %s3875 = sand.u32 %s212, 1
          %s3876 = scalar_lea.sflag [#allocation5], %s3875
          %s3877 = sand.u32 %s212, 1
          %s3878 = smul.addr %s3877, 128
          %s3879 = scalar_lea.vmem [#allocation14], %s3878
          %3881 = dma.done %s3876, 2048
        $region88: #{tpu_custom_call.1} parent=83 // pred_fallthru
          _
      $region84: #{tpu_custom_call.1} parent=5 // pred_fallthru
        _
    $region6: #{tpu_custom_call.1} parent=1 // loop_footer
      %s26 = sadd.s32 1, %s22
    $region7: #{tpu_custom_call.1} parent=1 // loop_footer_branch
      %21 = sbr.rel target = $region3
    $region8: #{tpu_custom_call.1} parent=1 // loop_exit
      _
    %3882 = vsyncpa [#allocation4], 1
    %s3883 = scalar_lea.sflag [#allocation4], 1
    %3884 = vsyncpa %s3883, 1
    %3885 = vsyncpa [#allocation7], 1
    %3886 = vsyncpa [#allocation10], 1
    %3887 = vsyncpa [#allocation13], 1
    %3888 = vsyncpa [#allocation5], 1
    %s3889 = scalar_lea.sflag [#allocation5], 1
    %3890 = vsyncpa %s3889, 1

// kernel: tpu_custom_call.1
$region0: #{tpu_custom_call.1}
  #allocation0 [shape = 'u32[]', space=smem, size = 0x4, offset = 0x4, fixed_abs, tag = 'smem constant byte address 0x4 - core index']
  #allocation1 [shape = 'u32[72,128]{1,0:T(1,128)}', space=vmem, size = 0x9000, scoped, tag = 'internal scratch']
  #allocation2 [shape = 'bf16[32,512]{1,0:T(8,128)(2,1)}', space=vmem, size = 0x8000, scoped, tag = 'scratch operand']
  %s0 = inlined_call_operand.hbm [shape: bf16[64,512], index: 0, kind: input, shape index: {}]
  %s1 = inlined_call_operand.hbm [shape: bf16[512,512], index: 1, kind: input, shape index: {}]
  %s2 = inlined_call_operand.hbm [shape: f32[1,512], index: 2, kind: input, shape index: {}]
  %s3 = inlined_call_operand.hbm [shape: bf16[512,512], index: 3, kind: input, shape index: {}]
  %s4 = inlined_call_operand.hbm [shape: f32[1,512], index: 4, kind: input, shape index: {}]
  %s5 = inlined_call_operand.hbm [shape: bf16[512,512], index: 5, kind: input, shape index: {}]
  %s6 = inlined_call_operand.vmem [shape: f32[1,512], index: 6, kind: input, shape index: {}]
  %s7 = inlined_call_operand.hbm [shape: f32[64,512], index: 7, kind: output, shape index: {}]
  %s8 = sld [smem:[#allocation0]]
  $region89: #{tpu_custom_call.1} parent=0
    _
  %s10 = ssub.s32 1, %s8
  %s11 = scalar_select 0, %s10, %s8
  $region1: #{tpu_custom_call.1} parent=0
    #allocation3 [shape = 'u8[65536]{0}', space=vmem, size = 0x10000, scoped, tag = 'input window, operand 0']
    #allocation4 [shape = 's32[2]{0}', space=sflag, size = 0x8, scoped, tag = 'scoped memory for tpu_custom_call.1']
    #allocation5 [shape = 's32[2]{0}', space=sflag, size = 0x8, scoped, tag = 'scoped memory for tpu_custom_call.1']
    #allocation6 [shape = 'u8[524288]{0}', space=vmem, size = 0x80000, scoped, tag = 'input window, operand 1, single buffered']
    #allocation7 [shape = 's32[1]{0}', space=sflag, size = 0x4, scoped, tag = 'scoped memory for tpu_custom_call.1']
    #allocation8 [shape = 'u8[2048]{0}', space=vmem, size = 0x800, scoped, tag = 'input window, operand 2, single buffered']
    #allocation9 [shape = 'u8[524288]{0}', space=vmem, size = 0x80000, scoped, tag = 'input window, operand 3, single buffered']
    #allocation10 [shape = 's32[1]{0}', space=sflag, size = 0x4, scoped, tag = 'scoped memory for tpu_custom_call.1']
    #allocation11 [shape = 'u8[2048]{0}', space=vmem, size = 0x800, scoped, tag = 'input window, operand 4, single buffered']
    #allocation12 [shape = 'u8[524288]{0}', space=vmem, size = 0x80000, scoped, tag = 'input window, operand 5, single buffered']
    #allocation13 [shape = 's32[1]{0}', space=sflag, size = 0x4, scoped, tag = 'scoped memory for tpu_custom_call.1']
    #allocation14 [shape = 'u8[131072]{0}', space=vmem, size = 0x20000, scoped, tag = 'output window, operand 0']
    %12 = vsyncpa [#allocation4], 0
    %s13 = scalar_lea.sflag [#allocation4], 1
    %14 = vsyncpa %s13, 0
    %15 = vsyncpa [#allocation7], 0
    %16 = vsyncpa [#allocation10], 0
    %17 = vsyncpa [#allocation13], 0
    %18 = vsyncpa [#allocation5], 0
    %s19 = scalar_lea.sflag [#allocation5], 1
    %20 = vsyncpa %s19, 0
    loop: start=0, step=1, limit=4
    $region2: #{tpu_custom_call.1} parent=1 // loop_pre_header
      _
    $region3: #{tpu_custom_call.1} parent=1 // loop_header
      %s22 = sphi 0, %s26
      %p23 = scmp.ge.s32.totalorder %s22, 4
      %s29 = sphi 0, %s41
      %s30 = sphi 0, %s37
      %s31 = sphi 0, %s29
      %s32 = sphi 0, %s30
      %s33 = sphi 0, %s31
      %s34 = sphi 0, %s32
      %s44 = sphi 0, %s46
      %s47 = sphi 0, %s44
      %s48 = sphi 0, %s47
      %s64 = sphi 0, %s48
      %s68 = sphi 0, %s68
      %s70 = sphi 0, %s68
      %s71 = sphi 0, %s70
      %s85 = sphi 0, %s71
      %s89 = sphi 0, %s89
      %s91 = sphi 0, %s89
      %s92 = sphi 0, %s91
      %s106 = sphi 0, %s92
      %s110 = sphi 0, %s110
      %s112 = sphi 0, %s110
      %s113 = sphi 0, %s112
      %s127 = sphi 0, %s113
      %s131 = sphi 0, %s131
      %s133 = sphi 0, %s131
      %s134 = sphi 0, %s133
      %s148 = sphi 0, %s134
      %s154 = sphi 0, %s156
      %s157 = sphi 0, %s154
      %s158 = sphi 0, %s157
      %s174 = sphi 0, %s158
      %s180 = sphi 0, %s182
      %s183 = sphi 0, %s180
      %s184 = sphi 0, %s183
      %s200 = sphi 0, %s184
      %s208 = sphi 0, %s210
      %s211 = sphi 0, %s208
      %s212 = sphi 0, %s211
      %s228 = sphi 0, %s212
    $region4: #{tpu_custom_call.1} parent=1 // loop_header_branch
      %25 = sbr.rel (%p23) target = $region8
    $region5: #{tpu_custom_call.1} parent=1 // loop_body
      %s27 = ssub.s32 %s22, 1
      %s28 = ssub.s32 %s22, 2
      %s35 = sadd.s32 1, %s30
      %p36 = scmp.ge.s32.totalorder %s35, 1
      %s37 = scalar_select %p36, 0, %s35
      %s38 = sadd.s32 1, %s29
      %s39 = scalar_select %p36, %s38, %s29
      %p40 = scmp.ge.s32.totalorder %s39, 2
      %s41 = scalar_select %p40, 0, %s39
      %s42 = ssub.s32 %s29, %s41
      %p43 = scmp.eq.s32.totalorder %s42, 0
      %s45 = sadd.s32 %s44, 1
      %s46 = scalar_select %p43, %s44, %s45
      %p49 = pneg %p43
      %p50 = scmp.eq.s32.totalorder %s22, 1
      %p51 = por %p49, %p50
      %p52 = scmp.ne.s32.totalorder %s44, %s47
      %p53 = scmp.eq.s32.totalorder %s22, 0
      %p54 = por %p52, %p53
      %p55 = scmp.ne.s32.totalorder %s44, %s47
      %p56 = scmp.eq.s32.totalorder %s27, 1
      %p57 = por %p55, %p56
      %p58 = scmp.ne.s32.totalorder %s47, %s48
      %p59 = scmp.eq.s32.totalorder %s27, 0
      %p60 = por %p58, %p59
      %p61 = scmp.ne.s32.totalorder %s47, %s48
      %p62 = scmp.eq.s32.totalorder %s28, 1
      %p63 = por %p61, %p62
      %p65 = scmp.ne.s32.totalorder %s48, %s64
      %p66 = scmp.eq.s32.totalorder %s28, 0
      %p67 = por %p65, %p66
      %s69 = sadd.s32 %s68, 1
      %p72 = scmp.eq.s32.totalorder %s22, 1
      %p73 = scmp.ne.s32.totalorder %s68, %s70
      %p74 = scmp.eq.s32.totalorder %s22, 0
      %p75 = por %p73, %p74
      %p76 = scmp.ne.s32.totalorder %s68, %s70
      %p77 = scmp.eq.s32.totalorder %s27, 1
      %p78 = por %p76, %p77
      %p79 = scmp.ne.s32.totalorder %s70, %s71
      %p80 = scmp.eq.s32.totalorder %s27, 0
      %p81 = por %p79, %p80
      %p82 = scmp.ne.s32.totalorder %s70, %s71
      %p83 = scmp.eq.s32.totalorder %s28, 1
      %p84 = por %p82, %p83
      %p86 = scmp.ne.s32.totalorder %s71, %s85
      %p87 = scmp.eq.s32.totalorder %s28, 0
      %p88 = por %p86, %p87
      %s90 = sadd.s32 %s89, 1
      %p93 = scmp.eq.s32.totalorder %s22, 1
      %p94 = scmp.ne.s32.totalorder %s89, %s91
      %p95 = scmp.eq.s32.totalorder %s22, 0
      %p96 = por %p94, %p95
      %p97 = scmp.ne.s32.totalorder %s89, %s91
      %p98 = scmp.eq.s32.totalorder %s27, 1
      %p99 = por %p97, %p98
      %p100 = scmp.ne.s32.totalorder %s91, %s92
      %p101 = scmp.eq.s32.totalorder %s27, 0
      %p102 = por %p100, %p101
      %p103 = scmp.ne.s32.totalorder %s91, %s92
      %p104 = scmp.eq.s32.totalorder %s28, 1
      %p105 = por %p103, %p104
      %p107 = scmp.ne.s32.totalorder %s92, %s106
      %p108 = scmp.eq.s32.totalorder %s28, 0
      %p109 = por %p107, %p108
      %s111 = sadd.s32 %s110, 1
      %p114 = scmp.eq.s32.totalorder %s22, 1
      %p115 = scmp.ne.s32.totalorder %s110, %s112
      %p116 = scmp.eq.s32.totalorder %s22, 0
      %p117 = por %p115, %p116
      %p118 = scmp.ne.s32.totalorder %s110, %s112
      %p119 = scmp.eq.s32.totalorder %s27, 1
      %p120 = por %p118, %p119
      %p121 = scmp.ne.s32.totalorder %s112, %s113
      %p122 = scmp.eq.s32.totalorder %s27, 0
      %p123 = por %p121, %p122
      %p124 = scmp.ne.s32.totalorder %s112, %s113
      %p125 = scmp.eq.s32.totalorder %s28, 1
      %p126 = por %p124, %p125
      %p128 = scmp.ne.s32.totalorder %s113, %s127
      %p129 = scmp.eq.s32.totalorder %s28, 0
      %p130 = por %p128, %p129
      %s132 = sadd.s32 %s131, 1
      %p135 = scmp.eq.s32.totalorder %s22, 1
      %p136 = scmp.ne.s32.totalorder %s131, %s133
      %p137 = scmp.eq.s32.totalorder %s22, 0
      %p138 = por %p136, %p137
      %p139 = scmp.ne.s32.totalorder %s131, %s133
      %p140 = scmp.eq.s32.totalorder %s27, 1
      %p141 = por %p139, %p140
      %p142 = scmp.ne.s32.totalorder %s133, %s134
      %p143 = scmp.eq.s32.totalorder %s27, 0
      %p144 = por %p142, %p143
      %p145 = scmp.ne.s32.totalorder %s133, %s134
      %p146 = scmp.eq.s32.totalorder %s28, 1
      %p147 = por %p145, %p146
      %p149 = scmp.ne.s32.totalorder %s134, %s148
      %p150 = scmp.eq.s32.totalorder %s28, 0
      %p151 = por %p149, %p150
      %s152 = ssub.s32 %s30, %s37
      %p153 = scmp.eq.s32.totalorder %s152, 0
      %s155 = sadd.s32 %s154, 1
      %s156 = scalar_select %p153, %s154, %s155
      %p159 = pneg %p153
      %p160 = scmp.eq.s32.totalorder %s22, 1
      %p161 = por %p159, %p160
      %p162 = scmp.ne.s32.totalorder %s154, %s157
      %p163 = scmp.eq.s32.totalorder %s22, 0
      %p164 = por %p162, %p163
      %p165 = scmp.ne.s32.totalorder %s154, %s157
      %p166 = scmp.eq.s32.totalorder %s27, 1
      %p167 = por %p165, %p166
      %p168 = scmp.ne.s32.totalorder %s157, %s158
      %p169 = scmp.eq.s32.totalorder %s27, 0
      %p170 = por %p168, %p169
      %p171 = scmp.ne.s32.totalorder %s157, %s158
      %p172 = scmp.eq.s32.totalorder %s28, 1
      %p173 = por %p171, %p172
      %p175 = scmp.ne.s32.totalorder %s158, %s174
      %p176 = scmp.eq.s32.totalorder %s28, 0
      %p177 = por %p175, %p176
      %s178 = ssub.s32 %s30, %s37
      %p179 = scmp.eq.s32.totalorder %s178, 0
      %s181 = sadd.s32 %s180, 1
      %s182 = scalar_select %p179, %s180, %s181
      %p185 = pneg %p179
      %p186 = scmp.eq.s32.totalorder %s22, 1
      %p187 = por %p185, %p186
      %p188 = scmp.ne.s32.totalorder %s180, %s183
      %p189 = scmp.eq.s32.totalorder %s22, 0
      %p190 = por %p188, %p189
      %p191 = scmp.ne.s32.totalorder %s180, %s183
      %p192 = scmp.eq.s32.totalorder %s27, 1
      %p193 = por %p191, %p192
      %p194 = scmp.ne.s32.totalorder %s183, %s184
      %p195 = scmp.eq.s32.totalorder %s27, 0
      %p196 = por %p194, %p195
      %p197 = scmp.ne.s32.totalorder %s183, %s184
      %p198 = scmp.eq.s32.totalorder %s28, 1
      %p199 = por %p197, %p198
      %p201 = scmp.ne.s32.totalorder %s184, %s200
      %p202 = scmp.eq.s32.totalorder %s28, 0
      %p203 = por %p201, %p202
      %s204 = ssub.s32 %s29, %s41
      %s205 = ssub.s32 %s30, %s37
      %s206 = sor.u32 %s204, %s205
      %p207 = scmp.eq.s32.totalorder %s206, 0
      %s209 = sadd.s32 %s208, 1
      %s210 = scalar_select %p207, %s208, %s209
      %p213 = pneg %p207
      %p214 = scmp.eq.s32.totalorder %s22, 1
      %p215 = por %p213, %p214
      %p216 = scmp.ne.s32.totalorder %s208, %s211
      %p217 = scmp.eq.s32.totalorder %s22, 0
      %p218 = por %p216, %p217
      %p219 = scmp.ne.s32.totalorder %s208, %s211
      %p220 = scmp.eq.s32.totalorder %s27, 1
      %p221 = por %p219, %p220
      %p222 = scmp.ne.s32.totalorder %s211, %s212
      %p223 = scmp.eq.s32.totalorder %s27, 0
      %p224 = por %p222, %p223
      %p225 = scmp.ne.s32.totalorder %s211, %s212
      %p226 = scmp.eq.s32.totalorder %s28, 1
      %p227 = por %p225, %p226
      %p229 = scmp.ne.s32.totalorder %s212, %s228
      %p230 = scmp.eq.s32.totalorder %s28, 0
      %p231 = por %p229, %p230
      %p232 = scmp.le.s32.totalorder 1, %s22
      %p233 = scmp.lt.s32.totalorder %s22, 3
      %p234 = pnand %p232, %p233
      %p235 = pneg %p234
      // Predicated region
      $region9: #{tpu_custom_call.1} parent=5 // pred_check
        _
      $region10: #{tpu_custom_call.1} parent=5 // pred_check_branch
        %237 = sbr.rel (%p234) target = $region12
      $region11: #{tpu_custom_call.1} parent=5 // pred_region
        %s238 = ssub.s32 %s22, 1
        // Predicated region
        $region13: #{tpu_custom_call.1} parent=11 // pred_check
          %p239 = pneg %p81
        $region14: #{tpu_custom_call.1} parent=11 // pred_check_branch
          %241 = sbr.rel (%p239) target = $region16
        $region15: #{tpu_custom_call.1} parent=11 // pred_region
          %243 = vsyncadd [#allocation7], 0
          %s244 = sshll.u32 %s1, 4
          %s245 = int_to_ptr.hbm [resolvable:$true] %s244
          %s246 = sshll.u32 [#allocation6], 4
          %s247 = int_to_ptr.vmem [resolvable:$true] %s246
          %252 = dma.hbm_to_vmem [thread:$0]  %s245, 16384, %s247, [#allocation7], 256, 256, 16
        $region16: #{tpu_custom_call.1} parent=11 // pred_fallthru
          _
        // Predicated region
        $region17: #{tpu_custom_call.1} parent=11 // pred_check
          %p253 = pneg %p102
        $region18: #{tpu_custom_call.1} parent=11 // pred_check_branch
          %255 = sbr.rel (%p253) target = $region20
        $region19: #{tpu_custom_call.1} parent=11 // pred_region
          %257 = vsyncadd [#allocation7], 0
          %s259 = sshll.u32 %s2, 4
          %s260 = int_to_ptr.hbm [resolvable:$true] %s259
          %s261 = sshll.u32 [#allocation8], 4
          %s262 = int_to_ptr.vmem [resolvable:$true] %s261
          %264 = dma.hbm_to_vmem [thread:$0]  %s260, 64, %s262, [#allocation7]
        $region20: #{tpu_custom_call.1} parent=11 // pred_fallthru
          _
        // Predicated region
        $region21: #{tpu_custom_call.1} parent=11 // pred_check
          %p265 = pneg %p123
        $region22: #{tpu_custom_call.1} parent=11 // pred_check_branch
          %267 = sbr.rel (%p265) target = $region24
        $region23: #{tpu_custom_call.1} parent=11 // pred_region
          %269 = vsyncadd [#allocation10], 0
          %s270 = sshll.u32 %s3, 4
          %s271 = int_to_ptr.hbm [resolvable:$true] %s270
          %s272 = sshll.u32 [#allocation9], 4
          %s273 = int_to_ptr.vmem [resolvable:$true] %s272
          %278 = dma.hbm_to_vmem [thread:$0]  %s271, 16384, %s273, [#allocation10], 256, 256, 16
        $region24: #{tpu_custom_call.1} parent=11 // pred_fallthru
          _
        // Predicated region
        $region25: #{tpu_custom_call.1} parent=11 // pred_check
          %p279 = pneg %p144
        $region26: #{tpu_custom_call.1} parent=11 // pred_check_branch
          %281 = sbr.rel (%p279) target = $region28
        $region27: #{tpu_custom_call.1} parent=11 // pred_region
          %283 = vsyncadd [#allocation10], 0
          %s285 = sshll.u32 %s4, 4
          %s286 = int_to_ptr.hbm [resolvable:$true] %s285
          %s287 = sshll.u32 [#allocation11], 4
          %s288 = int_to_ptr.vmem [resolvable:$true] %s287
          %290 = dma.hbm_to_vmem [thread:$0]  %s286, 64, %s288, [#allocation10]
        $region28: #{tpu_custom_call.1} parent=11 // pred_fallthru
          _
        // Predicated region
        $region29: #{tpu_custom_call.1} parent=11 // pred_check
          %p291 = pneg %p170
        $region30: #{tpu_custom_call.1} parent=11 // pred_check_branch
          %293 = sbr.rel (%p291) target = $region32
        $region31: #{tpu_custom_call.1} parent=11 // pred_region
          %s294 = smul.u32 4, %s32
          %296 = vsyncadd [#allocation13], 0
          %s297 = smul.addr %s294, 4
          %s298 = scalar_lea.hbm %s5, %s297
          %s299 = sshll.u32 %s298, 4
          %s300 = int_to_ptr.hbm [resolvable:$true] %s299
          %s301 = sshll.u32 [#allocation12], 4
          %s302 = int_to_ptr.vmem [resolvable:$true] %s301
          %307 = dma.hbm_to_vmem [thread:$0]  %s300, 16384, %s302, [#allocation13], 256, 256, 16
        $region32: #{tpu_custom_call.1} parent=11 // pred_fallthru
          _
        // Predicated region
        $region33: #{tpu_custom_call.1} parent=11 // pred_check
          %p308 = pneg %p196
        $region34: #{tpu_custom_call.1} parent=11 // pred_check_branch
          %310 = sbr.rel (%p308) target = $region36
        $region35: #{tpu_custom_call.1} parent=11 // pred_region
          %s311 = smul.u32 4, %s32
          %p312 = scmp.lt.s32.totalorder %s311, 3
          %s313 = scalar_select %p312, %s311, 3
          %s314 = scalar_lea.vmem %s6, %s313
          %s315 = smul.u32 4, %s32
        $region36: #{tpu_custom_call.1} parent=11 // pred_fallthru
          _
      $region12: #{tpu_custom_call.1} parent=5 // pred_fallthru
        _
      %p316 = scmp.lt.s32.totalorder %s22, 2
      // Predicated region
      $region37: #{tpu_custom_call.1} parent=5 // pred_check
        %p317 = pneg %p316
      $region38: #{tpu_custom_call.1} parent=5 // pred_check_branch
        %319 = sbr.rel (%p317) target = $region40
      $region39: #{tpu_custom_call.1} parent=5 // pred_region
        // Predicated region
        $region41: #{tpu_custom_call.1} parent=39 // pred_check
          %p320 = pneg %p54
        $region42: #{tpu_custom_call.1} parent=39 // pred_check_branch
          %322 = sbr.rel (%p320) target = $region44
        $region43: #{tpu_custom_call.1} parent=39 // pred_region
          %s323 = sand.u32 %s44, 1
          %s324 = scalar_lea.sflag [#allocation4], %s323
          %s325 = sand.u32 %s44, 1
          %s326 = smul.addr %s325, 64
          %s327 = scalar_lea.vmem [#allocation3], %s326
          %s328 = smul.u32 4, %s29
          %330 = vsyncadd %s324, 0
          %s331 = smul.addr %s328, 4
          %s332 = smul.addr %s331, 4
          %s333 = scalar_lea.hbm %s0, %s332
          %s334 = sshll.u32 %s333, 4
          %s335 = int_to_ptr.hbm [resolvable:$true] %s334
          %s336 = sshll.u32 %s327, 4
          %s337 = int_to_ptr.vmem [resolvable:$true] %s336
          %342 = dma.hbm_to_vmem [thread:$0]  %s335, 1024, %s337, %s324, 256, 256, 16
        $region44: #{tpu_custom_call.1} parent=39 // pred_fallthru
          _
      $region40: #{tpu_custom_call.1} parent=5 // pred_fallthru
        _
      %p343 = scmp.le.s32.totalorder 1, %s22
      %p344 = scmp.lt.s32.totalorder %s22, 3
      %p345 = pnand %p343, %p344
      %p346 = pneg %p345
      // Predicated region
      $region45: #{tpu_custom_call.1} parent=5 // pred_check
        _
      $region46: #{tpu_custom_call.1} parent=5 // pred_check_branch
        %348 = sbr.rel (%p345) target = $region48
      $region47: #{tpu_custom_call.1} parent=5 // pred_region
        %s349 = ssub.s32 %s22, 1
        %s350 = sand.u32 %s47, 1
        %s351 = scalar_lea.sflag [#allocation4], %s350
        %s352 = sand.u32 %s47, 1
        %s353 = smul.addr %s352, 64
        %s354 = scalar_lea.vmem [#allocation3], %s353
        // Predicated region
        $region49: #{tpu_custom_call.1} parent=47 // pred_check
          %p355 = pneg %p60
        $region50: #{tpu_custom_call.1} parent=47 // pred_check_branch
          %357 = sbr.rel (%p355) target = $region52
        $region51: #{tpu_custom_call.1} parent=47 // pred_region
          %359 = dma.done %s351, 1024
        $region52: #{tpu_custom_call.1} parent=47 // pred_fallthru
          _
        // Predicated region
        $region53: #{tpu_custom_call.1} parent=47 // pred_check
          %p360 = pneg %p81
        $region54: #{tpu_custom_call.1} parent=47 // pred_check_branch
          %362 = sbr.rel (%p360) target = $region56
        $region55: #{tpu_custom_call.1} parent=47 // pred_region
          %364 = dma.done [#allocation7], 16384
        $region56: #{tpu_custom_call.1} parent=47 // pred_fallthru
          _
        // Predicated region
        $region57: #{tpu_custom_call.1} parent=47 // pred_check
          %p365 = pneg %p102
        $region58: #{tpu_custom_call.1} parent=47 // pred_check_branch
          %367 = sbr.rel (%p365) target = $region60
        $region59: #{tpu_custom_call.1} parent=47 // pred_region
          %369 = dma.done [#allocation7], 64
        $region60: #{tpu_custom_call.1} parent=47 // pred_fallthru
          _
        // Predicated region
        $region61: #{tpu_custom_call.1} parent=47 // pred_check
          %p370 = pneg %p123
        $region62: #{tpu_custom_call.1} parent=47 // pred_check_branch
          %372 = sbr.rel (%p370) target = $region64
        $region63: #{tpu_custom_call.1} parent=47 // pred_region
          %374 = dma.done [#allocation10], 16384
        $region64: #{tpu_custom_call.1} parent=47 // pred_fallthru
          _
        // Predicated region
        $region65: #{tpu_custom_call.1} parent=47 // pred_check
          %p375 = pneg %p144
        $region66: #{tpu_custom_call.1} parent=47 // pred_check_branch
          %377 = sbr.rel (%p375) target = $region68
        $region67: #{tpu_custom_call.1} parent=47 // pred_region
          %379 = dma.done [#allocation10], 64
        $region68: #{tpu_custom_call.1} parent=47 // pred_fallthru
          _
        // Predicated region
        $region69: #{tpu_custom_call.1} parent=47 // pred_check
          %p380 = pneg %p170
        $region70: #{tpu_custom_call.1} parent=47 // pred_check_branch
          %382 = sbr.rel (%p380) target = $region72
        $region71: #{tpu_custom_call.1} parent=47 // pred_region
          %384 = dma.done [#allocation13], 16384
        $region72: #{tpu_custom_call.1} parent=47 // pred_fallthru
          _
        %s385 = sand.u32 %s47, 1
        %s386 = scalar_lea.sflag [#allocation4], %s385
        %s387 = sand.u32 %s47, 1
        %s388 = smul.addr %s387, 64
        %s389 = scalar_lea.vmem [#allocation3], %s388
        %p390 = pneg %p60
        %p391 = pneg %p57
        %p392 = pneg %p81
        %p393 = pneg %p78
        %p394 = pneg %p102
        %p395 = pneg %p99
        %p396 = pneg %p123
        %p397 = pneg %p120
        %p398 = pneg %p144
        %p399 = pneg %p141
        %p400 = pneg %p170
        %p401 = pneg %p167
        %s402 = smul.u32 4, %s32
        %p403 = scmp.lt.s32.totalorder %s402, 3
        %s404 = scalar_select %p403, %s402, 3
        %s405 = scalar_lea.vmem %s6, %s404
        %p406 = pneg %p196
        %p407 = pneg %p193
        %p408 = pneg %p224
        %p409 = pneg %p221
        %s410 = sand.u32 %s211, 1
        %s411 = scalar_lea.sflag [#allocation5], %s410
        %s412 = sand.u32 %s211, 1
        %s413 = smul.addr %s412, 128
        %s414 = scalar_lea.vmem [#allocation14], %s413
        %s415 = smul.u32 4, %s31
        %s416 = smul.u32 4, %s32
        %s417 = smul.u32 4, %s32
        %p418 = scmp.lt.s32.totalorder %s417, 3
        %s419 = scalar_select %p418, %s417, 3
        %s420 = scalar_lea.vmem %s6, %s419
        %s421 = smul.u32 4, %s32
        %s422 = smul.u32 4, %s31
        %s423 = smul.u32 4, %s32
        %p424 = scmp.eq.s32.totalorder %s32, 0
        // Predicated region
        $region73: #{tpu_custom_call.1} parent=47 // pred_check
          %p425 = pneg %p424
        $region74: #{tpu_custom_call.1} parent=47 // pred_check_branch
          %427 = sbr.rel (%p425) target = $region76
        $region75: #{tpu_custom_call.1} parent=47 // pred_region
          %v428 = vld [vmem:[%s354] sm:$0xff]
          %v429 = vld [vmem:[%s354 + $0x8] sm:$0xff]
          %v430 = vld [vmem:[%s354 + $0x10] sm:$0xff]
          %v431 = vld [vmem:[%s354 + $0x18] sm:$0xff]
          %v432 = vld [vmem:[%s354 + $0x20] sm:$0xff]
          %v433 = vld [vmem:[%s354 + $0x28] sm:$0xff]
          %v434 = vld [vmem:[%s354 + $0x30] sm:$0xff]
          %v435 = vld [vmem:[%s354 + $0x38] sm:$0xff]
          %v436 = vld [vmem:[#allocation6] sm:$0xff]
          %v437 = vld [vmem:[#allocation6 + $0x8] sm:$0xff]
          %v438 = vld [vmem:[#allocation6 + $0x10] sm:$0xff]
          %v439 = vld [vmem:[#allocation6 + $0x18] sm:$0xff]
          %v440 = vld [vmem:[#allocation6 + $0x20] sm:$0xff]
          %v441 = vld [vmem:[#allocation6 + $0x28] sm:$0xff]
          %v442 = vld [vmem:[#allocation6 + $0x30] sm:$0xff]
          %v443 = vld [vmem:[#allocation6 + $0x38] sm:$0xff]
          %v444 = vld [vmem:[#allocation6 + $0x40] sm:$0xff]
          %v445 = vld [vmem:[#allocation6 + $0x48] sm:$0xff]
          %v446 = vld [vmem:[#allocation6 + $0x50] sm:$0xff]
          %v447 = vld [vmem:[#allocation6 + $0x58] sm:$0xff]
          %v448 = vld [vmem:[#allocation6 + $0x60] sm:$0xff]
          %v449 = vld [vmem:[#allocation6 + $0x68] sm:$0xff]
          %v450 = vld [vmem:[#allocation6 + $0x70] sm:$0xff]
          %v451 = vld [vmem:[#allocation6 + $0x78] sm:$0xff]
          %v452 = vld [vmem:[#allocation6 + $0x80] sm:$0xff]
          %v453 = vld [vmem:[#allocation6 + $0x88] sm:$0xff]
          %v454 = vld [vmem:[#allocation6 + $0x90] sm:$0xff]
          %v455 = vld [vmem:[#allocation6 + $0x98] sm:$0xff]
          %v456 = vld [vmem:[#allocation6 + $0xa0] sm:$0xff]
          %v457 = vld [vmem:[#allocation6 + $0xa8] sm:$0xff]
          %v458 = vld [vmem:[#allocation6 + $0xb0] sm:$0xff]
          %v459 = vld [vmem:[#allocation6 + $0xb8] sm:$0xff]
          %v460 = vld [vmem:[#allocation6 + $0xc0] sm:$0xff]
          %v461 = vld [vmem:[#allocation6 + $0xc8] sm:$0xff]
          %v462 = vld [vmem:[#allocation6 + $0xd0] sm:$0xff]
          %v463 = vld [vmem:[#allocation6 + $0xd8] sm:$0xff]
          %v464 = vld [vmem:[#allocation6 + $0xe0] sm:$0xff]
          %v465 = vld [vmem:[#allocation6 + $0xe8] sm:$0xff]
          %v466 = vld [vmem:[#allocation6 + $0xf0] sm:$0xff]
          %v467 = vld [vmem:[#allocation6 + $0xf8] sm:$0xff]
          %v468 = vld [vmem:[#allocation6 + $0x100] sm:$0xff]
          %v469 = vld [vmem:[#allocation6 + $0x108] sm:$0xff]
          %v470 = vld [vmem:[#allocation6 + $0x110] sm:$0xff]
          %v471 = vld [vmem:[#allocation6 + $0x118] sm:$0xff]
          %v472 = vld [vmem:[#allocation6 + $0x120] sm:$0xff]
          %v473 = vld [vmem:[#allocation6 + $0x128] sm:$0xff]
          %v474 = vld [vmem:[#allocation6 + $0x130] sm:$0xff]
          %v475 = vld [vmem:[#allocation6 + $0x138] sm:$0xff]
          %v476 = vld [vmem:[#allocation6 + $0x140] sm:$0xff]
          %v477 = vld [vmem:[#allocation6 + $0x148] sm:$0xff]
          %v478 = vld [vmem:[#allocation6 + $0x150] sm:$0xff]
          %v479 = vld [vmem:[#allocation6 + $0x158] sm:$0xff]
          %v480 = vld [vmem:[#allocation6 + $0x160] sm:$0xff]
          %v481 = vld [vmem:[#allocation6 + $0x168] sm:$0xff]
          %v482 = vld [vmem:[#allocation6 + $0x170] sm:$0xff]
          %v483 = vld [vmem:[#allocation6 + $0x178] sm:$0xff]
          %v484 = vld [vmem:[#allocation6 + $0x180] sm:$0xff]
          %v485 = vld [vmem:[#allocation6 + $0x188] sm:$0xff]
          %v486 = vld [vmem:[#allocation6 + $0x190] sm:$0xff]
          %v487 = vld [vmem:[#allocation6 + $0x198] sm:$0xff]
          %v488 = vld [vmem:[#allocation6 + $0x1a0] sm:$0xff]
          %v489 = vld [vmem:[#allocation6 + $0x1a8] sm:$0xff]
          %v490 = vld [vmem:[#allocation6 + $0x1b0] sm:$0xff]
          %v491 = vld [vmem:[#allocation6 + $0x1b8] sm:$0xff]
          %v492 = vld [vmem:[#allocation6 + $0x1c0] sm:$0xff]
          %v493 = vld [vmem:[#allocation6 + $0x1c8] sm:$0xff]
          %v494 = vld [vmem:[#allocation6 + $0x1d0] sm:$0xff]
          %v495 = vld [vmem:[#allocation6 + $0x1d8] sm:$0xff]
          %v496 = vld [vmem:[#allocation6 + $0x1e0] sm:$0xff]
          %v497 = vld [vmem:[#allocation6 + $0x1e8] sm:$0xff]
          %v498 = vld [vmem:[#allocation6 + $0x1f0] sm:$0xff]
          %v499 = vld [vmem:[#allocation6 + $0x1f8] sm:$0xff]
          %v500 = vld [vmem:[#allocation6 + $0x200] sm:$0xff]
          %v501 = vld [vmem:[#allocation6 + $0x208] sm:$0xff]
          %v502 = vld [vmem:[#allocation6 + $0x210] sm:$0xff]
          %v503 = vld [vmem:[#allocation6 + $0x218] sm:$0xff]
          %v504 = vld [vmem:[#allocation6 + $0x220] sm:$0xff]
          %v505 = vld [vmem:[#allocation6 + $0x228] sm:$0xff]
          %v506 = vld [vmem:[#allocation6 + $0x230] sm:$0xff]
          %v507 = vld [vmem:[#allocation6 + $0x238] sm:$0xff]
          %v508 = vld [vmem:[#allocation6 + $0x240] sm:$0xff]
          %v509 = vld [vmem:[#allocation6 + $0x248] sm:$0xff]
          %v510 = vld [vmem:[#allocation6 + $0x250] sm:$0xff]
          %v511 = vld [vmem:[#allocation6 + $0x258] sm:$0xff]
          %v512 = vld [vmem:[#allocation6 + $0x260] sm:$0xff]
          %v513 = vld [vmem:[#allocation6 + $0x268] sm:$0xff]
          %v514 = vld [vmem:[#allocation6 + $0x270] sm:$0xff]
          %v515 = vld [vmem:[#allocation6 + $0x278] sm:$0xff]
          %v516 = vld [vmem:[#allocation6 + $0x280] sm:$0xff]
          %v517 = vld [vmem:[#allocation6 + $0x288] sm:$0xff]
          %v518 = vld [vmem:[#allocation6 + $0x290] sm:$0xff]
          %v519 = vld [vmem:[#allocation6 + $0x298] sm:$0xff]
          %v520 = vld [vmem:[#allocation6 + $0x2a0] sm:$0xff]
          %v521 = vld [vmem:[#allocation6 + $0x2a8] sm:$0xff]
          %v522 = vld [vmem:[#allocation6 + $0x2b0] sm:$0xff]
          %v523 = vld [vmem:[#allocation6 + $0x2b8] sm:$0xff]
          %v524 = vld [vmem:[#allocation6 + $0x2c0] sm:$0xff]
          %v525 = vld [vmem:[#allocation6 + $0x2c8] sm:$0xff]
          %v526 = vld [vmem:[#allocation6 + $0x2d0] sm:$0xff]
          %v527 = vld [vmem:[#allocation6 + $0x2d8] sm:$0xff]
          %v528 = vld [vmem:[#allocation6 + $0x2e0] sm:$0xff]
          %v529 = vld [vmem:[#allocation6 + $0x2e8] sm:$0xff]
          %v530 = vld [vmem:[#allocation6 + $0x2f0] sm:$0xff]
          %v531 = vld [vmem:[#allocation6 + $0x2f8] sm:$0xff]
          %v532 = vld [vmem:[#allocation6 + $0x300] sm:$0xff]
          %v533 = vld [vmem:[#allocation6 + $0x308] sm:$0xff]
          %v534 = vld [vmem:[#allocation6 + $0x310] sm:$0xff]
          %v535 = vld [vmem:[#allocation6 + $0x318] sm:$0xff]
          %v536 = vld [vmem:[#allocation6 + $0x320] sm:$0xff]
          %v537 = vld [vmem:[#allocation6 + $0x328] sm:$0xff]
          %v538 = vld [vmem:[#allocation6 + $0x330] sm:$0xff]
          %v539 = vld [vmem:[#allocation6 + $0x338] sm:$0xff]
          %v540 = vld [vmem:[#allocation6 + $0x340] sm:$0xff]
          %v541 = vld [vmem:[#allocation6 + $0x348] sm:$0xff]
          %v542 = vld [vmem:[#allocation6 + $0x350] sm:$0xff]
          %v543 = vld [vmem:[#allocation6 + $0x358] sm:$0xff]
          %v544 = vld [vmem:[#allocation6 + $0x360] sm:$0xff]
          %v545 = vld [vmem:[#allocation6 + $0x368] sm:$0xff]
          %v546 = vld [vmem:[#allocation6 + $0x370] sm:$0xff]
          %v547 = vld [vmem:[#allocation6 + $0x378] sm:$0xff]
          %v548 = vld [vmem:[#allocation6 + $0x380] sm:$0xff]
          %v549 = vld [vmem:[#allocation6 + $0x388] sm:$0xff]
          %v550 = vld [vmem:[#allocation6 + $0x390] sm:$0xff]
          %v551 = vld [vmem:[#allocation6 + $0x398] sm:$0xff]
          %v552 = vld [vmem:[#allocation6 + $0x3a0] sm:$0xff]
          %v553 = vld [vmem:[#allocation6 + $0x3a8] sm:$0xff]
          %v554 = vld [vmem:[#allocation6 + $0x3b0] sm:$0xff]
          %v555 = vld [vmem:[#allocation6 + $0x3b8] sm:$0xff]
          %v556 = vld [vmem:[#allocation6 + $0x3c0] sm:$0xff]
          %v557 = vld [vmem:[#allocation6 + $0x3c8] sm:$0xff]
          %v558 = vld [vmem:[#allocation6 + $0x3d0] sm:$0xff]
          %v559 = vld [vmem:[#allocation6 + $0x3d8] sm:$0xff]
          %v560 = vld [vmem:[#allocation6 + $0x3e0] sm:$0xff]
          %v561 = vld [vmem:[#allocation6 + $0x3e8] sm:$0xff]
          %v562 = vld [vmem:[#allocation6 + $0x3f0] sm:$0xff]
          %v563 = vld [vmem:[#allocation6 + $0x3f8] sm:$0xff]
          %v564 = vld [vmem:[#allocation8] sm:$0xf]
          %v566 = vperm.slane %v564, 0
          %v567 = vperm.slane %v564, 1
          %v568 = vperm.slane %v564, 2
          %v569 = vperm.slane %v564, 3
          %v582 = vunpack.c.l.b16 %v428
          %v583 = vunpack.c.h.b16 %v428
          %v584 = vunpack.c.l.b16 %v429
          %v585 = vunpack.c.h.b16 %v429
          %v586 = vunpack.c.l.b16 %v430
          %v587 = vunpack.c.h.b16 %v430
          %v588 = vunpack.c.l.b16 %v431
          %v589 = vunpack.c.h.b16 %v431
          %v590 = vunpack.c.l.b16 %v432
          %v591 = vunpack.c.h.b16 %v432
          %v592 = vunpack.c.l.b16 %v433
          %v593 = vunpack.c.h.b16 %v433
          %v594 = vunpack.c.l.b16 %v434
          %v595 = vunpack.c.h.b16 %v434
          %v596 = vunpack.c.l.b16 %v435
          %v597 = vunpack.c.h.b16 %v435
          %v598 = vpack.c.b16 %v586, %v582
          %v599 = vpack.c.b16 %v587, %v583
          %v600 = vpack.c.b16 %v588, %v584
          %v601 = vpack.c.b16 %v589, %v585
          %v602 = vpack.c.b16 %v594, %v590
          %v603 = vpack.c.b16 %v595, %v591
          %v604 = vpack.c.b16 %v596, %v592
          %v605 = vpack.c.b16 %v597, %v593
          %v742 = vunpack.c.l.b16 %v436
          %v743 = vunpack.c.h.b16 %v436
          %v744 = vunpack.c.l.b16 %v437
          %v745 = vunpack.c.h.b16 %v437
          %v746 = vunpack.c.l.b16 %v438
          %v747 = vunpack.c.h.b16 %v438
          %v748 = vunpack.c.l.b16 %v439
          %v749 = vunpack.c.h.b16 %v439
          %v750 = vunpack.c.l.b16 %v440
          %v751 = vunpack.c.h.b16 %v440
          %v752 = vunpack.c.l.b16 %v441
          %v753 = vunpack.c.h.b16 %v441
          %v754 = vunpack.c.l.b16 %v442
          %v755 = vunpack.c.h.b16 %v442
          %v756 = vunpack.c.l.b16 %v443
          %v757 = vunpack.c.h.b16 %v443
          %v758 = vunpack.c.l.b16 %v444
          %v759 = vunpack.c.h.b16 %v444
          %v760 = vunpack.c.l.b16 %v445
          %v761 = vunpack.c.h.b16 %v445
          %v762 = vunpack.c.l.b16 %v446
          %v763 = vunpack.c.h.b16 %v446
          %v764 = vunpack.c.l.b16 %v447
          %v765 = vunpack.c.h.b16 %v447
          %v766 = vunpack.c.l.b16 %v448
          %v767 = vunpack.c.h.b16 %v448
          %v768 = vunpack.c.l.b16 %v449
          %v769 = vunpack.c.h.b16 %v449
          %v770 = vunpack.c.l.b16 %v450
          %v771 = vunpack.c.h.b16 %v450
          %v772 = vunpack.c.l.b16 %v451
          %v773 = vunpack.c.h.b16 %v451
          %v774 = vunpack.c.l.b16 %v452
          %v775 = vunpack.c.h.b16 %v452
          %v776 = vunpack.c.l.b16 %v453
          %v777 = vunpack.c.h.b16 %v453
          %v778 = vunpack.c.l.b16 %v454
          %v779 = vunpack.c.h.b16 %v454
          %v780 = vunpack.c.l.b16 %v455
          %v781 = vunpack.c.h.b16 %v455
          %v782 = vunpack.c.l.b16 %v456
          %v783 = vunpack.c.h.b16 %v456
          %v784 = vunpack.c.l.b16 %v457
          %v785 = vunpack.c.h.b16 %v457
          %v786 = vunpack.c.l.b16 %v458
          %v787 = vunpack.c.h.b16 %v458
          %v788 = vunpack.c.l.b16 %v459
          %v789 = vunpack.c.h.b16 %v459
          %v790 = vunpack.c.l.b16 %v460
          %v791 = vunpack.c.h.b16 %v460
          %v792 = vunpack.c.l.b16 %v461
          %v793 = vunpack.c.h.b16 %v461
          %v794 = vunpack.c.l.b16 %v462
          %v795 = vunpack.c.h.b16 %v462
          %v796 = vunpack.c.l.b16 %v463
          %v797 = vunpack.c.h.b16 %v463
          %v798 = vunpack.c.l.b16 %v464
          %v799 = vunpack.c.h.b16 %v464
          %v800 = vunpack.c.l.b16 %v465
          %v801 = vunpack.c.h.b16 %v465
          %v802 = vunpack.c.l.b16 %v466
          %v803 = vunpack.c.h.b16 %v466
          %v804 = vunpack.c.l.b16 %v467
          %v805 = vunpack.c.h.b16 %v467
          %v806 = vunpack.c.l.b16 %v468
          %v807 = vunpack.c.h.b16 %v468
          %v808 = vunpack.c.l.b16 %v469
          %v809 = vunpack.c.h.b16 %v469
          %v810 = vunpack.c.l.b16 %v470
          %v811 = vunpack.c.h.b16 %v470
          %v812 = vunpack.c.l.b16 %v471
          %v813 = vunpack.c.h.b16 %v471
          %v814 = vunpack.c.l.b16 %v472
          %v815 = vunpack.c.h.b16 %v472
          %v816 = vunpack.c.l.b16 %v473
          %v817 = vunpack.c.h.b16 %v473
          %v818 = vunpack.c.l.b16 %v474
          %v819 = vunpack.c.h.b16 %v474
          %v820 = vunpack.c.l.b16 %v475
          %v821 = vunpack.c.h.b16 %v475
          %v822 = vunpack.c.l.b16 %v476
          %v823 = vunpack.c.h.b16 %v476
          %v824 = vunpack.c.l.b16 %v477
          %v825 = vunpack.c.h.b16 %v477
          %v826 = vunpack.c.l.b16 %v478
          %v827 = vunpack.c.h.b16 %v478
          %v828 = vunpack.c.l.b16 %v479
          %v829 = vunpack.c.h.b16 %v479
          %v830 = vunpack.c.l.b16 %v480
          %v831 = vunpack.c.h.b16 %v480
          %v832 = vunpack.c.l.b16 %v481
          %v833 = vunpack.c.h.b16 %v481
          %v834 = vunpack.c.l.b16 %v482
          %v835 = vunpack.c.h.b16 %v482
          %v836 = vunpack.c.l.b16 %v483
          %v837 = vunpack.c.h.b16 %v483
          %v838 = vunpack.c.l.b16 %v484
          %v839 = vunpack.c.h.b16 %v484
          %v840 = vunpack.c.l.b16 %v485
          %v841 = vunpack.c.h.b16 %v485
          %v842 = vunpack.c.l.b16 %v486
          %v843 = vunpack.c.h.b16 %v486
          %v844 = vunpack.c.l.b16 %v487
          %v845 = vunpack.c.h.b16 %v487
          %v846 = vunpack.c.l.b16 %v488
          %v847 = vunpack.c.h.b16 %v488
          %v848 = vunpack.c.l.b16 %v489
          %v849 = vunpack.c.h.b16 %v489
          %v850 = vunpack.c.l.b16 %v490
          %v851 = vunpack.c.h.b16 %v490
          %v852 = vunpack.c.l.b16 %v491
          %v853 = vunpack.c.h.b16 %v491
          %v854 = vunpack.c.l.b16 %v492
          %v855 = vunpack.c.h.b16 %v492
          %v856 = vunpack.c.l.b16 %v493
          %v857 = vunpack.c.h.b16 %v493
          %v858 = vunpack.c.l.b16 %v494
          %v859 = vunpack.c.h.b16 %v494
          %v860 = vunpack.c.l.b16 %v495
          %v861 = vunpack.c.h.b16 %v495
          %v862 = vunpack.c.l.b16 %v496
          %v863 = vunpack.c.h.b16 %v496
          %v864 = vunpack.c.l.b16 %v497
          %v865 = vunpack.c.h.b16 %v497
          %v866 = vunpack.c.l.b16 %v498
          %v867 = vunpack.c.h.b16 %v498
          %v868 = vunpack.c.l.b16 %v499
          %v869 = vunpack.c.h.b16 %v499
          %v870 = vunpack.c.l.b16 %v500
          %v871 = vunpack.c.h.b16 %v500
          %v872 = vunpack.c.l.b16 %v501
          %v873 = vunpack.c.h.b16 %v501
          %v874 = vunpack.c.l.b16 %v502
          %v875 = vunpack.c.h.b16 %v502
          %v876 = vunpack.c.l.b16 %v503
          %v877 = vunpack.c.h.b16 %v503
          %v878 = vunpack.c.l.b16 %v504
          %v879 = vunpack.c.h.b16 %v504
          %v880 = vunpack.c.l.b16 %v505
          %v881 = vunpack.c.h.b16 %v505
          %v882 = vunpack.c.l.b16 %v506
          %v883 = vunpack.c.h.b16 %v506
          %v884 = vunpack.c.l.b16 %v507
          %v885 = vunpack.c.h.b16 %v507
          %v886 = vunpack.c.l.b16 %v508
          %v887 = vunpack.c.h.b16 %v508
          %v888 = vunpack.c.l.b16 %v509
          %v889 = vunpack.c.h.b16 %v509
          %v890 = vunpack.c.l.b16 %v510
          %v891 = vunpack.c.h.b16 %v510
          %v892 = vunpack.c.l.b16 %v511
          %v893 = vunpack.c.h.b16 %v511
          %v894 = vunpack.c.l.b16 %v512
          %v895 = vunpack.c.h.b16 %v512
          %v896 = vunpack.c.l.b16 %v513
          %v897 = vunpack.c.h.b16 %v513
          %v898 = vunpack.c.l.b16 %v514
          %v899 = vunpack.c.h.b16 %v514
          %v900 = vunpack.c.l.b16 %v515
          %v901 = vunpack.c.h.b16 %v515
          %v902 = vunpack.c.l.b16 %v516
          %v903 = vunpack.c.h.b16 %v516
          %v904 = vunpack.c.l.b16 %v517
          %v905 = vunpack.c.h.b16 %v517
          %v906 = vunpack.c.l.b16 %v518
          %v907 = vunpack.c.h.b16 %v518
          %v908 = vunpack.c.l.b16 %v519
          %v909 = vunpack.c.h.b16 %v519
          %v910 = vunpack.c.l.b16 %v520
          %v911 = vunpack.c.h.b16 %v520
          %v912 = vunpack.c.l.b16 %v521
          %v913 = vunpack.c.h.b16 %v521
          %v914 = vunpack.c.l.b16 %v522
          %v915 = vunpack.c.h.b16 %v522
          %v916 = vunpack.c.l.b16 %v523
          %v917 = vunpack.c.h.b16 %v523
          %v918 = vunpack.c.l.b16 %v524
          %v919 = vunpack.c.h.b16 %v524
          %v920 = vunpack.c.l.b16 %v525
          %v921 = vunpack.c.h.b16 %v525
          %v922 = vunpack.c.l.b16 %v526
          %v923 = vunpack.c.h.b16 %v526
          %v924 = vunpack.c.l.b16 %v527
          %v925 = vunpack.c.h.b16 %v527
          %v926 = vunpack.c.l.b16 %v528
          %v927 = vunpack.c.h.b16 %v528
          %v928 = vunpack.c.l.b16 %v529
          %v929 = vunpack.c.h.b16 %v529
          %v930 = vunpack.c.l.b16 %v530
          %v931 = vunpack.c.h.b16 %v530
          %v932 = vunpack.c.l.b16 %v531
          %v933 = vunpack.c.h.b16 %v531
          %v934 = vunpack.c.l.b16 %v532
          %v935 = vunpack.c.h.b16 %v532
          %v936 = vunpack.c.l.b16 %v533
          %v937 = vunpack.c.h.b16 %v533
          %v938 = vunpack.c.l.b16 %v534
          %v939 = vunpack.c.h.b16 %v534
          %v940 = vunpack.c.l.b16 %v535
          %v941 = vunpack.c.h.b16 %v535
          %v942 = vunpack.c.l.b16 %v536
          %v943 = vunpack.c.h.b16 %v536
          %v944 = vunpack.c.l.b16 %v537
          %v945 = vunpack.c.h.b16 %v537
          %v946 = vunpack.c.l.b16 %v538
          %v947 = vunpack.c.h.b16 %v538
          %v948 = vunpack.c.l.b16 %v539
          %v949 = vunpack.c.h.b16 %v539
          %v950 = vunpack.c.l.b16 %v540
          %v951 = vunpack.c.h.b16 %v540
          %v952 = vunpack.c.l.b16 %v541
          %v953 = vunpack.c.h.b16 %v541
          %v954 = vunpack.c.l.b16 %v542
          %v955 = vunpack.c.h.b16 %v542
          %v956 = vunpack.c.l.b16 %v543
          %v957 = vunpack.c.h.b16 %v543
          %v958 = vunpack.c.l.b16 %v544
          %v959 = vunpack.c.h.b16 %v544
          %v960 = vunpack.c.l.b16 %v545
          %v961 = vunpack.c.h.b16 %v545
          %v962 = vunpack.c.l.b16 %v546
          %v963 = vunpack.c.h.b16 %v546
          %v964 = vunpack.c.l.b16 %v547
          %v965 = vunpack.c.h.b16 %v547
          %v966 = vunpack.c.l.b16 %v548
          %v967 = vunpack.c.h.b16 %v548
          %v968 = vunpack.c.l.b16 %v549
          %v969 = vunpack.c.h.b16 %v549
          %v970 = vunpack.c.l.b16 %v550
          %v971 = vunpack.c.h.b16 %v550
          %v972 = vunpack.c.l.b16 %v551
          %v973 = vunpack.c.h.b16 %v551
          %v974 = vunpack.c.l.b16 %v552
          %v975 = vunpack.c.h.b16 %v552
          %v976 = vunpack.c.l.b16 %v553
          %v977 = vunpack.c.h.b16 %v553
          %v978 = vunpack.c.l.b16 %v554
          %v979 = vunpack.c.h.b16 %v554
          %v980 = vunpack.c.l.b16 %v555
          %v981 = vunpack.c.h.b16 %v555
          %v982 = vunpack.c.l.b16 %v556
          %v983 = vunpack.c.h.b16 %v556
          %v984 = vunpack.c.l.b16 %v557
          %v985 = vunpack.c.h.b16 %v557
          %v986 = vunpack.c.l.b16 %v558
          %v987 = vunpack.c.h.b16 %v558
          %v988 = vunpack.c.l.b16 %v559
          %v989 = vunpack.c.h.b16 %v559
          %v990 = vunpack.c.l.b16 %v560
          %v991 = vunpack.c.h.b16 %v560
          %v992 = vunpack.c.l.b16 %v561
          %v993 = vunpack.c.h.b16 %v561
          %v994 = vunpack.c.l.b16 %v562
          %v995 = vunpack.c.h.b16 %v562
          %v996 = vunpack.c.l.b16 %v563
          %v997 = vunpack.c.h.b16 %v563
          %v998 = vpack.c.b16 %v746, %v742
          %v999 = vpack.c.b16 %v747, %v743
          %v1000 = vpack.c.b16 %v748, %v744
          %v1001 = vpack.c.b16 %v749, %v745
          %v1002 = vpack.c.b16 %v754, %v750
          %v1003 = vpack.c.b16 %v755, %v751
          %v1004 = vpack.c.b16 %v756, %v752
          %v1005 = vpack.c.b16 %v757, %v753
          %v1006 = vpack.c.b16 %v762, %v758
          %v1007 = vpack.c.b16 %v763, %v759
          %v1008 = vpack.c.b16 %v764, %v760
          %v1009 = vpack.c.b16 %v765, %v761
          %v1010 = vpack.c.b16 %v770, %v766
          %v1011 = vpack.c.b16 %v771, %v767
          %v1012 = vpack.c.b16 %v772, %v768
          %v1013 = vpack.c.b16 %v773, %v769
          %v1014 = vpack.c.b16 %v778, %v774
          %v1015 = vpack.c.b16 %v779, %v775
          %v1016 = vpack.c.b16 %v780, %v776
          %v1017 = vpack.c.b16 %v781, %v777
          %v1018 = vpack.c.b16 %v786, %v782
          %v1019 = vpack.c.b16 %v787, %v783
          %v1020 = vpack.c.b16 %v788, %v784
          %v1021 = vpack.c.b16 %v789, %v785
          %v1022 = vpack.c.b16 %v794, %v790
          %v1023 = vpack.c.b16 %v795, %v791
          %v1024 = vpack.c.b16 %v796, %v792
          %v1025 = vpack.c.b16 %v797, %v793
          %v1026 = vpack.c.b16 %v802, %v798
          %v1027 = vpack.c.b16 %v803, %v799
          %v1028 = vpack.c.b16 %v804, %v800
          %v1029 = vpack.c.b16 %v805, %v801
          %v1030 = vpack.c.b16 %v810, %v806
          %v1031 = vpack.c.b16 %v811, %v807
          %v1032 = vpack.c.b16 %v812, %v808
          %v1033 = vpack.c.b16 %v813, %v809
          %v1034 = vpack.c.b16 %v818, %v814
          %v1035 = vpack.c.b16 %v819, %v815
          %v1036 = vpack.c.b16 %v820, %v816
          %v1037 = vpack.c.b16 %v821, %v817
          %v1038 = vpack.c.b16 %v826, %v822
          %v1039 = vpack.c.b16 %v827, %v823
          %v1040 = vpack.c.b16 %v828, %v824
          %v1041 = vpack.c.b16 %v829, %v825
          %v1042 = vpack.c.b16 %v834, %v830
          %v1043 = vpack.c.b16 %v835, %v831
          %v1044 = vpack.c.b16 %v836, %v832
          %v1045 = vpack.c.b16 %v837, %v833
          %v1046 = vpack.c.b16 %v842, %v838
          %v1047 = vpack.c.b16 %v843, %v839
          %v1048 = vpack.c.b16 %v844, %v840
          %v1049 = vpack.c.b16 %v845, %v841
          %v1050 = vpack.c.b16 %v850, %v846
          %v1051 = vpack.c.b16 %v851, %v847
          %v1052 = vpack.c.b16 %v852, %v848
          %v1053 = vpack.c.b16 %v853, %v849
          %v1054 = vpack.c.b16 %v858, %v854
          %v1055 = vpack.c.b16 %v859, %v855
          %v1056 = vpack.c.b16 %v860, %v856
          %v1057 = vpack.c.b16 %v861, %v857
          %v1058 = vpack.c.b16 %v866, %v862
          %v1059 = vpack.c.b16 %v867, %v863
          %v1060 = vpack.c.b16 %v868, %v864
          %v1061 = vpack.c.b16 %v869, %v865
          %v1062 = vpack.c.b16 %v874, %v870
          %v1063 = vpack.c.b16 %v875, %v871
          %v1064 = vpack.c.b16 %v876, %v872
          %v1065 = vpack.c.b16 %v877, %v873
          %v1066 = vpack.c.b16 %v882, %v878
          %v1067 = vpack.c.b16 %v883, %v879
          %v1068 = vpack.c.b16 %v884, %v880
          %v1069 = vpack.c.b16 %v885, %v881
          %v1070 = vpack.c.b16 %v890, %v886
          %v1071 = vpack.c.b16 %v891, %v887
          %v1072 = vpack.c.b16 %v892, %v888
          %v1073 = vpack.c.b16 %v893, %v889
          %v1074 = vpack.c.b16 %v898, %v894
          %v1075 = vpack.c.b16 %v899, %v895
          %v1076 = vpack.c.b16 %v900, %v896
          %v1077 = vpack.c.b16 %v901, %v897
          %v1078 = vpack.c.b16 %v906, %v902
          %v1079 = vpack.c.b16 %v907, %v903
          %v1080 = vpack.c.b16 %v908, %v904
          %v1081 = vpack.c.b16 %v909, %v905
          %v1082 = vpack.c.b16 %v914, %v910
          %v1083 = vpack.c.b16 %v915, %v911
          %v1084 = vpack.c.b16 %v916, %v912
          %v1085 = vpack.c.b16 %v917, %v913
          %v1086 = vpack.c.b16 %v922, %v918
          %v1087 = vpack.c.b16 %v923, %v919
          %v1088 = vpack.c.b16 %v924, %v920
          %v1089 = vpack.c.b16 %v925, %v921
          %v1090 = vpack.c.b16 %v930, %v926
          %v1091 = vpack.c.b16 %v931, %v927
          %v1092 = vpack.c.b16 %v932, %v928
          %v1093 = vpack.c.b16 %v933, %v929
          %v1094 = vpack.c.b16 %v938, %v934
          %v1095 = vpack.c.b16 %v939, %v935
          %v1096 = vpack.c.b16 %v940, %v936
          %v1097 = vpack.c.b16 %v941, %v937
          %v1098 = vpack.c.b16 %v946, %v942
          %v1099 = vpack.c.b16 %v947, %v943
          %v1100 = vpack.c.b16 %v948, %v944
          %v1101 = vpack.c.b16 %v949, %v945
          %v1102 = vpack.c.b16 %v954, %v950
          %v1103 = vpack.c.b16 %v955, %v951
          %v1104 = vpack.c.b16 %v956, %v952
          %v1105 = vpack.c.b16 %v957, %v953
          %v1106 = vpack.c.b16 %v962, %v958
          %v1107 = vpack.c.b16 %v963, %v959
          %v1108 = vpack.c.b16 %v964, %v960
          %v1109 = vpack.c.b16 %v965, %v961
          %v1110 = vpack.c.b16 %v970, %v966
          %v1111 = vpack.c.b16 %v971, %v967
          %v1112 = vpack.c.b16 %v972, %v968
          %v1113 = vpack.c.b16 %v973, %v969
          %v1114 = vpack.c.b16 %v978, %v974
          %v1115 = vpack.c.b16 %v979, %v975
          %v1116 = vpack.c.b16 %v980, %v976
          %v1117 = vpack.c.b16 %v981, %v977
          %v1118 = vpack.c.b16 %v986, %v982
          %v1119 = vpack.c.b16 %v987, %v983
          %v1120 = vpack.c.b16 %v988, %v984
          %v1121 = vpack.c.b16 %v989, %v985
          %v1122 = vpack.c.b16 %v994, %v990
          %v1123 = vpack.c.b16 %v995, %v991
          %v1124 = vpack.c.b16 %v996, %v992
          %v1125 = vpack.c.b16 %v997, %v993
          %1254 = vmatpush.bf16.msra.mxu0 %v1026
          %1255 = vmatpush.bf16.msra.mxu0 %v1022
          %1256 = vmatpush.bf16.msra.mxu0 %v1018
          %1257 = vmatpush.bf16.msra.mxu0 %v1014
          %1258 = vmatpush.bf16.msra.mxu0 %v1010
          %1259 = vmatpush.bf16.msra.mxu0 %v1006
          %1260 = vmatpush.bf16.msra.mxu0 %v1002
          %1261 = vmatpush.bf16.msra.mxu0 %v998
          %1262 = vmatmul.bf16.gmra.mxu0 %v598
          %v1263 = vpop.f32.mrf.mxu0
          %v1264 = vadd.f32 %v566, %v1263
          %v1265 = vpop.f32.mrf.mxu0
          %v1266 = vadd.f32 %v566, %v1265
          %1267 = vmatmul.bf16.gmra.mxu0 %v602
          %v1268 = vpop.f32.mrf.mxu0
          %v1269 = vadd.f32 %v566, %v1268
          %v1270 = vpop.f32.mrf.mxu0
          %v1271 = vadd.f32 %v566, %v1270
          %1272 = vdwg.mxu0
          %1273 = vmatpush.bf16.msra.mxu0 %v1058
          %1274 = vmatpush.bf16.msra.mxu0 %v1054
          %1275 = vmatpush.bf16.msra.mxu0 %v1050
          %1276 = vmatpush.bf16.msra.mxu0 %v1046
          %1277 = vmatpush.bf16.msra.mxu0 %v1042
          %1278 = vmatpush.bf16.msra.mxu0 %v1038
          %1279 = vmatpush.bf16.msra.mxu0 %v1034
          %1280 = vmatpush.bf16.msra.mxu0 %v1030
          %1281 = vmatmul.bf16.gmra.mxu0 %v599
          %v1282 = vpop.f32.mrf.mxu0
          %v1283 = vadd.f32 %v1264, %v1282
          %v1284 = vpop.f32.mrf.mxu0
          %v1285 = vadd.f32 %v1266, %v1284
          %1286 = vmatmul.bf16.gmra.mxu0 %v603
          %v1287 = vpop.f32.mrf.mxu0
          %v1288 = vadd.f32 %v1269, %v1287
          %v1289 = vpop.f32.mrf.mxu0
          %v1290 = vadd.f32 %v1271, %v1289
          %1291 = vdwg.mxu0
          %1292 = vmatpush.bf16.msra.mxu0 %v1090
          %1293 = vmatpush.bf16.msra.mxu0 %v1086
          %1294 = vmatpush.bf16.msra.mxu0 %v1082
          %1295 = vmatpush.bf16.msra.mxu0 %v1078
          %1296 = vmatpush.bf16.msra.mxu0 %v1074
          %1297 = vmatpush.bf16.msra.mxu0 %v1070
          %1298 = vmatpush.bf16.msra.mxu0 %v1066
          %1299 = vmatpush.bf16.msra.mxu0 %v1062
          %1300 = vmatmul.bf16.gmra.mxu0 %v600
          %v1301 = vpop.f32.mrf.mxu0
          %v1302 = vadd.f32 %v1283, %v1301
          %v1303 = vpop.f32.mrf.mxu0
          %v1304 = vadd.f32 %v1285, %v1303
          %1305 = vmatmul.bf16.gmra.mxu0 %v604
          %v1306 = vpop.f32.mrf.mxu0
          %v1307 = vadd.f32 %v1288, %v1306
          %v1308 = vpop.f32.mrf.mxu0
          %v1309 = vadd.f32 %v1290, %v1308
          %1310 = vdwg.mxu0
          %1311 = vmatpush.bf16.msra.mxu0 %v1122
          %1312 = vmatpush.bf16.msra.mxu0 %v1118
          %1313 = vmatpush.bf16.msra.mxu0 %v1114
          %1314 = vmatpush.bf16.msra.mxu0 %v1110
          %1315 = vmatpush.bf16.msra.mxu0 %v1106
          %1316 = vmatpush.bf16.msra.mxu0 %v1102
          %1317 = vmatpush.bf16.msra.mxu0 %v1098
          %1318 = vmatpush.bf16.msra.mxu0 %v1094
          %1319 = vmatmul.bf16.gmra.mxu0 %v601
          %v1320 = vpop.f32.mrf.mxu0
          %v1321 = vadd.f32 %v1302, %v1320
          %v1322 = vpop.f32.mrf.mxu0
          %v1323 = vadd.f32 %v1304, %v1322
          %1324 = vmatmul.bf16.gmra.mxu0 %v605
          %v1325 = vpop.f32.mrf.mxu0
          %v1326 = vadd.f32 %v1307, %v1325
          %v1327 = vpop.f32.mrf.mxu0
          %v1328 = vadd.f32 %v1309, %v1327
          %1329 = vdwg.mxu0
          %1330 = vmatpush.bf16.msra.mxu0 %v1027
          %1331 = vmatpush.bf16.msra.mxu0 %v1023
          %1332 = vmatpush.bf16.msra.mxu0 %v1019
          %1333 = vmatpush.bf16.msra.mxu0 %v1015
          %1334 = vmatpush.bf16.msra.mxu0 %v1011
          %1335 = vmatpush.bf16.msra.mxu0 %v1007
          %1336 = vmatpush.bf16.msra.mxu0 %v1003
          %1337 = vmatpush.bf16.msra.mxu0 %v999
          %1338 = vmatmul.bf16.gmra.mxu0 %v598
          %v1339 = vpop.f32.mrf.mxu0
          %v1340 = vadd.f32 %v567, %v1339
          %v1341 = vpop.f32.mrf.mxu0
          %v1342 = vadd.f32 %v567, %v1341
          %1343 = vmatmul.bf16.gmra.mxu0 %v602
          %v1344 = vpop.f32.mrf.mxu0
          %v1345 = vadd.f32 %v567, %v1344
          %v1346 = vpop.f32.mrf.mxu0
          %v1347 = vadd.f32 %v567, %v1346
          %1348 = vdwg.mxu0
          %1349 = vmatpush.bf16.msra.mxu0 %v1059
          %1350 = vmatpush.bf16.msra.mxu0 %v1055
          %1351 = vmatpush.bf16.msra.mxu0 %v1051
          %1352 = vmatpush.bf16.msra.mxu0 %v1047
          %1353 = vmatpush.bf16.msra.mxu0 %v1043
          %1354 = vmatpush.bf16.msra.mxu0 %v1039
          %1355 = vmatpush.bf16.msra.mxu0 %v1035
          %1356 = vmatpush.bf16.msra.mxu0 %v1031
          %1357 = vmatmul.bf16.gmra.mxu0 %v599
          %v1358 = vpop.f32.mrf.mxu0
          %v1359 = vadd.f32 %v1340, %v1358
          %v1360 = vpop.f32.mrf.mxu0
          %v1361 = vadd.f32 %v1342, %v1360
          %1362 = vmatmul.bf16.gmra.mxu0 %v603
          %v1363 = vpop.f32.mrf.mxu0
          %v1364 = vadd.f32 %v1345, %v1363
          %v1365 = vpop.f32.mrf.mxu0
          %v1366 = vadd.f32 %v1347, %v1365
          %1367 = vdwg.mxu0
          %1368 = vmatpush.bf16.msra.mxu0 %v1091
          %1369 = vmatpush.bf16.msra.mxu0 %v1087
          %1370 = vmatpush.bf16.msra.mxu0 %v1083
          %1371 = vmatpush.bf16.msra.mxu0 %v1079
          %1372 = vmatpush.bf16.msra.mxu0 %v1075
          %1373 = vmatpush.bf16.msra.mxu0 %v1071
          %1374 = vmatpush.bf16.msra.mxu0 %v1067
          %1375 = vmatpush.bf16.msra.mxu0 %v1063
          %1376 = vmatmul.bf16.gmra.mxu0 %v600
          %v1377 = vpop.f32.mrf.mxu0
          %v1378 = vadd.f32 %v1359, %v1377
          %v1379 = vpop.f32.mrf.mxu0
          %v1380 = vadd.f32 %v1361, %v1379
          %1381 = vmatmul.bf16.gmra.mxu0 %v604
          %v1382 = vpop.f32.mrf.mxu0
          %v1383 = vadd.f32 %v1364, %v1382
          %v1384 = vpop.f32.mrf.mxu0
          %v1385 = vadd.f32 %v1366, %v1384
          %1386 = vdwg.mxu0
          %1387 = vmatpush.bf16.msra.mxu0 %v1123
          %1388 = vmatpush.bf16.msra.mxu0 %v1119
          %1389 = vmatpush.bf16.msra.mxu0 %v1115
          %1390 = vmatpush.bf16.msra.mxu0 %v1111
          %1391 = vmatpush.bf16.msra.mxu0 %v1107
          %1392 = vmatpush.bf16.msra.mxu0 %v1103
          %1393 = vmatpush.bf16.msra.mxu0 %v1099
          %1394 = vmatpush.bf16.msra.mxu0 %v1095
          %1395 = vmatmul.bf16.gmra.mxu0 %v601
          %v1396 = vpop.f32.mrf.mxu0
          %v1397 = vadd.f32 %v1378, %v1396
          %v1398 = vpop.f32.mrf.mxu0
          %v1399 = vadd.f32 %v1380, %v1398
          %1400 = vmatmul.bf16.gmra.mxu0 %v605
          %v1401 = vpop.f32.mrf.mxu0
          %v1402 = vadd.f32 %v1383, %v1401
          %v1403 = vpop.f32.mrf.mxu0
          %v1404 = vadd.f32 %v1385, %v1403
          %1405 = vdwg.mxu0
          %1406 = vmatpush.bf16.msra.mxu0 %v1028
          %1407 = vmatpush.bf16.msra.mxu0 %v1024
          %1408 = vmatpush.bf16.msra.mxu0 %v1020
          %1409 = vmatpush.bf16.msra.mxu0 %v1016
          %1410 = vmatpush.bf16.msra.mxu0 %v1012
          %1411 = vmatpush.bf16.msra.mxu0 %v1008
          %1412 = vmatpush.bf16.msra.mxu0 %v1004
          %1413 = vmatpush.bf16.msra.mxu0 %v1000
          %1414 = vmatmul.bf16.gmra.mxu0 %v598
          %v1415 = vpop.f32.mrf.mxu0
          %v1416 = vadd.f32 %v568, %v1415
          %v1417 = vpop.f32.mrf.mxu0
          %v1418 = vadd.f32 %v568, %v1417
          %1419 = vmatmul.bf16.gmra.mxu0 %v602
          %v1420 = vpop.f32.mrf.mxu0
          %v1421 = vadd.f32 %v568, %v1420
          %v1422 = vpop.f32.mrf.mxu0
          %v1423 = vadd.f32 %v568, %v1422
          %1424 = vdwg.mxu0
          %1425 = vmatpush.bf16.msra.mxu0 %v1060
          %1426 = vmatpush.bf16.msra.mxu0 %v1056
          %1427 = vmatpush.bf16.msra.mxu0 %v1052
          %1428 = vmatpush.bf16.msra.mxu0 %v1048
          %1429 = vmatpush.bf16.msra.mxu0 %v1044
          %1430 = vmatpush.bf16.msra.mxu0 %v1040
          %1431 = vmatpush.bf16.msra.mxu0 %v1036
          %1432 = vmatpush.bf16.msra.mxu0 %v1032
          %1433 = vmatmul.bf16.gmra.mxu0 %v599
          %v1434 = vpop.f32.mrf.mxu0
          %v1435 = vadd.f32 %v1416, %v1434
          %v1436 = vpop.f32.mrf.mxu0
          %v1437 = vadd.f32 %v1418, %v1436
          %1438 = vmatmul.bf16.gmra.mxu0 %v603
          %v1439 = vpop.f32.mrf.mxu0
          %v1440 = vadd.f32 %v1421, %v1439
          %v1441 = vpop.f32.mrf.mxu0
          %v1442 = vadd.f32 %v1423, %v1441
          %1443 = vdwg.mxu0
          %1444 = vmatpush.bf16.msra.mxu0 %v1092
          %1445 = vmatpush.bf16.msra.mxu0 %v1088
          %1446 = vmatpush.bf16.msra.mxu0 %v1084
          %1447 = vmatpush.bf16.msra.mxu0 %v1080
          %1448 = vmatpush.bf16.msra.mxu0 %v1076
          %1449 = vmatpush.bf16.msra.mxu0 %v1072
          %1450 = vmatpush.bf16.msra.mxu0 %v1068
          %1451 = vmatpush.bf16.msra.mxu0 %v1064
          %1452 = vmatmul.bf16.gmra.mxu0 %v600
          %v1453 = vpop.f32.mrf.mxu0
          %v1454 = vadd.f32 %v1435, %v1453
          %v1455 = vpop.f32.mrf.mxu0
          %v1456 = vadd.f32 %v1437, %v1455
          %1457 = vmatmul.bf16.gmra.mxu0 %v604
          %v1458 = vpop.f32.mrf.mxu0
          %v1459 = vadd.f32 %v1440, %v1458
          %v1460 = vpop.f32.mrf.mxu0
          %v1461 = vadd.f32 %v1442, %v1460
          %1462 = vdwg.mxu0
          %1463 = vmatpush.bf16.msra.mxu0 %v1124
          %1464 = vmatpush.bf16.msra.mxu0 %v1120
          %1465 = vmatpush.bf16.msra.mxu0 %v1116
          %1466 = vmatpush.bf16.msra.mxu0 %v1112
          %1467 = vmatpush.bf16.msra.mxu0 %v1108
          %1468 = vmatpush.bf16.msra.mxu0 %v1104
          %1469 = vmatpush.bf16.msra.mxu0 %v1100
          %1470 = vmatpush.bf16.msra.mxu0 %v1096
          %1471 = vmatmul.bf16.gmra.mxu0 %v601
          %v1472 = vpop.f32.mrf.mxu0
          %v1473 = vadd.f32 %v1454, %v1472
          %v1474 = vpop.f32.mrf.mxu0
          %v1475 = vadd.f32 %v1456, %v1474
          %1476 = vmatmul.bf16.gmra.mxu0 %v605
          %v1477 = vpop.f32.mrf.mxu0
          %v1478 = vadd.f32 %v1459, %v1477
          %v1479 = vpop.f32.mrf.mxu0
          %v1480 = vadd.f32 %v1461, %v1479
          %1481 = vdwg.mxu0
          %1482 = vmatpush.bf16.msra.mxu0 %v1029
          %1483 = vmatpush.bf16.msra.mxu0 %v1025
          %1484 = vmatpush.bf16.msra.mxu0 %v1021
          %1485 = vmatpush.bf16.msra.mxu0 %v1017
          %1486 = vmatpush.bf16.msra.mxu0 %v1013
          %1487 = vmatpush.bf16.msra.mxu0 %v1009
          %1488 = vmatpush.bf16.msra.mxu0 %v1005
          %1489 = vmatpush.bf16.msra.mxu0 %v1001
          %1490 = vmatmul.bf16.gmra.mxu0 %v598
          %v1491 = vpop.f32.mrf.mxu0
          %v1492 = vadd.f32 %v569, %v1491
          %v1493 = vpop.f32.mrf.mxu0
          %v1494 = vadd.f32 %v569, %v1493
          %1495 = vmatmul.bf16.gmra.mxu0 %v602
          %v1496 = vpop.f32.mrf.mxu0
          %v1497 = vadd.f32 %v569, %v1496
          %v1498 = vpop.f32.mrf.mxu0
          %v1499 = vadd.f32 %v569, %v1498
          %1500 = vdwg.mxu0
          %1501 = vmatpush.bf16.msra.mxu0 %v1061
          %1502 = vmatpush.bf16.msra.mxu0 %v1057
          %1503 = vmatpush.bf16.msra.mxu0 %v1053
          %1504 = vmatpush.bf16.msra.mxu0 %v1049
          %1505 = vmatpush.bf16.msra.mxu0 %v1045
          %1506 = vmatpush.bf16.msra.mxu0 %v1041
          %1507 = vmatpush.bf16.msra.mxu0 %v1037
          %1508 = vmatpush.bf16.msra.mxu0 %v1033
          %1509 = vmatmul.bf16.gmra.mxu0 %v599
          %v1510 = vpop.f32.mrf.mxu0
          %v1511 = vadd.f32 %v1492, %v1510
          %v1512 = vpop.f32.mrf.mxu0
          %v1513 = vadd.f32 %v1494, %v1512
          %1514 = vmatmul.bf16.gmra.mxu0 %v603
          %v1515 = vpop.f32.mrf.mxu0
          %v1516 = vadd.f32 %v1497, %v1515
          %v1517 = vpop.f32.mrf.mxu0
          %v1518 = vadd.f32 %v1499, %v1517
          %1519 = vdwg.mxu0
          %1520 = vmatpush.bf16.msra.mxu0 %v1093
          %1521 = vmatpush.bf16.msra.mxu0 %v1089
          %1522 = vmatpush.bf16.msra.mxu0 %v1085
          %1523 = vmatpush.bf16.msra.mxu0 %v1081
          %1524 = vmatpush.bf16.msra.mxu0 %v1077
          %1525 = vmatpush.bf16.msra.mxu0 %v1073
          %1526 = vmatpush.bf16.msra.mxu0 %v1069
          %1527 = vmatpush.bf16.msra.mxu0 %v1065
          %1528 = vmatmul.bf16.gmra.mxu0 %v600
          %v1529 = vpop.f32.mrf.mxu0
          %v1530 = vadd.f32 %v1511, %v1529
          %v1531 = vpop.f32.mrf.mxu0
          %v1532 = vadd.f32 %v1513, %v1531
          %1533 = vmatmul.bf16.gmra.mxu0 %v604
          %v1534 = vpop.f32.mrf.mxu0
          %v1535 = vadd.f32 %v1516, %v1534
          %v1536 = vpop.f32.mrf.mxu0
          %v1537 = vadd.f32 %v1518, %v1536
          %1538 = vdwg.mxu0
          %1539 = vmatpush.bf16.msra.mxu0 %v1125
          %1540 = vmatpush.bf16.msra.mxu0 %v1121
          %1541 = vmatpush.bf16.msra.mxu0 %v1117
          %1542 = vmatpush.bf16.msra.mxu0 %v1113
          %1543 = vmatpush.bf16.msra.mxu0 %v1109
          %1544 = vmatpush.bf16.msra.mxu0 %v1105
          %1545 = vmatpush.bf16.msra.mxu0 %v1101
          %1546 = vmatpush.bf16.msra.mxu0 %v1097
          %1547 = vmatmul.bf16.gmra.mxu0 %v601
          %v1548 = vpop.f32.mrf.mxu0
          %v1549 = vadd.f32 %v1530, %v1548
          %v1550 = vpop.f32.mrf.mxu0
          %v1551 = vadd.f32 %v1532, %v1550
          %1552 = vmatmul.bf16.gmra.mxu0 %v605
          %v1553 = vpop.f32.mrf.mxu0
          %v1554 = vadd.f32 %v1535, %v1553
          %v1555 = vpop.f32.mrf.mxu0
          %v1556 = vadd.f32 %v1537, %v1555
          %1557 = vdwg.mxu0
          %v1558 = vmax.f32 %v1321, 0.0
          %v1559 = vmax.f32 %v1397, 0.0
          %v1560 = vmax.f32 %v1473, 0.0
          %v1561 = vmax.f32 %v1549, 0.0
          %v1562 = vmax.f32 %v1323, 0.0
          %v1563 = vmax.f32 %v1399, 0.0
          %v1564 = vmax.f32 %v1475, 0.0
          %v1565 = vmax.f32 %v1551, 0.0
          %v1566 = vmax.f32 %v1326, 0.0
          %v1567 = vmax.f32 %v1402, 0.0
          %v1568 = vmax.f32 %v1478, 0.0
          %v1569 = vmax.f32 %v1554, 0.0
          %v1570 = vmax.f32 %v1328, 0.0
          %v1571 = vmax.f32 %v1404, 0.0
          %v1572 = vmax.f32 %v1480, 0.0
          %v1573 = vmax.f32 %v1556, 0.0
          %v1574 = vpack.c.bf16 %v1562, %v1558
          %v1575 = vpack.c.bf16 %v1563, %v1559
          %v1576 = vpack.c.bf16 %v1564, %v1560
          %v1577 = vpack.c.bf16 %v1565, %v1561
          %v1578 = vpack.c.bf16 %v1570, %v1566
          %v1579 = vpack.c.bf16 %v1571, %v1567
          %v1580 = vpack.c.bf16 %v1572, %v1568
          %v1581 = vpack.c.bf16 %v1573, %v1569
          %v1582 = vld [vmem:[#allocation9] sm:$0xff]
          %v1583 = vld [vmem:[#allocation9 + $0x8] sm:$0xff]
          %v1584 = vld [vmem:[#allocation9 + $0x10] sm:$0xff]
          %v1585 = vld [vmem:[#allocation9 + $0x18] sm:$0xff]
          %v1586 = vld [vmem:[#allocation9 + $0x20] sm:$0xff]
          %v1587 = vld [vmem:[#allocation9 + $0x28] sm:$0xff]
          %v1588 = vld [vmem:[#allocation9 + $0x30] sm:$0xff]
          %v1589 = vld [vmem:[#allocation9 + $0x38] sm:$0xff]
          %v1590 = vld [vmem:[#allocation9 + $0x40] sm:$0xff]
          %v1591 = vld [vmem:[#allocation9 + $0x48] sm:$0xff]
          %v1592 = vld [vmem:[#allocation9 + $0x50] sm:$0xff]
          %v1593 = vld [vmem:[#allocation9 + $0x58] sm:$0xff]
          %v1594 = vld [vmem:[#allocation9 + $0x60] sm:$0xff]
          %v1595 = vld [vmem:[#allocation9 + $0x68] sm:$0xff]
          %v1596 = vld [vmem:[#allocation9 + $0x70] sm:$0xff]
          %v1597 = vld [vmem:[#allocation9 + $0x78] sm:$0xff]
          %v1598 = vld [vmem:[#allocation9 + $0x80] sm:$0xff]
          %v1599 = vld [vmem:[#allocation9 + $0x88] sm:$0xff]
          %v1600 = vld [vmem:[#allocation9 + $0x90] sm:$0xff]
          %v1601 = vld [vmem:[#allocation9 + $0x98] sm:$0xff]
          %v1602 = vld [vmem:[#allocation9 + $0xa0] sm:$0xff]
          %v1603 = vld [vmem:[#allocation9 + $0xa8] sm:$0xff]
          %v1604 = vld [vmem:[#allocation9 + $0xb0] sm:$0xff]
          %v1605 = vld [vmem:[#allocation9 + $0xb8] sm:$0xff]
          %v1606 = vld [vmem:[#allocation9 + $0xc0] sm:$0xff]
          %v1607 = vld [vmem:[#allocation9 + $0xc8] sm:$0xff]
          %v1608 = vld [vmem:[#allocation9 + $0xd0] sm:$0xff]
          %v1609 = vld [vmem:[#allocation9 + $0xd8] sm:$0xff]
          %v1610 = vld [vmem:[#allocation9 + $0xe0] sm:$0xff]
          %v1611 = vld [vmem:[#allocation9 + $0xe8] sm:$0xff]
          %v1612 = vld [vmem:[#allocation9 + $0xf0] sm:$0xff]
          %v1613 = vld [vmem:[#allocation9 + $0xf8] sm:$0xff]
          %v1614 = vld [vmem:[#allocation9 + $0x100] sm:$0xff]
          %v1615 = vld [vmem:[#allocation9 + $0x108] sm:$0xff]
          %v1616 = vld [vmem:[#allocation9 + $0x110] sm:$0xff]
          %v1617 = vld [vmem:[#allocation9 + $0x118] sm:$0xff]
          %v1618 = vld [vmem:[#allocation9 + $0x120] sm:$0xff]
          %v1619 = vld [vmem:[#allocation9 + $0x128] sm:$0xff]
          %v1620 = vld [vmem:[#allocation9 + $0x130] sm:$0xff]
          %v1621 = vld [vmem:[#allocation9 + $0x138] sm:$0xff]
          %v1622 = vld [vmem:[#allocation9 + $0x140] sm:$0xff]
          %v1623 = vld [vmem:[#allocation9 + $0x148] sm:$0xff]
          %v1624 = vld [vmem:[#allocation9 + $0x150] sm:$0xff]
          %v1625 = vld [vmem:[#allocation9 + $0x158] sm:$0xff]
          %v1626 = vld [vmem:[#allocation9 + $0x160] sm:$0xff]
          %v1627 = vld [vmem:[#allocation9 + $0x168] sm:$0xff]
          %v1628 = vld [vmem:[#allocation9 + $0x170] sm:$0xff]
          %v1629 = vld [vmem:[#allocation9 + $0x178] sm:$0xff]
          %v1630 = vld [vmem:[#allocation9 + $0x180] sm:$0xff]
          %v1631 = vld [vmem:[#allocation9 + $0x188] sm:$0xff]
          %v1632 = vld [vmem:[#allocation9 + $0x190] sm:$0xff]
          %v1633 = vld [vmem:[#allocation9 + $0x198] sm:$0xff]
          %v1634 = vld [vmem:[#allocation9 + $0x1a0] sm:$0xff]
          %v1635 = vld [vmem:[#allocation9 + $0x1a8] sm:$0xff]
          %v1636 = vld [vmem:[#allocation9 + $0x1b0] sm:$0xff]
          %v1637 = vld [vmem:[#allocation9 + $0x1b8] sm:$0xff]
          %v1638 = vld [vmem:[#allocation9 + $0x1c0] sm:$0xff]
          %v1639 = vld [vmem:[#allocation9 + $0x1c8] sm:$0xff]
          %v1640 = vld [vmem:[#allocation9 + $0x1d0] sm:$0xff]
          %v1641 = vld [vmem:[#allocation9 + $0x1d8] sm:$0xff]
          %v1642 = vld [vmem:[#allocation9 + $0x1e0] sm:$0xff]
          %v1643 = vld [vmem:[#allocation9 + $0x1e8] sm:$0xff]
          %v1644 = vld [vmem:[#allocation9 + $0x1f0] sm:$0xff]
          %v1645 = vld [vmem:[#allocation9 + $0x1f8] sm:$0xff]
          %v1646 = vld [vmem:[#allocation9 + $0x200] sm:$0xff]
          %v1647 = vld [vmem:[#allocation9 + $0x208] sm:$0xff]
          %v1648 = vld [vmem:[#allocation9 + $0x210] sm:$0xff]
          %v1649 = vld [vmem:[#allocation9 + $0x218] sm:$0xff]
          %v1650 = vld [vmem:[#allocation9 + $0x220] sm:$0xff]
          %v1651 = vld [vmem:[#allocation9 + $0x228] sm:$0xff]
          %v1652 = vld [vmem:[#allocation9 + $0x230] sm:$0xff]
          %v1653 = vld [vmem:[#allocation9 + $0x238] sm:$0xff]
          %v1654 = vld [vmem:[#allocation9 + $0x240] sm:$0xff]
          %v1655 = vld [vmem:[#allocation9 + $0x248] sm:$0xff]
          %v1656 = vld [vmem:[#allocation9 + $0x250] sm:$0xff]
          %v1657 = vld [vmem:[#allocation9 + $0x258] sm:$0xff]
          %v1658 = vld [vmem:[#allocation9 + $0x260] sm:$0xff]
          %v1659 = vld [vmem:[#allocation9 + $0x268] sm:$0xff]
          %v1660 = vld [vmem:[#allocation9 + $0x270] sm:$0xff]
          %v1661 = vld [vmem:[#allocation9 + $0x278] sm:$0xff]
          %v1662 = vld [vmem:[#allocation9 + $0x280] sm:$0xff]
          %v1663 = vld [vmem:[#allocation9 + $0x288] sm:$0xff]
          %v1664 = vld [vmem:[#allocation9 + $0x290] sm:$0xff]
          %v1665 = vld [vmem:[#allocation9 + $0x298] sm:$0xff]
          %v1666 = vld [vmem:[#allocation9 + $0x2a0] sm:$0xff]
          %v1667 = vld [vmem:[#allocation9 + $0x2a8] sm:$0xff]
          %v1668 = vld [vmem:[#allocation9 + $0x2b0] sm:$0xff]
          %v1669 = vld [vmem:[#allocation9 + $0x2b8] sm:$0xff]
          %v1670 = vld [vmem:[#allocation9 + $0x2c0] sm:$0xff]
          %v1671 = vld [vmem:[#allocation9 + $0x2c8] sm:$0xff]
          %v1672 = vld [vmem:[#allocation9 + $0x2d0] sm:$0xff]
          %v1673 = vld [vmem:[#allocation9 + $0x2d8] sm:$0xff]
          %v1674 = vld [vmem:[#allocation9 + $0x2e0] sm:$0xff]
          %v1675 = vld [vmem:[#allocation9 + $0x2e8] sm:$0xff]
          %v1676 = vld [vmem:[#allocation9 + $0x2f0] sm:$0xff]
          %v1677 = vld [vmem:[#allocation9 + $0x2f8] sm:$0xff]
          %v1678 = vld [vmem:[#allocation9 + $0x300] sm:$0xff]
          %v1679 = vld [vmem:[#allocation9 + $0x308] sm:$0xff]
          %v1680 = vld [vmem:[#allocation9 + $0x310] sm:$0xff]
          %v1681 = vld [vmem:[#allocation9 + $0x318] sm:$0xff]
          %v1682 = vld [vmem:[#allocation9 + $0x320] sm:$0xff]
          %v1683 = vld [vmem:[#allocation9 + $0x328] sm:$0xff]
          %v1684 = vld [vmem:[#allocation9 + $0x330] sm:$0xff]
          %v1685 = vld [vmem:[#allocation9 + $0x338] sm:$0xff]
          %v1686 = vld [vmem:[#allocation9 + $0x340] sm:$0xff]
          %v1687 = vld [vmem:[#allocation9 + $0x348] sm:$0xff]
          %v1688 = vld [vmem:[#allocation9 + $0x350] sm:$0xff]
          %v1689 = vld [vmem:[#allocation9 + $0x358] sm:$0xff]
          %v1690 = vld [vmem:[#allocation9 + $0x360] sm:$0xff]
          %v1691 = vld [vmem:[#allocation9 + $0x368] sm:$0xff]
          %v1692 = vld [vmem:[#allocation9 + $0x370] sm:$0xff]
          %v1693 = vld [vmem:[#allocation9 + $0x378] sm:$0xff]
          %v1694 = vld [vmem:[#allocation9 + $0x380] sm:$0xff]
          %v1695 = vld [vmem:[#allocation9 + $0x388] sm:$0xff]
          %v1696 = vld [vmem:[#allocation9 + $0x390] sm:$0xff]
          %v1697 = vld [vmem:[#allocation9 + $0x398] sm:$0xff]
          %v1698 = vld [vmem:[#allocation9 + $0x3a0] sm:$0xff]
          %v1699 = vld [vmem:[#allocation9 + $0x3a8] sm:$0xff]
          %v1700 = vld [vmem:[#allocation9 + $0x3b0] sm:$0xff]
          %v1701 = vld [vmem:[#allocation9 + $0x3b8] sm:$0xff]
          %v1702 = vld [vmem:[#allocation9 + $0x3c0] sm:$0xff]
          %v1703 = vld [vmem:[#allocation9 + $0x3c8] sm:$0xff]
          %v1704 = vld [vmem:[#allocation9 + $0x3d0] sm:$0xff]
          %v1705 = vld [vmem:[#allocation9 + $0x3d8] sm:$0xff]
          %v1706 = vld [vmem:[#allocation9 + $0x3e0] sm:$0xff]
          %v1707 = vld [vmem:[#allocation9 + $0x3e8] sm:$0xff]
          %v1708 = vld [vmem:[#allocation9 + $0x3f0] sm:$0xff]
          %v1709 = vld [vmem:[#allocation9 + $0x3f8] sm:$0xff]
          %v1710 = vld [vmem:[#allocation11] sm:$0xf]
          %v1712 = vperm.slane %v1710, 0
          %v1713 = vperm.slane %v1710, 1
          %v1714 = vperm.slane %v1710, 2
          %v1715 = vperm.slane %v1710, 3
          %v1848 = vunpack.c.l.b16 %v1582
          %v1849 = vunpack.c.h.b16 %v1582
          %v1850 = vunpack.c.l.b16 %v1583
          %v1851 = vunpack.c.h.b16 %v1583
          %v1852 = vunpack.c.l.b16 %v1584
          %v1853 = vunpack.c.h.b16 %v1584
          %v1854 = vunpack.c.l.b16 %v1585
          %v1855 = vunpack.c.h.b16 %v1585
          %v1856 = vunpack.c.l.b16 %v1586
          %v1857 = vunpack.c.h.b16 %v1586
          %v1858 = vunpack.c.l.b16 %v1587
          %v1859 = vunpack.c.h.b16 %v1587
          %v1860 = vunpack.c.l.b16 %v1588
          %v1861 = vunpack.c.h.b16 %v1588
          %v1862 = vunpack.c.l.b16 %v1589
          %v1863 = vunpack.c.h.b16 %v1589
          %v1864 = vunpack.c.l.b16 %v1590
          %v1865 = vunpack.c.h.b16 %v1590
          %v1866 = vunpack.c.l.b16 %v1591
          %v1867 = vunpack.c.h.b16 %v1591
          %v1868 = vunpack.c.l.b16 %v1592
          %v1869 = vunpack.c.h.b16 %v1592
          %v1870 = vunpack.c.l.b16 %v1593
          %v1871 = vunpack.c.h.b16 %v1593
          %v1872 = vunpack.c.l.b16 %v1594
          %v1873 = vunpack.c.h.b16 %v1594
          %v1874 = vunpack.c.l.b16 %v1595
          %v1875 = vunpack.c.h.b16 %v1595
          %v1876 = vunpack.c.l.b16 %v1596
          %v1877 = vunpack.c.h.b16 %v1596
          %v1878 = vunpack.c.l.b16 %v1597
          %v1879 = vunpack.c.h.b16 %v1597
          %v1880 = vunpack.c.l.b16 %v1598
          %v1881 = vunpack.c.h.b16 %v1598
          %v1882 = vunpack.c.l.b16 %v1599
          %v1883 = vunpack.c.h.b16 %v1599
          %v1884 = vunpack.c.l.b16 %v1600
          %v1885 = vunpack.c.h.b16 %v1600
          %v1886 = vunpack.c.l.b16 %v1601
          %v1887 = vunpack.c.h.b16 %v1601
          %v1888 = vunpack.c.l.b16 %v1602
          %v1889 = vunpack.c.h.b16 %v1602
          %v1890 = vunpack.c.l.b16 %v1603
          %v1891 = vunpack.c.h.b16 %v1603
          %v1892 = vunpack.c.l.b16 %v1604
          %v1893 = vunpack.c.h.b16 %v1604
          %v1894 = vunpack.c.l.b16 %v1605
          %v1895 = vunpack.c.h.b16 %v1605
          %v1896 = vunpack.c.l.b16 %v1606
          %v1897 = vunpack.c.h.b16 %v1606
          %v1898 = vunpack.c.l.b16 %v1607
          %v1899 = vunpack.c.h.b16 %v1607
          %v1900 = vunpack.c.l.b16 %v1608
          %v1901 = vunpack.c.h.b16 %v1608
          %v1902 = vunpack.c.l.b16 %v1609
          %v1903 = vunpack.c.h.b16 %v1609
          %v1904 = vunpack.c.l.b16 %v1610
          %v1905 = vunpack.c.h.b16 %v1610
          %v1906 = vunpack.c.l.b16 %v1611
          %v1907 = vunpack.c.h.b16 %v1611
          %v1908 = vunpack.c.l.b16 %v1612
          %v1909 = vunpack.c.h.b16 %v1612
          %v1910 = vunpack.c.l.b16 %v1613
          %v1911 = vunpack.c.h.b16 %v1613
          %v1912 = vunpack.c.l.b16 %v1614
          %v1913 = vunpack.c.h.b16 %v1614
          %v1914 = vunpack.c.l.b16 %v1615
          %v1915 = vunpack.c.h.b16 %v1615
          %v1916 = vunpack.c.l.b16 %v1616
          %v1917 = vunpack.c.h.b16 %v1616
          %v1918 = vunpack.c.l.b16 %v1617
          %v1919 = vunpack.c.h.b16 %v1617
          %v1920 = vunpack.c.l.b16 %v1618
          %v1921 = vunpack.c.h.b16 %v1618
          %v1922 = vunpack.c.l.b16 %v1619
          %v1923 = vunpack.c.h.b16 %v1619
          %v1924 = vunpack.c.l.b16 %v1620
          %v1925 = vunpack.c.h.b16 %v1620
          %v1926 = vunpack.c.l.b16 %v1621
          %v1927 = vunpack.c.h.b16 %v1621
          %v1928 = vunpack.c.l.b16 %v1622
          %v1929 = vunpack.c.h.b16 %v1622
          %v1930 = vunpack.c.l.b16 %v1623
          %v1931 = vunpack.c.h.b16 %v1623
          %v1932 = vunpack.c.l.b16 %v1624
          %v1933 = vunpack.c.h.b16 %v1624
          %v1934 = vunpack.c.l.b16 %v1625
          %v1935 = vunpack.c.h.b16 %v1625
          %v1936 = vunpack.c.l.b16 %v1626
          %v1937 = vunpack.c.h.b16 %v1626
          %v1938 = vunpack.c.l.b16 %v1627
          %v1939 = vunpack.c.h.b16 %v1627
          %v1940 = vunpack.c.l.b16 %v1628
          %v1941 = vunpack.c.h.b16 %v1628
          %v1942 = vunpack.c.l.b16 %v1629
          %v1943 = vunpack.c.h.b16 %v1629
          %v1944 = vunpack.c.l.b16 %v1630
          %v1945 = vunpack.c.h.b16 %v1630
          %v1946 = vunpack.c.l.b16 %v1631
          %v1947 = vunpack.c.h.b16 %v1631
          %v1948 = vunpack.c.l.b16 %v1632
          %v1949 = vunpack.c.h.b16 %v1632
          %v1950 = vunpack.c.l.b16 %v1633
          %v1951 = vunpack.c.h.b16 %v1633
          %v1952 = vunpack.c.l.b16 %v1634
          %v1953 = vunpack.c.h.b16 %v1634
          %v1954 = vunpack.c.l.b16 %v1635
          %v1955 = vunpack.c.h.b16 %v1635
          %v1956 = vunpack.c.l.b16 %v1636
          %v1957 = vunpack.c.h.b16 %v1636
          %v1958 = vunpack.c.l.b16 %v1637
          %v1959 = vunpack.c.h.b16 %v1637
          %v1960 = vunpack.c.l.b16 %v1638
          %v1961 = vunpack.c.h.b16 %v1638
          %v1962 = vunpack.c.l.b16 %v1639
          %v1963 = vunpack.c.h.b16 %v1639
          %v1964 = vunpack.c.l.b16 %v1640
          %v1965 = vunpack.c.h.b16 %v1640
          %v1966 = vunpack.c.l.b16 %v1641
          %v1967 = vunpack.c.h.b16 %v1641
          %v1968 = vunpack.c.l.b16 %v1642
          %v1969 = vunpack.c.h.b16 %v1642
          %v1970 = vunpack.c.l.b16 %v1643
          %v1971 = vunpack.c.h.b16 %v1643
          %v1972 = vunpack.c.l.b16 %v1644
          %v1973 = vunpack.c.h.b16 %v1644
          %v1974 = vunpack.c.l.b16 %v1645
          %v1975 = vunpack.c.h.b16 %v1645
          %v1976 = vunpack.c.l.b16 %v1646
          %v1977 = vunpack.c.h.b16 %v1646
          %v1978 = vunpack.c.l.b16 %v1647
          %v1979 = vunpack.c.h.b16 %v1647
          %v1980 = vunpack.c.l.b16 %v1648
          %v1981 = vunpack.c.h.b16 %v1648
          %v1982 = vunpack.c.l.b16 %v1649
          %v1983 = vunpack.c.h.b16 %v1649
          %v1984 = vunpack.c.l.b16 %v1650
          %v1985 = vunpack.c.h.b16 %v1650
          %v1986 = vunpack.c.l.b16 %v1651
          %v1987 = vunpack.c.h.b16 %v1651
          %v1988 = vunpack.c.l.b16 %v1652
          %v1989 = vunpack.c.h.b16 %v1652
          %v1990 = vunpack.c.l.b16 %v1653
          %v1991 = vunpack.c.h.b16 %v1653
          %v1992 = vunpack.c.l.b16 %v1654
          %v1993 = vunpack.c.h.b16 %v1654
          %v1994 = vunpack.c.l.b16 %v1655
          %v1995 = vunpack.c.h.b16 %v1655
          %v1996 = vunpack.c.l.b16 %v1656
          %v1997 = vunpack.c.h.b16 %v1656
          %v1998 = vunpack.c.l.b16 %v1657
          %v1999 = vunpack.c.h.b16 %v1657
          %v2000 = vunpack.c.l.b16 %v1658
          %v2001 = vunpack.c.h.b16 %v1658
          %v2002 = vunpack.c.l.b16 %v1659
          %v2003 = vunpack.c.h.b16 %v1659
          %v2004 = vunpack.c.l.b16 %v1660
          %v2005 = vunpack.c.h.b16 %v1660
          %v2006 = vunpack.c.l.b16 %v1661
          %v2007 = vunpack.c.h.b16 %v1661
          %v2008 = vunpack.c.l.b16 %v1662
          %v2009 = vunpack.c.h.b16 %v1662
          %v2010 = vunpack.c.l.b16 %v1663
          %v2011 = vunpack.c.h.b16 %v1663
          %v2012 = vunpack.c.l.b16 %v1664
          %v2013 = vunpack.c.h.b16 %v1664
          %v2014 = vunpack.c.l.b16 %v1665
          %v2015 = vunpack.c.h.b16 %v1665
          %v2016 = vunpack.c.l.b16 %v1666
          %v2017 = vunpack.c.h.b16 %v1666
          %v2018 = vunpack.c.l.b16 %v1667
          %v2019 = vunpack.c.h.b16 %v1667
          %v2020 = vunpack.c.l.b16 %v1668
          %v2021 = vunpack.c.h.b16 %v1668
          %v2022 = vunpack.c.l.b16 %v1669
          %v2023 = vunpack.c.h.b16 %v1669
          %v2024 = vunpack.c.l.b16 %v1670
          %v2025 = vunpack.c.h.b16 %v1670
          %v2026 = vunpack.c.l.b16 %v1671
          %v2027 = vunpack.c.h.b16 %v1671
          %v2028 = vunpack.c.l.b16 %v1672
          %v2029 = vunpack.c.h.b16 %v1672
          %v2030 = vunpack.c.l.b16 %v1673
          %v2031 = vunpack.c.h.b16 %v1673
          %v2032 = vunpack.c.l.b16 %v1674
          %v2033 = vunpack.c.h.b16 %v1674
          %v2034 = vunpack.c.l.b16 %v1675
          %v2035 = vunpack.c.h.b16 %v1675
          %v2036 = vunpack.c.l.b16 %v1676
          %v2037 = vunpack.c.h.b16 %v1676
          %v2038 = vunpack.c.l.b16 %v1677
          %v2039 = vunpack.c.h.b16 %v1677
          %v2040 = vunpack.c.l.b16 %v1678
          %v2041 = vunpack.c.h.b16 %v1678
          %v2042 = vunpack.c.l.b16 %v1679
          %v2043 = vunpack.c.h.b16 %v1679
          %v2044 = vunpack.c.l.b16 %v1680
          %v2045 = vunpack.c.h.b16 %v1680
          %v2046 = vunpack.c.l.b16 %v1681
          %v2047 = vunpack.c.h.b16 %v1681
          %v2048 = vunpack.c.l.b16 %v1682
          %v2049 = vunpack.c.h.b16 %v1682
          %v2050 = vunpack.c.l.b16 %v1683
          %v2051 = vunpack.c.h.b16 %v1683
          %v2052 = vunpack.c.l.b16 %v1684
          %v2053 = vunpack.c.h.b16 %v1684
          %v2054 = vunpack.c.l.b16 %v1685
          %v2055 = vunpack.c.h.b16 %v1685
          %v2056 = vunpack.c.l.b16 %v1686
          %v2057 = vunpack.c.h.b16 %v1686
          %v2058 = vunpack.c.l.b16 %v1687
          %v2059 = vunpack.c.h.b16 %v1687
          %v2060 = vunpack.c.l.b16 %v1688
          %v2061 = vunpack.c.h.b16 %v1688
          %v2062 = vunpack.c.l.b16 %v1689
          %v2063 = vunpack.c.h.b16 %v1689
          %v2064 = vunpack.c.l.b16 %v1690
          %v2065 = vunpack.c.h.b16 %v1690
          %v2066 = vunpack.c.l.b16 %v1691
          %v2067 = vunpack.c.h.b16 %v1691
          %v2068 = vunpack.c.l.b16 %v1692
          %v2069 = vunpack.c.h.b16 %v1692
          %v2070 = vunpack.c.l.b16 %v1693
          %v2071 = vunpack.c.h.b16 %v1693
          %v2072 = vunpack.c.l.b16 %v1694
          %v2073 = vunpack.c.h.b16 %v1694
          %v2074 = vunpack.c.l.b16 %v1695
          %v2075 = vunpack.c.h.b16 %v1695
          %v2076 = vunpack.c.l.b16 %v1696
          %v2077 = vunpack.c.h.b16 %v1696
          %v2078 = vunpack.c.l.b16 %v1697
          %v2079 = vunpack.c.h.b16 %v1697
          %v2080 = vunpack.c.l.b16 %v1698
          %v2081 = vunpack.c.h.b16 %v1698
          %v2082 = vunpack.c.l.b16 %v1699
          %v2083 = vunpack.c.h.b16 %v1699
          %v2084 = vunpack.c.l.b16 %v1700
          %v2085 = vunpack.c.h.b16 %v1700
          %v2086 = vunpack.c.l.b16 %v1701
          %v2087 = vunpack.c.h.b16 %v1701
          %v2088 = vunpack.c.l.b16 %v1702
          %v2089 = vunpack.c.h.b16 %v1702
          %v2090 = vunpack.c.l.b16 %v1703
          %v2091 = vunpack.c.h.b16 %v1703
          %v2092 = vunpack.c.l.b16 %v1704
          %v2093 = vunpack.c.h.b16 %v1704
          %v2094 = vunpack.c.l.b16 %v1705
          %v2095 = vunpack.c.h.b16 %v1705
          %v2096 = vunpack.c.l.b16 %v1706
          %v2097 = vunpack.c.h.b16 %v1706
          %v2098 = vunpack.c.l.b16 %v1707
          %v2099 = vunpack.c.h.b16 %v1707
          %v2100 = vunpack.c.l.b16 %v1708
          %v2101 = vunpack.c.h.b16 %v1708
          %v2102 = vunpack.c.l.b16 %v1709
          %v2103 = vunpack.c.h.b16 %v1709
          %v2104 = vpack.c.b16 %v1852, %v1848
          %v2105 = vpack.c.b16 %v1853, %v1849
          %v2106 = vpack.c.b16 %v1854, %v1850
          %v2107 = vpack.c.b16 %v1855, %v1851
          %v2108 = vpack.c.b16 %v1860, %v1856
          %v2109 = vpack.c.b16 %v1861, %v1857
          %v2110 = vpack.c.b16 %v1862, %v1858
          %v2111 = vpack.c.b16 %v1863, %v1859
          %v2112 = vpack.c.b16 %v1868, %v1864
          %v2113 = vpack.c.b16 %v1869, %v1865
          %v2114 = vpack.c.b16 %v1870, %v1866
          %v2115 = vpack.c.b16 %v1871, %v1867
          %v2116 = vpack.c.b16 %v1876, %v1872
          %v2117 = vpack.c.b16 %v1877, %v1873
          %v2118 = vpack.c.b16 %v1878, %v1874
          %v2119 = vpack.c.b16 %v1879, %v1875
          %v2120 = vpack.c.b16 %v1884, %v1880
          %v2121 = vpack.c.b16 %v1885, %v1881
          %v2122 = vpack.c.b16 %v1886, %v1882
          %v2123 = vpack.c.b16 %v1887, %v1883
          %v2124 = vpack.c.b16 %v1892, %v1888
          %v2125 = vpack.c.b16 %v1893, %v1889
          %v2126 = vpack.c.b16 %v1894, %v1890
          %v2127 = vpack.c.b16 %v1895, %v1891
          %v2128 = vpack.c.b16 %v1900, %v1896
          %v2129 = vpack.c.b16 %v1901, %v1897
          %v2130 = vpack.c.b16 %v1902, %v1898
          %v2131 = vpack.c.b16 %v1903, %v1899
          %v2132 = vpack.c.b16 %v1908, %v1904
          %v2133 = vpack.c.b16 %v1909, %v1905
          %v2134 = vpack.c.b16 %v1910, %v1906
          %v2135 = vpack.c.b16 %v1911, %v1907
          %v2136 = vpack.c.b16 %v1916, %v1912
          %v2137 = vpack.c.b16 %v1917, %v1913
          %v2138 = vpack.c.b16 %v1918, %v1914
          %v2139 = vpack.c.b16 %v1919, %v1915
          %v2140 = vpack.c.b16 %v1924, %v1920
          %v2141 = vpack.c.b16 %v1925, %v1921
          %v2142 = vpack.c.b16 %v1926, %v1922
          %v2143 = vpack.c.b16 %v1927, %v1923
          %v2144 = vpack.c.b16 %v1932, %v1928
          %v2145 = vpack.c.b16 %v1933, %v1929
          %v2146 = vpack.c.b16 %v1934, %v1930
          %v2147 = vpack.c.b16 %v1935, %v1931
          %v2148 = vpack.c.b16 %v1940, %v1936
          %v2149 = vpack.c.b16 %v1941, %v1937
          %v2150 = vpack.c.b16 %v1942, %v1938
          %v2151 = vpack.c.b16 %v1943, %v1939
          %v2152 = vpack.c.b16 %v1948, %v1944
          %v2153 = vpack.c.b16 %v1949, %v1945
          %v2154 = vpack.c.b16 %v1950, %v1946
          %v2155 = vpack.c.b16 %v1951, %v1947
          %v2156 = vpack.c.b16 %v1956, %v1952
          %v2157 = vpack.c.b16 %v1957, %v1953
          %v2158 = vpack.c.b16 %v1958, %v1954
          %v2159 = vpack.c.b16 %v1959, %v1955
          %v2160 = vpack.c.b16 %v1964, %v1960
          %v2161 = vpack.c.b16 %v1965, %v1961
          %v2162 = vpack.c.b16 %v1966, %v1962
          %v2163 = vpack.c.b16 %v1967, %v1963
          %v2164 = vpack.c.b16 %v1972, %v1968
          %v2165 = vpack.c.b16 %v1973, %v1969
          %v2166 = vpack.c.b16 %v1974, %v1970
          %v2167 = vpack.c.b16 %v1975, %v1971
          %v2168 = vpack.c.b16 %v1980, %v1976
          %v2169 = vpack.c.b16 %v1981, %v1977
          %v2170 = vpack.c.b16 %v1982, %v1978
          %v2171 = vpack.c.b16 %v1983, %v1979
          %v2172 = vpack.c.b16 %v1988, %v1984
          %v2173 = vpack.c.b16 %v1989, %v1985
          %v2174 = vpack.c.b16 %v1990, %v1986
          %v2175 = vpack.c.b16 %v1991, %v1987
          %v2176 = vpack.c.b16 %v1996, %v1992
          %v2177 = vpack.c.b16 %v1997, %v1993
          %v2178 = vpack.c.b16 %v1998, %v1994
          %v2179 = vpack.c.b16 %v1999, %v1995
          %v2180 = vpack.c.b16 %v2004, %v2000
          %v2181 = vpack.c.b16 %v2005, %v2001
          %v2182 = vpack.c.b16 %v2006, %v2002
          %v2183 = vpack.c.b16 %v2007, %v2003
          %v2184 = vpack.c.b16 %v2012, %v2008
          %v2185 = vpack.c.b16 %v2013, %v2009
          %v2186 = vpack.c.b16 %v2014, %v2010
          %v2187 = vpack.c.b16 %v2015, %v2011
          %v2188 = vpack.c.b16 %v2020, %v2016
          %v2189 = vpack.c.b16 %v2021, %v2017
          %v2190 = vpack.c.b16 %v2022, %v2018
          %v2191 = vpack.c.b16 %v2023, %v2019
          %v2192 = vpack.c.b16 %v2028, %v2024
          %v2193 = vpack.c.b16 %v2029, %v2025
          %v2194 = vpack.c.b16 %v2030, %v2026
          %v2195 = vpack.c.b16 %v2031, %v2027
          %v2196 = vpack.c.b16 %v2036, %v2032
          %v2197 = vpack.c.b16 %v2037, %v2033
          %v2198 = vpack.c.b16 %v2038, %v2034
          %v2199 = vpack.c.b16 %v2039, %v2035
          %v2200 = vpack.c.b16 %v2044, %v2040
          %v2201 = vpack.c.b16 %v2045, %v2041
          %v2202 = vpack.c.b16 %v2046, %v2042
          %v2203 = vpack.c.b16 %v2047, %v2043
          %v2204 = vpack.c.b16 %v2052, %v2048
          %v2205 = vpack.c.b16 %v2053, %v2049
          %v2206 = vpack.c.b16 %v2054, %v2050
          %v2207 = vpack.c.b16 %v2055, %v2051
          %v2208 = vpack.c.b16 %v2060, %v2056
          %v2209 = vpack.c.b16 %v2061, %v2057
          %v2210 = vpack.c.b16 %v2062, %v2058
          %v2211 = vpack.c.b16 %v2063, %v2059
          %v2212 = vpack.c.b16 %v2068, %v2064
          %v2213 = vpack.c.b16 %v2069, %v2065
          %v2214 = vpack.c.b16 %v2070, %v2066
          %v2215 = vpack.c.b16 %v2071, %v2067
          %v2216 = vpack.c.b16 %v2076, %v2072
          %v2217 = vpack.c.b16 %v2077, %v2073
          %v2218 = vpack.c.b16 %v2078, %v2074
          %v2219 = vpack.c.b16 %v2079, %v2075
          %v2220 = vpack.c.b16 %v2084, %v2080
          %v2221 = vpack.c.b16 %v2085, %v2081
          %v2222 = vpack.c.b16 %v2086, %v2082
          %v2223 = vpack.c.b16 %v2087, %v2083
          %v2224 = vpack.c.b16 %v2092, %v2088
          %v2225 = vpack.c.b16 %v2093, %v2089
          %v2226 = vpack.c.b16 %v2094, %v2090
          %v2227 = vpack.c.b16 %v2095, %v2091
          %v2228 = vpack.c.b16 %v2100, %v2096
          %v2229 = vpack.c.b16 %v2101, %v2097
          %v2230 = vpack.c.b16 %v2102, %v2098
          %v2231 = vpack.c.b16 %v2103, %v2099
          %2360 = vmatpush.bf16.msra.mxu0 %v2132
          %2361 = vmatpush.bf16.msra.mxu0 %v2128
          %2362 = vmatpush.bf16.msra.mxu0 %v2124
          %2363 = vmatpush.bf16.msra.mxu0 %v2120
          %2364 = vmatpush.bf16.msra.mxu0 %v2116
          %2365 = vmatpush.bf16.msra.mxu0 %v2112
          %2366 = vmatpush.bf16.msra.mxu0 %v2108
          %2367 = vmatpush.bf16.msra.mxu0 %v2104
          %2368 = vmatmul.bf16.gmra.mxu0 %v1574
          %v2369 = vpop.f32.mrf.mxu0
          %v2370 = vadd.f32 %v1712, %v2369
          %v2371 = vpop.f32.mrf.mxu0
          %v2372 = vadd.f32 %v1712, %v2371
          %2373 = vmatmul.bf16.gmra.mxu0 %v1578
          %v2374 = vpop.f32.mrf.mxu0
          %v2375 = vadd.f32 %v1712, %v2374
          %v2376 = vpop.f32.mrf.mxu0
          %v2377 = vadd.f32 %v1712, %v2376
          %2378 = vdwg.mxu0
          %2379 = vmatpush.bf16.msra.mxu0 %v2164
          %2380 = vmatpush.bf16.msra.mxu0 %v2160
          %2381 = vmatpush.bf16.msra.mxu0 %v2156
          %2382 = vmatpush.bf16.msra.mxu0 %v2152
          %2383 = vmatpush.bf16.msra.mxu0 %v2148
          %2384 = vmatpush.bf16.msra.mxu0 %v2144
          %2385 = vmatpush.bf16.msra.mxu0 %v2140
          %2386 = vmatpush.bf16.msra.mxu0 %v2136
          %2387 = vmatmul.bf16.gmra.mxu0 %v1575
          %v2388 = vpop.f32.mrf.mxu0
          %v2389 = vadd.f32 %v2370, %v2388
          %v2390 = vpop.f32.mrf.mxu0
          %v2391 = vadd.f32 %v2372, %v2390
          %2392 = vmatmul.bf16.gmra.mxu0 %v1579
          %v2393 = vpop.f32.mrf.mxu0
          %v2394 = vadd.f32 %v2375, %v2393
          %v2395 = vpop.f32.mrf.mxu0
          %v2396 = vadd.f32 %v2377, %v2395
          %2397 = vdwg.mxu0
          %2398 = vmatpush.bf16.msra.mxu0 %v2196
          %2399 = vmatpush.bf16.msra.mxu0 %v2192
          %2400 = vmatpush.bf16.msra.mxu0 %v2188
          %2401 = vmatpush.bf16.msra.mxu0 %v2184
          %2402 = vmatpush.bf16.msra.mxu0 %v2180
          %2403 = vmatpush.bf16.msra.mxu0 %v2176
          %2404 = vmatpush.bf16.msra.mxu0 %v2172
          %2405 = vmatpush.bf16.msra.mxu0 %v2168
          %2406 = vmatmul.bf16.gmra.mxu0 %v1576
          %v2407 = vpop.f32.mrf.mxu0
          %v2408 = vadd.f32 %v2389, %v2407
          %v2409 = vpop.f32.mrf.mxu0
          %v2410 = vadd.f32 %v2391, %v2409
          %2411 = vmatmul.bf16.gmra.mxu0 %v1580
          %v2412 = vpop.f32.mrf.mxu0
          %v2413 = vadd.f32 %v2394, %v2412
          %v2414 = vpop.f32.mrf.mxu0
          %v2415 = vadd.f32 %v2396, %v2414
          %2416 = vdwg.mxu0
          %2417 = vmatpush.bf16.msra.mxu0 %v2228
          %2418 = vmatpush.bf16.msra.mxu0 %v2224
          %2419 = vmatpush.bf16.msra.mxu0 %v2220
          %2420 = vmatpush.bf16.msra.mxu0 %v2216
          %2421 = vmatpush.bf16.msra.mxu0 %v2212
          %2422 = vmatpush.bf16.msra.mxu0 %v2208
          %2423 = vmatpush.bf16.msra.mxu0 %v2204
          %2424 = vmatpush.bf16.msra.mxu0 %v2200
          %2425 = vmatmul.bf16.gmra.mxu0 %v1577
          %v2426 = vpop.f32.mrf.mxu0
          %v2427 = vadd.f32 %v2408, %v2426
          %v2428 = vpop.f32.mrf.mxu0
          %v2429 = vadd.f32 %v2410, %v2428
          %2430 = vmatmul.bf16.gmra.mxu0 %v1581
          %v2431 = vpop.f32.mrf.mxu0
          %v2432 = vadd.f32 %v2413, %v2431
          %v2433 = vpop.f32.mrf.mxu0
          %v2434 = vadd.f32 %v2415, %v2433
          %2435 = vdwg.mxu0
          %2436 = vmatpush.bf16.msra.mxu0 %v2133
          %2437 = vmatpush.bf16.msra.mxu0 %v2129
          %2438 = vmatpush.bf16.msra.mxu0 %v2125
          %2439 = vmatpush.bf16.msra.mxu0 %v2121
          %2440 = vmatpush.bf16.msra.mxu0 %v2117
          %2441 = vmatpush.bf16.msra.mxu0 %v2113
          %2442 = vmatpush.bf16.msra.mxu0 %v2109
          %2443 = vmatpush.bf16.msra.mxu0 %v2105
          %2444 = vmatmul.bf16.gmra.mxu0 %v1574
          %v2445 = vpop.f32.mrf.mxu0
          %v2446 = vadd.f32 %v1713, %v2445
          %v2447 = vpop.f32.mrf.mxu0
          %v2448 = vadd.f32 %v1713, %v2447
          %2449 = vmatmul.bf16.gmra.mxu0 %v1578
          %v2450 = vpop.f32.mrf.mxu0
          %v2451 = vadd.f32 %v1713, %v2450
          %v2452 = vpop.f32.mrf.mxu0
          %v2453 = vadd.f32 %v1713, %v2452
          %2454 = vdwg.mxu0
          %2455 = vmatpush.bf16.msra.mxu0 %v2165
          %2456 = vmatpush.bf16.msra.mxu0 %v2161
          %2457 = vmatpush.bf16.msra.mxu0 %v2157
          %2458 = vmatpush.bf16.msra.mxu0 %v2153
          %2459 = vmatpush.bf16.msra.mxu0 %v2149
          %2460 = vmatpush.bf16.msra.mxu0 %v2145
          %2461 = vmatpush.bf16.msra.mxu0 %v2141
          %2462 = vmatpush.bf16.msra.mxu0 %v2137
          %2463 = vmatmul.bf16.gmra.mxu0 %v1575
          %v2464 = vpop.f32.mrf.mxu0
          %v2465 = vadd.f32 %v2446, %v2464
          %v2466 = vpop.f32.mrf.mxu0
          %v2467 = vadd.f32 %v2448, %v2466
          %2468 = vmatmul.bf16.gmra.mxu0 %v1579
          %v2469 = vpop.f32.mrf.mxu0
          %v2470 = vadd.f32 %v2451, %v2469
          %v2471 = vpop.f32.mrf.mxu0
          %v2472 = vadd.f32 %v2453, %v2471
          %2473 = vdwg.mxu0
          %2474 = vmatpush.bf16.msra.mxu0 %v2197
          %2475 = vmatpush.bf16.msra.mxu0 %v2193
          %2476 = vmatpush.bf16.msra.mxu0 %v2189
          %2477 = vmatpush.bf16.msra.mxu0 %v2185
          %2478 = vmatpush.bf16.msra.mxu0 %v2181
          %2479 = vmatpush.bf16.msra.mxu0 %v2177
          %2480 = vmatpush.bf16.msra.mxu0 %v2173
          %2481 = vmatpush.bf16.msra.mxu0 %v2169
          %2482 = vmatmul.bf16.gmra.mxu0 %v1576
          %v2483 = vpop.f32.mrf.mxu0
          %v2484 = vadd.f32 %v2465, %v2483
          %v2485 = vpop.f32.mrf.mxu0
          %v2486 = vadd.f32 %v2467, %v2485
          %2487 = vmatmul.bf16.gmra.mxu0 %v1580
          %v2488 = vpop.f32.mrf.mxu0
          %v2489 = vadd.f32 %v2470, %v2488
          %v2490 = vpop.f32.mrf.mxu0
          %v2491 = vadd.f32 %v2472, %v2490
          %2492 = vdwg.mxu0
          %2493 = vmatpush.bf16.msra.mxu0 %v2229
          %2494 = vmatpush.bf16.msra.mxu0 %v2225
          %2495 = vmatpush.bf16.msra.mxu0 %v2221
          %2496 = vmatpush.bf16.msra.mxu0 %v2217
          %2497 = vmatpush.bf16.msra.mxu0 %v2213
          %2498 = vmatpush.bf16.msra.mxu0 %v2209
          %2499 = vmatpush.bf16.msra.mxu0 %v2205
          %2500 = vmatpush.bf16.msra.mxu0 %v2201
          %2501 = vmatmul.bf16.gmra.mxu0 %v1577
          %v2502 = vpop.f32.mrf.mxu0
          %v2503 = vadd.f32 %v2484, %v2502
          %v2504 = vpop.f32.mrf.mxu0
          %v2505 = vadd.f32 %v2486, %v2504
          %2506 = vmatmul.bf16.gmra.mxu0 %v1581
          %v2507 = vpop.f32.mrf.mxu0
          %v2508 = vadd.f32 %v2489, %v2507
          %v2509 = vpop.f32.mrf.mxu0
          %v2510 = vadd.f32 %v2491, %v2509
          %2511 = vdwg.mxu0
          %2512 = vmatpush.bf16.msra.mxu0 %v2134
          %2513 = vmatpush.bf16.msra.mxu0 %v2130
          %2514 = vmatpush.bf16.msra.mxu0 %v2126
          %2515 = vmatpush.bf16.msra.mxu0 %v2122
          %2516 = vmatpush.bf16.msra.mxu0 %v2118
          %2517 = vmatpush.bf16.msra.mxu0 %v2114
          %2518 = vmatpush.bf16.msra.mxu0 %v2110
          %2519 = vmatpush.bf16.msra.mxu0 %v2106
          %2520 = vmatmul.bf16.gmra.mxu0 %v1574
          %v2521 = vpop.f32.mrf.mxu0
          %v2522 = vadd.f32 %v1714, %v2521
          %v2523 = vpop.f32.mrf.mxu0
          %v2524 = vadd.f32 %v1714, %v2523
          %2525 = vmatmul.bf16.gmra.mxu0 %v1578
          %v2526 = vpop.f32.mrf.mxu0
          %v2527 = vadd.f32 %v1714, %v2526
          %v2528 = vpop.f32.mrf.mxu0
          %v2529 = vadd.f32 %v1714, %v2528
          %2530 = vdwg.mxu0
          %2531 = vmatpush.bf16.msra.mxu0 %v2166
          %2532 = vmatpush.bf16.msra.mxu0 %v2162
          %2533 = vmatpush.bf16.msra.mxu0 %v2158
          %2534 = vmatpush.bf16.msra.mxu0 %v2154
          %2535 = vmatpush.bf16.msra.mxu0 %v2150
          %2536 = vmatpush.bf16.msra.mxu0 %v2146
          %2537 = vmatpush.bf16.msra.mxu0 %v2142
          %2538 = vmatpush.bf16.msra.mxu0 %v2138
          %2539 = vmatmul.bf16.gmra.mxu0 %v1575
          %v2540 = vpop.f32.mrf.mxu0
          %v2541 = vadd.f32 %v2522, %v2540
          %v2542 = vpop.f32.mrf.mxu0
          %v2543 = vadd.f32 %v2524, %v2542
          %2544 = vmatmul.bf16.gmra.mxu0 %v1579
          %v2545 = vpop.f32.mrf.mxu0
          %v2546 = vadd.f32 %v2527, %v2545
          %v2547 = vpop.f32.mrf.mxu0
          %v2548 = vadd.f32 %v2529, %v2547
          %2549 = vdwg.mxu0
          %2550 = vmatpush.bf16.msra.mxu0 %v2198
          %2551 = vmatpush.bf16.msra.mxu0 %v2194
          %2552 = vmatpush.bf16.msra.mxu0 %v2190
          %2553 = vmatpush.bf16.msra.mxu0 %v2186
          %2554 = vmatpush.bf16.msra.mxu0 %v2182
          %2555 = vmatpush.bf16.msra.mxu0 %v2178
          %2556 = vmatpush.bf16.msra.mxu0 %v2174
          %2557 = vmatpush.bf16.msra.mxu0 %v2170
          %2558 = vmatmul.bf16.gmra.mxu0 %v1576
          %v2559 = vpop.f32.mrf.mxu0
          %v2560 = vadd.f32 %v2541, %v2559
          %v2561 = vpop.f32.mrf.mxu0
          %v2562 = vadd.f32 %v2543, %v2561
          %2563 = vmatmul.bf16.gmra.mxu0 %v1580
          %v2564 = vpop.f32.mrf.mxu0
          %v2565 = vadd.f32 %v2546, %v2564
          %v2566 = vpop.f32.mrf.mxu0
          %v2567 = vadd.f32 %v2548, %v2566
          %2568 = vdwg.mxu0
          %2569 = vmatpush.bf16.msra.mxu0 %v2230
          %2570 = vmatpush.bf16.msra.mxu0 %v2226
          %2571 = vmatpush.bf16.msra.mxu0 %v2222
          %2572 = vmatpush.bf16.msra.mxu0 %v2218
          %2573 = vmatpush.bf16.msra.mxu0 %v2214
          %2574 = vmatpush.bf16.msra.mxu0 %v2210
          %2575 = vmatpush.bf16.msra.mxu0 %v2206
          %2576 = vmatpush.bf16.msra.mxu0 %v2202
          %2577 = vmatmul.bf16.gmra.mxu0 %v1577
          %v2578 = vpop.f32.mrf.mxu0
          %v2579 = vadd.f32 %v2560, %v2578
          %v2580 = vpop.f32.mrf.mxu0
          %v2581 = vadd.f32 %v2562, %v2580
          %2582 = vmatmul.bf16.gmra.mxu0 %v1581
          %v2583 = vpop.f32.mrf.mxu0
          %v2584 = vadd.f32 %v2565, %v2583
          %v2585 = vpop.f32.mrf.mxu0
          %v2586 = vadd.f32 %v2567, %v2585
          %2587 = vdwg.mxu0
          %2588 = vmatpush.bf16.msra.mxu0 %v2135
          %2589 = vmatpush.bf16.msra.mxu0 %v2131
          %2590 = vmatpush.bf16.msra.mxu0 %v2127
          %2591 = vmatpush.bf16.msra.mxu0 %v2123
          %2592 = vmatpush.bf16.msra.mxu0 %v2119
          %2593 = vmatpush.bf16.msra.mxu0 %v2115
          %2594 = vmatpush.bf16.msra.mxu0 %v2111
          %2595 = vmatpush.bf16.msra.mxu0 %v2107
          %2596 = vmatmul.bf16.gmra.mxu0 %v1574
          %v2597 = vpop.f32.mrf.mxu0
          %v2598 = vadd.f32 %v1715, %v2597
          %v2599 = vpop.f32.mrf.mxu0
          %v2600 = vadd.f32 %v1715, %v2599
          %2601 = vmatmul.bf16.gmra.mxu0 %v1578
          %v2602 = vpop.f32.mrf.mxu0
          %v2603 = vadd.f32 %v1715, %v2602
          %v2604 = vpop.f32.mrf.mxu0
          %v2605 = vadd.f32 %v1715, %v2604
          %2606 = vdwg.mxu0
          %2607 = vmatpush.bf16.msra.mxu0 %v2167
          %2608 = vmatpush.bf16.msra.mxu0 %v2163
          %2609 = vmatpush.bf16.msra.mxu0 %v2159
          %2610 = vmatpush.bf16.msra.mxu0 %v2155
          %2611 = vmatpush.bf16.msra.mxu0 %v2151
          %2612 = vmatpush.bf16.msra.mxu0 %v2147
          %2613 = vmatpush.bf16.msra.mxu0 %v2143
          %2614 = vmatpush.bf16.msra.mxu0 %v2139
          %2615 = vmatmul.bf16.gmra.mxu0 %v1575
          %v2616 = vpop.f32.mrf.mxu0
          %v2617 = vadd.f32 %v2598, %v2616
          %v2618 = vpop.f32.mrf.mxu0
          %v2619 = vadd.f32 %v2600, %v2618
          %2620 = vmatmul.bf16.gmra.mxu0 %v1579
          %v2621 = vpop.f32.mrf.mxu0
          %v2622 = vadd.f32 %v2603, %v2621
          %v2623 = vpop.f32.mrf.mxu0
          %v2624 = vadd.f32 %v2605, %v2623
          %2625 = vdwg.mxu0
          %2626 = vmatpush.bf16.msra.mxu0 %v2199
          %2627 = vmatpush.bf16.msra.mxu0 %v2195
          %2628 = vmatpush.bf16.msra.mxu0 %v2191
          %2629 = vmatpush.bf16.msra.mxu0 %v2187
          %2630 = vmatpush.bf16.msra.mxu0 %v2183
          %2631 = vmatpush.bf16.msra.mxu0 %v2179
          %2632 = vmatpush.bf16.msra.mxu0 %v2175
          %2633 = vmatpush.bf16.msra.mxu0 %v2171
          %2634 = vmatmul.bf16.gmra.mxu0 %v1576
          %v2635 = vpop.f32.mrf.mxu0
          %v2636 = vadd.f32 %v2617, %v2635
          %v2637 = vpop.f32.mrf.mxu0
          %v2638 = vadd.f32 %v2619, %v2637
          %2639 = vmatmul.bf16.gmra.mxu0 %v1580
          %v2640 = vpop.f32.mrf.mxu0
          %v2641 = vadd.f32 %v2622, %v2640
          %v2642 = vpop.f32.mrf.mxu0
          %v2643 = vadd.f32 %v2624, %v2642
          %2644 = vdwg.mxu0
          %2645 = vmatpush.bf16.msra.mxu0 %v2231
          %2646 = vmatpush.bf16.msra.mxu0 %v2227
          %2647 = vmatpush.bf16.msra.mxu0 %v2223
          %2648 = vmatpush.bf16.msra.mxu0 %v2219
          %2649 = vmatpush.bf16.msra.mxu0 %v2215
          %2650 = vmatpush.bf16.msra.mxu0 %v2211
          %2651 = vmatpush.bf16.msra.mxu0 %v2207
          %2652 = vmatpush.bf16.msra.mxu0 %v2203
          %2653 = vmatmul.bf16.gmra.mxu0 %v1577
          %v2654 = vpop.f32.mrf.mxu0
          %v2655 = vadd.f32 %v2636, %v2654
          %v2656 = vpop.f32.mrf.mxu0
          %v2657 = vadd.f32 %v2638, %v2656
          %2658 = vmatmul.bf16.gmra.mxu0 %v1581
          %v2659 = vpop.f32.mrf.mxu0
          %v2660 = vadd.f32 %v2641, %v2659
          %v2661 = vpop.f32.mrf.mxu0
          %v2662 = vadd.f32 %v2643, %v2661
          %2663 = vdwg.mxu0
          %v2664 = vmax.f32 %v2427, 0.0
          %v2665 = vmax.f32 %v2503, 0.0
          %v2666 = vmax.f32 %v2579, 0.0
          %v2667 = vmax.f32 %v2655, 0.0
          %v2668 = vmax.f32 %v2429, 0.0
          %v2669 = vmax.f32 %v2505, 0.0
          %v2670 = vmax.f32 %v2581, 0.0
          %v2671 = vmax.f32 %v2657, 0.0
          %v2672 = vmax.f32 %v2432, 0.0
          %v2673 = vmax.f32 %v2508, 0.0
          %v2674 = vmax.f32 %v2584, 0.0
          %v2675 = vmax.f32 %v2660, 0.0
          %v2676 = vmax.f32 %v2434, 0.0
          %v2677 = vmax.f32 %v2510, 0.0
          %v2678 = vmax.f32 %v2586, 0.0
          %v2679 = vmax.f32 %v2662, 0.0
          %v2680 = vpack.c.bf16 %v2665, %v2664
          %v2681 = vpack.c.bf16 %v2667, %v2666
          %v2682 = vpack.c.bf16 %v2669, %v2668
          %v2683 = vpack.c.bf16 %v2671, %v2670
          %v2684 = vpack.c.bf16 %v2673, %v2672
          %v2685 = vpack.c.bf16 %v2675, %v2674
          %v2686 = vpack.c.bf16 %v2677, %v2676
          %v2687 = vpack.c.bf16 %v2679, %v2678
          %2688 = vst [vmem:[#allocation2] sm:$0xff] %v2680
          %2689 = vst [vmem:[#allocation2 + $0x8] sm:$0xff] %v2681
          %2690 = vst [vmem:[#allocation2 + $0x10] sm:$0xff] %v2682
          %2691 = vst [vmem:[#allocation2 + $0x18] sm:$0xff] %v2683
          %2692 = vst [vmem:[#allocation2 + $0x20] sm:$0xff] %v2684
          %2693 = vst [vmem:[#allocation2 + $0x28] sm:$0xff] %v2685
          %2694 = vst [vmem:[#allocation2 + $0x30] sm:$0xff] %v2686
          %2695 = vst [vmem:[#allocation2 + $0x38] sm:$0xff] %v2687
        $region76: #{tpu_custom_call.1} parent=47 // pred_fallthru
          _
        %v2696 = vld [vmem:[#allocation2] sm:$0xff]
        %v2697 = vld [vmem:[#allocation2 + $0x8] sm:$0xff]
        %v2698 = vld [vmem:[#allocation2 + $0x10] sm:$0xff]
        %v2699 = vld [vmem:[#allocation2 + $0x18] sm:$0xff]
        %v2700 = vld [vmem:[#allocation2 + $0x20] sm:$0xff]
        %v2701 = vld [vmem:[#allocation2 + $0x28] sm:$0xff]
        %v2702 = vld [vmem:[#allocation2 + $0x30] sm:$0xff]
        %v2703 = vld [vmem:[#allocation2 + $0x38] sm:$0xff]
        %v2704 = vld [vmem:[#allocation12] sm:$0xff]
        %v2705 = vld [vmem:[#allocation12 + $0x8] sm:$0xff]
        %v2706 = vld [vmem:[#allocation12 + $0x10] sm:$0xff]
        %v2707 = vld [vmem:[#allocation12 + $0x18] sm:$0xff]
        %v2708 = vld [vmem:[#allocation12 + $0x20] sm:$0xff]
        %v2709 = vld [vmem:[#allocation12 + $0x28] sm:$0xff]
        %v2710 = vld [vmem:[#allocation12 + $0x30] sm:$0xff]
        %v2711 = vld [vmem:[#allocation12 + $0x38] sm:$0xff]
        %v2712 = vld [vmem:[#allocation12 + $0x40] sm:$0xff]
        %v2713 = vld [vmem:[#allocation12 + $0x48] sm:$0xff]
        %v2714 = vld [vmem:[#allocation12 + $0x50] sm:$0xff]
        %v2715 = vld [vmem:[#allocation12 + $0x58] sm:$0xff]
        %v2716 = vld [vmem:[#allocation12 + $0x60] sm:$0xff]
        %v2717 = vld [vmem:[#allocation12 + $0x68] sm:$0xff]
        %v2718 = vld [vmem:[#allocation12 + $0x70] sm:$0xff]
        %v2719 = vld [vmem:[#allocation12 + $0x78] sm:$0xff]
        %v2720 = vld [vmem:[#allocation12 + $0x80] sm:$0xff]
        %v2721 = vld [vmem:[#allocation12 + $0x88] sm:$0xff]
        %v2722 = vld [vmem:[#allocation12 + $0x90] sm:$0xff]
        %v2723 = vld [vmem:[#allocation12 + $0x98] sm:$0xff]
        %v2724 = vld [vmem:[#allocation12 + $0xa0] sm:$0xff]
        %v2725 = vld [vmem:[#allocation12 + $0xa8] sm:$0xff]
        %v2726 = vld [vmem:[#allocation12 + $0xb0] sm:$0xff]
        %v2727 = vld [vmem:[#allocation12 + $0xb8] sm:$0xff]
        %v2728 = vld [vmem:[#allocation12 + $0xc0] sm:$0xff]
        %v2729 = vld [vmem:[#allocation12 + $0xc8] sm:$0xff]
        %v2730 = vld [vmem:[#allocation12 + $0xd0] sm:$0xff]
        %v2731 = vld [vmem:[#allocation12 + $0xd8] sm:$0xff]
        %v2732 = vld [vmem:[#allocation12 + $0xe0] sm:$0xff]
        %v2733 = vld [vmem:[#allocation12 + $0xe8] sm:$0xff]
        %v2734 = vld [vmem:[#allocation12 + $0xf0] sm:$0xff]
        %v2735 = vld [vmem:[#allocation12 + $0xf8] sm:$0xff]
        %v2736 = vld [vmem:[#allocation12 + $0x100] sm:$0xff]
        %v2737 = vld [vmem:[#allocation12 + $0x108] sm:$0xff]
        %v2738 = vld [vmem:[#allocation12 + $0x110] sm:$0xff]
        %v2739 = vld [vmem:[#allocation12 + $0x118] sm:$0xff]
        %v2740 = vld [vmem:[#allocation12 + $0x120] sm:$0xff]
        %v2741 = vld [vmem:[#allocation12 + $0x128] sm:$0xff]
        %v2742 = vld [vmem:[#allocation12 + $0x130] sm:$0xff]
        %v2743 = vld [vmem:[#allocation12 + $0x138] sm:$0xff]
        %v2744 = vld [vmem:[#allocation12 + $0x140] sm:$0xff]
        %v2745 = vld [vmem:[#allocation12 + $0x148] sm:$0xff]
        %v2746 = vld [vmem:[#allocation12 + $0x150] sm:$0xff]
        %v2747 = vld [vmem:[#allocation12 + $0x158] sm:$0xff]
        %v2748 = vld [vmem:[#allocation12 + $0x160] sm:$0xff]
        %v2749 = vld [vmem:[#allocation12 + $0x168] sm:$0xff]
        %v2750 = vld [vmem:[#allocation12 + $0x170] sm:$0xff]
        %v2751 = vld [vmem:[#allocation12 + $0x178] sm:$0xff]
        %v2752 = vld [vmem:[#allocation12 + $0x180] sm:$0xff]
        %v2753 = vld [vmem:[#allocation12 + $0x188] sm:$0xff]
        %v2754 = vld [vmem:[#allocation12 + $0x190] sm:$0xff]
        %v2755 = vld [vmem:[#allocation12 + $0x198] sm:$0xff]
        %v2756 = vld [vmem:[#allocation12 + $0x1a0] sm:$0xff]
        %v2757 = vld [vmem:[#allocation12 + $0x1a8] sm:$0xff]
        %v2758 = vld [vmem:[#allocation12 + $0x1b0] sm:$0xff]
        %v2759 = vld [vmem:[#allocation12 + $0x1b8] sm:$0xff]
        %v2760 = vld [vmem:[#allocation12 + $0x1c0] sm:$0xff]
        %v2761 = vld [vmem:[#allocation12 + $0x1c8] sm:$0xff]
        %v2762 = vld [vmem:[#allocation12 + $0x1d0] sm:$0xff]
        %v2763 = vld [vmem:[#allocation12 + $0x1d8] sm:$0xff]
        %v2764 = vld [vmem:[#allocation12 + $0x1e0] sm:$0xff]
        %v2765 = vld [vmem:[#allocation12 + $0x1e8] sm:$0xff]
        %v2766 = vld [vmem:[#allocation12 + $0x1f0] sm:$0xff]
        %v2767 = vld [vmem:[#allocation12 + $0x1f8] sm:$0xff]
        %v2768 = vld [vmem:[#allocation12 + $0x200] sm:$0xff]
        %v2769 = vld [vmem:[#allocation12 + $0x208] sm:$0xff]
        %v2770 = vld [vmem:[#allocation12 + $0x210] sm:$0xff]
        %v2771 = vld [vmem:[#allocation12 + $0x218] sm:$0xff]
        %v2772 = vld [vmem:[#allocation12 + $0x220] sm:$0xff]
        %v2773 = vld [vmem:[#allocation12 + $0x228] sm:$0xff]
        %v2774 = vld [vmem:[#allocation12 + $0x230] sm:$0xff]
        %v2775 = vld [vmem:[#allocation12 + $0x238] sm:$0xff]
        %v2776 = vld [vmem:[#allocation12 + $0x240] sm:$0xff]
        %v2777 = vld [vmem:[#allocation12 + $0x248] sm:$0xff]
        %v2778 = vld [vmem:[#allocation12 + $0x250] sm:$0xff]
        %v2779 = vld [vmem:[#allocation12 + $0x258] sm:$0xff]
        %v2780 = vld [vmem:[#allocation12 + $0x260] sm:$0xff]
        %v2781 = vld [vmem:[#allocation12 + $0x268] sm:$0xff]
        %v2782 = vld [vmem:[#allocation12 + $0x270] sm:$0xff]
        %v2783 = vld [vmem:[#allocation12 + $0x278] sm:$0xff]
        %v2784 = vld [vmem:[#allocation12 + $0x280] sm:$0xff]
        %v2785 = vld [vmem:[#allocation12 + $0x288] sm:$0xff]
        %v2786 = vld [vmem:[#allocation12 + $0x290] sm:$0xff]
        %v2787 = vld [vmem:[#allocation12 + $0x298] sm:$0xff]
        %v2788 = vld [vmem:[#allocation12 + $0x2a0] sm:$0xff]
        %v2789 = vld [vmem:[#allocation12 + $0x2a8] sm:$0xff]
        %v2790 = vld [vmem:[#allocation12 + $0x2b0] sm:$0xff]
        %v2791 = vld [vmem:[#allocation12 + $0x2b8] sm:$0xff]
        %v2792 = vld [vmem:[#allocation12 + $0x2c0] sm:$0xff]
        %v2793 = vld [vmem:[#allocation12 + $0x2c8] sm:$0xff]
        %v2794 = vld [vmem:[#allocation12 + $0x2d0] sm:$0xff]
        %v2795 = vld [vmem:[#allocation12 + $0x2d8] sm:$0xff]
        %v2796 = vld [vmem:[#allocation12 + $0x2e0] sm:$0xff]
        %v2797 = vld [vmem:[#allocation12 + $0x2e8] sm:$0xff]
        %v2798 = vld [vmem:[#allocation12 + $0x2f0] sm:$0xff]
        %v2799 = vld [vmem:[#allocation12 + $0x2f8] sm:$0xff]
        %v2800 = vld [vmem:[#allocation12 + $0x300] sm:$0xff]
        %v2801 = vld [vmem:[#allocation12 + $0x308] sm:$0xff]
        %v2802 = vld [vmem:[#allocation12 + $0x310] sm:$0xff]
        %v2803 = vld [vmem:[#allocation12 + $0x318] sm:$0xff]
        %v2804 = vld [vmem:[#allocation12 + $0x320] sm:$0xff]
        %v2805 = vld [vmem:[#allocation12 + $0x328] sm:$0xff]
        %v2806 = vld [vmem:[#allocation12 + $0x330] sm:$0xff]
        %v2807 = vld [vmem:[#allocation12 + $0x338] sm:$0xff]
        %v2808 = vld [vmem:[#allocation12 + $0x340] sm:$0xff]
        %v2809 = vld [vmem:[#allocation12 + $0x348] sm:$0xff]
        %v2810 = vld [vmem:[#allocation12 + $0x350] sm:$0xff]
        %v2811 = vld [vmem:[#allocation12 + $0x358] sm:$0xff]
        %v2812 = vld [vmem:[#allocation12 + $0x360] sm:$0xff]
        %v2813 = vld [vmem:[#allocation12 + $0x368] sm:$0xff]
        %v2814 = vld [vmem:[#allocation12 + $0x370] sm:$0xff]
        %v2815 = vld [vmem:[#allocation12 + $0x378] sm:$0xff]
        %v2816 = vld [vmem:[#allocation12 + $0x380] sm:$0xff]
        %v2817 = vld [vmem:[#allocation12 + $0x388] sm:$0xff]
        %v2818 = vld [vmem:[#allocation12 + $0x390] sm:$0xff]
        %v2819 = vld [vmem:[#allocation12 + $0x398] sm:$0xff]
        %v2820 = vld [vmem:[#allocation12 + $0x3a0] sm:$0xff]
        %v2821 = vld [vmem:[#allocation12 + $0x3a8] sm:$0xff]
        %v2822 = vld [vmem:[#allocation12 + $0x3b0] sm:$0xff]
        %v2823 = vld [vmem:[#allocation12 + $0x3b8] sm:$0xff]
        %v2824 = vld [vmem:[#allocation12 + $0x3c0] sm:$0xff]
        %v2825 = vld [vmem:[#allocation12 + $0x3c8] sm:$0xff]
        %v2826 = vld [vmem:[#allocation12 + $0x3d0] sm:$0xff]
        %v2827 = vld [vmem:[#allocation12 + $0x3d8] sm:$0xff]
        %v2828 = vld [vmem:[#allocation12 + $0x3e0] sm:$0xff]
        %v2829 = vld [vmem:[#allocation12 + $0x3e8] sm:$0xff]
        %v2830 = vld [vmem:[#allocation12 + $0x3f0] sm:$0xff]
        %v2831 = vld [vmem:[#allocation12 + $0x3f8] sm:$0xff]
        %v2832 = vld [vmem:[%s420] sm:$0xf]
        %v2834 = vperm.slane %v2832, 0
        %v2835 = vperm.slane %v2832, 1
        %v2836 = vperm.slane %v2832, 2
        %v2837 = vperm.slane %v2832, 3
        %v2850 = vunpack.c.l.b16 %v2696
        %v2851 = vunpack.c.h.b16 %v2696
        %v2852 = vunpack.c.l.b16 %v2697
        %v2853 = vunpack.c.h.b16 %v2697
        %v2854 = vunpack.c.l.b16 %v2698
        %v2855 = vunpack.c.h.b16 %v2698
        %v2856 = vunpack.c.l.b16 %v2699
        %v2857 = vunpack.c.h.b16 %v2699
        %v2858 = vunpack.c.l.b16 %v2700
        %v2859 = vunpack.c.h.b16 %v2700
        %v2860 = vunpack.c.l.b16 %v2701
        %v2861 = vunpack.c.h.b16 %v2701
        %v2862 = vunpack.c.l.b16 %v2702
        %v2863 = vunpack.c.h.b16 %v2702
        %v2864 = vunpack.c.l.b16 %v2703
        %v2865 = vunpack.c.h.b16 %v2703
        %v2866 = vpack.c.b16 %v2854, %v2850
        %v2867 = vpack.c.b16 %v2855, %v2851
        %v2868 = vpack.c.b16 %v2856, %v2852
        %v2869 = vpack.c.b16 %v2857, %v2853
        %v2870 = vpack.c.b16 %v2862, %v2858
        %v2871 = vpack.c.b16 %v2863, %v2859
        %v2872 = vpack.c.b16 %v2864, %v2860
        %v2873 = vpack.c.b16 %v2865, %v2861
        %v3010 = vunpack.c.l.b16 %v2704
        %v3011 = vunpack.c.h.b16 %v2704
        %v3012 = vunpack.c.l.b16 %v2705
        %v3013 = vunpack.c.h.b16 %v2705
        %v3014 = vunpack.c.l.b16 %v2706
        %v3015 = vunpack.c.h.b16 %v2706
        %v3016 = vunpack.c.l.b16 %v2707
        %v3017 = vunpack.c.h.b16 %v2707
        %v3018 = vunpack.c.l.b16 %v2708
        %v3019 = vunpack.c.h.b16 %v2708
        %v3020 = vunpack.c.l.b16 %v2709
        %v3021 = vunpack.c.h.b16 %v2709
        %v3022 = vunpack.c.l.b16 %v2710
        %v3023 = vunpack.c.h.b16 %v2710
        %v3024 = vunpack.c.l.b16 %v2711
        %v3025 = vunpack.c.h.b16 %v2711
        %v3026 = vunpack.c.l.b16 %v2712
        %v3027 = vunpack.c.h.b16 %v2712
        %v3028 = vunpack.c.l.b16 %v2713
        %v3029 = vunpack.c.h.b16 %v2713
        %v3030 = vunpack.c.l.b16 %v2714
        %v3031 = vunpack.c.h.b16 %v2714
        %v3032 = vunpack.c.l.b16 %v2715
        %v3033 = vunpack.c.h.b16 %v2715
        %v3034 = vunpack.c.l.b16 %v2716
        %v3035 = vunpack.c.h.b16 %v2716
        %v3036 = vunpack.c.l.b16 %v2717
        %v3037 = vunpack.c.h.b16 %v2717
        %v3038 = vunpack.c.l.b16 %v2718
        %v3039 = vunpack.c.h.b16 %v2718
        %v3040 = vunpack.c.l.b16 %v2719
        %v3041 = vunpack.c.h.b16 %v2719
        %v3042 = vunpack.c.l.b16 %v2720
        %v3043 = vunpack.c.h.b16 %v2720
        %v3044 = vunpack.c.l.b16 %v2721
        %v3045 = vunpack.c.h.b16 %v2721
        %v3046 = vunpack.c.l.b16 %v2722
        %v3047 = vunpack.c.h.b16 %v2722
        %v3048 = vunpack.c.l.b16 %v2723
        %v3049 = vunpack.c.h.b16 %v2723
        %v3050 = vunpack.c.l.b16 %v2724
        %v3051 = vunpack.c.h.b16 %v2724
        %v3052 = vunpack.c.l.b16 %v2725
        %v3053 = vunpack.c.h.b16 %v2725
        %v3054 = vunpack.c.l.b16 %v2726
        %v3055 = vunpack.c.h.b16 %v2726
        %v3056 = vunpack.c.l.b16 %v2727
        %v3057 = vunpack.c.h.b16 %v2727
        %v3058 = vunpack.c.l.b16 %v2728
        %v3059 = vunpack.c.h.b16 %v2728
        %v3060 = vunpack.c.l.b16 %v2729
        %v3061 = vunpack.c.h.b16 %v2729
        %v3062 = vunpack.c.l.b16 %v2730
        %v3063 = vunpack.c.h.b16 %v2730
        %v3064 = vunpack.c.l.b16 %v2731
        %v3065 = vunpack.c.h.b16 %v2731
        %v3066 = vunpack.c.l.b16 %v2732
        %v3067 = vunpack.c.h.b16 %v2732
        %v3068 = vunpack.c.l.b16 %v2733
        %v3069 = vunpack.c.h.b16 %v2733
        %v3070 = vunpack.c.l.b16 %v2734
        %v3071 = vunpack.c.h.b16 %v2734
        %v3072 = vunpack.c.l.b16 %v2735
        %v3073 = vunpack.c.h.b16 %v2735
        %v3074 = vunpack.c.l.b16 %v2736
        %v3075 = vunpack.c.h.b16 %v2736
        %v3076 = vunpack.c.l.b16 %v2737
        %v3077 = vunpack.c.h.b16 %v2737
        %v3078 = vunpack.c.l.b16 %v2738
        %v3079 = vunpack.c.h.b16 %v2738
        %v3080 = vunpack.c.l.b16 %v2739
        %v3081 = vunpack.c.h.b16 %v2739
        %v3082 = vunpack.c.l.b16 %v2740
        %v3083 = vunpack.c.h.b16 %v2740
        %v3084 = vunpack.c.l.b16 %v2741
        %v3085 = vunpack.c.h.b16 %v2741
        %v3086 = vunpack.c.l.b16 %v2742
        %v3087 = vunpack.c.h.b16 %v2742
        %v3088 = vunpack.c.l.b16 %v2743
        %v3089 = vunpack.c.h.b16 %v2743
        %v3090 = vunpack.c.l.b16 %v2744
        %v3091 = vunpack.c.h.b16 %v2744
        %v3092 = vunpack.c.l.b16 %v2745
        %v3093 = vunpack.c.h.b16 %v2745
        %v3094 = vunpack.c.l.b16 %v2746
        %v3095 = vunpack.c.h.b16 %v2746
        %v3096 = vunpack.c.l.b16 %v2747
        %v3097 = vunpack.c.h.b16 %v2747
        %v3098 = vunpack.c.l.b16 %v2748
        %v3099 = vunpack.c.h.b16 %v2748
        %v3100 = vunpack.c.l.b16 %v2749
        %v3101 = vunpack.c.h.b16 %v2749
        %v3102 = vunpack.c.l.b16 %v2750
        %v3103 = vunpack.c.h.b16 %v2750
        %v3104 = vunpack.c.l.b16 %v2751
        %v3105 = vunpack.c.h.b16 %v2751
        %v3106 = vunpack.c.l.b16 %v2752
        %v3107 = vunpack.c.h.b16 %v2752
        %v3108 = vunpack.c.l.b16 %v2753
        %v3109 = vunpack.c.h.b16 %v2753
        %v3110 = vunpack.c.l.b16 %v2754
        %v3111 = vunpack.c.h.b16 %v2754
        %v3112 = vunpack.c.l.b16 %v2755
        %v3113 = vunpack.c.h.b16 %v2755
        %v3114 = vunpack.c.l.b16 %v2756
        %v3115 = vunpack.c.h.b16 %v2756
        %v3116 = vunpack.c.l.b16 %v2757
        %v3117 = vunpack.c.h.b16 %v2757
        %v3118 = vunpack.c.l.b16 %v2758
        %v3119 = vunpack.c.h.b16 %v2758
        %v3120 = vunpack.c.l.b16 %v2759
        %v3121 = vunpack.c.h.b16 %v2759
        %v3122 = vunpack.c.l.b16 %v2760
        %v3123 = vunpack.c.h.b16 %v2760
        %v3124 = vunpack.c.l.b16 %v2761
        %v3125 = vunpack.c.h.b16 %v2761
        %v3126 = vunpack.c.l.b16 %v2762
        %v3127 = vunpack.c.h.b16 %v2762
        %v3128 = vunpack.c.l.b16 %v2763
        %v3129 = vunpack.c.h.b16 %v2763
        %v3130 = vunpack.c.l.b16 %v2764
        %v3131 = vunpack.c.h.b16 %v2764
        %v3132 = vunpack.c.l.b16 %v2765
        %v3133 = vunpack.c.h.b16 %v2765
        %v3134 = vunpack.c.l.b16 %v2766
        %v3135 = vunpack.c.h.b16 %v2766
        %v3136 = vunpack.c.l.b16 %v2767
        %v3137 = vunpack.c.h.b16 %v2767
        %v3138 = vunpack.c.l.b16 %v2768
        %v3139 = vunpack.c.h.b16 %v2768
        %v3140 = vunpack.c.l.b16 %v2769
        %v3141 = vunpack.c.h.b16 %v2769
        %v3142 = vunpack.c.l.b16 %v2770
        %v3143 = vunpack.c.h.b16 %v2770
        %v3144 = vunpack.c.l.b16 %v2771
        %v3145 = vunpack.c.h.b16 %v2771
        %v3146 = vunpack.c.l.b16 %v2772
        %v3147 = vunpack.c.h.b16 %v2772
        %v3148 = vunpack.c.l.b16 %v2773
        %v3149 = vunpack.c.h.b16 %v2773
        %v3150 = vunpack.c.l.b16 %v2774
        %v3151 = vunpack.c.h.b16 %v2774
        %v3152 = vunpack.c.l.b16 %v2775
        %v3153 = vunpack.c.h.b16 %v2775
        %v3154 = vunpack.c.l.b16 %v2776
        %v3155 = vunpack.c.h.b16 %v2776
        %v3156 = vunpack.c.l.b16 %v2777
        %v3157 = vunpack.c.h.b16 %v2777
        %v3158 = vunpack.c.l.b16 %v2778
        %v3159 = vunpack.c.h.b16 %v2778
        %v3160 = vunpack.c.l.b16 %v2779
        %v3161 = vunpack.c.h.b16 %v2779
        %v3162 = vunpack.c.l.b16 %v2780
        %v3163 = vunpack.c.h.b16 %v2780
        %v3164 = vunpack.c.l.b16 %v2781
        %v3165 = vunpack.c.h.b16 %v2781
        %v3166 = vunpack.c.l.b16 %v2782
        %v3167 = vunpack.c.h.b16 %v2782
        %v3168 = vunpack.c.l.b16 %v2783
        %v3169 = vunpack.c.h.b16 %v2783
        %v3170 = vunpack.c.l.b16 %v2784
        %v3171 = vunpack.c.h.b16 %v2784
        %v3172 = vunpack.c.l.b16 %v2785
        %v3173 = vunpack.c.h.b16 %v2785
        %v3174 = vunpack.c.l.b16 %v2786
        %v3175 = vunpack.c.h.b16 %v2786
        %v3176 = vunpack.c.l.b16 %v2787
        %v3177 = vunpack.c.h.b16 %v2787
        %v3178 = vunpack.c.l.b16 %v2788
        %v3179 = vunpack.c.h.b16 %v2788
        %v3180 = vunpack.c.l.b16 %v2789
        %v3181 = vunpack.c.h.b16 %v2789
        %v3182 = vunpack.c.l.b16 %v2790
        %v3183 = vunpack.c.h.b16 %v2790
        %v3184 = vunpack.c.l.b16 %v2791
        %v3185 = vunpack.c.h.b16 %v2791
        %v3186 = vunpack.c.l.b16 %v2792
        %v3187 = vunpack.c.h.b16 %v2792
        %v3188 = vunpack.c.l.b16 %v2793
        %v3189 = vunpack.c.h.b16 %v2793
        %v3190 = vunpack.c.l.b16 %v2794
        %v3191 = vunpack.c.h.b16 %v2794
        %v3192 = vunpack.c.l.b16 %v2795
        %v3193 = vunpack.c.h.b16 %v2795
        %v3194 = vunpack.c.l.b16 %v2796
        %v3195 = vunpack.c.h.b16 %v2796
        %v3196 = vunpack.c.l.b16 %v2797
        %v3197 = vunpack.c.h.b16 %v2797
        %v3198 = vunpack.c.l.b16 %v2798
        %v3199 = vunpack.c.h.b16 %v2798
        %v3200 = vunpack.c.l.b16 %v2799
        %v3201 = vunpack.c.h.b16 %v2799
        %v3202 = vunpack.c.l.b16 %v2800
        %v3203 = vunpack.c.h.b16 %v2800
        %v3204 = vunpack.c.l.b16 %v2801
        %v3205 = vunpack.c.h.b16 %v2801
        %v3206 = vunpack.c.l.b16 %v2802
        %v3207 = vunpack.c.h.b16 %v2802
        %v3208 = vunpack.c.l.b16 %v2803
        %v3209 = vunpack.c.h.b16 %v2803
        %v3210 = vunpack.c.l.b16 %v2804
        %v3211 = vunpack.c.h.b16 %v2804
        %v3212 = vunpack.c.l.b16 %v2805
        %v3213 = vunpack.c.h.b16 %v2805
        %v3214 = vunpack.c.l.b16 %v2806
        %v3215 = vunpack.c.h.b16 %v2806
        %v3216 = vunpack.c.l.b16 %v2807
        %v3217 = vunpack.c.h.b16 %v2807
        %v3218 = vunpack.c.l.b16 %v2808
        %v3219 = vunpack.c.h.b16 %v2808
        %v3220 = vunpack.c.l.b16 %v2809
        %v3221 = vunpack.c.h.b16 %v2809
        %v3222 = vunpack.c.l.b16 %v2810
        %v3223 = vunpack.c.h.b16 %v2810
        %v3224 = vunpack.c.l.b16 %v2811
        %v3225 = vunpack.c.h.b16 %v2811
        %v3226 = vunpack.c.l.b16 %v2812
        %v3227 = vunpack.c.h.b16 %v2812
        %v3228 = vunpack.c.l.b16 %v2813
        %v3229 = vunpack.c.h.b16 %v2813
        %v3230 = vunpack.c.l.b16 %v2814
        %v3231 = vunpack.c.h.b16 %v2814
        %v3232 = vunpack.c.l.b16 %v2815
        %v3233 = vunpack.c.h.b16 %v2815
        %v3234 = vunpack.c.l.b16 %v2816
        %v3235 = vunpack.c.h.b16 %v2816
        %v3236 = vunpack.c.l.b16 %v2817
        %v3237 = vunpack.c.h.b16 %v2817
        %v3238 = vunpack.c.l.b16 %v2818
        %v3239 = vunpack.c.h.b16 %v2818
        %v3240 = vunpack.c.l.b16 %v2819
        %v3241 = vunpack.c.h.b16 %v2819
        %v3242 = vunpack.c.l.b16 %v2820
        %v3243 = vunpack.c.h.b16 %v2820
        %v3244 = vunpack.c.l.b16 %v2821
        %v3245 = vunpack.c.h.b16 %v2821
        %v3246 = vunpack.c.l.b16 %v2822
        %v3247 = vunpack.c.h.b16 %v2822
        %v3248 = vunpack.c.l.b16 %v2823
        %v3249 = vunpack.c.h.b16 %v2823
        %v3250 = vunpack.c.l.b16 %v2824
        %v3251 = vunpack.c.h.b16 %v2824
        %v3252 = vunpack.c.l.b16 %v2825
        %v3253 = vunpack.c.h.b16 %v2825
        %v3254 = vunpack.c.l.b16 %v2826
        %v3255 = vunpack.c.h.b16 %v2826
        %v3256 = vunpack.c.l.b16 %v2827
        %v3257 = vunpack.c.h.b16 %v2827
        %v3258 = vunpack.c.l.b16 %v2828
        %v3259 = vunpack.c.h.b16 %v2828
        %v3260 = vunpack.c.l.b16 %v2829
        %v3261 = vunpack.c.h.b16 %v2829
        %v3262 = vunpack.c.l.b16 %v2830
        %v3263 = vunpack.c.h.b16 %v2830
        %v3264 = vunpack.c.l.b16 %v2831
        %v3265 = vunpack.c.h.b16 %v2831
        %v3266 = vpack.c.b16 %v3014, %v3010
        %v3267 = vpack.c.b16 %v3015, %v3011
        %v3268 = vpack.c.b16 %v3016, %v3012
        %v3269 = vpack.c.b16 %v3017, %v3013
        %v3270 = vpack.c.b16 %v3022, %v3018
        %v3271 = vpack.c.b16 %v3023, %v3019
        %v3272 = vpack.c.b16 %v3024, %v3020
        %v3273 = vpack.c.b16 %v3025, %v3021
        %v3274 = vpack.c.b16 %v3030, %v3026
        %v3275 = vpack.c.b16 %v3031, %v3027
        %v3276 = vpack.c.b16 %v3032, %v3028
        %v3277 = vpack.c.b16 %v3033, %v3029
        %v3278 = vpack.c.b16 %v3038, %v3034
        %v3279 = vpack.c.b16 %v3039, %v3035
        %v3280 = vpack.c.b16 %v3040, %v3036
        %v3281 = vpack.c.b16 %v3041, %v3037
        %v3282 = vpack.c.b16 %v3046, %v3042
        %v3283 = vpack.c.b16 %v3047, %v3043
        %v3284 = vpack.c.b16 %v3048, %v3044
        %v3285 = vpack.c.b16 %v3049, %v3045
        %v3286 = vpack.c.b16 %v3054, %v3050
        %v3287 = vpack.c.b16 %v3055, %v3051
        %v3288 = vpack.c.b16 %v3056, %v3052
        %v3289 = vpack.c.b16 %v3057, %v3053
        %v3290 = vpack.c.b16 %v3062, %v3058
        %v3291 = vpack.c.b16 %v3063, %v3059
        %v3292 = vpack.c.b16 %v3064, %v3060
        %v3293 = vpack.c.b16 %v3065, %v3061
        %v3294 = vpack.c.b16 %v3070, %v3066
        %v3295 = vpack.c.b16 %v3071, %v3067
        %v3296 = vpack.c.b16 %v3072, %v3068
        %v3297 = vpack.c.b16 %v3073, %v3069
        %v3298 = vpack.c.b16 %v3078, %v3074
        %v3299 = vpack.c.b16 %v3079, %v3075
        %v3300 = vpack.c.b16 %v3080, %v3076
        %v3301 = vpack.c.b16 %v3081, %v3077
        %v3302 = vpack.c.b16 %v3086, %v3082
        %v3303 = vpack.c.b16 %v3087, %v3083
        %v3304 = vpack.c.b16 %v3088, %v3084
        %v3305 = vpack.c.b16 %v3089, %v3085
        %v3306 = vpack.c.b16 %v3094, %v3090
        %v3307 = vpack.c.b16 %v3095, %v3091
        %v3308 = vpack.c.b16 %v3096, %v3092
        %v3309 = vpack.c.b16 %v3097, %v3093
        %v3310 = vpack.c.b16 %v3102, %v3098
        %v3311 = vpack.c.b16 %v3103, %v3099
        %v3312 = vpack.c.b16 %v3104, %v3100
        %v3313 = vpack.c.b16 %v3105, %v3101
        %v3314 = vpack.c.b16 %v3110, %v3106
        %v3315 = vpack.c.b16 %v3111, %v3107
        %v3316 = vpack.c.b16 %v3112, %v3108
        %v3317 = vpack.c.b16 %v3113, %v3109
        %v3318 = vpack.c.b16 %v3118, %v3114
        %v3319 = vpack.c.b16 %v3119, %v3115
        %v3320 = vpack.c.b16 %v3120, %v3116
        %v3321 = vpack.c.b16 %v3121, %v3117
        %v3322 = vpack.c.b16 %v3126, %v3122
        %v3323 = vpack.c.b16 %v3127, %v3123
        %v3324 = vpack.c.b16 %v3128, %v3124
        %v3325 = vpack.c.b16 %v3129, %v3125
        %v3326 = vpack.c.b16 %v3134, %v3130
        %v3327 = vpack.c.b16 %v3135, %v3131
        %v3328 = vpack.c.b16 %v3136, %v3132
        %v3329 = vpack.c.b16 %v3137, %v3133
        %v3330 = vpack.c.b16 %v3142, %v3138
        %v3331 = vpack.c.b16 %v3143, %v3139
        %v3332 = vpack.c.b16 %v3144, %v3140
        %v3333 = vpack.c.b16 %v3145, %v3141
        %v3334 = vpack.c.b16 %v3150, %v3146
        %v3335 = vpack.c.b16 %v3151, %v3147
        %v3336 = vpack.c.b16 %v3152, %v3148
        %v3337 = vpack.c.b16 %v3153, %v3149
        %v3338 = vpack.c.b16 %v3158, %v3154
        %v3339 = vpack.c.b16 %v3159, %v3155
        %v3340 = vpack.c.b16 %v3160, %v3156
        %v3341 = vpack.c.b16 %v3161, %v3157
        %v3342 = vpack.c.b16 %v3166, %v3162
        %v3343 = vpack.c.b16 %v3167, %v3163
        %v3344 = vpack.c.b16 %v3168, %v3164
        %v3345 = vpack.c.b16 %v3169, %v3165
        %v3346 = vpack.c.b16 %v3174, %v3170
        %v3347 = vpack.c.b16 %v3175, %v3171
        %v3348 = vpack.c.b16 %v3176, %v3172
        %v3349 = vpack.c.b16 %v3177, %v3173
        %v3350 = vpack.c.b16 %v3182, %v3178
        %v3351 = vpack.c.b16 %v3183, %v3179
        %v3352 = vpack.c.b16 %v3184, %v3180
        %v3353 = vpack.c.b16 %v3185, %v3181
        %v3354 = vpack.c.b16 %v3190, %v3186
        %v3355 = vpack.c.b16 %v3191, %v3187
        %v3356 = vpack.c.b16 %v3192, %v3188
        %v3357 = vpack.c.b16 %v3193, %v3189
        %v3358 = vpack.c.b16 %v3198, %v3194
        %v3359 = vpack.c.b16 %v3199, %v3195
        %v3360 = vpack.c.b16 %v3200, %v3196
        %v3361 = vpack.c.b16 %v3201, %v3197
        %v3362 = vpack.c.b16 %v3206, %v3202
        %v3363 = vpack.c.b16 %v3207, %v3203
        %v3364 = vpack.c.b16 %v3208, %v3204
        %v3365 = vpack.c.b16 %v3209, %v3205
        %v3366 = vpack.c.b16 %v3214, %v3210
        %v3367 = vpack.c.b16 %v3215, %v3211
        %v3368 = vpack.c.b16 %v3216, %v3212
        %v3369 = vpack.c.b16 %v3217, %v3213
        %v3370 = vpack.c.b16 %v3222, %v3218
        %v3371 = vpack.c.b16 %v3223, %v3219
        %v3372 = vpack.c.b16 %v3224, %v3220
        %v3373 = vpack.c.b16 %v3225, %v3221
        %v3374 = vpack.c.b16 %v3230, %v3226
        %v3375 = vpack.c.b16 %v3231, %v3227
        %v3376 = vpack.c.b16 %v3232, %v3228
        %v3377 = vpack.c.b16 %v3233, %v3229
        %v3378 = vpack.c.b16 %v3238, %v3234
        %v3379 = vpack.c.b16 %v3239, %v3235
        %v3380 = vpack.c.b16 %v3240, %v3236
        %v3381 = vpack.c.b16 %v3241, %v3237
        %v3382 = vpack.c.b16 %v3246, %v3242
        %v3383 = vpack.c.b16 %v3247, %v3243
        %v3384 = vpack.c.b16 %v3248, %v3244
        %v3385 = vpack.c.b16 %v3249, %v3245
        %v3386 = vpack.c.b16 %v3254, %v3250
        %v3387 = vpack.c.b16 %v3255, %v3251
        %v3388 = vpack.c.b16 %v3256, %v3252
        %v3389 = vpack.c.b16 %v3257, %v3253
        %v3390 = vpack.c.b16 %v3262, %v3258
        %v3391 = vpack.c.b16 %v3263, %v3259
        %v3392 = vpack.c.b16 %v3264, %v3260
        %v3393 = vpack.c.b16 %v3265, %v3261
        %3522 = vmatpush.bf16.msra.mxu0 %v3294
        %3523 = vmatpush.bf16.msra.mxu0 %v3290
        %3524 = vmatpush.bf16.msra.mxu0 %v3286
        %3525 = vmatpush.bf16.msra.mxu0 %v3282
        %3526 = vmatpush.bf16.msra.mxu0 %v3278
        %3527 = vmatpush.bf16.msra.mxu0 %v3274
        %3528 = vmatpush.bf16.msra.mxu0 %v3270
        %3529 = vmatpush.bf16.msra.mxu0 %v3266
        %3530 = vmatmul.bf16.gmra.mxu0 %v2866
        %v3531 = vpop.f32.mrf.mxu0
        %v3532 = vadd.f32 %v2834, %v3531
        %v3533 = vpop.f32.mrf.mxu0
        %v3534 = vadd.f32 %v2834, %v3533
        %3535 = vmatmul.bf16.gmra.mxu0 %v2870
        %v3536 = vpop.f32.mrf.mxu0
        %v3537 = vadd.f32 %v2834, %v3536
        %v3538 = vpop.f32.mrf.mxu0
        %v3539 = vadd.f32 %v2834, %v3538
        %3540 = vdwg.mxu0
        %3541 = vmatpush.bf16.msra.mxu0 %v3326
        %3542 = vmatpush.bf16.msra.mxu0 %v3322
        %3543 = vmatpush.bf16.msra.mxu0 %v3318
        %3544 = vmatpush.bf16.msra.mxu0 %v3314
        %3545 = vmatpush.bf16.msra.mxu0 %v3310
        %3546 = vmatpush.bf16.msra.mxu0 %v3306
        %3547 = vmatpush.bf16.msra.mxu0 %v3302
        %3548 = vmatpush.bf16.msra.mxu0 %v3298
        %3549 = vmatmul.bf16.gmra.mxu0 %v2867
        %v3550 = vpop.f32.mrf.mxu0
        %v3551 = vadd.f32 %v3532, %v3550
        %v3552 = vpop.f32.mrf.mxu0
        %v3553 = vadd.f32 %v3534, %v3552
        %3554 = vmatmul.bf16.gmra.mxu0 %v2871
        %v3555 = vpop.f32.mrf.mxu0
        %v3556 = vadd.f32 %v3537, %v3555
        %v3557 = vpop.f32.mrf.mxu0
        %v3558 = vadd.f32 %v3539, %v3557
        %3559 = vdwg.mxu0
        %3560 = vmatpush.bf16.msra.mxu0 %v3358
        %3561 = vmatpush.bf16.msra.mxu0 %v3354
        %3562 = vmatpush.bf16.msra.mxu0 %v3350
        %3563 = vmatpush.bf16.msra.mxu0 %v3346
        %3564 = vmatpush.bf16.msra.mxu0 %v3342
        %3565 = vmatpush.bf16.msra.mxu0 %v3338
        %3566 = vmatpush.bf16.msra.mxu0 %v3334
        %3567 = vmatpush.bf16.msra.mxu0 %v3330
        %3568 = vmatmul.bf16.gmra.mxu0 %v2868
        %v3569 = vpop.f32.mrf.mxu0
        %v3570 = vadd.f32 %v3551, %v3569
        %v3571 = vpop.f32.mrf.mxu0
        %v3572 = vadd.f32 %v3553, %v3571
        %3573 = vmatmul.bf16.gmra.mxu0 %v2872
        %v3574 = vpop.f32.mrf.mxu0
        %v3575 = vadd.f32 %v3556, %v3574
        %v3576 = vpop.f32.mrf.mxu0
        %v3577 = vadd.f32 %v3558, %v3576
        %3578 = vdwg.mxu0
        %3579 = vmatpush.bf16.msra.mxu0 %v3390
        %3580 = vmatpush.bf16.msra.mxu0 %v3386
        %3581 = vmatpush.bf16.msra.mxu0 %v3382
        %3582 = vmatpush.bf16.msra.mxu0 %v3378
        %3583 = vmatpush.bf16.msra.mxu0 %v3374
        %3584 = vmatpush.bf16.msra.mxu0 %v3370
        %3585 = vmatpush.bf16.msra.mxu0 %v3366
        %3586 = vmatpush.bf16.msra.mxu0 %v3362
        %3587 = vmatmul.bf16.gmra.mxu0 %v2869
        %v3588 = vpop.f32.mrf.mxu0
        %v3589 = vadd.f32 %v3570, %v3588
        %v3590 = vpop.f32.mrf.mxu0
        %v3591 = vadd.f32 %v3572, %v3590
        %3592 = vmatmul.bf16.gmra.mxu0 %v2873
        %v3593 = vpop.f32.mrf.mxu0
        %v3594 = vadd.f32 %v3575, %v3593
        %v3595 = vpop.f32.mrf.mxu0
        %v3596 = vadd.f32 %v3577, %v3595
        %3597 = vdwg.mxu0
        %3598 = vmatpush.bf16.msra.mxu0 %v3295
        %3599 = vmatpush.bf16.msra.mxu0 %v3291
        %3600 = vmatpush.bf16.msra.mxu0 %v3287
        %3601 = vmatpush.bf16.msra.mxu0 %v3283
        %3602 = vmatpush.bf16.msra.mxu0 %v3279
        %3603 = vmatpush.bf16.msra.mxu0 %v3275
        %3604 = vmatpush.bf16.msra.mxu0 %v3271
        %3605 = vmatpush.bf16.msra.mxu0 %v3267
        %3606 = vmatmul.bf16.gmra.mxu0 %v2866
        %v3607 = vpop.f32.mrf.mxu0
        %v3608 = vadd.f32 %v2835, %v3607
        %v3609 = vpop.f32.mrf.mxu0
        %v3610 = vadd.f32 %v2835, %v3609
        %3611 = vmatmul.bf16.gmra.mxu0 %v2870
        %v3612 = vpop.f32.mrf.mxu0
        %v3613 = vadd.f32 %v2835, %v3612
        %v3614 = vpop.f32.mrf.mxu0
        %v3615 = vadd.f32 %v2835, %v3614
        %3616 = vdwg.mxu0
        %3617 = vmatpush.bf16.msra.mxu0 %v3327
        %3618 = vmatpush.bf16.msra.mxu0 %v3323
        %3619 = vmatpush.bf16.msra.mxu0 %v3319
        %3620 = vmatpush.bf16.msra.mxu0 %v3315
        %3621 = vmatpush.bf16.msra.mxu0 %v3311
        %3622 = vmatpush.bf16.msra.mxu0 %v3307
        %3623 = vmatpush.bf16.msra.mxu0 %v3303
        %3624 = vmatpush.bf16.msra.mxu0 %v3299
        %3625 = vmatmul.bf16.gmra.mxu0 %v2867
        %v3626 = vpop.f32.mrf.mxu0
        %v3627 = vadd.f32 %v3608, %v3626
        %v3628 = vpop.f32.mrf.mxu0
        %v3629 = vadd.f32 %v3610, %v3628
        %3630 = vmatmul.bf16.gmra.mxu0 %v2871
        %v3631 = vpop.f32.mrf.mxu0
        %v3632 = vadd.f32 %v3613, %v3631
        %v3633 = vpop.f32.mrf.mxu0
        %v3634 = vadd.f32 %v3615, %v3633
        %3635 = vdwg.mxu0
        %3636 = vmatpush.bf16.msra.mxu0 %v3359
        %3637 = vmatpush.bf16.msra.mxu0 %v3355
        %3638 = vmatpush.bf16.msra.mxu0 %v3351
        %3639 = vmatpush.bf16.msra.mxu0 %v3347
        %3640 = vmatpush.bf16.msra.mxu0 %v3343
        %3641 = vmatpush.bf16.msra.mxu0 %v3339
        %3642 = vmatpush.bf16.msra.mxu0 %v3335
        %3643 = vmatpush.bf16.msra.mxu0 %v3331
        %3644 = vmatmul.bf16.gmra.mxu0 %v2868
        %v3645 = vpop.f32.mrf.mxu0
        %v3646 = vadd.f32 %v3627, %v3645
        %v3647 = vpop.f32.mrf.mxu0
        %v3648 = vadd.f32 %v3629, %v3647
        %3649 = vmatmul.bf16.gmra.mxu0 %v2872
        %v3650 = vpop.f32.mrf.mxu0
        %v3651 = vadd.f32 %v3632, %v3650
        %v3652 = vpop.f32.mrf.mxu0
        %v3653 = vadd.f32 %v3634, %v3652
        %3654 = vdwg.mxu0
        %3655 = vmatpush.bf16.msra.mxu0 %v3391
        %3656 = vmatpush.bf16.msra.mxu0 %v3387
        %3657 = vmatpush.bf16.msra.mxu0 %v3383
        %3658 = vmatpush.bf16.msra.mxu0 %v3379
        %3659 = vmatpush.bf16.msra.mxu0 %v3375
        %3660 = vmatpush.bf16.msra.mxu0 %v3371
        %3661 = vmatpush.bf16.msra.mxu0 %v3367
        %3662 = vmatpush.bf16.msra.mxu0 %v3363
        %3663 = vmatmul.bf16.gmra.mxu0 %v2869
        %v3664 = vpop.f32.mrf.mxu0
        %v3665 = vadd.f32 %v3646, %v3664
        %v3666 = vpop.f32.mrf.mxu0
        %v3667 = vadd.f32 %v3648, %v3666
        %3668 = vmatmul.bf16.gmra.mxu0 %v2873
        %v3669 = vpop.f32.mrf.mxu0
        %v3670 = vadd.f32 %v3651, %v3669
        %v3671 = vpop.f32.mrf.mxu0
        %v3672 = vadd.f32 %v3653, %v3671
        %3673 = vdwg.mxu0
        %3674 = vmatpush.bf16.msra.mxu0 %v3296
        %3675 = vmatpush.bf16.msra.mxu0 %v3292
        %3676 = vmatpush.bf16.msra.mxu0 %v3288
        %3677 = vmatpush.bf16.msra.mxu0 %v3284
        %3678 = vmatpush.bf16.msra.mxu0 %v3280
        %3679 = vmatpush.bf16.msra.mxu0 %v3276
        %3680 = vmatpush.bf16.msra.mxu0 %v3272
        %3681 = vmatpush.bf16.msra.mxu0 %v3268
        %3682 = vmatmul.bf16.gmra.mxu0 %v2866
        %v3683 = vpop.f32.mrf.mxu0
        %v3684 = vadd.f32 %v2836, %v3683
        %v3685 = vpop.f32.mrf.mxu0
        %v3686 = vadd.f32 %v2836, %v3685
        %3687 = vmatmul.bf16.gmra.mxu0 %v2870
        %v3688 = vpop.f32.mrf.mxu0
        %v3689 = vadd.f32 %v2836, %v3688
        %v3690 = vpop.f32.mrf.mxu0
        %v3691 = vadd.f32 %v2836, %v3690
        %3692 = vdwg.mxu0
        %3693 = vmatpush.bf16.msra.mxu0 %v3328
        %3694 = vmatpush.bf16.msra.mxu0 %v3324
        %3695 = vmatpush.bf16.msra.mxu0 %v3320
        %3696 = vmatpush.bf16.msra.mxu0 %v3316
        %3697 = vmatpush.bf16.msra.mxu0 %v3312
        %3698 = vmatpush.bf16.msra.mxu0 %v3308
        %3699 = vmatpush.bf16.msra.mxu0 %v3304
        %3700 = vmatpush.bf16.msra.mxu0 %v3300
        %3701 = vmatmul.bf16.gmra.mxu0 %v2867
        %v3702 = vpop.f32.mrf.mxu0
        %v3703 = vadd.f32 %v3684, %v3702
        %v3704 = vpop.f32.mrf.mxu0
        %v3705 = vadd.f32 %v3686, %v3704
        %3706 = vmatmul.bf16.gmra.mxu0 %v2871
        %v3707 = vpop.f32.mrf.mxu0
        %v3708 = vadd.f32 %v3689, %v3707
        %v3709 = vpop.f32.mrf.mxu0
        %v3710 = vadd.f32 %v3691, %v3709
        %3711 = vdwg.mxu0
        %3712 = vmatpush.bf16.msra.mxu0 %v3360
        %3713 = vmatpush.bf16.msra.mxu0 %v3356
        %3714 = vmatpush.bf16.msra.mxu0 %v3352
        %3715 = vmatpush.bf16.msra.mxu0 %v3348
        %3716 = vmatpush.bf16.msra.mxu0 %v3344
        %3717 = vmatpush.bf16.msra.mxu0 %v3340
        %3718 = vmatpush.bf16.msra.mxu0 %v3336
        %3719 = vmatpush.bf16.msra.mxu0 %v3332
        %3720 = vmatmul.bf16.gmra.mxu0 %v2868
        %v3721 = vpop.f32.mrf.mxu0
        %v3722 = vadd.f32 %v3703, %v3721
        %v3723 = vpop.f32.mrf.mxu0
        %v3724 = vadd.f32 %v3705, %v3723
        %3725 = vmatmul.bf16.gmra.mxu0 %v2872
        %v3726 = vpop.f32.mrf.mxu0
        %v3727 = vadd.f32 %v3708, %v3726
        %v3728 = vpop.f32.mrf.mxu0
        %v3729 = vadd.f32 %v3710, %v3728
        %3730 = vdwg.mxu0
        %3731 = vmatpush.bf16.msra.mxu0 %v3392
        %3732 = vmatpush.bf16.msra.mxu0 %v3388
        %3733 = vmatpush.bf16.msra.mxu0 %v3384
        %3734 = vmatpush.bf16.msra.mxu0 %v3380
        %3735 = vmatpush.bf16.msra.mxu0 %v3376
        %3736 = vmatpush.bf16.msra.mxu0 %v3372
        %3737 = vmatpush.bf16.msra.mxu0 %v3368
        %3738 = vmatpush.bf16.msra.mxu0 %v3364
        %3739 = vmatmul.bf16.gmra.mxu0 %v2869
        %v3740 = vpop.f32.mrf.mxu0
        %v3741 = vadd.f32 %v3722, %v3740
        %v3742 = vpop.f32.mrf.mxu0
        %v3743 = vadd.f32 %v3724, %v3742
        %3744 = vmatmul.bf16.gmra.mxu0 %v2873
        %v3745 = vpop.f32.mrf.mxu0
        %v3746 = vadd.f32 %v3727, %v3745
        %v3747 = vpop.f32.mrf.mxu0
        %v3748 = vadd.f32 %v3729, %v3747
        %3749 = vdwg.mxu0
        %3750 = vmatpush.bf16.msra.mxu0 %v3297
        %3751 = vmatpush.bf16.msra.mxu0 %v3293
        %3752 = vmatpush.bf16.msra.mxu0 %v3289
        %3753 = vmatpush.bf16.msra.mxu0 %v3285
        %3754 = vmatpush.bf16.msra.mxu0 %v3281
        %3755 = vmatpush.bf16.msra.mxu0 %v3277
        %3756 = vmatpush.bf16.msra.mxu0 %v3273
        %3757 = vmatpush.bf16.msra.mxu0 %v3269
        %3758 = vmatmul.bf16.gmra.mxu0 %v2866
        %v3759 = vpop.f32.mrf.mxu0
        %v3760 = vadd.f32 %v2837, %v3759
        %v3761 = vpop.f32.mrf.mxu0
        %v3762 = vadd.f32 %v2837, %v3761
        %3763 = vmatmul.bf16.gmra.mxu0 %v2870
        %v3764 = vpop.f32.mrf.mxu0
        %v3765 = vadd.f32 %v2837, %v3764
        %v3766 = vpop.f32.mrf.mxu0
        %v3767 = vadd.f32 %v2837, %v3766
        %3768 = vdwg.mxu0
        %3769 = vmatpush.bf16.msra.mxu0 %v3329
        %3770 = vmatpush.bf16.msra.mxu0 %v3325
        %3771 = vmatpush.bf16.msra.mxu0 %v3321
        %3772 = vmatpush.bf16.msra.mxu0 %v3317
        %3773 = vmatpush.bf16.msra.mxu0 %v3313
        %3774 = vmatpush.bf16.msra.mxu0 %v3309
        %3775 = vmatpush.bf16.msra.mxu0 %v3305
        %3776 = vmatpush.bf16.msra.mxu0 %v3301
        %3777 = vmatmul.bf16.gmra.mxu0 %v2867
        %v3778 = vpop.f32.mrf.mxu0
        %v3779 = vadd.f32 %v3760, %v3778
        %v3780 = vpop.f32.mrf.mxu0
        %v3781 = vadd.f32 %v3762, %v3780
        %3782 = vmatmul.bf16.gmra.mxu0 %v2871
        %v3783 = vpop.f32.mrf.mxu0
        %v3784 = vadd.f32 %v3765, %v3783
        %v3785 = vpop.f32.mrf.mxu0
        %v3786 = vadd.f32 %v3767, %v3785
        %3787 = vdwg.mxu0
        %3788 = vmatpush.bf16.msra.mxu0 %v3361
        %3789 = vmatpush.bf16.msra.mxu0 %v3357
        %3790 = vmatpush.bf16.msra.mxu0 %v3353
        %3791 = vmatpush.bf16.msra.mxu0 %v3349
        %3792 = vmatpush.bf16.msra.mxu0 %v3345
        %3793 = vmatpush.bf16.msra.mxu0 %v3341
        %3794 = vmatpush.bf16.msra.mxu0 %v3337
        %3795 = vmatpush.bf16.msra.mxu0 %v3333
        %3796 = vmatmul.bf16.gmra.mxu0 %v2868
        %v3797 = vpop.f32.mrf.mxu0
        %v3798 = vadd.f32 %v3779, %v3797
        %v3799 = vpop.f32.mrf.mxu0
        %v3800 = vadd.f32 %v3781, %v3799
        %3801 = vmatmul.bf16.gmra.mxu0 %v2872
        %v3802 = vpop.f32.mrf.mxu0
        %v3803 = vadd.f32 %v3784, %v3802
        %v3804 = vpop.f32.mrf.mxu0
        %v3805 = vadd.f32 %v3786, %v3804
        %3806 = vdwg.mxu0
        %3807 = vmatpush.bf16.msra.mxu0 %v3393
        %3808 = vmatpush.bf16.msra.mxu0 %v3389
        %3809 = vmatpush.bf16.msra.mxu0 %v3385
        %3810 = vmatpush.bf16.msra.mxu0 %v3381
        %3811 = vmatpush.bf16.msra.mxu0 %v3377
        %3812 = vmatpush.bf16.msra.mxu0 %v3373
        %3813 = vmatpush.bf16.msra.mxu0 %v3369
        %3814 = vmatpush.bf16.msra.mxu0 %v3365
        %3815 = vmatmul.bf16.gmra.mxu0 %v2869
        %v3816 = vpop.f32.mrf.mxu0
        %v3817 = vadd.f32 %v3798, %v3816
        %v3818 = vpop.f32.mrf.mxu0
        %v3819 = vadd.f32 %v3800, %v3818
        %3820 = vmatmul.bf16.gmra.mxu0 %v2873
        %v3821 = vpop.f32.mrf.mxu0
        %v3822 = vadd.f32 %v3803, %v3821
        %v3823 = vpop.f32.mrf.mxu0
        %v3824 = vadd.f32 %v3805, %v3823
        %3825 = vdwg.mxu0
        %3826 = vst [vmem:[%s414] sm:$0xff] %v3589
        %3827 = vst [vmem:[%s414 + $0x8] sm:$0xff] %v3665
        %3828 = vst [vmem:[%s414 + $0x10] sm:$0xff] %v3741
        %3829 = vst [vmem:[%s414 + $0x18] sm:$0xff] %v3817
        %3830 = vst [vmem:[%s414 + $0x20] sm:$0xff] %v3591
        %3831 = vst [vmem:[%s414 + $0x28] sm:$0xff] %v3667
        %3832 = vst [vmem:[%s414 + $0x30] sm:$0xff] %v3743
        %3833 = vst [vmem:[%s414 + $0x38] sm:$0xff] %v3819
        %3834 = vst [vmem:[%s414 + $0x40] sm:$0xff] %v3594
        %3835 = vst [vmem:[%s414 + $0x48] sm:$0xff] %v3670
        %3836 = vst [vmem:[%s414 + $0x50] sm:$0xff] %v3746
        %3837 = vst [vmem:[%s414 + $0x58] sm:$0xff] %v3822
        %3838 = vst [vmem:[%s414 + $0x60] sm:$0xff] %v3596
        %3839 = vst [vmem:[%s414 + $0x68] sm:$0xff] %v3672
        %3840 = vst [vmem:[%s414 + $0x70] sm:$0xff] %v3748
        %3841 = vst [vmem:[%s414 + $0x78] sm:$0xff] %v3824
        %s3842 = sand.u32 %s211, 1
        %s3843 = scalar_lea.sflag [#allocation5], %s3842
        %s3844 = sand.u32 %s211, 1
        %s3845 = smul.addr %s3844, 128
        %s3846 = scalar_lea.vmem [#allocation14], %s3845
        // Predicated region
        $region77: #{tpu_custom_call.1} parent=47 // pred_check
          %p3847 = pneg %p221
        $region78: #{tpu_custom_call.1} parent=47 // pred_check_branch
          %3849 = sbr.rel (%p3847) target = $region80
        $region79: #{tpu_custom_call.1} parent=47 // pred_region
          %s3850 = smul.u32 4, %s31
          %s3851 = smul.u32 4, %s32
          %3853 = vsyncadd %s3843, 0
          %s3854 = smul.addr %s3850, 4
          %s3855 = sadd.s32 %s3851, %s3854
          %s3856 = smul.addr %s3855, 8
          %s3857 = scalar_lea.hbm %s7, %s3856
          %s3858 = sshll.u32 %s3846, 4
          %s3859 = int_to_ptr.vmem [resolvable:$true] %s3858
          %s3860 = sshll.u32 %s3857, 4
          %s3861 = int_to_ptr.hbm [resolvable:$true] %s3860
          %3866 = dma.vmem_to_hbm [thread:$0]  %s3859, 2048, %s3861, %s3843, 512, 512, 32
        $region80: #{tpu_custom_call.1} parent=47 // pred_fallthru
          _
      $region48: #{tpu_custom_call.1} parent=5 // pred_fallthru
        _
      %p3867 = scmp.le.s32.totalorder 2, %s22
      // Predicated region
      $region81: #{tpu_custom_call.1} parent=5 // pred_check
        %p3868 = pneg %p3867
      $region82: #{tpu_custom_call.1} parent=5 // pred_check_branch
        %3870 = sbr.rel (%p3868) target = $region84
      $region83: #{tpu_custom_call.1} parent=5 // pred_region
        %s3871 = ssub.s32 %s22, 2
        // Predicated region
        $region85: #{tpu_custom_call.1} parent=83 // pred_check
          %p3872 = pneg %p227
        $region86: #{tpu_custom_call.1} parent=83 // pred_check_branch
          %3874 = sbr.rel (%p3872) target = $region88
        $region87: #{tpu_custom_call.1} parent=83 // pred_region
          %s3875 = sand.u32 %s212, 1
          %s3876 = scalar_lea.sflag [#allocation5], %s3875
          %s3877 = sand.u32 %s212, 1
          %s3878 = smul.addr %s3877, 128
          %s3879 = scalar_lea.vmem [#allocation14], %s3878
          %3881 = dma.done %s3876, 2048
        $region88: #{tpu_custom_call.1} parent=83 // pred_fallthru
          _
      $region84: #{tpu_custom_call.1} parent=5 // pred_fallthru
        _
    $region6: #{tpu_custom_call.1} parent=1 // loop_footer
      %s26 = sadd.s32 1, %s22
    $region7: #{tpu_custom_call.1} parent=1 // loop_footer_branch
      %21 = sbr.rel target = $region3
    $region8: #{tpu_custom_call.1} parent=1 // loop_exit
      _
    %3882 = vsyncpa [#allocation4], 1
    %s3883 = scalar_lea.sflag [#allocation4], 1
    %3884 = vsyncpa %s3883, 1
    %3885 = vsyncpa [#allocation7], 1
    %3886 = vsyncpa [#allocation10], 1
    %3887 = vsyncpa [#allocation13], 1
    %3888 = vsyncpa [#allocation5], 1
    %s3889 = scalar_lea.sflag [#allocation5], 1
    %3890 = vsyncpa %s3889, 1

</llo_original>
